<compile_context>
chip_gen: v6e
topology: v6e:2x2x1
jax: 0.10.0
libtpu: 0.0.40
codegen_flags: <defaults>
</compile_context>

<pallas_src>
import functools
import math

import jax
import jax.numpy as jnp
from jax.experimental import pallas as pl
from jax.experimental.pallas import tpu as pltpu

_LN_EPS = 1e-5
_MASK_BIAS = -1e30  # finite "minus infinity": exp() stays NaN-free even on fully masked rows


# ---------------------------------------------------------------------------
# Kernel
# ---------------------------------------------------------------------------
def _decoder_layer_kernel(
    x_ref, enc_ref, sbias_ref, cbias_ref,
    wqkv_s_ref, bqkv_s_ref, wo_s_ref, bo_s_ref,
    wq_c_ref, bq_c_ref, wkv_c_ref, bkv_c_ref, wo_c_ref, bo_c_ref,
    g1_ref, b1_ref, g2_ref, b2_ref, g3_ref, b3_ref,
    w1_ref, bf1_ref, w2_ref, bf2_ref,
    y_ref, *attn_refs, n_heads, output_attn):
  """Per-batch fused decoder layer.

  x_ref: (L, D) bf16, enc_ref: (S, D) bf16.
  Fused projection weights are 2-D bf16 (K = D contraction, lane-dense N);
  biases / LN params are f32.  Outputs: y_ref (L, D) f32 and, when
  output_attn, sattn_ref (H, L, L) bf16 and cattn_ref (H, L, S) bf16.
  """
  H = n_heads
  f32 = jnp.float32
  bf16 = jnp.bfloat16
  sattn_ref, cattn_ref = attn_refs if output_attn else (None, None)

  def layer_norm(v, g, b):
    mu = jnp.mean(v, axis=-1, keepdims=True)
    c = v - mu
    var = jnp.mean(c * c, axis=-1, keepdims=True)
    return c * jax.lax.rsqrt(var + _LN_EPS) * g + b

  def linear(a16, w_ref, b_ref):
    # a16: (R, K) bf16, w_ref: (K, N) bf16, b_ref: (1, N) f32 -> (R, N) f32
    return jnp.dot(a16, w_ref[...], preferred_element_type=f32) + b_ref[...]

  def attend(q2, k2, v2, bias, wo_ref, bo_ref, attn_ref):
    # q2: (L, D) f32 (softmax scale already folded into Wq/bq)
    # k2/v2: (S, D) f32, bias: (L, S) f32 additive mask, wo_ref: (D, D) bf16.
    E = q2.shape[1] // H
    q16 = q2.astype(bf16)
    k16 = k2.astype(bf16)
    v16 = v2.astype(bf16)
    ctx_heads = []
    for h in range(H):                      # static head loop: layout split only;
      sl = slice(h * E, (h + 1) * E)        # the projections above are full-width.
      s = jax.lax.dot_general(              # (L, E) x (S, E)^T -> (L, S)
          q16[:, sl], k16[:, sl],
          dimension_numbers=(((1,), (1,)), ((), ())),
          preferred_element_type=f32)
      s = s + bias
      m = jnp.max(s, axis=-1, keepdims=True)
      e = jnp.exp(s - m)
      w = e * pl.reciprocal(jnp.sum(e, axis=-1, keepdims=True), approx=True)
      if attn_ref is not None:
        attn_ref[h] = w.astype(bf16)        # bf16 probability writeback
      # TODO(synk): nn.Dropout on the attention probabilities is omitted (eval identity).
      ctx_heads.append(jnp.dot(w.astype(bf16), v16[:, sl],
                               preferred_element_type=f32))       # (L, E)
    ctx = jnp.concatenate(ctx_heads, axis=1).astype(bf16)         # (L, H*E) lane-dense
    # Single fused output projection with full contraction depth K = D.
    return jnp.dot(ctx, wo_ref[...], preferred_element_type=f32) + bo_ref[...]

  x16 = x_ref[...]            # (L, D) bf16
  enc16 = enc_ref[...]        # (S, D) bf16
  D = x16.shape[1]
  x_f32 = x16.astype(f32)

  # --- self attention: one wide fused QKV matmul (L, D) @ (D, 3D) ---
  qkv = linear(x16, wqkv_s_ref, bqkv_s_ref)                       # (L, 3D) f32
  self_out = attend(qkv[:, :D], qkv[:, D:2 * D], qkv[:, 2 * D:],
                    sbias_ref[...].astype(f32),
                    wo_s_ref, bo_s_ref, sattn_ref)
  # TODO(synk): residual-branch nn.Dropout is omitted (eval-mode identity).
  h1 = layer_norm(x_f32 + self_out, g1_ref[...], b1_ref[...])

  # --- cross attention: wide Q matmul + wide fused KV matmul of enc memory ---
  q_c = linear(h1.astype(bf16), wq_c_ref, bq_c_ref)               # (L, D)  f32
  kv_c = linear(enc16, wkv_c_ref, bkv_c_ref)                      # (S, 2D) f32
  cross_out = attend(q_c, kv_c[:, :D], kv_c[:, D:],
                     cbias_ref[...].astype(f32),
                     wo_c_ref, bo_c_ref, cattn_ref)
  h2 = layer_norm(h1 + cross_out, g2_ref[...], b2_ref[...])

  # --- position-wise FFN (1x1 convs == per-row linears) ---
  f = linear(h2.astype(bf16), w1_ref, bf1_ref)                    # (L, d_ff) f32
  # TODO(synk): tanh-approximate GELU is used in-kernel (F.gelu default is exact erf).
  f = 0.5 * f * (1.0 + jnp.tanh(0.7978845608028654 * (f + 0.044715 * f * f * f)))
  ffn = linear(f.astype(bf16), w2_ref, bf2_ref)                   # (L, D) f32

  y_ref[...] = layer_norm(h2 + ffn, g3_ref[...], b3_ref[...])


# ---------------------------------------------------------------------------
# Wrapper
# ---------------------------------------------------------------------------
def decoder_layer_pallas(x, enc_out, params, n_heads,
                         self_attn_mask=None, cross_attn_mask=None,
                         output_attn=True):
  """x: (B, L, D), enc_out: (B, S, D).

  Returns (y (B, L, D) f32, (self_w, cross_w)) where the attention weights are
  (B, H, L, L) / (B, H, L, S) bf16, or (None, None) when output_attn=False.
  """
  B, L, D = x.shape
  S = enc_out.shape[1]
  H = n_heads
  d_ff = params["ffn"]["w1"].shape[0]
  scale = D ** (-0.5)            # matches the ported module: d_model ** -0.5

  bf16 = jnp.bfloat16
  f32 = jnp.float32
  sa, ca, ffn = params["self_attn"], params["cross_attn"], params["ffn"]

  # self-attn: fused QKV weight (D, 3D); softmax scale folded into the Q slice.
  wqkv_s = jnp.concatenate(
      [(sa["wq"] * scale).T, sa["wk"].T, sa["wv"].T], axis=1).astype(bf16)
  bqkv_s = jnp.concatenate(
      [sa["bq"] * scale, sa["bk"], sa["bv"]]).reshape(1, 3 * D).astype(f32)
  wo_s = sa["wo"].T.astype(bf16)                   # (D, D)
  bo_s = sa["bo"].reshape(1, D).astype(f32)

  # cross-attn: separate Q (decoder stream), fused KV (encoder memory).
  wq_c = (ca["wq"] * scale).T.astype(bf16)         # (D, D)
  bq_c = (ca["bq"] * scale).reshape(1, D).astype(f32)
  wkv_c = jnp.concatenate([ca["wk"].T, ca["wv"].T], axis=1).astype(bf16)  # (D, 2D)
  bkv_c = jnp.concatenate([ca["bk"], ca["bv"]]).reshape(1, 2 * D).astype(f32)
  wo_c = ca["wo"].T.astype(bf16)                   # (D, D)
  bo_c = ca["bo"].reshape(1, D).astype(f32)

  ln = lambda p: (p["gamma"].reshape(1, D).astype(f32),
                  p["beta"].reshape(1, D).astype(f32))
  g1, b1 = ln(params["ln1"])
  g2, b2 = ln(params["ln2"])
  g3, b3 = ln(params["ln3"])

  w1 = ffn["w1"].T.astype(bf16)                    # (D, d_ff)
  bf1 = ffn["b1"].reshape(1, d_ff).astype(f32)
  w2 = ffn["w2"].T.astype(bf16)                    # (d_ff, D)
  bf2 = ffn["b2"].reshape(1, D).astype(f32)

  def mask_bias(mask, rows, cols):
    if mask is None:
      return jnp.zeros((rows, cols), bf16)
    return jnp.where(mask, _MASK_BIAS, 0.0).astype(bf16)

  sbias = mask_bias(self_attn_mask, L, L)
  cbias = mask_bias(cross_attn_mask, L, S)

  x16 = x.astype(bf16)
  enc16 = enc_out.astype(bf16)

  # --- explicit VMEM budget (bytes) -> vmem_limit_bytes with headroom -------
  consts = (sbias, cbias, wqkv_s, bqkv_s, wo_s, bo_s, wq_c, bq_c,
            wkv_c, bkv_c, wo_c, bo_c, g1, b1, g2, b2, g3, b3,
            w1, bf1, w2, bf2)
  const_bytes = sum(int(a.size) * a.dtype.itemsize for a in consts)
  attn_out_bytes = (H * L * L + H * L * S) * 2 if output_attn else 0
  stream_bytes = 2 * (L * D * 2 + S * D * 2 + L * D * 4 + attn_out_bytes)
  interm_bytes = 4 * (H * L * L + H * L * S + L * d_ff + 8 * L * D + 2 * S * D)
  budget = 2 * const_bytes + stream_bytes + interm_bytes + (2 << 20)
  try:
    phys_vmem = int(pltpu.get_tpu_info().vmem_capacity_bytes)
  except Exception:                      # conservative default (v7x per-core VMEM)
    phys_vmem = 64 << 20
  vmem_limit = int(min(max(budget, 32 << 20), int(phys_vmem * 0.9)))

  kernel = functools.partial(_decoder_layer_kernel,
                             n_heads=H, output_attn=output_attn)

  batch_blk = lambda r, c: pl.BlockSpec((None, r, c), lambda b: (b, 0, 0))

  def run(single_buffer_consts):
    def const(shape):
      idx = lambda b, _n=len(shape): (0,) * _n
      if single_buffer_consts:
        # Constant-index operands: one VMEM copy instead of the default
        # double-buffering (the weights dominate VMEM at real model sizes).
        return pl.BlockSpec(shape, idx, pipeline_mode=pl.Buffered(buffer_count=1))
      return pl.BlockSpec(shape, idx)

    out_shape = [jax.ShapeDtypeStruct((B, L, D), f32)]
    out_specs = [batch_blk(L, D)]
    if output_attn:
      out_shape += [jax.ShapeDtypeStruct((B, H, L, L), bf16),
                    jax.ShapeDtypeStruct((B, H, L, S), bf16)]
      out_specs += [pl.BlockSpec((None, H, L, L), lambda b: (b, 0, 0, 0)),
                    pl.BlockSpec((None, H, L, S), lambda b: (b, 0, 0, 0))]

    return pl.pallas_call(
        kernel,
        out_shape=tuple(out_shape),
        grid=(B,),
        in_specs=[
            batch_blk(L, D),                                 # x
            batch_blk(S, D),                                 # enc_out
            const((L, L)), const((L, S)),                    # mask biases (bf16)
            const((D, 3 * D)), const((1, 3 * D)),            # self fused QKV
            const((D, D)), const((1, D)),                    # self out proj
            const((D, D)), const((1, D)),                    # cross Q
            const((D, 2 * D)), const((1, 2 * D)),            # cross fused KV
            const((D, D)), const((1, D)),                    # cross out proj
            const((1, D)), const((1, D)),                    # LayerNorm 1
            const((1, D)), const((1, D)),                    # LayerNorm 2
            const((1, D)), const((1, D)),                    # LayerNorm 3
            const((D, d_ff)), const((1, d_ff)),              # FFN conv1
            const((d_ff, D)), const((1, D)),                 # FFN conv2
        ],
        out_specs=tuple(out_specs),
        compiler_params=pltpu.CompilerParams(
            dimension_semantics=("parallel",),
            vmem_limit_bytes=vmem_limit),
    )(x16, enc16, sbias, cbias,
      wqkv_s, bqkv_s, wo_s, bo_s,
      wq_c, bq_c, wkv_c, bkv_c, wo_c, bo_c,
      g1, b1, g2, b2, g3, b3,
      w1, bf1, w2, bf2)

  try:
    outs = run(True)
  except Exception:
    # TODO(synk): pl.Buffered(1) not accepted by this jax build; fall back to
    # default double-buffering of the constant-index operands.
    outs = run(False)

  if output_attn:
    y, sattn, cattn = outs
    return y, (sattn, cattn)
  (y,) = outs
  return y, (None, None)


# ---------------------------------------------------------------------------
# Pure-JAX reference (mirrors the PyTorch module, eval mode, f32)
# ---------------------------------------------------------------------------
def _layer_norm_ref(v, gamma, beta):
  mu = jnp.mean(v, axis=-1, keepdims=True)
  var = jnp.mean((v - mu) ** 2, axis=-1, keepdims=True)
  return (v - mu) / jnp.sqrt(var + _LN_EPS) * gamma + beta


def _mha_ref(q, k, v, p, n_heads, mask):
  L, B, D = q.shape
  S = k.shape[0]
  E = D // n_heads
  scale = D ** (-0.5)
  Q = q @ p["wq"].T + p["bq"]
  K = k @ p["wk"].T + p["bk"]
  V = v @ p["wv"].T + p["bv"]
  Qh = Q.reshape(L, B, n_heads, E)
  Kh = K.reshape(S, B, n_heads, E)
  Vh = V.reshape(S, B, n_heads, E)
  s = jnp.einsum("ibnd,jbnd->ijbn", Qh, Kh) * scale
  if mask is not None:
    s = jnp.where(mask[:, :, None, None], -jnp.inf, s)
  w = jax.nn.softmax(s, axis=1)
  out = jnp.einsum("ijbn,jbnd->ibnd", w, Vh).reshape(L, B, -1) @ p["wo"].T + p["bo"]
  return out, jnp.transpose(w, (2, 3, 0, 1))


def decoder_layer_ref(x, enc_out, params, n_heads,
                      self_attn_mask=None, cross_attn_mask=None):
  xt = jnp.transpose(x, (1, 0, 2))
  out, sw = _mha_ref(xt, xt, xt, params["self_attn"], n_heads, self_attn_mask)
  xt = _layer_norm_ref(xt + out, params["ln1"]["gamma"], params["ln1"]["beta"])
  et = jnp.transpose(enc_out, (1, 0, 2))
  out, cw = _mha_ref(xt, et, et, params["cross_attn"], n_heads, cross_attn_mask)
  xt = _layer_norm_ref(xt + out, params["ln2"]["gamma"], params["ln2"]["beta"])
  xb = jnp.transpose(xt, (1, 0, 2))
  f = jax.nn.gelu(xb @ params["ffn"]["w1"].T + params["ffn"]["b1"], approximate=False)
  out = f @ params["ffn"]["w2"].T + params["ffn"]["b2"]
  xb = _layer_norm_ref(xb + out, params["ln3"]["gamma"], params["ln3"]["beta"])
  return xb, (sw, cw)


# ---------------------------------------------------------------------------
# Parameter init (torch-style layouts)
# ---------------------------------------------------------------------------
def _init_mha(key, d_model):
  ks = jax.random.split(key, 8)
  b = 1.0 / math.sqrt(d_model)
  u = lambda k, shape: jax.random.uniform(k, shape, jnp.float32, -b, b)
  return {
      "wq": u(ks[0], (d_model, d_model)), "bq": u(ks[1], (d_model,)),
      "wk": u(ks[2], (d_model, d_model)), "bk": u(ks[3], (d_model,)),
      "wv": u(ks[4], (d_model, d_model)), "bv": u(ks[5], (d_model,)),
      "wo": u(ks[6], (d_model, d_model)), "bo": u(ks[7], (d_model,)),
  }


def _init_ln(key, d_model):
  k1, k2 = jax.random.split(key)
  return {"gamma": 1.0 + 0.1 * jax.random.normal(k1, (d_model,), jnp.float32),
          "beta": 0.1 * jax.random.normal(k2, (d_model,), jnp.float32)}


def _init_ffn(key, d_model, d_ff):
  k1, k2, k3, k4 = jax.random.split(key, 4)
  b1 = 1.0 / math.sqrt(d_model)
  b2 = 1.0 / math.sqrt(d_ff)
  return {
      "w1": jax.random.uniform(k1, (d_ff, d_model), jnp.float32, -b1, b1),
      "b1": jax.random.uniform(k2, (d_ff,), jnp.float32, -b1, b1),
      "w2": jax.random.uniform(k3, (d_model, d_ff), jnp.float32, -b2, b2),
      "b2": jax.random.uniform(k4, (d_model,), jnp.float32, -b2, b2),
  }


def init_decoder_params(key, d_model, n_heads, d_ff):
  ks = jax.random.split(key, 6)
  return {
      "self_attn": _init_mha(ks[0], d_model),
      "cross_attn": _init_mha(ks[1], d_model),
      "ffn": _init_ffn(ks[2], d_model, d_ff),
      "ln1": _init_ln(ks[3], d_model),
      "ln2": _init_ln(ks[4], d_model),
      "ln3": _init_ln(ks[5], d_model),
  }


if __name__ == "__main__":
  B, L, S, D, H, F = 2, 8, 16, 32, 4, 64

  root = jax.random.PRNGKey(0)
  kp, kx, ke = jax.random.split(root, 3)
  params = init_decoder_params(kp, D, H, F)
  x = jax.random.normal(kx, (B, L, D), jnp.float32)
  enc = jax.random.normal(ke, (B, S, D), jnp.float32)

  i_idx = jnp.arange(L)[:, None]
  self_mask = jnp.arange(L)[None, :] > i_idx               # causal (L, L)
  cross_mask = jnp.arange(S)[None, :] > (2 * i_idx + 1)    # ragged (L, S), no empty rows

  y_ref = None
  for sm, cm in ((None, None), (self_mask, cross_mask)):
    y, (sw, cw) = decoder_layer_pallas(x, enc, params, H,
                                       self_attn_mask=sm, cross_attn_mask=cm,
                                       output_attn=True)
    y = jax.block_until_ready(y)
    y_ref, (sw_ref, cw_ref) = decoder_layer_ref(x, enc, params, H,
                                                self_attn_mask=sm, cross_attn_mask=cm)
    assert jnp.allclose(y, y_ref, rtol=5e-2, atol=5e-2)
    assert jnp.allclose(sw.astype(jnp.float32), sw_ref, rtol=5e-2, atol=5e-2)
    assert jnp.allclose(cw.astype(jnp.float32), cw_ref, rtol=5e-2, atol=5e-2)

  # need_weights=False path: attention-probability outputs/stores skipped entirely.
  y2, (sw2, cw2) = decoder_layer_pallas(x, enc, params, H,
                                        self_attn_mask=self_mask,
                                        cross_attn_mask=cross_mask,
                                        output_attn=False)
  y2 = jax.block_until_ready(y2)
  assert sw2 is None and cw2 is None
  assert jnp.allclose(y2, y_ref, rtol=5e-2, atol=5e-2)

  print("KERNEL_OK")
</pallas_src>

<mosaic_0001>
module attributes {stable_mosaic.version = 11 : i64} {
  func.func @_decoder_layer_kernel(%arg0: i32, %arg1: memref<1x8x32xbf16, #tpu.memory_space<vmem>>, %arg2: memref<1x16x32xbf16, #tpu.memory_space<vmem>>, %arg3: memref<8x8xbf16, #tpu.memory_space<vmem>>, %arg4: memref<8x16xbf16, #tpu.memory_space<vmem>>, %arg5: memref<32x96xbf16, #tpu.memory_space<vmem>>, %arg6: memref<1x96xf32, #tpu.memory_space<vmem>>, %arg7: memref<32x32xbf16, #tpu.memory_space<vmem>>, %arg8: memref<1x32xf32, #tpu.memory_space<vmem>>, %arg9: memref<32x32xbf16, #tpu.memory_space<vmem>>, %arg10: memref<1x32xf32, #tpu.memory_space<vmem>>, %arg11: memref<32x64xbf16, #tpu.memory_space<vmem>>, %arg12: memref<1x64xf32, #tpu.memory_space<vmem>>, %arg13: memref<32x32xbf16, #tpu.memory_space<vmem>>, %arg14: memref<1x32xf32, #tpu.memory_space<vmem>>, %arg15: memref<1x32xf32, #tpu.memory_space<vmem>>, %arg16: memref<1x32xf32, #tpu.memory_space<vmem>>, %arg17: memref<1x32xf32, #tpu.memory_space<vmem>>, %arg18: memref<1x32xf32, #tpu.memory_space<vmem>>, %arg19: memref<1x32xf32, #tpu.memory_space<vmem>>, %arg20: memref<1x32xf32, #tpu.memory_space<vmem>>, %arg21: memref<32x64xbf16, #tpu.memory_space<vmem>>, %arg22: memref<1x64xf32, #tpu.memory_space<vmem>>, %arg23: memref<64x32xbf16, #tpu.memory_space<vmem>>, %arg24: memref<1x32xf32, #tpu.memory_space<vmem>>, %arg25: memref<1x8x32xf32, #tpu.memory_space<vmem>>, %arg26: memref<1x4x8x8xbf16, #tpu.memory_space<vmem>>, %arg27: memref<1x4x8x16xbf16, #tpu.memory_space<vmem>>) attributes {dimension_semantics = [#tpu.dimension_semantics<parallel>], iteration_bounds = array<i64: 2>, scalar_prefetch = 0 : i64, scratch_operands = 0 : i64, tpu.core_type = #tpu.core_type<tc>, window_params = [{transform_indices = @transform_0, window_bounds = array<i64: 1, 8, 32>}, {transform_indices = @transform_1, window_bounds = array<i64: 1, 16, 32>}, {pipeline_mode = #tpu.pipeline_mode<synchronous>, transform_indices = @transform_2, window_bounds = array<i64: 8, 8>}, {pipeline_mode = #tpu.pipeline_mode<synchronous>, transform_indices = @transform_3, window_bounds = array<i64: 8, 16>}, {pipeline_mode = #tpu.pipeline_mode<synchronous>, transform_indices = @transform_4, window_bounds = array<i64: 32, 96>}, {pipeline_mode = #tpu.pipeline_mode<synchronous>, transform_indices = @transform_5, window_bounds = array<i64: 1, 96>}, {pipeline_mode = #tpu.pipeline_mode<synchronous>, transform_indices = @transform_6, window_bounds = array<i64: 32, 32>}, {pipeline_mode = #tpu.pipeline_mode<synchronous>, transform_indices = @transform_7, window_bounds = array<i64: 1, 32>}, {pipeline_mode = #tpu.pipeline_mode<synchronous>, transform_indices = @transform_8, window_bounds = array<i64: 32, 32>}, {pipeline_mode = #tpu.pipeline_mode<synchronous>, transform_indices = @transform_9, window_bounds = array<i64: 1, 32>}, {pipeline_mode = #tpu.pipeline_mode<synchronous>, transform_indices = @transform_10, window_bounds = array<i64: 32, 64>}, {pipeline_mode = #tpu.pipeline_mode<synchronous>, transform_indices = @transform_11, window_bounds = array<i64: 1, 64>}, {pipeline_mode = #tpu.pipeline_mode<synchronous>, transform_indices = @transform_12, window_bounds = array<i64: 32, 32>}, {pipeline_mode = #tpu.pipeline_mode<synchronous>, transform_indices = @transform_13, window_bounds = array<i64: 1, 32>}, {pipeline_mode = #tpu.pipeline_mode<synchronous>, transform_indices = @transform_14, window_bounds = array<i64: 1, 32>}, {pipeline_mode = #tpu.pipeline_mode<synchronous>, transform_indices = @transform_15, window_bounds = array<i64: 1, 32>}, {pipeline_mode = #tpu.pipeline_mode<synchronous>, transform_indices = @transform_16, window_bounds = array<i64: 1, 32>}, {pipeline_mode = #tpu.pipeline_mode<synchronous>, transform_indices = @transform_17, window_bounds = array<i64: 1, 32>}, {pipeline_mode = #tpu.pipeline_mode<synchronous>, transform_indices = @transform_18, window_bounds = array<i64: 1, 32>}, {pipeline_mode = #tpu.pipeline_mode<synchronous>, transform_indices = @transform_19, window_bounds = array<i64: 1, 32>}, {pipeline_mode = #tpu.pipeline_mode<synchronous>, transform_indices = @transform_20, window_bounds = array<i64: 32, 64>}, {pipeline_mode = #tpu.pipeline_mode<synchronous>, transform_indices = @transform_21, window_bounds = array<i64: 1, 64>}, {pipeline_mode = #tpu.pipeline_mode<synchronous>, transform_indices = @transform_22, window_bounds = array<i64: 64, 32>}, {pipeline_mode = #tpu.pipeline_mode<synchronous>, transform_indices = @transform_23, window_bounds = array<i64: 1, 32>}, {transform_indices = @transform_24, window_bounds = array<i64: 1, 8, 32>}, {transform_indices = @transform_25, window_bounds = array<i64: 1, 4, 8, 8>}, {transform_indices = @transform_26, window_bounds = array<i64: 1, 4, 8, 16>}]} {
    %c0 = arith.constant 0 : index
    %c0_0 = arith.constant 0 : index
    %c0_1 = arith.constant 0 : index
    %0 = vector.load %arg1[%c0, %c0_0, %c0_1] : memref<1x8x32xbf16, #tpu.memory_space<vmem>>, vector<1x8x32xbf16>
    %1 = vector.shape_cast %0 : vector<1x8x32xbf16> to vector<8x32xbf16>
    %c0_2 = arith.constant 0 : index
    %c0_3 = arith.constant 0 : index
    %c0_4 = arith.constant 0 : index
    %2 = vector.load %arg2[%c0_2, %c0_3, %c0_4] : memref<1x16x32xbf16, #tpu.memory_space<vmem>>, vector<1x16x32xbf16>
    %3 = vector.shape_cast %2 : vector<1x16x32xbf16> to vector<16x32xbf16>
    %4 = arith.extf %1 : vector<8x32xbf16> to vector<8x32xf32>
    %c0_5 = arith.constant 0 : index
    %c0_6 = arith.constant 0 : index
    %5 = vector.load %arg5[%c0_5, %c0_6] : memref<32x96xbf16, #tpu.memory_space<vmem>>, vector<32x96xbf16>
    %cst = arith.constant dense<0.000000e+00> : vector<8x96xf32>
    %6 = tpu.matmul %1, %5, %cst {dimension_numbers = #tpu.dot_dimension_numbers<[1], [0], [0], [1], [0, 0, 1, 1], [], []>} : vector<8x32xbf16>, vector<32x96xbf16>, vector<8x96xf32> -> vector<8x96xf32>
    %c0_7 = arith.constant 0 : index
    %c0_8 = arith.constant 0 : index
    %7 = vector.load %arg6[%c0_7, %c0_8] : memref<1x96xf32, #tpu.memory_space<vmem>>, vector<1x96xf32>
    %8 = vector.broadcast %7 : vector<1x96xf32> to vector<8x96xf32>
    %9 = arith.addf %6, %8 : vector<8x96xf32>
    %10 = vector.extract_strided_slice %9 {offsets = [0, 0], sizes = [8, 32], strides = [1, 1]} : vector<8x96xf32> to vector<8x32xf32>
    %11 = vector.extract_strided_slice %9 {offsets = [0, 32], sizes = [8, 32], strides = [1, 1]} : vector<8x96xf32> to vector<8x32xf32>
    %12 = vector.extract_strided_slice %9 {offsets = [0, 64], sizes = [8, 32], strides = [1, 1]} : vector<8x96xf32> to vector<8x32xf32>
    %c0_9 = arith.constant 0 : index
    %c0_10 = arith.constant 0 : index
    %13 = vector.load %arg3[%c0_9, %c0_10] : memref<8x8xbf16, #tpu.memory_space<vmem>>, vector<8x8xbf16>
    %14 = arith.extf %13 : vector<8x8xbf16> to vector<8x8xf32>
    %15 = arith.truncf %10 : vector<8x32xf32> to vector<8x32xbf16>
    %16 = arith.truncf %11 : vector<8x32xf32> to vector<8x32xbf16>
    %17 = arith.truncf %12 : vector<8x32xf32> to vector<8x32xbf16>
    %18 = vector.extract_strided_slice %15 {offsets = [0, 0], sizes = [8, 8], strides = [1, 1]} : vector<8x32xbf16> to vector<8x8xbf16>
    %19 = vector.extract_strided_slice %16 {offsets = [0, 0], sizes = [8, 8], strides = [1, 1]} : vector<8x32xbf16> to vector<8x8xbf16>
    %cst_11 = arith.constant dense<0.000000e+00> : vector<8x8xf32>
    %20 = tpu.matmul %18, %19, %cst_11 {dimension_numbers = #tpu.dot_dimension_numbers<[1], [1], [0], [0], [0, 0, 1, 0], [], []>} : vector<8x8xbf16>, vector<8x8xbf16>, vector<8x8xf32> -> vector<8x8xf32>
    %21 = arith.addf %20, %14 : vector<8x8xf32>
    %cst_12 = arith.constant dense<0xFF800000> : vector<8xf32>
    %22 = vector.multi_reduction <maximumf>, %21, %cst_12 [1] : vector<8x8xf32> to vector<8xf32>
    %23 = vector.shape_cast %22 : vector<8xf32> to vector<8x1xf32>
    %24 = vector.broadcast %23 : vector<8x1xf32> to vector<8x8xf32>
    %25 = arith.subf %21, %24 : vector<8x8xf32>
    %26 = math.exp %25 : vector<8x8xf32>
    %cst_13 = arith.constant dense<0.000000e+00> : vector<8xf32>
    %27 = vector.multi_reduction <add>, %26, %cst_13 [1] : vector<8x8xf32> to vector<8xf32>
    %28 = vector.shape_cast %27 : vector<8xf32> to vector<8x1xf32>
    %29 = tpu.reciprocal %28 {approx = true} : vector<8x1xf32> -> vector<8x1xf32>
    %30 = vector.broadcast %29 : vector<8x1xf32> to vector<8x8xf32>
    %31 = arith.mulf %26, %30 : vector<8x8xf32>
    %32 = arith.truncf %31 : vector<8x8xf32> to vector<8x8xbf16>
    %c0_14 = arith.constant 0 : index
    %c0_15 = arith.constant 0 : index
    %c0_16 = arith.constant 0 : index
    %c0_17 = arith.constant 0 : index
    %33 = vector.load %arg26[%c0_14, %c0_15, %c0_16, %c0_17] : memref<1x4x8x8xbf16, #tpu.memory_space<vmem>>, vector<1x1x8x8xbf16>
    %34 = vector.shape_cast %33 : vector<1x1x8x8xbf16> to vector<8x8xbf16>
    %35 = vector.shape_cast %32 : vector<8x8xbf16> to vector<1x1x8x8xbf16>
    tpu.vector_store %arg26[%c0_14, %c0_15, %c0_16, %c0_17], %35 {strides = array<i32>} : memref<1x4x8x8xbf16, #tpu.memory_space<vmem>>, vector<1x1x8x8xbf16>,
    %36 = arith.truncf %31 : vector<8x8xf32> to vector<8x8xbf16>
    %37 = vector.extract_strided_slice %17 {offsets = [0, 0], sizes = [8, 8], strides = [1, 1]} : vector<8x32xbf16> to vector<8x8xbf16>
    %cst_18 = arith.constant dense<0.000000e+00> : vector<8x8xf32>
    %38 = tpu.matmul %36, %37, %cst_18 {dimension_numbers = #tpu.dot_dimension_numbers<[1], [0], [0], [1], [0, 0, 1, 1], [], []>} : vector<8x8xbf16>, vector<8x8xbf16>, vector<8x8xf32> -> vector<8x8xf32>
    %39 = vector.extract_strided_slice %15 {offsets = [0, 8], sizes = [8, 8], strides = [1, 1]} : vector<8x32xbf16> to vector<8x8xbf16>
    %40 = vector.extract_strided_slice %16 {offsets = [0, 8], sizes = [8, 8], strides = [1, 1]} : vector<8x32xbf16> to vector<8x8xbf16>
    %cst_19 = arith.constant dense<0.000000e+00> : vector<8x8xf32>
    %41 = tpu.matmul %39, %40, %cst_19 {dimension_numbers = #tpu.dot_dimension_numbers<[1], [1], [0], [0], [0, 0, 1, 0], [], []>} : vector<8x8xbf16>, vector<8x8xbf16>, vector<8x8xf32> -> vector<8x8xf32>
    %42 = arith.addf %41, %14 : vector<8x8xf32>
    %cst_20 = arith.constant dense<0xFF800000> : vector<8xf32>
    %43 = vector.multi_reduction <maximumf>, %42, %cst_20 [1] : vector<8x8xf32> to vector<8xf32>
    %44 = vector.shape_cast %43 : vector<8xf32> to vector<8x1xf32>
    %45 = vector.broadcast %44 : vector<8x1xf32> to vector<8x8xf32>
    %46 = arith.subf %42, %45 : vector<8x8xf32>
    %47 = math.exp %46 : vector<8x8xf32>
    %cst_21 = arith.constant dense<0.000000e+00> : vector<8xf32>
    %48 = vector.multi_reduction <add>, %47, %cst_21 [1] : vector<8x8xf32> to vector<8xf32>
    %49 = vector.shape_cast %48 : vector<8xf32> to vector<8x1xf32>
    %50 = tpu.reciprocal %49 {approx = true} : vector<8x1xf32> -> vector<8x1xf32>
    %51 = vector.broadcast %50 : vector<8x1xf32> to vector<8x8xf32>
    %52 = arith.mulf %47, %51 : vector<8x8xf32>
    %53 = arith.truncf %52 : vector<8x8xf32> to vector<8x8xbf16>
    %c0_22 = arith.constant 0 : index
    %c1 = arith.constant 1 : index
    %c0_23 = arith.constant 0 : index
    %c0_24 = arith.constant 0 : index
    %54 = vector.load %arg26[%c0_22, %c1, %c0_23, %c0_24] : memref<1x4x8x8xbf16, #tpu.memory_space<vmem>>, vector<1x1x8x8xbf16>
    %55 = vector.shape_cast %54 : vector<1x1x8x8xbf16> to vector<8x8xbf16>
    %56 = vector.shape_cast %53 : vector<8x8xbf16> to vector<1x1x8x8xbf16>
    tpu.vector_store %arg26[%c0_22, %c1, %c0_23, %c0_24], %56 {strides = array<i32>} : memref<1x4x8x8xbf16, #tpu.memory_space<vmem>>, vector<1x1x8x8xbf16>,
    %57 = arith.truncf %52 : vector<8x8xf32> to vector<8x8xbf16>
    %58 = vector.extract_strided_slice %17 {offsets = [0, 8], sizes = [8, 8], strides = [1, 1]} : vector<8x32xbf16> to vector<8x8xbf16>
    %cst_25 = arith.constant dense<0.000000e+00> : vector<8x8xf32>
    %59 = tpu.matmul %57, %58, %cst_25 {dimension_numbers = #tpu.dot_dimension_numbers<[1], [0], [0], [1], [0, 0, 1, 1], [], []>} : vector<8x8xbf16>, vector<8x8xbf16>, vector<8x8xf32> -> vector<8x8xf32>
    %60 = vector.extract_strided_slice %15 {offsets = [0, 16], sizes = [8, 8], strides = [1, 1]} : vector<8x32xbf16> to vector<8x8xbf16>
    %61 = vector.extract_strided_slice %16 {offsets = [0, 16], sizes = [8, 8], strides = [1, 1]} : vector<8x32xbf16> to vector<8x8xbf16>
    %cst_26 = arith.constant dense<0.000000e+00> : vector<8x8xf32>
    %62 = tpu.matmul %60, %61, %cst_26 {dimension_numbers = #tpu.dot_dimension_numbers<[1], [1], [0], [0], [0, 0, 1, 0], [], []>} : vector<8x8xbf16>, vector<8x8xbf16>, vector<8x8xf32> -> vector<8x8xf32>
    %63 = arith.addf %62, %14 : vector<8x8xf32>
    %cst_27 = arith.constant dense<0xFF800000> : vector<8xf32>
    %64 = vector.multi_reduction <maximumf>, %63, %cst_27 [1] : vector<8x8xf32> to vector<8xf32>
    %65 = vector.shape_cast %64 : vector<8xf32> to vector<8x1xf32>
    %66 = vector.broadcast %65 : vector<8x1xf32> to vector<8x8xf32>
    %67 = arith.subf %63, %66 : vector<8x8xf32>
    %68 = math.exp %67 : vector<8x8xf32>
    %cst_28 = arith.constant dense<0.000000e+00> : vector<8xf32>
    %69 = vector.multi_reduction <add>, %68, %cst_28 [1] : vector<8x8xf32> to vector<8xf32>
    %70 = vector.shape_cast %69 : vector<8xf32> to vector<8x1xf32>
    %71 = tpu.reciprocal %70 {approx = true} : vector<8x1xf32> -> vector<8x1xf32>
    %72 = vector.broadcast %71 : vector<8x1xf32> to vector<8x8xf32>
    %73 = arith.mulf %68, %72 : vector<8x8xf32>
    %74 = arith.truncf %73 : vector<8x8xf32> to vector<8x8xbf16>
    %c0_29 = arith.constant 0 : index
    %c2 = arith.constant 2 : index
    %c0_30 = arith.constant 0 : index
    %c0_31 = arith.constant 0 : index
    %75 = vector.load %arg26[%c0_29, %c2, %c0_30, %c0_31] : memref<1x4x8x8xbf16, #tpu.memory_space<vmem>>, vector<1x1x8x8xbf16>
    %76 = vector.shape_cast %75 : vector<1x1x8x8xbf16> to vector<8x8xbf16>
    %77 = vector.shape_cast %74 : vector<8x8xbf16> to vector<1x1x8x8xbf16>
    tpu.vector_store %arg26[%c0_29, %c2, %c0_30, %c0_31], %77 {strides = array<i32>} : memref<1x4x8x8xbf16, #tpu.memory_space<vmem>>, vector<1x1x8x8xbf16>,
    %78 = arith.truncf %73 : vector<8x8xf32> to vector<8x8xbf16>
    %79 = vector.extract_strided_slice %17 {offsets = [0, 16], sizes = [8, 8], strides = [1, 1]} : vector<8x32xbf16> to vector<8x8xbf16>
    %cst_32 = arith.constant dense<0.000000e+00> : vector<8x8xf32>
    %80 = tpu.matmul %78, %79, %cst_32 {dimension_numbers = #tpu.dot_dimension_numbers<[1], [0], [0], [1], [0, 0, 1, 1], [], []>} : vector<8x8xbf16>, vector<8x8xbf16>, vector<8x8xf32> -> vector<8x8xf32>
    %81 = vector.extract_strided_slice %15 {offsets = [0, 24], sizes = [8, 8], strides = [1, 1]} : vector<8x32xbf16> to vector<8x8xbf16>
    %82 = vector.extract_strided_slice %16 {offsets = [0, 24], sizes = [8, 8], strides = [1, 1]} : vector<8x32xbf16> to vector<8x8xbf16>
    %cst_33 = arith.constant dense<0.000000e+00> : vector<8x8xf32>
    %83 = tpu.matmul %81, %82, %cst_33 {dimension_numbers = #tpu.dot_dimension_numbers<[1], [1], [0], [0], [0, 0, 1, 0], [], []>} : vector<8x8xbf16>, vector<8x8xbf16>, vector<8x8xf32> -> vector<8x8xf32>
    %84 = arith.addf %83, %14 : vector<8x8xf32>
    %cst_34 = arith.constant dense<0xFF800000> : vector<8xf32>
    %85 = vector.multi_reduction <maximumf>, %84, %cst_34 [1] : vector<8x8xf32> to vector<8xf32>
    %86 = vector.shape_cast %85 : vector<8xf32> to vector<8x1xf32>
    %87 = vector.broadcast %86 : vector<8x1xf32> to vector<8x8xf32>
    %88 = arith.subf %84, %87 : vector<8x8xf32>
    %89 = math.exp %88 : vector<8x8xf32>
    %cst_35 = arith.constant dense<0.000000e+00> : vector<8xf32>
    %90 = vector.multi_reduction <add>, %89, %cst_35 [1] : vector<8x8xf32> to vector<8xf32>
    %91 = vector.shape_cast %90 : vector<8xf32> to vector<8x1xf32>
    %92 = tpu.reciprocal %91 {approx = true} : vector<8x1xf32> -> vector<8x1xf32>
    %93 = vector.broadcast %92 : vector<8x1xf32> to vector<8x8xf32>
    %94 = arith.mulf %89, %93 : vector<8x8xf32>
    %95 = arith.truncf %94 : vector<8x8xf32> to vector<8x8xbf16>
    %c0_36 = arith.constant 0 : index
    %c3 = arith.constant 3 : index
    %c0_37 = arith.constant 0 : index
    %c0_38 = arith.constant 0 : index
    %96 = vector.load %arg26[%c0_36, %c3, %c0_37, %c0_38] : memref<1x4x8x8xbf16, #tpu.memory_space<vmem>>, vector<1x1x8x8xbf16>
    %97 = vector.shape_cast %96 : vector<1x1x8x8xbf16> to vector<8x8xbf16>
    %98 = vector.shape_cast %95 : vector<8x8xbf16> to vector<1x1x8x8xbf16>
    tpu.vector_store %arg26[%c0_36, %c3, %c0_37, %c0_38], %98 {strides = array<i32>} : memref<1x4x8x8xbf16, #tpu.memory_space<vmem>>, vector<1x1x8x8xbf16>,
    %99 = arith.truncf %94 : vector<8x8xf32> to vector<8x8xbf16>
    %100 = vector.extract_strided_slice %17 {offsets = [0, 24], sizes = [8, 8], strides = [1, 1]} : vector<8x32xbf16> to vector<8x8xbf16>
    %cst_39 = arith.constant dense<0.000000e+00> : vector<8x8xf32>
    %101 = tpu.matmul %99, %100, %cst_39 {dimension_numbers = #tpu.dot_dimension_numbers<[1], [0], [0], [1], [0, 0, 1, 1], [], []>} : vector<8x8xbf16>, vector<8x8xbf16>, vector<8x8xf32> -> vector<8x8xf32>
    %102 = tpu.concatenate %38, %59, %80, %101 in 1 : vector<8x8xf32>, vector<8x8xf32>, vector<8x8xf32>, vector<8x8xf32> -> vector<8x32xf32>
    %103 = arith.truncf %102 : vector<8x32xf32> to vector<8x32xbf16>
    %c0_40 = arith.constant 0 : index
    %c0_41 = arith.constant 0 : index
    %104 = vector.load %arg7[%c0_40, %c0_41] : memref<32x32xbf16, #tpu.memory_space<vmem>>, vector<32x32xbf16>
    %cst_42 = arith.constant dense<0.000000e+00> : vector<8x32xf32>
    %105 = tpu.matmul %103, %104, %cst_42 {dimension_numbers = #tpu.dot_dimension_numbers<[1], [0], [0], [1], [0, 0, 1, 1], [], []>} : vector<8x32xbf16>, vector<32x32xbf16>, vector<8x32xf32> -> vector<8x32xf32>
    %c0_43 = arith.constant 0 : index
    %c0_44 = arith.constant 0 : index
    %106 = vector.load %arg8[%c0_43, %c0_44] : memref<1x32xf32, #tpu.memory_space<vmem>>, vector<1x32xf32>
    %107 = vector.broadcast %106 : vector<1x32xf32> to vector<8x32xf32>
    %108 = arith.addf %105, %107 : vector<8x32xf32>
    %109 = arith.addf %4, %108 : vector<8x32xf32>
    %c0_45 = arith.constant 0 : index
    %c0_46 = arith.constant 0 : index
    %110 = vector.load %arg15[%c0_45, %c0_46] : memref<1x32xf32, #tpu.memory_space<vmem>>, vector<1x32xf32>
    %c0_47 = arith.constant 0 : index
    %c0_48 = arith.constant 0 : index
    %111 = vector.load %arg16[%c0_47, %c0_48] : memref<1x32xf32, #tpu.memory_space<vmem>>, vector<1x32xf32>
    %cst_49 = arith.constant dense<0.000000e+00> : vector<8xf32>
    %112 = vector.multi_reduction <add>, %109, %cst_49 [1] : vector<8x32xf32> to vector<8xf32>
    %113 = vector.shape_cast %112 : vector<8xf32> to vector<8x1xf32>
    %cst_50 = arith.constant 3.200000e+01 : f32
    %114 = vector.broadcast %cst_50 : f32 to vector<8x1xf32>
    %115 = arith.divf %113, %114 : vector<8x1xf32>
    %116 = vector.broadcast %115 : vector<8x1xf32> to vector<8x32xf32>
    %117 = arith.subf %109, %116 : vector<8x32xf32>
    %118 = arith.mulf %117, %117 : vector<8x32xf32>
    %cst_51 = arith.constant dense<0.000000e+00> : vector<8xf32>
    %119 = vector.multi_reduction <add>, %118, %cst_51 [1] : vector<8x32xf32> to vector<8xf32>
    %120 = vector.shape_cast %119 : vector<8xf32> to vector<8x1xf32>
    %cst_52 = arith.constant 3.200000e+01 : f32
    %121 = vector.broadcast %cst_52 : f32 to vector<8x1xf32>
    %122 = arith.divf %120, %121 : vector<8x1xf32>
    %cst_53 = arith.constant 9.99999974E-6 : f32
    %123 = vector.broadcast %cst_53 : f32 to vector<8x1xf32>
    %124 = arith.addf %122, %123 : vector<8x1xf32>
    %125 = math.rsqrt %124 : vector<8x1xf32>
    %126 = vector.broadcast %125 : vector<8x1xf32> to vector<8x32xf32>
    %127 = arith.mulf %117, %126 : vector<8x32xf32>
    %128 = vector.broadcast %110 : vector<1x32xf32> to vector<8x32xf32>
    %129 = arith.mulf %127, %128 : vector<8x32xf32>
    %130 = vector.broadcast %111 : vector<1x32xf32> to vector<8x32xf32>
    %131 = arith.addf %129, %130 : vector<8x32xf32>
    %132 = arith.truncf %131 : vector<8x32xf32> to vector<8x32xbf16>
    %c0_54 = arith.constant 0 : index
    %c0_55 = arith.constant 0 : index
    %133 = vector.load %arg9[%c0_54, %c0_55] : memref<32x32xbf16, #tpu.memory_space<vmem>>, vector<32x32xbf16>
    %cst_56 = arith.constant dense<0.000000e+00> : vector<8x32xf32>
    %134 = tpu.matmul %132, %133, %cst_56 {dimension_numbers = #tpu.dot_dimension_numbers<[1], [0], [0], [1], [0, 0, 1, 1], [], []>} : vector<8x32xbf16>, vector<32x32xbf16>, vector<8x32xf32> -> vector<8x32xf32>
    %c0_57 = arith.constant 0 : index
    %c0_58 = arith.constant 0 : index
    %135 = vector.load %arg10[%c0_57, %c0_58] : memref<1x32xf32, #tpu.memory_space<vmem>>, vector<1x32xf32>
    %136 = vector.broadcast %135 : vector<1x32xf32> to vector<8x32xf32>
    %137 = arith.addf %134, %136 : vector<8x32xf32>
    %c0_59 = arith.constant 0 : index
    %c0_60 = arith.constant 0 : index
    %138 = vector.load %arg11[%c0_59, %c0_60] : memref<32x64xbf16, #tpu.memory_space<vmem>>, vector<32x64xbf16>
    %cst_61 = arith.constant dense<0.000000e+00> : vector<16x64xf32>
    %139 = tpu.matmul %3, %138, %cst_61 {dimension_numbers = #tpu.dot_dimension_numbers<[1], [0], [0], [1], [0, 0, 1, 1], [], []>} : vector<16x32xbf16>, vector<32x64xbf16>, vector<16x64xf32> -> vector<16x64xf32>
    %c0_62 = arith.constant 0 : index
    %c0_63 = arith.constant 0 : index
    %140 = vector.load %arg12[%c0_62, %c0_63] : memref<1x64xf32, #tpu.memory_space<vmem>>, vector<1x64xf32>
    %141 = vector.broadcast %140 : vector<1x64xf32> to vector<16x64xf32>
    %142 = arith.addf %139, %141 : vector<16x64xf32>
    %143 = vector.extract_strided_slice %142 {offsets = [0, 0], sizes = [16, 32], strides = [1, 1]} : vector<16x64xf32> to vector<16x32xf32>
    %144 = vector.extract_strided_slice %142 {offsets = [0, 32], sizes = [16, 32], strides = [1, 1]} : vector<16x64xf32> to vector<16x32xf32>
    %c0_64 = arith.constant 0 : index
    %c0_65 = arith.constant 0 : index
    %145 = vector.load %arg4[%c0_64, %c0_65] : memref<8x16xbf16, #tpu.memory_space<vmem>>, vector<8x16xbf16>
    %146 = arith.extf %145 : vector<8x16xbf16> to vector<8x16xf32>
    %147 = arith.truncf %137 : vector<8x32xf32> to vector<8x32xbf16>
    %148 = arith.truncf %143 : vector<16x32xf32> to vector<16x32xbf16>
    %149 = arith.truncf %144 : vector<16x32xf32> to vector<16x32xbf16>
    %150 = vector.extract_strided_slice %147 {offsets = [0, 0], sizes = [8, 8], strides = [1, 1]} : vector<8x32xbf16> to vector<8x8xbf16>
    %151 = vector.extract_strided_slice %148 {offsets = [0, 0], sizes = [16, 8], strides = [1, 1]} : vector<16x32xbf16> to vector<16x8xbf16>
    %cst_66 = arith.constant dense<0.000000e+00> : vector<8x16xf32>
    %152 = tpu.matmul %150, %151, %cst_66 {dimension_numbers = #tpu.dot_dimension_numbers<[1], [1], [0], [0], [0, 0, 1, 0], [], []>} : vector<8x8xbf16>, vector<16x8xbf16>, vector<8x16xf32> -> vector<8x16xf32>
    %153 = arith.addf %152, %146 : vector<8x16xf32>
    %cst_67 = arith.constant dense<0xFF800000> : vector<8xf32>
    %154 = vector.multi_reduction <maximumf>, %153, %cst_67 [1] : vector<8x16xf32> to vector<8xf32>
    %155 = vector.shape_cast %154 : vector<8xf32> to vector<8x1xf32>
    %156 = vector.broadcast %155 : vector<8x1xf32> to vector<8x16xf32>
    %157 = arith.subf %153, %156 : vector<8x16xf32>
    %158 = math.exp %157 : vector<8x16xf32>
    %cst_68 = arith.constant dense<0.000000e+00> : vector<8xf32>
    %159 = vector.multi_reduction <add>, %158, %cst_68 [1] : vector<8x16xf32> to vector<8xf32>
    %160 = vector.shape_cast %159 : vector<8xf32> to vector<8x1xf32>
    %161 = tpu.reciprocal %160 {approx = true} : vector<8x1xf32> -> vector<8x1xf32>
    %162 = vector.broadcast %161 : vector<8x1xf32> to vector<8x16xf32>
    %163 = arith.mulf %158, %162 : vector<8x16xf32>
    %164 = arith.truncf %163 : vector<8x16xf32> to vector<8x16xbf16>
    %c0_69 = arith.constant 0 : index
    %c0_70 = arith.constant 0 : index
    %c0_71 = arith.constant 0 : index
    %c0_72 = arith.constant 0 : index
    %165 = vector.load %arg27[%c0_69, %c0_70, %c0_71, %c0_72] : memref<1x4x8x16xbf16, #tpu.memory_space<vmem>>, vector<1x1x8x16xbf16>
    %166 = vector.shape_cast %165 : vector<1x1x8x16xbf16> to vector<8x16xbf16>
    %167 = vector.shape_cast %164 : vector<8x16xbf16> to vector<1x1x8x16xbf16>
    tpu.vector_store %arg27[%c0_69, %c0_70, %c0_71, %c0_72], %167 {strides = array<i32>} : memref<1x4x8x16xbf16, #tpu.memory_space<vmem>>, vector<1x1x8x16xbf16>,
    %168 = arith.truncf %163 : vector<8x16xf32> to vector<8x16xbf16>
    %169 = vector.extract_strided_slice %149 {offsets = [0, 0], sizes = [16, 8], strides = [1, 1]} : vector<16x32xbf16> to vector<16x8xbf16>
    %cst_73 = arith.constant dense<0.000000e+00> : vector<8x8xf32>
    %170 = tpu.matmul %168, %169, %cst_73 {dimension_numbers = #tpu.dot_dimension_numbers<[1], [0], [0], [1], [0, 0, 1, 1], [], []>} : vector<8x16xbf16>, vector<16x8xbf16>, vector<8x8xf32> -> vector<8x8xf32>
    %171 = vector.extract_strided_slice %147 {offsets = [0, 8], sizes = [8, 8], strides = [1, 1]} : vector<8x32xbf16> to vector<8x8xbf16>
    %172 = vector.extract_strided_slice %148 {offsets = [0, 8], sizes = [16, 8], strides = [1, 1]} : vector<16x32xbf16> to vector<16x8xbf16>
    %cst_74 = arith.constant dense<0.000000e+00> : vector<8x16xf32>
    %173 = tpu.matmul %171, %172, %cst_74 {dimension_numbers = #tpu.dot_dimension_numbers<[1], [1], [0], [0], [0, 0, 1, 0], [], []>} : vector<8x8xbf16>, vector<16x8xbf16>, vector<8x16xf32> -> vector<8x16xf32>
    %174 = arith.addf %173, %146 : vector<8x16xf32>
    %cst_75 = arith.constant dense<0xFF800000> : vector<8xf32>
    %175 = vector.multi_reduction <maximumf>, %174, %cst_75 [1] : vector<8x16xf32> to vector<8xf32>
    %176 = vector.shape_cast %175 : vector<8xf32> to vector<8x1xf32>
    %177 = vector.broadcast %176 : vector<8x1xf32> to vector<8x16xf32>
    %178 = arith.subf %174, %177 : vector<8x16xf32>
    %179 = math.exp %178 : vector<8x16xf32>
    %cst_76 = arith.constant dense<0.000000e+00> : vector<8xf32>
    %180 = vector.multi_reduction <add>, %179, %cst_76 [1] : vector<8x16xf32> to vector<8xf32>
    %181 = vector.shape_cast %180 : vector<8xf32> to vector<8x1xf32>
    %182 = tpu.reciprocal %181 {approx = true} : vector<8x1xf32> -> vector<8x1xf32>
    %183 = vector.broadcast %182 : vector<8x1xf32> to vector<8x16xf32>
    %184 = arith.mulf %179, %183 : vector<8x16xf32>
    %185 = arith.truncf %184 : vector<8x16xf32> to vector<8x16xbf16>
    %c0_77 = arith.constant 0 : index
    %c1_78 = arith.constant 1 : index
    %c0_79 = arith.constant 0 : index
    %c0_80 = arith.constant 0 : index
    %186 = vector.load %arg27[%c0_77, %c1_78, %c0_79, %c0_80] : memref<1x4x8x16xbf16, #tpu.memory_space<vmem>>, vector<1x1x8x16xbf16>
    %187 = vector.shape_cast %186 : vector<1x1x8x16xbf16> to vector<8x16xbf16>
    %188 = vector.shape_cast %185 : vector<8x16xbf16> to vector<1x1x8x16xbf16>
    tpu.vector_store %arg27[%c0_77, %c1_78, %c0_79, %c0_80], %188 {strides = array<i32>} : memref<1x4x8x16xbf16, #tpu.memory_space<vmem>>, vector<1x1x8x16xbf16>,
    %189 = arith.truncf %184 : vector<8x16xf32> to vector<8x16xbf16>
    %190 = vector.extract_strided_slice %149 {offsets = [0, 8], sizes = [16, 8], strides = [1, 1]} : vector<16x32xbf16> to vector<16x8xbf16>
    %cst_81 = arith.constant dense<0.000000e+00> : vector<8x8xf32>
    %191 = tpu.matmul %189, %190, %cst_81 {dimension_numbers = #tpu.dot_dimension_numbers<[1], [0], [0], [1], [0, 0, 1, 1], [], []>} : vector<8x16xbf16>, vector<16x8xbf16>, vector<8x8xf32> -> vector<8x8xf32>
    %192 = vector.extract_strided_slice %147 {offsets = [0, 16], sizes = [8, 8], strides = [1, 1]} : vector<8x32xbf16> to vector<8x8xbf16>
    %193 = vector.extract_strided_slice %148 {offsets = [0, 16], sizes = [16, 8], strides = [1, 1]} : vector<16x32xbf16> to vector<16x8xbf16>
    %cst_82 = arith.constant dense<0.000000e+00> : vector<8x16xf32>
    %194 = tpu.matmul %192, %193, %cst_82 {dimension_numbers = #tpu.dot_dimension_numbers<[1], [1], [0], [0], [0, 0, 1, 0], [], []>} : vector<8x8xbf16>, vector<16x8xbf16>, vector<8x16xf32> -> vector<8x16xf32>
    %195 = arith.addf %194, %146 : vector<8x16xf32>
    %cst_83 = arith.constant dense<0xFF800000> : vector<8xf32>
    %196 = vector.multi_reduction <maximumf>, %195, %cst_83 [1] : vector<8x16xf32> to vector<8xf32>
    %197 = vector.shape_cast %196 : vector<8xf32> to vector<8x1xf32>
    %198 = vector.broadcast %197 : vector<8x1xf32> to vector<8x16xf32>
    %199 = arith.subf %195, %198 : vector<8x16xf32>
    %200 = math.exp %199 : vector<8x16xf32>
    %cst_84 = arith.constant dense<0.000000e+00> : vector<8xf32>
    %201 = vector.multi_reduction <add>, %200, %cst_84 [1] : vector<8x16xf32> to vector<8xf32>
    %202 = vector.shape_cast %201 : vector<8xf32> to vector<8x1xf32>
    %203 = tpu.reciprocal %202 {approx = true} : vector<8x1xf32> -> vector<8x1xf32>
    %204 = vector.broadcast %203 : vector<8x1xf32> to vector<8x16xf32>
    %205 = arith.mulf %200, %204 : vector<8x16xf32>
    %206 = arith.truncf %205 : vector<8x16xf32> to vector<8x16xbf16>
    %c0_85 = arith.constant 0 : index
    %c2_86 = arith.constant 2 : index
    %c0_87 = arith.constant 0 : index
    %c0_88 = arith.constant 0 : index
    %207 = vector.load %arg27[%c0_85, %c2_86, %c0_87, %c0_88] : memref<1x4x8x16xbf16, #tpu.memory_space<vmem>>, vector<1x1x8x16xbf16>
    %208 = vector.shape_cast %207 : vector<1x1x8x16xbf16> to vector<8x16xbf16>
    %209 = vector.shape_cast %206 : vector<8x16xbf16> to vector<1x1x8x16xbf16>
    tpu.vector_store %arg27[%c0_85, %c2_86, %c0_87, %c0_88], %209 {strides = array<i32>} : memref<1x4x8x16xbf16, #tpu.memory_space<vmem>>, vector<1x1x8x16xbf16>,
    %210 = arith.truncf %205 : vector<8x16xf32> to vector<8x16xbf16>
    %211 = vector.extract_strided_slice %149 {offsets = [0, 16], sizes = [16, 8], strides = [1, 1]} : vector<16x32xbf16> to vector<16x8xbf16>
    %cst_89 = arith.constant dense<0.000000e+00> : vector<8x8xf32>
    %212 = tpu.matmul %210, %211, %cst_89 {dimension_numbers = #tpu.dot_dimension_numbers<[1], [0], [0], [1], [0, 0, 1, 1], [], []>} : vector<8x16xbf16>, vector<16x8xbf16>, vector<8x8xf32> -> vector<8x8xf32>
    %213 = vector.extract_strided_slice %147 {offsets = [0, 24], sizes = [8, 8], strides = [1, 1]} : vector<8x32xbf16> to vector<8x8xbf16>
    %214 = vector.extract_strided_slice %148 {offsets = [0, 24], sizes = [16, 8], strides = [1, 1]} : vector<16x32xbf16> to vector<16x8xbf16>
    %cst_90 = arith.constant dense<0.000000e+00> : vector<8x16xf32>
    %215 = tpu.matmul %213, %214, %cst_90 {dimension_numbers = #tpu.dot_dimension_numbers<[1], [1], [0], [0], [0, 0, 1, 0], [], []>} : vector<8x8xbf16>, vector<16x8xbf16>, vector<8x16xf32> -> vector<8x16xf32>
    %216 = arith.addf %215, %146 : vector<8x16xf32>
    %cst_91 = arith.constant dense<0xFF800000> : vector<8xf32>
    %217 = vector.multi_reduction <maximumf>, %216, %cst_91 [1] : vector<8x16xf32> to vector<8xf32>
    %218 = vector.shape_cast %217 : vector<8xf32> to vector<8x1xf32>
    %219 = vector.broadcast %218 : vector<8x1xf32> to vector<8x16xf32>
    %220 = arith.subf %216, %219 : vector<8x16xf32>
    %221 = math.exp %220 : vector<8x16xf32>
    %cst_92 = arith.constant dense<0.000000e+00> : vector<8xf32>
    %222 = vector.multi_reduction <add>, %221, %cst_92 [1] : vector<8x16xf32> to vector<8xf32>
    %223 = vector.shape_cast %222 : vector<8xf32> to vector<8x1xf32>
    %224 = tpu.reciprocal %223 {approx = true} : vector<8x1xf32> -> vector<8x1xf32>
    %225 = vector.broadcast %224 : vector<8x1xf32> to vector<8x16xf32>
    %226 = arith.mulf %221, %225 : vector<8x16xf32>
    %227 = arith.truncf %226 : vector<8x16xf32> to vector<8x16xbf16>
    %c0_93 = arith.constant 0 : index
    %c3_94 = arith.constant 3 : index
    %c0_95 = arith.constant 0 : index
    %c0_96 = arith.constant 0 : index
    %228 = vector.load %arg27[%c0_93, %c3_94, %c0_95, %c0_96] : memref<1x4x8x16xbf16, #tpu.memory_space<vmem>>, vector<1x1x8x16xbf16>
    %229 = vector.shape_cast %228 : vector<1x1x8x16xbf16> to vector<8x16xbf16>
    %230 = vector.shape_cast %227 : vector<8x16xbf16> to vector<1x1x8x16xbf16>
    tpu.vector_store %arg27[%c0_93, %c3_94, %c0_95, %c0_96], %230 {strides = array<i32>} : memref<1x4x8x16xbf16, #tpu.memory_space<vmem>>, vector<1x1x8x16xbf16>,
    %231 = arith.truncf %226 : vector<8x16xf32> to vector<8x16xbf16>
    %232 = vector.extract_strided_slice %149 {offsets = [0, 24], sizes = [16, 8], strides = [1, 1]} : vector<16x32xbf16> to vector<16x8xbf16>
    %cst_97 = arith.constant dense<0.000000e+00> : vector<8x8xf32>
    %233 = tpu.matmul %231, %232, %cst_97 {dimension_numbers = #tpu.dot_dimension_numbers<[1], [0], [0], [1], [0, 0, 1, 1], [], []>} : vector<8x16xbf16>, vector<16x8xbf16>, vector<8x8xf32> -> vector<8x8xf32>
    %234 = tpu.concatenate %170, %191, %212, %233 in 1 : vector<8x8xf32>, vector<8x8xf32>, vector<8x8xf32>, vector<8x8xf32> -> vector<8x32xf32>
    %235 = arith.truncf %234 : vector<8x32xf32> to vector<8x32xbf16>
    %c0_98 = arith.constant 0 : index
    %c0_99 = arith.constant 0 : index
    %236 = vector.load %arg13[%c0_98, %c0_99] : memref<32x32xbf16, #tpu.memory_space<vmem>>, vector<32x32xbf16>
    %cst_100 = arith.constant dense<0.000000e+00> : vector<8x32xf32>
    %237 = tpu.matmul %235, %236, %cst_100 {dimension_numbers = #tpu.dot_dimension_numbers<[1], [0], [0], [1], [0, 0, 1, 1], [], []>} : vector<8x32xbf16>, vector<32x32xbf16>, vector<8x32xf32> -> vector<8x32xf32>
    %c0_101 = arith.constant 0 : index
    %c0_102 = arith.constant 0 : index
    %238 = vector.load %arg14[%c0_101, %c0_102] : memref<1x32xf32, #tpu.memory_space<vmem>>, vector<1x32xf32>
    %239 = vector.broadcast %238 : vector<1x32xf32> to vector<8x32xf32>
    %240 = arith.addf %237, %239 : vector<8x32xf32>
    %241 = arith.addf %131, %240 : vector<8x32xf32>
    %c0_103 = arith.constant 0 : index
    %c0_104 = arith.constant 0 : index
    %242 = vector.load %arg17[%c0_103, %c0_104] : memref<1x32xf32, #tpu.memory_space<vmem>>, vector<1x32xf32>
    %c0_105 = arith.constant 0 : index
    %c0_106 = arith.constant 0 : index
    %243 = vector.load %arg18[%c0_105, %c0_106] : memref<1x32xf32, #tpu.memory_space<vmem>>, vector<1x32xf32>
    %cst_107 = arith.constant dense<0.000000e+00> : vector<8xf32>
    %244 = vector.multi_reduction <add>, %241, %cst_107 [1] : vector<8x32xf32> to vector<8xf32>
    %245 = vector.shape_cast %244 : vector<8xf32> to vector<8x1xf32>
    %cst_108 = arith.constant 3.200000e+01 : f32
    %246 = vector.broadcast %cst_108 : f32 to vector<8x1xf32>
    %247 = arith.divf %245, %246 : vector<8x1xf32>
    %248 = vector.broadcast %247 : vector<8x1xf32> to vector<8x32xf32>
    %249 = arith.subf %241, %248 : vector<8x32xf32>
    %250 = arith.mulf %249, %249 : vector<8x32xf32>
    %cst_109 = arith.constant dense<0.000000e+00> : vector<8xf32>
    %251 = vector.multi_reduction <add>, %250, %cst_109 [1] : vector<8x32xf32> to vector<8xf32>
    %252 = vector.shape_cast %251 : vector<8xf32> to vector<8x1xf32>
    %cst_110 = arith.constant 3.200000e+01 : f32
    %253 = vector.broadcast %cst_110 : f32 to vector<8x1xf32>
    %254 = arith.divf %252, %253 : vector<8x1xf32>
    %cst_111 = arith.constant 9.99999974E-6 : f32
    %255 = vector.broadcast %cst_111 : f32 to vector<8x1xf32>
    %256 = arith.addf %254, %255 : vector<8x1xf32>
    %257 = math.rsqrt %256 : vector<8x1xf32>
    %258 = vector.broadcast %257 : vector<8x1xf32> to vector<8x32xf32>
    %259 = arith.mulf %249, %258 : vector<8x32xf32>
    %260 = vector.broadcast %242 : vector<1x32xf32> to vector<8x32xf32>
    %261 = arith.mulf %259, %260 : vector<8x32xf32>
    %262 = vector.broadcast %243 : vector<1x32xf32> to vector<8x32xf32>
    %263 = arith.addf %261, %262 : vector<8x32xf32>
    %264 = arith.truncf %263 : vector<8x32xf32> to vector<8x32xbf16>
    %c0_112 = arith.constant 0 : index
    %c0_113 = arith.constant 0 : index
    %265 = vector.load %arg21[%c0_112, %c0_113] : memref<32x64xbf16, #tpu.memory_space<vmem>>, vector<32x64xbf16>
    %cst_114 = arith.constant dense<0.000000e+00> : vector<8x64xf32>
    %266 = tpu.matmul %264, %265, %cst_114 {dimension_numbers = #tpu.dot_dimension_numbers<[1], [0], [0], [1], [0, 0, 1, 1], [], []>} : vector<8x32xbf16>, vector<32x64xbf16>, vector<8x64xf32> -> vector<8x64xf32>
    %c0_115 = arith.constant 0 : index
    %c0_116 = arith.constant 0 : index
    %267 = vector.load %arg22[%c0_115, %c0_116] : memref<1x64xf32, #tpu.memory_space<vmem>>, vector<1x64xf32>
    %268 = vector.broadcast %267 : vector<1x64xf32> to vector<8x64xf32>
    %269 = arith.addf %266, %268 : vector<8x64xf32>
    %cst_117 = arith.constant 5.000000e-01 : f32
    %270 = vector.broadcast %cst_117 : f32 to vector<8x64xf32>
    %271 = arith.mulf %270, %269 : vector<8x64xf32>
    %cst_118 = arith.constant 4.471500e-02 : f32
    %272 = vector.broadcast %cst_118 : f32 to vector<8x64xf32>
    %273 = arith.mulf %272, %269 : vector<8x64xf32>
    %274 = arith.mulf %273, %269 : vector<8x64xf32>
    %275 = arith.mulf %274, %269 : vector<8x64xf32>
    %276 = arith.addf %269, %275 : vector<8x64xf32>
    %cst_119 = arith.constant 0.797884583 : f32
    %277 = vector.broadcast %cst_119 : f32 to vector<8x64xf32>
    %278 = arith.mulf %277, %276 : vector<8x64xf32>
    %279 = math.tanh %278 : vector<8x64xf32>
    %cst_120 = arith.constant 1.000000e+00 : f32
    %280 = vector.broadcast %cst_120 : f32 to vector<8x64xf32>
    %281 = arith.addf %280, %279 : vector<8x64xf32>
    %282 = arith.mulf %271, %281 : vector<8x64xf32>
    %283 = arith.truncf %282 : vector<8x64xf32> to vector<8x64xbf16>
    %c0_121 = arith.constant 0 : index
    %c0_122 = arith.constant 0 : index
    %284 = vector.load %arg23[%c0_121, %c0_122] : memref<64x32xbf16, #tpu.memory_space<vmem>>, vector<64x32xbf16>
    %cst_123 = arith.constant dense<0.000000e+00> : vector<8x32xf32>
    %285 = tpu.matmul %283, %284, %cst_123 {dimension_numbers = #tpu.dot_dimension_numbers<[1], [0], [0], [1], [0, 0, 1, 1], [], []>} : vector<8x64xbf16>, vector<64x32xbf16>, vector<8x32xf32> -> vector<8x32xf32>
    %c0_124 = arith.constant 0 : index
    %c0_125 = arith.constant 0 : index
    %286 = vector.load %arg24[%c0_124, %c0_125] : memref<1x32xf32, #tpu.memory_space<vmem>>, vector<1x32xf32>
    %287 = vector.broadcast %286 : vector<1x32xf32> to vector<8x32xf32>
    %288 = arith.addf %285, %287 : vector<8x32xf32>
    %289 = arith.addf %263, %288 : vector<8x32xf32>
    %c0_126 = arith.constant 0 : index
    %c0_127 = arith.constant 0 : index
    %290 = vector.load %arg19[%c0_126, %c0_127] : memref<1x32xf32, #tpu.memory_space<vmem>>, vector<1x32xf32>
    %c0_128 = arith.constant 0 : index
    %c0_129 = arith.constant 0 : index
    %291 = vector.load %arg20[%c0_128, %c0_129] : memref<1x32xf32, #tpu.memory_space<vmem>>, vector<1x32xf32>
    %cst_130 = arith.constant dense<0.000000e+00> : vector<8xf32>
    %292 = vector.multi_reduction <add>, %289, %cst_130 [1] : vector<8x32xf32> to vector<8xf32>
    %293 = vector.shape_cast %292 : vector<8xf32> to vector<8x1xf32>
    %cst_131 = arith.constant 3.200000e+01 : f32
    %294 = vector.broadcast %cst_131 : f32 to vector<8x1xf32>
    %295 = arith.divf %293, %294 : vector<8x1xf32>
    %296 = vector.broadcast %295 : vector<8x1xf32> to vector<8x32xf32>
    %297 = arith.subf %289, %296 : vector<8x32xf32>
    %298 = arith.mulf %297, %297 : vector<8x32xf32>
    %cst_132 = arith.constant dense<0.000000e+00> : vector<8xf32>
    %299 = vector.multi_reduction <add>, %298, %cst_132 [1] : vector<8x32xf32> to vector<8xf32>
    %300 = vector.shape_cast %299 : vector<8xf32> to vector<8x1xf32>
    %cst_133 = arith.constant 3.200000e+01 : f32
    %301 = vector.broadcast %cst_133 : f32 to vector<8x1xf32>
    %302 = arith.divf %300, %301 : vector<8x1xf32>
    %cst_134 = arith.constant 9.99999974E-6 : f32
    %303 = vector.broadcast %cst_134 : f32 to vector<8x1xf32>
    %304 = arith.addf %302, %303 : vector<8x1xf32>
    %305 = math.rsqrt %304 : vector<8x1xf32>
    %306 = vector.broadcast %305 : vector<8x1xf32> to vector<8x32xf32>
    %307 = arith.mulf %297, %306 : vector<8x32xf32>
    %308 = vector.broadcast %290 : vector<1x32xf32> to vector<8x32xf32>
    %309 = arith.mulf %307, %308 : vector<8x32xf32>
    %310 = vector.broadcast %291 : vector<1x32xf32> to vector<8x32xf32>
    %311 = arith.addf %309, %310 : vector<8x32xf32>
    %c0_135 = arith.constant 0 : index
    %c0_136 = arith.constant 0 : index
    %c0_137 = arith.constant 0 : index
    %312 = vector.load %arg25[%c0_135, %c0_136, %c0_137] : memref<1x8x32xf32, #tpu.memory_space<vmem>>, vector<1x8x32xf32>
    %313 = vector.shape_cast %312 : vector<1x8x32xf32> to vector<8x32xf32>
    %314 = vector.shape_cast %311 : vector<8x32xf32> to vector<1x8x32xf32>
    tpu.vector_store %arg25[%c0_135, %c0_136, %c0_137], %314 {strides = array<i32>} : memref<1x8x32xf32, #tpu.memory_space<vmem>>, vector<1x8x32xf32>,
    return
  }
  func.func @transform_0(%arg0: i32) -> (i32, i32, i32) {
    %c0_i32 = arith.constant 0 : i32
    %c0_i32_0 = arith.constant 0 : i32
    %c0_i32_1 = arith.constant 0 : i32
    return %arg0, %c0_i32, %c0_i32_0 : i32, i32, i32
  }
  func.func @transform_1(%arg0: i32) -> (i32, i32, i32) {
    %c0_i32 = arith.constant 0 : i32
    %c0_i32_0 = arith.constant 0 : i32
    %c0_i32_1 = arith.constant 0 : i32
    return %arg0, %c0_i32, %c0_i32_0 : i32, i32, i32
  }
  func.func @transform_2(%arg0: i32) -> (i32, i32) {
    %c0_i32 = arith.constant 0 : i32
    %c0_i32_0 = arith.constant 0 : i32
    %c0_i32_1 = arith.constant 0 : i32
    return %c0_i32, %c0_i32_0 : i32, i32
  }
  func.func @transform_3(%arg0: i32) -> (i32, i32) {
    %c0_i32 = arith.constant 0 : i32
    %c0_i32_0 = arith.constant 0 : i32
    %c0_i32_1 = arith.constant 0 : i32
    return %c0_i32, %c0_i32_0 : i32, i32
  }
  func.func @transform_4(%arg0: i32) -> (i32, i32) {
    %c0_i32 = arith.constant 0 : i32
    %c0_i32_0 = arith.constant 0 : i32
    %c0_i32_1 = arith.constant 0 : i32
    return %c0_i32, %c0_i32_0 : i32, i32
  }
  func.func @transform_5(%arg0: i32) -> (i32, i32) {
    %c0_i32 = arith.constant 0 : i32
    %c0_i32_0 = arith.constant 0 : i32
    %c0_i32_1 = arith.constant 0 : i32
    return %c0_i32, %c0_i32_0 : i32, i32
  }
  func.func @transform_6(%arg0: i32) -> (i32, i32) {
    %c0_i32 = arith.constant 0 : i32
    %c0_i32_0 = arith.constant 0 : i32
    %c0_i32_1 = arith.constant 0 : i32
    return %c0_i32, %c0_i32_0 : i32, i32
  }
  func.func @transform_7(%arg0: i32) -> (i32, i32) {
    %c0_i32 = arith.constant 0 : i32
    %c0_i32_0 = arith.constant 0 : i32
    %c0_i32_1 = arith.constant 0 : i32
    return %c0_i32, %c0_i32_0 : i32, i32
  }
  func.func @transform_8(%arg0: i32) -> (i32, i32) {
    %c0_i32 = arith.constant 0 : i32
    %c0_i32_0 = arith.constant 0 : i32
    %c0_i32_1 = arith.constant 0 : i32
    return %c0_i32, %c0_i32_0 : i32, i32
  }
  func.func @transform_9(%arg0: i32) -> (i32, i32) {
    %c0_i32 = arith.constant 0 : i32
    %c0_i32_0 = arith.constant 0 : i32
    %c0_i32_1 = arith.constant 0 : i32
    return %c0_i32, %c0_i32_0 : i32, i32
  }
  func.func @transform_10(%arg0: i32) -> (i32, i32) {
    %c0_i32 = arith.constant 0 : i32
    %c0_i32_0 = arith.constant 0 : i32
    %c0_i32_1 = arith.constant 0 : i32
    return %c0_i32, %c0_i32_0 : i32, i32
  }
  func.func @transform_11(%arg0: i32) -> (i32, i32) {
    %c0_i32 = arith.constant 0 : i32
    %c0_i32_0 = arith.constant 0 : i32
    %c0_i32_1 = arith.constant 0 : i32
    return %c0_i32, %c0_i32_0 : i32, i32
  }
  func.func @transform_12(%arg0: i32) -> (i32, i32) {
    %c0_i32 = arith.constant 0 : i32
    %c0_i32_0 = arith.constant 0 : i32
    %c0_i32_1 = arith.constant 0 : i32
    return %c0_i32, %c0_i32_0 : i32, i32
  }
  func.func @transform_13(%arg0: i32) -> (i32, i32) {
    %c0_i32 = arith.constant 0 : i32
    %c0_i32_0 = arith.constant 0 : i32
    %c0_i32_1 = arith.constant 0 : i32
    return %c0_i32, %c0_i32_0 : i32, i32
  }
  func.func @transform_14(%arg0: i32) -> (i32, i32) {
    %c0_i32 = arith.constant 0 : i32
    %c0_i32_0 = arith.constant 0 : i32
    %c0_i32_1 = arith.constant 0 : i32
    return %c0_i32, %c0_i32_0 : i32, i32
  }
  func.func @transform_15(%arg0: i32) -> (i32, i32) {
    %c0_i32 = arith.constant 0 : i32
    %c0_i32_0 = arith.constant 0 : i32
    %c0_i32_1 = arith.constant 0 : i32
    return %c0_i32, %c0_i32_0 : i32, i32
  }
  func.func @transform_16(%arg0: i32) -> (i32, i32) {
    %c0_i32 = arith.constant 0 : i32
    %c0_i32_0 = arith.constant 0 : i32
    %c0_i32_1 = arith.constant 0 : i32
    return %c0_i32, %c0_i32_0 : i32, i32
  }
  func.func @transform_17(%arg0: i32) -> (i32, i32) {
    %c0_i32 = arith.constant 0 : i32
    %c0_i32_0 = arith.constant 0 : i32
    %c0_i32_1 = arith.constant 0 : i32
    return %c0_i32, %c0_i32_0 : i32, i32
  }
  func.func @transform_18(%arg0: i32) -> (i32, i32) {
    %c0_i32 = arith.constant 0 : i32
    %c0_i32_0 = arith.constant 0 : i32
    %c0_i32_1 = arith.constant 0 : i32
    return %c0_i32, %c0_i32_0 : i32, i32
  }
  func.func @transform_19(%arg0: i32) -> (i32, i32) {
    %c0_i32 = arith.constant 0 : i32
    %c0_i32_0 = arith.constant 0 : i32
    %c0_i32_1 = arith.constant 0 : i32
    return %c0_i32, %c0_i32_0 : i32, i32
  }
  func.func @transform_20(%arg0: i32) -> (i32, i32) {
    %c0_i32 = arith.constant 0 : i32
    %c0_i32_0 = arith.constant 0 : i32
    %c0_i32_1 = arith.constant 0 : i32
    return %c0_i32, %c0_i32_0 : i32, i32
  }
  func.func @transform_21(%arg0: i32) -> (i32, i32) {
    %c0_i32 = arith.constant 0 : i32
    %c0_i32_0 = arith.constant 0 : i32
    %c0_i32_1 = arith.constant 0 : i32
    return %c0_i32, %c0_i32_0 : i32, i32
  }
  func.func @transform_22(%arg0: i32) -> (i32, i32) {
    %c0_i32 = arith.constant 0 : i32
    %c0_i32_0 = arith.constant 0 : i32
    %c0_i32_1 = arith.constant 0 : i32
    return %c0_i32, %c0_i32_0 : i32, i32
  }
  func.func @transform_23(%arg0: i32) -> (i32, i32) {
    %c0_i32 = arith.constant 0 : i32
    %c0_i32_0 = arith.constant 0 : i32
    %c0_i32_1 = arith.constant 0 : i32
    return %c0_i32, %c0_i32_0 : i32, i32
  }
  func.func @transform_24(%arg0: i32) -> (i32, i32, i32) {
    %c0_i32 = arith.constant 0 : i32
    %c0_i32_0 = arith.constant 0 : i32
    %c0_i32_1 = arith.constant 0 : i32
    return %arg0, %c0_i32, %c0_i32_0 : i32, i32, i32
  }
  func.func @transform_25(%arg0: i32) -> (i32, i32, i32, i32) {
    %c0_i32 = arith.constant 0 : i32
    %c0_i32_0 = arith.constant 0 : i32
    %c0_i32_1 = arith.constant 0 : i32
    %c0_i32_2 = arith.constant 0 : i32
    return %arg0, %c0_i32, %c0_i32_0, %c0_i32_1 : i32, i32, i32, i32
  }
  func.func @transform_26(%arg0: i32) -> (i32, i32, i32, i32) {
    %c0_i32 = arith.constant 0 : i32
    %c0_i32_0 = arith.constant 0 : i32
    %c0_i32_1 = arith.constant 0 : i32
    %c0_i32_2 = arith.constant 0 : i32
    return %arg0, %c0_i32, %c0_i32_0, %c0_i32_1 : i32, i32, i32, i32
  }
}

module attributes {stable_mosaic.version = 11 : i64} {
  func.func @_decoder_layer_kernel(%arg0: i32, %arg1: memref<1x8x32xbf16, #tpu.memory_space<vmem>>, %arg2: memref<1x16x32xbf16, #tpu.memory_space<vmem>>, %arg3: memref<8x8xbf16, #tpu.memory_space<vmem>>, %arg4: memref<8x16xbf16, #tpu.memory_space<vmem>>, %arg5: memref<32x96xbf16, #tpu.memory_space<vmem>>, %arg6: memref<1x96xf32, #tpu.memory_space<vmem>>, %arg7: memref<32x32xbf16, #tpu.memory_space<vmem>>, %arg8: memref<1x32xf32, #tpu.memory_space<vmem>>, %arg9: memref<32x32xbf16, #tpu.memory_space<vmem>>, %arg10: memref<1x32xf32, #tpu.memory_space<vmem>>, %arg11: memref<32x64xbf16, #tpu.memory_space<vmem>>, %arg12: memref<1x64xf32, #tpu.memory_space<vmem>>, %arg13: memref<32x32xbf16, #tpu.memory_space<vmem>>, %arg14: memref<1x32xf32, #tpu.memory_space<vmem>>, %arg15: memref<1x32xf32, #tpu.memory_space<vmem>>, %arg16: memref<1x32xf32, #tpu.memory_space<vmem>>, %arg17: memref<1x32xf32, #tpu.memory_space<vmem>>, %arg18: memref<1x32xf32, #tpu.memory_space<vmem>>, %arg19: memref<1x32xf32, #tpu.memory_space<vmem>>, %arg20: memref<1x32xf32, #tpu.memory_space<vmem>>, %arg21: memref<32x64xbf16, #tpu.memory_space<vmem>>, %arg22: memref<1x64xf32, #tpu.memory_space<vmem>>, %arg23: memref<64x32xbf16, #tpu.memory_space<vmem>>, %arg24: memref<1x32xf32, #tpu.memory_space<vmem>>, %arg25: memref<1x8x32xf32, #tpu.memory_space<vmem>>, %arg26: memref<1x4x8x8xbf16, #tpu.memory_space<vmem>>, %arg27: memref<1x4x8x16xbf16, #tpu.memory_space<vmem>>) attributes {dimension_semantics = [#tpu.dimension_semantics<parallel>], iteration_bounds = array<i64: 2>, scalar_prefetch = 0 : i64, scratch_operands = 0 : i64, tpu.core_type = #tpu.core_type<tc>, window_params = [{transform_indices = @transform_0, window_bounds = array<i64: 1, 8, 32>}, {transform_indices = @transform_1, window_bounds = array<i64: 1, 16, 32>}, {pipeline_mode = #tpu.pipeline_mode<synchronous>, transform_indices = @transform_2, window_bounds = array<i64: 8, 8>}, {pipeline_mode = #tpu.pipeline_mode<synchronous>, transform_indices = @transform_3, window_bounds = array<i64: 8, 16>}, {pipeline_mode = #tpu.pipeline_mode<synchronous>, transform_indices = @transform_4, window_bounds = array<i64: 32, 96>}, {pipeline_mode = #tpu.pipeline_mode<synchronous>, transform_indices = @transform_5, window_bounds = array<i64: 1, 96>}, {pipeline_mode = #tpu.pipeline_mode<synchronous>, transform_indices = @transform_6, window_bounds = array<i64: 32, 32>}, {pipeline_mode = #tpu.pipeline_mode<synchronous>, transform_indices = @transform_7, window_bounds = array<i64: 1, 32>}, {pipeline_mode = #tpu.pipeline_mode<synchronous>, transform_indices = @transform_8, window_bounds = array<i64: 32, 32>}, {pipeline_mode = #tpu.pipeline_mode<synchronous>, transform_indices = @transform_9, window_bounds = array<i64: 1, 32>}, {pipeline_mode = #tpu.pipeline_mode<synchronous>, transform_indices = @transform_10, window_bounds = array<i64: 32, 64>}, {pipeline_mode = #tpu.pipeline_mode<synchronous>, transform_indices = @transform_11, window_bounds = array<i64: 1, 64>}, {pipeline_mode = #tpu.pipeline_mode<synchronous>, transform_indices = @transform_12, window_bounds = array<i64: 32, 32>}, {pipeline_mode = #tpu.pipeline_mode<synchronous>, transform_indices = @transform_13, window_bounds = array<i64: 1, 32>}, {pipeline_mode = #tpu.pipeline_mode<synchronous>, transform_indices = @transform_14, window_bounds = array<i64: 1, 32>}, {pipeline_mode = #tpu.pipeline_mode<synchronous>, transform_indices = @transform_15, window_bounds = array<i64: 1, 32>}, {pipeline_mode = #tpu.pipeline_mode<synchronous>, transform_indices = @transform_16, window_bounds = array<i64: 1, 32>}, {pipeline_mode = #tpu.pipeline_mode<synchronous>, transform_indices = @transform_17, window_bounds = array<i64: 1, 32>}, {pipeline_mode = #tpu.pipeline_mode<synchronous>, transform_indices = @transform_18, window_bounds = array<i64: 1, 32>}, {pipeline_mode = #tpu.pipeline_mode<synchronous>, transform_indices = @transform_19, window_bounds = array<i64: 1, 32>}, {pipeline_mode = #tpu.pipeline_mode<synchronous>, transform_indices = @transform_20, window_bounds = array<i64: 32, 64>}, {pipeline_mode = #tpu.pipeline_mode<synchronous>, transform_indices = @transform_21, window_bounds = array<i64: 1, 64>}, {pipeline_mode = #tpu.pipeline_mode<synchronous>, transform_indices = @transform_22, window_bounds = array<i64: 64, 32>}, {pipeline_mode = #tpu.pipeline_mode<synchronous>, transform_indices = @transform_23, window_bounds = array<i64: 1, 32>}, {transform_indices = @transform_24, window_bounds = array<i64: 1, 8, 32>}, {transform_indices = @transform_25, window_bounds = array<i64: 1, 4, 8, 8>}, {transform_indices = @transform_26, window_bounds = array<i64: 1, 4, 8, 16>}]} {
    %c0 = arith.constant 0 : index
    %c0_0 = arith.constant 0 : index
    %c0_1 = arith.constant 0 : index
    %0 = vector.load %arg1[%c0, %c0_0, %c0_1] : memref<1x8x32xbf16, #tpu.memory_space<vmem>>, vector<1x8x32xbf16>
    %1 = vector.shape_cast %0 : vector<1x8x32xbf16> to vector<8x32xbf16>
    %c0_2 = arith.constant 0 : index
    %c0_3 = arith.constant 0 : index
    %c0_4 = arith.constant 0 : index
    %2 = vector.load %arg2[%c0_2, %c0_3, %c0_4] : memref<1x16x32xbf16, #tpu.memory_space<vmem>>, vector<1x16x32xbf16>
    %3 = vector.shape_cast %2 : vector<1x16x32xbf16> to vector<16x32xbf16>
    %4 = arith.extf %1 : vector<8x32xbf16> to vector<8x32xf32>
    %c0_5 = arith.constant 0 : index
    %c0_6 = arith.constant 0 : index
    %5 = vector.load %arg5[%c0_5, %c0_6] : memref<32x96xbf16, #tpu.memory_space<vmem>>, vector<32x96xbf16>
    %cst = arith.constant dense<0.000000e+00> : vector<8x96xf32>
    %6 = tpu.matmul %1, %5, %cst {dimension_numbers = #tpu.dot_dimension_numbers<[1], [0], [0], [1], [0, 0, 1, 1], [], []>} : vector<8x32xbf16>, vector<32x96xbf16>, vector<8x96xf32> -> vector<8x96xf32>
    %c0_7 = arith.constant 0 : index
    %c0_8 = arith.constant 0 : index
    %7 = vector.load %arg6[%c0_7, %c0_8] : memref<1x96xf32, #tpu.memory_space<vmem>>, vector<1x96xf32>
    %8 = vector.broadcast %7 : vector<1x96xf32> to vector<8x96xf32>
    %9 = arith.addf %6, %8 : vector<8x96xf32>
    %10 = vector.extract_strided_slice %9 {offsets = [0, 0], sizes = [8, 32], strides = [1, 1]} : vector<8x96xf32> to vector<8x32xf32>
    %11 = vector.extract_strided_slice %9 {offsets = [0, 32], sizes = [8, 32], strides = [1, 1]} : vector<8x96xf32> to vector<8x32xf32>
    %12 = vector.extract_strided_slice %9 {offsets = [0, 64], sizes = [8, 32], strides = [1, 1]} : vector<8x96xf32> to vector<8x32xf32>
    %c0_9 = arith.constant 0 : index
    %c0_10 = arith.constant 0 : index
    %13 = vector.load %arg3[%c0_9, %c0_10] : memref<8x8xbf16, #tpu.memory_space<vmem>>, vector<8x8xbf16>
    %14 = arith.extf %13 : vector<8x8xbf16> to vector<8x8xf32>
    %15 = arith.truncf %10 : vector<8x32xf32> to vector<8x32xbf16>
    %16 = arith.truncf %11 : vector<8x32xf32> to vector<8x32xbf16>
    %17 = arith.truncf %12 : vector<8x32xf32> to vector<8x32xbf16>
    %18 = vector.extract_strided_slice %15 {offsets = [0, 0], sizes = [8, 8], strides = [1, 1]} : vector<8x32xbf16> to vector<8x8xbf16>
    %19 = vector.extract_strided_slice %16 {offsets = [0, 0], sizes = [8, 8], strides = [1, 1]} : vector<8x32xbf16> to vector<8x8xbf16>
    %cst_11 = arith.constant dense<0.000000e+00> : vector<8x8xf32>
    %20 = tpu.matmul %18, %19, %cst_11 {dimension_numbers = #tpu.dot_dimension_numbers<[1], [1], [0], [0], [0, 0, 1, 0], [], []>} : vector<8x8xbf16>, vector<8x8xbf16>, vector<8x8xf32> -> vector<8x8xf32>
    %21 = arith.addf %20, %14 : vector<8x8xf32>
    %cst_12 = arith.constant dense<0xFF800000> : vector<8xf32>
    %22 = vector.multi_reduction <maximumf>, %21, %cst_12 [1] : vector<8x8xf32> to vector<8xf32>
    %23 = vector.shape_cast %22 : vector<8xf32> to vector<8x1xf32>
    %24 = vector.broadcast %23 : vector<8x1xf32> to vector<8x8xf32>
    %25 = arith.subf %21, %24 : vector<8x8xf32>
    %26 = math.exp %25 : vector<8x8xf32>
    %cst_13 = arith.constant dense<0.000000e+00> : vector<8xf32>
    %27 = vector.multi_reduction <add>, %26, %cst_13 [1] : vector<8x8xf32> to vector<8xf32>
    %28 = vector.shape_cast %27 : vector<8xf32> to vector<8x1xf32>
    %29 = tpu.reciprocal %28 {approx = true} : vector<8x1xf32> -> vector<8x1xf32>
    %30 = vector.broadcast %29 : vector<8x1xf32> to vector<8x8xf32>
    %31 = arith.mulf %26, %30 : vector<8x8xf32>
    %32 = arith.truncf %31 : vector<8x8xf32> to vector<8x8xbf16>
    %c0_14 = arith.constant 0 : index
    %c0_15 = arith.constant 0 : index
    %c0_16 = arith.constant 0 : index
    %c0_17 = arith.constant 0 : index
    %33 = vector.load %arg26[%c0_14, %c0_15, %c0_16, %c0_17] : memref<1x4x8x8xbf16, #tpu.memory_space<vmem>>, vector<1x1x8x8xbf16>
    %34 = vector.shape_cast %33 : vector<1x1x8x8xbf16> to vector<8x8xbf16>
    %35 = vector.shape_cast %32 : vector<8x8xbf16> to vector<1x1x8x8xbf16>
    tpu.vector_store %arg26[%c0_14, %c0_15, %c0_16, %c0_17], %35 {strides = array<i32>} : memref<1x4x8x8xbf16, #tpu.memory_space<vmem>>, vector<1x1x8x8xbf16>,
    %36 = arith.truncf %31 : vector<8x8xf32> to vector<8x8xbf16>
    %37 = vector.extract_strided_slice %17 {offsets = [0, 0], sizes = [8, 8], strides = [1, 1]} : vector<8x32xbf16> to vector<8x8xbf16>
    %cst_18 = arith.constant dense<0.000000e+00> : vector<8x8xf32>
    %38 = tpu.matmul %36, %37, %cst_18 {dimension_numbers = #tpu.dot_dimension_numbers<[1], [0], [0], [1], [0, 0, 1, 1], [], []>} : vector<8x8xbf16>, vector<8x8xbf16>, vector<8x8xf32> -> vector<8x8xf32>
    %39 = vector.extract_strided_slice %15 {offsets = [0, 8], sizes = [8, 8], strides = [1, 1]} : vector<8x32xbf16> to vector<8x8xbf16>
    %40 = vector.extract_strided_slice %16 {offsets = [0, 8], sizes = [8, 8], strides = [1, 1]} : vector<8x32xbf16> to vector<8x8xbf16>
    %cst_19 = arith.constant dense<0.000000e+00> : vector<8x8xf32>
    %41 = tpu.matmul %39, %40, %cst_19 {dimension_numbers = #tpu.dot_dimension_numbers<[1], [1], [0], [0], [0, 0, 1, 0], [], []>} : vector<8x8xbf16>, vector<8x8xbf16>, vector<8x8xf32> -> vector<8x8xf32>
    %42 = arith.addf %41, %14 : vector<8x8xf32>
    %cst_20 = arith.constant dense<0xFF800000> : vector<8xf32>
    %43 = vector.multi_reduction <maximumf>, %42, %cst_20 [1] : vector<8x8xf32> to vector<8xf32>
    %44 = vector.shape_cast %43 : vector<8xf32> to vector<8x1xf32>
    %45 = vector.broadcast %44 : vector<8x1xf32> to vector<8x8xf32>
    %46 = arith.subf %42, %45 : vector<8x8xf32>
    %47 = math.exp %46 : vector<8x8xf32>
    %cst_21 = arith.constant dense<0.000000e+00> : vector<8xf32>
    %48 = vector.multi_reduction <add>, %47, %cst_21 [1] : vector<8x8xf32> to vector<8xf32>
    %49 = vector.shape_cast %48 : vector<8xf32> to vector<8x1xf32>
    %50 = tpu.reciprocal %49 {approx = true} : vector<8x1xf32> -> vector<8x1xf32>
    %51 = vector.broadcast %50 : vector<8x1xf32> to vector<8x8xf32>
    %52 = arith.mulf %47, %51 : vector<8x8xf32>
    %53 = arith.truncf %52 : vector<8x8xf32> to vector<8x8xbf16>
    %c0_22 = arith.constant 0 : index
    %c1 = arith.constant 1 : index
    %c0_23 = arith.constant 0 : index
    %c0_24 = arith.constant 0 : index
    %54 = vector.load %arg26[%c0_22, %c1, %c0_23, %c0_24] : memref<1x4x8x8xbf16, #tpu.memory_space<vmem>>, vector<1x1x8x8xbf16>
    %55 = vector.shape_cast %54 : vector<1x1x8x8xbf16> to vector<8x8xbf16>
    %56 = vector.shape_cast %53 : vector<8x8xbf16> to vector<1x1x8x8xbf16>
    tpu.vector_store %arg26[%c0_22, %c1, %c0_23, %c0_24], %56 {strides = array<i32>} : memref<1x4x8x8xbf16, #tpu.memory_space<vmem>>, vector<1x1x8x8xbf16>,
    %57 = arith.truncf %52 : vector<8x8xf32> to vector<8x8xbf16>
    %58 = vector.extract_strided_slice %17 {offsets = [0, 8], sizes = [8, 8], strides = [1, 1]} : vector<8x32xbf16> to vector<8x8xbf16>
    %cst_25 = arith.constant dense<0.000000e+00> : vector<8x8xf32>
    %59 = tpu.matmul %57, %58, %cst_25 {dimension_numbers = #tpu.dot_dimension_numbers<[1], [0], [0], [1], [0, 0, 1, 1], [], []>} : vector<8x8xbf16>, vector<8x8xbf16>, vector<8x8xf32> -> vector<8x8xf32>
    %60 = vector.extract_strided_slice %15 {offsets = [0, 16], sizes = [8, 8], strides = [1, 1]} : vector<8x32xbf16> to vector<8x8xbf16>
    %61 = vector.extract_strided_slice %16 {offsets = [0, 16], sizes = [8, 8], strides = [1, 1]} : vector<8x32xbf16> to vector<8x8xbf16>
    %cst_26 = arith.constant dense<0.000000e+00> : vector<8x8xf32>
    %62 = tpu.matmul %60, %61, %cst_26 {dimension_numbers = #tpu.dot_dimension_numbers<[1], [1], [0], [0], [0, 0, 1, 0], [], []>} : vector<8x8xbf16>, vector<8x8xbf16>, vector<8x8xf32> -> vector<8x8xf32>
    %63 = arith.addf %62, %14 : vector<8x8xf32>
    %cst_27 = arith.constant dense<0xFF800000> : vector<8xf32>
    %64 = vector.multi_reduction <maximumf>, %63, %cst_27 [1] : vector<8x8xf32> to vector<8xf32>
    %65 = vector.shape_cast %64 : vector<8xf32> to vector<8x1xf32>
    %66 = vector.broadcast %65 : vector<8x1xf32> to vector<8x8xf32>
    %67 = arith.subf %63, %66 : vector<8x8xf32>
    %68 = math.exp %67 : vector<8x8xf32>
    %cst_28 = arith.constant dense<0.000000e+00> : vector<8xf32>
    %69 = vector.multi_reduction <add>, %68, %cst_28 [1] : vector<8x8xf32> to vector<8xf32>
    %70 = vector.shape_cast %69 : vector<8xf32> to vector<8x1xf32>
    %71 = tpu.reciprocal %70 {approx = true} : vector<8x1xf32> -> vector<8x1xf32>
    %72 = vector.broadcast %71 : vector<8x1xf32> to vector<8x8xf32>
    %73 = arith.mulf %68, %72 : vector<8x8xf32>
    %74 = arith.truncf %73 : vector<8x8xf32> to vector<8x8xbf16>
    %c0_29 = arith.constant 0 : index
    %c2 = arith.constant 2 : index
    %c0_30 = arith.constant 0 : index
    %c0_31 = arith.constant 0 : index
    %75 = vector.load %arg26[%c0_29, %c2, %c0_30, %c0_31] : memref<1x4x8x8xbf16, #tpu.memory_space<vmem>>, vector<1x1x8x8xbf16>
    %76 = vector.shape_cast %75 : vector<1x1x8x8xbf16> to vector<8x8xbf16>
    %77 = vector.shape_cast %74 : vector<8x8xbf16> to vector<1x1x8x8xbf16>
    tpu.vector_store %arg26[%c0_29, %c2, %c0_30, %c0_31], %77 {strides = array<i32>} : memref<1x4x8x8xbf16, #tpu.memory_space<vmem>>, vector<1x1x8x8xbf16>,
    %78 = arith.truncf %73 : vector<8x8xf32> to vector<8x8xbf16>
    %79 = vector.extract_strided_slice %17 {offsets = [0, 16], sizes = [8, 8], strides = [1, 1]} : vector<8x32xbf16> to vector<8x8xbf16>
    %cst_32 = arith.constant dense<0.000000e+00> : vector<8x8xf32>
    %80 = tpu.matmul %78, %79, %cst_32 {dimension_numbers = #tpu.dot_dimension_numbers<[1], [0], [0], [1], [0, 0, 1, 1], [], []>} : vector<8x8xbf16>, vector<8x8xbf16>, vector<8x8xf32> -> vector<8x8xf32>
    %81 = vector.extract_strided_slice %15 {offsets = [0, 24], sizes = [8, 8], strides = [1, 1]} : vector<8x32xbf16> to vector<8x8xbf16>
    %82 = vector.extract_strided_slice %16 {offsets = [0, 24], sizes = [8, 8], strides = [1, 1]} : vector<8x32xbf16> to vector<8x8xbf16>
    %cst_33 = arith.constant dense<0.000000e+00> : vector<8x8xf32>
    %83 = tpu.matmul %81, %82, %cst_33 {dimension_numbers = #tpu.dot_dimension_numbers<[1], [1], [0], [0], [0, 0, 1, 0], [], []>} : vector<8x8xbf16>, vector<8x8xbf16>, vector<8x8xf32> -> vector<8x8xf32>
    %84 = arith.addf %83, %14 : vector<8x8xf32>
    %cst_34 = arith.constant dense<0xFF800000> : vector<8xf32>
    %85 = vector.multi_reduction <maximumf>, %84, %cst_34 [1] : vector<8x8xf32> to vector<8xf32>
    %86 = vector.shape_cast %85 : vector<8xf32> to vector<8x1xf32>
    %87 = vector.broadcast %86 : vector<8x1xf32> to vector<8x8xf32>
    %88 = arith.subf %84, %87 : vector<8x8xf32>
    %89 = math.exp %88 : vector<8x8xf32>
    %cst_35 = arith.constant dense<0.000000e+00> : vector<8xf32>
    %90 = vector.multi_reduction <add>, %89, %cst_35 [1] : vector<8x8xf32> to vector<8xf32>
    %91 = vector.shape_cast %90 : vector<8xf32> to vector<8x1xf32>
    %92 = tpu.reciprocal %91 {approx = true} : vector<8x1xf32> -> vector<8x1xf32>
    %93 = vector.broadcast %92 : vector<8x1xf32> to vector<8x8xf32>
    %94 = arith.mulf %89, %93 : vector<8x8xf32>
    %95 = arith.truncf %94 : vector<8x8xf32> to vector<8x8xbf16>
    %c0_36 = arith.constant 0 : index
    %c3 = arith.constant 3 : index
    %c0_37 = arith.constant 0 : index
    %c0_38 = arith.constant 0 : index
    %96 = vector.load %arg26[%c0_36, %c3, %c0_37, %c0_38] : memref<1x4x8x8xbf16, #tpu.memory_space<vmem>>, vector<1x1x8x8xbf16>
    %97 = vector.shape_cast %96 : vector<1x1x8x8xbf16> to vector<8x8xbf16>
    %98 = vector.shape_cast %95 : vector<8x8xbf16> to vector<1x1x8x8xbf16>
    tpu.vector_store %arg26[%c0_36, %c3, %c0_37, %c0_38], %98 {strides = array<i32>} : memref<1x4x8x8xbf16, #tpu.memory_space<vmem>>, vector<1x1x8x8xbf16>,
    %99 = arith.truncf %94 : vector<8x8xf32> to vector<8x8xbf16>
    %100 = vector.extract_strided_slice %17 {offsets = [0, 24], sizes = [8, 8], strides = [1, 1]} : vector<8x32xbf16> to vector<8x8xbf16>
    %cst_39 = arith.constant dense<0.000000e+00> : vector<8x8xf32>
    %101 = tpu.matmul %99, %100, %cst_39 {dimension_numbers = #tpu.dot_dimension_numbers<[1], [0], [0], [1], [0, 0, 1, 1], [], []>} : vector<8x8xbf16>, vector<8x8xbf16>, vector<8x8xf32> -> vector<8x8xf32>
    %102 = tpu.concatenate %38, %59, %80, %101 in 1 : vector<8x8xf32>, vector<8x8xf32>, vector<8x8xf32>, vector<8x8xf32> -> vector<8x32xf32>
    %103 = arith.truncf %102 : vector<8x32xf32> to vector<8x32xbf16>
    %c0_40 = arith.constant 0 : index
    %c0_41 = arith.constant 0 : index
    %104 = vector.load %arg7[%c0_40, %c0_41] : memref<32x32xbf16, #tpu.memory_space<vmem>>, vector<32x32xbf16>
    %cst_42 = arith.constant dense<0.000000e+00> : vector<8x32xf32>
    %105 = tpu.matmul %103, %104, %cst_42 {dimension_numbers = #tpu.dot_dimension_numbers<[1], [0], [0], [1], [0, 0, 1, 1], [], []>} : vector<8x32xbf16>, vector<32x32xbf16>, vector<8x32xf32> -> vector<8x32xf32>
    %c0_43 = arith.constant 0 : index
    %c0_44 = arith.constant 0 : index
    %106 = vector.load %arg8[%c0_43, %c0_44] : memref<1x32xf32, #tpu.memory_space<vmem>>, vector<1x32xf32>
    %107 = vector.broadcast %106 : vector<1x32xf32> to vector<8x32xf32>
    %108 = arith.addf %105, %107 : vector<8x32xf32>
    %109 = arith.addf %4, %108 : vector<8x32xf32>
    %c0_45 = arith.constant 0 : index
    %c0_46 = arith.constant 0 : index
    %110 = vector.load %arg15[%c0_45, %c0_46] : memref<1x32xf32, #tpu.memory_space<vmem>>, vector<1x32xf32>
    %c0_47 = arith.constant 0 : index
    %c0_48 = arith.constant 0 : index
    %111 = vector.load %arg16[%c0_47, %c0_48] : memref<1x32xf32, #tpu.memory_space<vmem>>, vector<1x32xf32>
    %cst_49 = arith.constant dense<0.000000e+00> : vector<8xf32>
    %112 = vector.multi_reduction <add>, %109, %cst_49 [1] : vector<8x32xf32> to vector<8xf32>
    %113 = vector.shape_cast %112 : vector<8xf32> to vector<8x1xf32>
    %cst_50 = arith.constant 3.200000e+01 : f32
    %114 = vector.broadcast %cst_50 : f32 to vector<8x1xf32>
    %115 = arith.divf %113, %114 : vector<8x1xf32>
    %116 = vector.broadcast %115 : vector<8x1xf32> to vector<8x32xf32>
    %117 = arith.subf %109, %116 : vector<8x32xf32>
    %118 = arith.mulf %117, %117 : vector<8x32xf32>
    %cst_51 = arith.constant dense<0.000000e+00> : vector<8xf32>
    %119 = vector.multi_reduction <add>, %118, %cst_51 [1] : vector<8x32xf32> to vector<8xf32>
    %120 = vector.shape_cast %119 : vector<8xf32> to vector<8x1xf32>
    %cst_52 = arith.constant 3.200000e+01 : f32
    %121 = vector.broadcast %cst_52 : f32 to vector<8x1xf32>
    %122 = arith.divf %120, %121 : vector<8x1xf32>
    %cst_53 = arith.constant 9.99999974E-6 : f32
    %123 = vector.broadcast %cst_53 : f32 to vector<8x1xf32>
    %124 = arith.addf %122, %123 : vector<8x1xf32>
    %125 = math.rsqrt %124 : vector<8x1xf32>
    %126 = vector.broadcast %125 : vector<8x1xf32> to vector<8x32xf32>
    %127 = arith.mulf %117, %126 : vector<8x32xf32>
    %128 = vector.broadcast %110 : vector<1x32xf32> to vector<8x32xf32>
    %129 = arith.mulf %127, %128 : vector<8x32xf32>
    %130 = vector.broadcast %111 : vector<1x32xf32> to vector<8x32xf32>
    %131 = arith.addf %129, %130 : vector<8x32xf32>
    %132 = arith.truncf %131 : vector<8x32xf32> to vector<8x32xbf16>
    %c0_54 = arith.constant 0 : index
    %c0_55 = arith.constant 0 : index
    %133 = vector.load %arg9[%c0_54, %c0_55] : memref<32x32xbf16, #tpu.memory_space<vmem>>, vector<32x32xbf16>
    %cst_56 = arith.constant dense<0.000000e+00> : vector<8x32xf32>
    %134 = tpu.matmul %132, %133, %cst_56 {dimension_numbers = #tpu.dot_dimension_numbers<[1], [0], [0], [1], [0, 0, 1, 1], [], []>} : vector<8x32xbf16>, vector<32x32xbf16>, vector<8x32xf32> -> vector<8x32xf32>
    %c0_57 = arith.constant 0 : index
    %c0_58 = arith.constant 0 : index
    %135 = vector.load %arg10[%c0_57, %c0_58] : memref<1x32xf32, #tpu.memory_space<vmem>>, vector<1x32xf32>
    %136 = vector.broadcast %135 : vector<1x32xf32> to vector<8x32xf32>
    %137 = arith.addf %134, %136 : vector<8x32xf32>
    %c0_59 = arith.constant 0 : index
    %c0_60 = arith.constant 0 : index
    %138 = vector.load %arg11[%c0_59, %c0_60] : memref<32x64xbf16, #tpu.memory_space<vmem>>, vector<32x64xbf16>
    %cst_61 = arith.constant dense<0.000000e+00> : vector<16x64xf32>
    %139 = tpu.matmul %3, %138, %cst_61 {dimension_numbers = #tpu.dot_dimension_numbers<[1], [0], [0], [1], [0, 0, 1, 1], [], []>} : vector<16x32xbf16>, vector<32x64xbf16>, vector<16x64xf32> -> vector<16x64xf32>
    %c0_62 = arith.constant 0 : index
    %c0_63 = arith.constant 0 : index
    %140 = vector.load %arg12[%c0_62, %c0_63] : memref<1x64xf32, #tpu.memory_space<vmem>>, vector<1x64xf32>
    %141 = vector.broadcast %140 : vector<1x64xf32> to vector<16x64xf32>
    %142 = arith.addf %139, %141 : vector<16x64xf32>
    %143 = vector.extract_strided_slice %142 {offsets = [0, 0], sizes = [16, 32], strides = [1, 1]} : vector<16x64xf32> to vector<16x32xf32>
    %144 = vector.extract_strided_slice %142 {offsets = [0, 32], sizes = [16, 32], strides = [1, 1]} : vector<16x64xf32> to vector<16x32xf32>
    %c0_64 = arith.constant 0 : index
    %c0_65 = arith.constant 0 : index
    %145 = vector.load %arg4[%c0_64, %c0_65] : memref<8x16xbf16, #tpu.memory_space<vmem>>, vector<8x16xbf16>
    %146 = arith.extf %145 : vector<8x16xbf16> to vector<8x16xf32>
    %147 = arith.truncf %137 : vector<8x32xf32> to vector<8x32xbf16>
    %148 = arith.truncf %143 : vector<16x32xf32> to vector<16x32xbf16>
    %149 = arith.truncf %144 : vector<16x32xf32> to vector<16x32xbf16>
    %150 = vector.extract_strided_slice %147 {offsets = [0, 0], sizes = [8, 8], strides = [1, 1]} : vector<8x32xbf16> to vector<8x8xbf16>
    %151 = vector.extract_strided_slice %148 {offsets = [0, 0], sizes = [16, 8], strides = [1, 1]} : vector<16x32xbf16> to vector<16x8xbf16>
    %cst_66 = arith.constant dense<0.000000e+00> : vector<8x16xf32>
    %152 = tpu.matmul %150, %151, %cst_66 {dimension_numbers = #tpu.dot_dimension_numbers<[1], [1], [0], [0], [0, 0, 1, 0], [], []>} : vector<8x8xbf16>, vector<16x8xbf16>, vector<8x16xf32> -> vector<8x16xf32>
    %153 = arith.addf %152, %146 : vector<8x16xf32>
    %cst_67 = arith.constant dense<0xFF800000> : vector<8xf32>
    %154 = vector.multi_reduction <maximumf>, %153, %cst_67 [1] : vector<8x16xf32> to vector<8xf32>
    %155 = vector.shape_cast %154 : vector<8xf32> to vector<8x1xf32>
    %156 = vector.broadcast %155 : vector<8x1xf32> to vector<8x16xf32>
    %157 = arith.subf %153, %156 : vector<8x16xf32>
    %158 = math.exp %157 : vector<8x16xf32>
    %cst_68 = arith.constant dense<0.000000e+00> : vector<8xf32>
    %159 = vector.multi_reduction <add>, %158, %cst_68 [1] : vector<8x16xf32> to vector<8xf32>
    %160 = vector.shape_cast %159 : vector<8xf32> to vector<8x1xf32>
    %161 = tpu.reciprocal %160 {approx = true} : vector<8x1xf32> -> vector<8x1xf32>
    %162 = vector.broadcast %161 : vector<8x1xf32> to vector<8x16xf32>
    %163 = arith.mulf %158, %162 : vector<8x16xf32>
    %164 = arith.truncf %163 : vector<8x16xf32> to vector<8x16xbf16>
    %c0_69 = arith.constant 0 : index
    %c0_70 = arith.constant 0 : index
    %c0_71 = arith.constant 0 : index
    %c0_72 = arith.constant 0 : index
    %165 = vector.load %arg27[%c0_69, %c0_70, %c0_71, %c0_72] : memref<1x4x8x16xbf16, #tpu.memory_space<vmem>>, vector<1x1x8x16xbf16>
    %166 = vector.shape_cast %165 : vector<1x1x8x16xbf16> to vector<8x16xbf16>
    %167 = vector.shape_cast %164 : vector<8x16xbf16> to vector<1x1x8x16xbf16>
    tpu.vector_store %arg27[%c0_69, %c0_70, %c0_71, %c0_72], %167 {strides = array<i32>} : memref<1x4x8x16xbf16, #tpu.memory_space<vmem>>, vector<1x1x8x16xbf16>,
    %168 = arith.truncf %163 : vector<8x16xf32> to vector<8x16xbf16>
    %169 = vector.extract_strided_slice %149 {offsets = [0, 0], sizes = [16, 8], strides = [1, 1]} : vector<16x32xbf16> to vector<16x8xbf16>
    %cst_73 = arith.constant dense<0.000000e+00> : vector<8x8xf32>
    %170 = tpu.matmul %168, %169, %cst_73 {dimension_numbers = #tpu.dot_dimension_numbers<[1], [0], [0], [1], [0, 0, 1, 1], [], []>} : vector<8x16xbf16>, vector<16x8xbf16>, vector<8x8xf32> -> vector<8x8xf32>
    %171 = vector.extract_strided_slice %147 {offsets = [0, 8], sizes = [8, 8], strides = [1, 1]} : vector<8x32xbf16> to vector<8x8xbf16>
    %172 = vector.extract_strided_slice %148 {offsets = [0, 8], sizes = [16, 8], strides = [1, 1]} : vector<16x32xbf16> to vector<16x8xbf16>
    %cst_74 = arith.constant dense<0.000000e+00> : vector<8x16xf32>
    %173 = tpu.matmul %171, %172, %cst_74 {dimension_numbers = #tpu.dot_dimension_numbers<[1], [1], [0], [0], [0, 0, 1, 0], [], []>} : vector<8x8xbf16>, vector<16x8xbf16>, vector<8x16xf32> -> vector<8x16xf32>
    %174 = arith.addf %173, %146 : vector<8x16xf32>
    %cst_75 = arith.constant dense<0xFF800000> : vector<8xf32>
    %175 = vector.multi_reduction <maximumf>, %174, %cst_75 [1] : vector<8x16xf32> to vector<8xf32>
    %176 = vector.shape_cast %175 : vector<8xf32> to vector<8x1xf32>
    %177 = vector.broadcast %176 : vector<8x1xf32> to vector<8x16xf32>
    %178 = arith.subf %174, %177 : vector<8x16xf32>
    %179 = math.exp %178 : vector<8x16xf32>
    %cst_76 = arith.constant dense<0.000000e+00> : vector<8xf32>
    %180 = vector.multi_reduction <add>, %179, %cst_76 [1] : vector<8x16xf32> to vector<8xf32>
    %181 = vector.shape_cast %180 : vector<8xf32> to vector<8x1xf32>
    %182 = tpu.reciprocal %181 {approx = true} : vector<8x1xf32> -> vector<8x1xf32>
    %183 = vector.broadcast %182 : vector<8x1xf32> to vector<8x16xf32>
    %184 = arith.mulf %179, %183 : vector<8x16xf32>
    %185 = arith.truncf %184 : vector<8x16xf32> to vector<8x16xbf16>
    %c0_77 = arith.constant 0 : index
    %c1_78 = arith.constant 1 : index
    %c0_79 = arith.constant 0 : index
    %c0_80 = arith.constant 0 : index
    %186 = vector.load %arg27[%c0_77, %c1_78, %c0_79, %c0_80] : memref<1x4x8x16xbf16, #tpu.memory_space<vmem>>, vector<1x1x8x16xbf16>
    %187 = vector.shape_cast %186 : vector<1x1x8x16xbf16> to vector<8x16xbf16>
    %188 = vector.shape_cast %185 : vector<8x16xbf16> to vector<1x1x8x16xbf16>
    tpu.vector_store %arg27[%c0_77, %c1_78, %c0_79, %c0_80], %188 {strides = array<i32>} : memref<1x4x8x16xbf16, #tpu.memory_space<vmem>>, vector<1x1x8x16xbf16>,
    %189 = arith.truncf %184 : vector<8x16xf32> to vector<8x16xbf16>
    %190 = vector.extract_strided_slice %149 {offsets = [0, 8], sizes = [16, 8], strides = [1, 1]} : vector<16x32xbf16> to vector<16x8xbf16>
    %cst_81 = arith.constant dense<0.000000e+00> : vector<8x8xf32>
    %191 = tpu.matmul %189, %190, %cst_81 {dimension_numbers = #tpu.dot_dimension_numbers<[1], [0], [0], [1], [0, 0, 1, 1], [], []>} : vector<8x16xbf16>, vector<16x8xbf16>, vector<8x8xf32> -> vector<8x8xf32>
    %192 = vector.extract_strided_slice %147 {offsets = [0, 16], sizes = [8, 8], strides = [1, 1]} : vector<8x32xbf16> to vector<8x8xbf16>
    %193 = vector.extract_strided_slice %148 {offsets = [0, 16], sizes = [16, 8], strides = [1, 1]} : vector<16x32xbf16> to vector<16x8xbf16>
    %cst_82 = arith.constant dense<0.000000e+00> : vector<8x16xf32>
    %194 = tpu.matmul %192, %193, %cst_82 {dimension_numbers = #tpu.dot_dimension_numbers<[1], [1], [0], [0], [0, 0, 1, 0], [], []>} : vector<8x8xbf16>, vector<16x8xbf16>, vector<8x16xf32> -> vector<8x16xf32>
    %195 = arith.addf %194, %146 : vector<8x16xf32>
    %cst_83 = arith.constant dense<0xFF800000> : vector<8xf32>
    %196 = vector.multi_reduction <maximumf>, %195, %cst_83 [1] : vector<8x16xf32> to vector<8xf32>
    %197 = vector.shape_cast %196 : vector<8xf32> to vector<8x1xf32>
    %198 = vector.broadcast %197 : vector<8x1xf32> to vector<8x16xf32>
    %199 = arith.subf %195, %198 : vector<8x16xf32>
    %200 = math.exp %199 : vector<8x16xf32>
    %cst_84 = arith.constant dense<0.000000e+00> : vector<8xf32>
    %201 = vector.multi_reduction <add>, %200, %cst_84 [1] : vector<8x16xf32> to vector<8xf32>
    %202 = vector.shape_cast %201 : vector<8xf32> to vector<8x1xf32>
    %203 = tpu.reciprocal %202 {approx = true} : vector<8x1xf32> -> vector<8x1xf32>
    %204 = vector.broadcast %203 : vector<8x1xf32> to vector<8x16xf32>
    %205 = arith.mulf %200, %204 : vector<8x16xf32>
    %206 = arith.truncf %205 : vector<8x16xf32> to vector<8x16xbf16>
    %c0_85 = arith.constant 0 : index
    %c2_86 = arith.constant 2 : index
    %c0_87 = arith.constant 0 : index
    %c0_88 = arith.constant 0 : index
    %207 = vector.load %arg27[%c0_85, %c2_86, %c0_87, %c0_88] : memref<1x4x8x16xbf16, #tpu.memory_space<vmem>>, vector<1x1x8x16xbf16>
    %208 = vector.shape_cast %207 : vector<1x1x8x16xbf16> to vector<8x16xbf16>
    %209 = vector.shape_cast %206 : vector<8x16xbf16> to vector<1x1x8x16xbf16>
    tpu.vector_store %arg27[%c0_85, %c2_86, %c0_87, %c0_88], %209 {strides = array<i32>} : memref<1x4x8x16xbf16, #tpu.memory_space<vmem>>, vector<1x1x8x16xbf16>,
    %210 = arith.truncf %205 : vector<8x16xf32> to vector<8x16xbf16>
    %211 = vector.extract_strided_slice %149 {offsets = [0, 16], sizes = [16, 8], strides = [1, 1]} : vector<16x32xbf16> to vector<16x8xbf16>
    %cst_89 = arith.constant dense<0.000000e+00> : vector<8x8xf32>
    %212 = tpu.matmul %210, %211, %cst_89 {dimension_numbers = #tpu.dot_dimension_numbers<[1], [0], [0], [1], [0, 0, 1, 1], [], []>} : vector<8x16xbf16>, vector<16x8xbf16>, vector<8x8xf32> -> vector<8x8xf32>
    %213 = vector.extract_strided_slice %147 {offsets = [0, 24], sizes = [8, 8], strides = [1, 1]} : vector<8x32xbf16> to vector<8x8xbf16>
    %214 = vector.extract_strided_slice %148 {offsets = [0, 24], sizes = [16, 8], strides = [1, 1]} : vector<16x32xbf16> to vector<16x8xbf16>
    %cst_90 = arith.constant dense<0.000000e+00> : vector<8x16xf32>
    %215 = tpu.matmul %213, %214, %cst_90 {dimension_numbers = #tpu.dot_dimension_numbers<[1], [1], [0], [0], [0, 0, 1, 0], [], []>} : vector<8x8xbf16>, vector<16x8xbf16>, vector<8x16xf32> -> vector<8x16xf32>
    %216 = arith.addf %215, %146 : vector<8x16xf32>
    %cst_91 = arith.constant dense<0xFF800000> : vector<8xf32>
    %217 = vector.multi_reduction <maximumf>, %216, %cst_91 [1] : vector<8x16xf32> to vector<8xf32>
    %218 = vector.shape_cast %217 : vector<8xf32> to vector<8x1xf32>
    %219 = vector.broadcast %218 : vector<8x1xf32> to vector<8x16xf32>
    %220 = arith.subf %216, %219 : vector<8x16xf32>
    %221 = math.exp %220 : vector<8x16xf32>
    %cst_92 = arith.constant dense<0.000000e+00> : vector<8xf32>
    %222 = vector.multi_reduction <add>, %221, %cst_92 [1] : vector<8x16xf32> to vector<8xf32>
    %223 = vector.shape_cast %222 : vector<8xf32> to vector<8x1xf32>
    %224 = tpu.reciprocal %223 {approx = true} : vector<8x1xf32> -> vector<8x1xf32>
    %225 = vector.broadcast %224 : vector<8x1xf32> to vector<8x16xf32>
    %226 = arith.mulf %221, %225 : vector<8x16xf32>
    %227 = arith.truncf %226 : vector<8x16xf32> to vector<8x16xbf16>
    %c0_93 = arith.constant 0 : index
    %c3_94 = arith.constant 3 : index
    %c0_95 = arith.constant 0 : index
    %c0_96 = arith.constant 0 : index
    %228 = vector.load %arg27[%c0_93, %c3_94, %c0_95, %c0_96] : memref<1x4x8x16xbf16, #tpu.memory_space<vmem>>, vector<1x1x8x16xbf16>
    %229 = vector.shape_cast %228 : vector<1x1x8x16xbf16> to vector<8x16xbf16>
    %230 = vector.shape_cast %227 : vector<8x16xbf16> to vector<1x1x8x16xbf16>
    tpu.vector_store %arg27[%c0_93, %c3_94, %c0_95, %c0_96], %230 {strides = array<i32>} : memref<1x4x8x16xbf16, #tpu.memory_space<vmem>>, vector<1x1x8x16xbf16>,
    %231 = arith.truncf %226 : vector<8x16xf32> to vector<8x16xbf16>
    %232 = vector.extract_strided_slice %149 {offsets = [0, 24], sizes = [16, 8], strides = [1, 1]} : vector<16x32xbf16> to vector<16x8xbf16>
    %cst_97 = arith.constant dense<0.000000e+00> : vector<8x8xf32>
    %233 = tpu.matmul %231, %232, %cst_97 {dimension_numbers = #tpu.dot_dimension_numbers<[1], [0], [0], [1], [0, 0, 1, 1], [], []>} : vector<8x16xbf16>, vector<16x8xbf16>, vector<8x8xf32> -> vector<8x8xf32>
    %234 = tpu.concatenate %170, %191, %212, %233 in 1 : vector<8x8xf32>, vector<8x8xf32>, vector<8x8xf32>, vector<8x8xf32> -> vector<8x32xf32>
    %235 = arith.truncf %234 : vector<8x32xf32> to vector<8x32xbf16>
    %c0_98 = arith.constant 0 : index
    %c0_99 = arith.constant 0 : index
    %236 = vector.load %arg13[%c0_98, %c0_99] : memref<32x32xbf16, #tpu.memory_space<vmem>>, vector<32x32xbf16>
    %cst_100 = arith.constant dense<0.000000e+00> : vector<8x32xf32>
    %237 = tpu.matmul %235, %236, %cst_100 {dimension_numbers = #tpu.dot_dimension_numbers<[1], [0], [0], [1], [0, 0, 1, 1], [], []>} : vector<8x32xbf16>, vector<32x32xbf16>, vector<8x32xf32> -> vector<8x32xf32>
    %c0_101 = arith.constant 0 : index
    %c0_102 = arith.constant 0 : index
    %238 = vector.load %arg14[%c0_101, %c0_102] : memref<1x32xf32, #tpu.memory_space<vmem>>, vector<1x32xf32>
    %239 = vector.broadcast %238 : vector<1x32xf32> to vector<8x32xf32>
    %240 = arith.addf %237, %239 : vector<8x32xf32>
    %241 = arith.addf %131, %240 : vector<8x32xf32>
    %c0_103 = arith.constant 0 : index
    %c0_104 = arith.constant 0 : index
    %242 = vector.load %arg17[%c0_103, %c0_104] : memref<1x32xf32, #tpu.memory_space<vmem>>, vector<1x32xf32>
    %c0_105 = arith.constant 0 : index
    %c0_106 = arith.constant 0 : index
    %243 = vector.load %arg18[%c0_105, %c0_106] : memref<1x32xf32, #tpu.memory_space<vmem>>, vector<1x32xf32>
    %cst_107 = arith.constant dense<0.000000e+00> : vector<8xf32>
    %244 = vector.multi_reduction <add>, %241, %cst_107 [1] : vector<8x32xf32> to vector<8xf32>
    %245 = vector.shape_cast %244 : vector<8xf32> to vector<8x1xf32>
    %cst_108 = arith.constant 3.200000e+01 : f32
    %246 = vector.broadcast %cst_108 : f32 to vector<8x1xf32>
    %247 = arith.divf %245, %246 : vector<8x1xf32>
    %248 = vector.broadcast %247 : vector<8x1xf32> to vector<8x32xf32>
    %249 = arith.subf %241, %248 : vector<8x32xf32>
    %250 = arith.mulf %249, %249 : vector<8x32xf32>
    %cst_109 = arith.constant dense<0.000000e+00> : vector<8xf32>
    %251 = vector.multi_reduction <add>, %250, %cst_109 [1] : vector<8x32xf32> to vector<8xf32>
    %252 = vector.shape_cast %251 : vector<8xf32> to vector<8x1xf32>
    %cst_110 = arith.constant 3.200000e+01 : f32
    %253 = vector.broadcast %cst_110 : f32 to vector<8x1xf32>
    %254 = arith.divf %252, %253 : vector<8x1xf32>
    %cst_111 = arith.constant 9.99999974E-6 : f32
    %255 = vector.broadcast %cst_111 : f32 to vector<8x1xf32>
    %256 = arith.addf %254, %255 : vector<8x1xf32>
    %257 = math.rsqrt %256 : vector<8x1xf32>
    %258 = vector.broadcast %257 : vector<8x1xf32> to vector<8x32xf32>
    %259 = arith.mulf %249, %258 : vector<8x32xf32>
    %260 = vector.broadcast %242 : vector<1x32xf32> to vector<8x32xf32>
    %261 = arith.mulf %259, %260 : vector<8x32xf32>
    %262 = vector.broadcast %243 : vector<1x32xf32> to vector<8x32xf32>
    %263 = arith.addf %261, %262 : vector<8x32xf32>
    %264 = arith.truncf %263 : vector<8x32xf32> to vector<8x32xbf16>
    %c0_112 = arith.constant 0 : index
    %c0_113 = arith.constant 0 : index
    %265 = vector.load %arg21[%c0_112, %c0_113] : memref<32x64xbf16, #tpu.memory_space<vmem>>, vector<32x64xbf16>
    %cst_114 = arith.constant dense<0.000000e+00> : vector<8x64xf32>
    %266 = tpu.matmul %264, %265, %cst_114 {dimension_numbers = #tpu.dot_dimension_numbers<[1], [0], [0], [1], [0, 0, 1, 1], [], []>} : vector<8x32xbf16>, vector<32x64xbf16>, vector<8x64xf32> -> vector<8x64xf32>
    %c0_115 = arith.constant 0 : index
    %c0_116 = arith.constant 0 : index
    %267 = vector.load %arg22[%c0_115, %c0_116] : memref<1x64xf32, #tpu.memory_space<vmem>>, vector<1x64xf32>
    %268 = vector.broadcast %267 : vector<1x64xf32> to vector<8x64xf32>
    %269 = arith.addf %266, %268 : vector<8x64xf32>
    %cst_117 = arith.constant 5.000000e-01 : f32
    %270 = vector.broadcast %cst_117 : f32 to vector<8x64xf32>
    %271 = arith.mulf %270, %269 : vector<8x64xf32>
    %cst_118 = arith.constant 4.471500e-02 : f32
    %272 = vector.broadcast %cst_118 : f32 to vector<8x64xf32>
    %273 = arith.mulf %272, %269 : vector<8x64xf32>
    %274 = arith.mulf %273, %269 : vector<8x64xf32>
    %275 = arith.mulf %274, %269 : vector<8x64xf32>
    %276 = arith.addf %269, %275 : vector<8x64xf32>
    %cst_119 = arith.constant 0.797884583 : f32
    %277 = vector.broadcast %cst_119 : f32 to vector<8x64xf32>
    %278 = arith.mulf %277, %276 : vector<8x64xf32>
    %279 = math.tanh %278 : vector<8x64xf32>
    %cst_120 = arith.constant 1.000000e+00 : f32
    %280 = vector.broadcast %cst_120 : f32 to vector<8x64xf32>
    %281 = arith.addf %280, %279 : vector<8x64xf32>
    %282 = arith.mulf %271, %281 : vector<8x64xf32>
    %283 = arith.truncf %282 : vector<8x64xf32> to vector<8x64xbf16>
    %c0_121 = arith.constant 0 : index
    %c0_122 = arith.constant 0 : index
    %284 = vector.load %arg23[%c0_121, %c0_122] : memref<64x32xbf16, #tpu.memory_space<vmem>>, vector<64x32xbf16>
    %cst_123 = arith.constant dense<0.000000e+00> : vector<8x32xf32>
    %285 = tpu.matmul %283, %284, %cst_123 {dimension_numbers = #tpu.dot_dimension_numbers<[1], [0], [0], [1], [0, 0, 1, 1], [], []>} : vector<8x64xbf16>, vector<64x32xbf16>, vector<8x32xf32> -> vector<8x32xf32>
    %c0_124 = arith.constant 0 : index
    %c0_125 = arith.constant 0 : index
    %286 = vector.load %arg24[%c0_124, %c0_125] : memref<1x32xf32, #tpu.memory_space<vmem>>, vector<1x32xf32>
    %287 = vector.broadcast %286 : vector<1x32xf32> to vector<8x32xf32>
    %288 = arith.addf %285, %287 : vector<8x32xf32>
    %289 = arith.addf %263, %288 : vector<8x32xf32>
    %c0_126 = arith.constant 0 : index
    %c0_127 = arith.constant 0 : index
    %290 = vector.load %arg19[%c0_126, %c0_127] : memref<1x32xf32, #tpu.memory_space<vmem>>, vector<1x32xf32>
    %c0_128 = arith.constant 0 : index
    %c0_129 = arith.constant 0 : index
    %291 = vector.load %arg20[%c0_128, %c0_129] : memref<1x32xf32, #tpu.memory_space<vmem>>, vector<1x32xf32>
    %cst_130 = arith.constant dense<0.000000e+00> : vector<8xf32>
    %292 = vector.multi_reduction <add>, %289, %cst_130 [1] : vector<8x32xf32> to vector<8xf32>
    %293 = vector.shape_cast %292 : vector<8xf32> to vector<8x1xf32>
    %cst_131 = arith.constant 3.200000e+01 : f32
    %294 = vector.broadcast %cst_131 : f32 to vector<8x1xf32>
    %295 = arith.divf %293, %294 : vector<8x1xf32>
    %296 = vector.broadcast %295 : vector<8x1xf32> to vector<8x32xf32>
    %297 = arith.subf %289, %296 : vector<8x32xf32>
    %298 = arith.mulf %297, %297 : vector<8x32xf32>
    %cst_132 = arith.constant dense<0.000000e+00> : vector<8xf32>
    %299 = vector.multi_reduction <add>, %298, %cst_132 [1] : vector<8x32xf32> to vector<8xf32>
    %300 = vector.shape_cast %299 : vector<8xf32> to vector<8x1xf32>
    %cst_133 = arith.constant 3.200000e+01 : f32
    %301 = vector.broadcast %cst_133 : f32 to vector<8x1xf32>
    %302 = arith.divf %300, %301 : vector<8x1xf32>
    %cst_134 = arith.constant 9.99999974E-6 : f32
    %303 = vector.broadcast %cst_134 : f32 to vector<8x1xf32>
    %304 = arith.addf %302, %303 : vector<8x1xf32>
    %305 = math.rsqrt %304 : vector<8x1xf32>
    %306 = vector.broadcast %305 : vector<8x1xf32> to vector<8x32xf32>
    %307 = arith.mulf %297, %306 : vector<8x32xf32>
    %308 = vector.broadcast %290 : vector<1x32xf32> to vector<8x32xf32>
    %309 = arith.mulf %307, %308 : vector<8x32xf32>
    %310 = vector.broadcast %291 : vector<1x32xf32> to vector<8x32xf32>
    %311 = arith.addf %309, %310 : vector<8x32xf32>
    %c0_135 = arith.constant 0 : index
    %c0_136 = arith.constant 0 : index
    %c0_137 = arith.constant 0 : index
    %312 = vector.load %arg25[%c0_135, %c0_136, %c0_137] : memref<1x8x32xf32, #tpu.memory_space<vmem>>, vector<1x8x32xf32>
    %313 = vector.shape_cast %312 : vector<1x8x32xf32> to vector<8x32xf32>
    %314 = vector.shape_cast %311 : vector<8x32xf32> to vector<1x8x32xf32>
    tpu.vector_store %arg25[%c0_135, %c0_136, %c0_137], %314 {strides = array<i32>} : memref<1x8x32xf32, #tpu.memory_space<vmem>>, vector<1x8x32xf32>,
    return
  }
  func.func @transform_0(%arg0: i32) -> (i32, i32, i32) {
    %c0_i32 = arith.constant 0 : i32
    %c0_i32_0 = arith.constant 0 : i32
    %c0_i32_1 = arith.constant 0 : i32
    return %arg0, %c0_i32, %c0_i32_0 : i32, i32, i32
  }
  func.func @transform_1(%arg0: i32) -> (i32, i32, i32) {
    %c0_i32 = arith.constant 0 : i32
    %c0_i32_0 = arith.constant 0 : i32
    %c0_i32_1 = arith.constant 0 : i32
    return %arg0, %c0_i32, %c0_i32_0 : i32, i32, i32
  }
  func.func @transform_2(%arg0: i32) -> (i32, i32) {
    %c0_i32 = arith.constant 0 : i32
    %c0_i32_0 = arith.constant 0 : i32
    %c0_i32_1 = arith.constant 0 : i32
    return %c0_i32, %c0_i32_0 : i32, i32
  }
  func.func @transform_3(%arg0: i32) -> (i32, i32) {
    %c0_i32 = arith.constant 0 : i32
    %c0_i32_0 = arith.constant 0 : i32
    %c0_i32_1 = arith.constant 0 : i32
    return %c0_i32, %c0_i32_0 : i32, i32
  }
  func.func @transform_4(%arg0: i32) -> (i32, i32) {
    %c0_i32 = arith.constant 0 : i32
    %c0_i32_0 = arith.constant 0 : i32
    %c0_i32_1 = arith.constant 0 : i32
    return %c0_i32, %c0_i32_0 : i32, i32
  }
  func.func @transform_5(%arg0: i32) -> (i32, i32) {
    %c0_i32 = arith.constant 0 : i32
    %c0_i32_0 = arith.constant 0 : i32
    %c0_i32_1 = arith.constant 0 : i32
    return %c0_i32, %c0_i32_0 : i32, i32
  }
  func.func @transform_6(%arg0: i32) -> (i32, i32) {
    %c0_i32 = arith.constant 0 : i32
    %c0_i32_0 = arith.constant 0 : i32
    %c0_i32_1 = arith.constant 0 : i32
    return %c0_i32, %c0_i32_0 : i32, i32
  }
  func.func @transform_7(%arg0: i32) -> (i32, i32) {
    %c0_i32 = arith.constant 0 : i32
    %c0_i32_0 = arith.constant 0 : i32
    %c0_i32_1 = arith.constant 0 : i32
    return %c0_i32, %c0_i32_0 : i32, i32
  }
  func.func @transform_8(%arg0: i32) -> (i32, i32) {
    %c0_i32 = arith.constant 0 : i32
    %c0_i32_0 = arith.constant 0 : i32
    %c0_i32_1 = arith.constant 0 : i32
    return %c0_i32, %c0_i32_0 : i32, i32
  }
  func.func @transform_9(%arg0: i32) -> (i32, i32) {
    %c0_i32 = arith.constant 0 : i32
    %c0_i32_0 = arith.constant 0 : i32
    %c0_i32_1 = arith.constant 0 : i32
    return %c0_i32, %c0_i32_0 : i32, i32
  }
  func.func @transform_10(%arg0: i32) -> (i32, i32) {
    %c0_i32 = arith.constant 0 : i32
    %c0_i32_0 = arith.constant 0 : i32
    %c0_i32_1 = arith.constant 0 : i32
    return %c0_i32, %c0_i32_0 : i32, i32
  }
  func.func @transform_11(%arg0: i32) -> (i32, i32) {
    %c0_i32 = arith.constant 0 : i32
    %c0_i32_0 = arith.constant 0 : i32
    %c0_i32_1 = arith.constant 0 : i32
    return %c0_i32, %c0_i32_0 : i32, i32
  }
  func.func @transform_12(%arg0: i32) -> (i32, i32) {
    %c0_i32 = arith.constant 0 : i32
    %c0_i32_0 = arith.constant 0 : i32
    %c0_i32_1 = arith.constant 0 : i32
    return %c0_i32, %c0_i32_0 : i32, i32
  }
  func.func @transform_13(%arg0: i32) -> (i32, i32) {
    %c0_i32 = arith.constant 0 : i32
    %c0_i32_0 = arith.constant 0 : i32
    %c0_i32_1 = arith.constant 0 : i32
    return %c0_i32, %c0_i32_0 : i32, i32
  }
  func.func @transform_14(%arg0: i32) -> (i32, i32) {
    %c0_i32 = arith.constant 0 : i32
    %c0_i32_0 = arith.constant 0 : i32
    %c0_i32_1 = arith.constant 0 : i32
    return %c0_i32, %c0_i32_0 : i32, i32
  }
  func.func @transform_15(%arg0: i32) -> (i32, i32) {
    %c0_i32 = arith.constant 0 : i32
    %c0_i32_0 = arith.constant 0 : i32
    %c0_i32_1 = arith.constant 0 : i32
    return %c0_i32, %c0_i32_0 : i32, i32
  }
  func.func @transform_16(%arg0: i32) -> (i32, i32) {
    %c0_i32 = arith.constant 0 : i32
    %c0_i32_0 = arith.constant 0 : i32
    %c0_i32_1 = arith.constant 0 : i32
    return %c0_i32, %c0_i32_0 : i32, i32
  }
  func.func @transform_17(%arg0: i32) -> (i32, i32) {
    %c0_i32 = arith.constant 0 : i32
    %c0_i32_0 = arith.constant 0 : i32
    %c0_i32_1 = arith.constant 0 : i32
    return %c0_i32, %c0_i32_0 : i32, i32
  }
  func.func @transform_18(%arg0: i32) -> (i32, i32) {
    %c0_i32 = arith.constant 0 : i32
    %c0_i32_0 = arith.constant 0 : i32
    %c0_i32_1 = arith.constant 0 : i32
    return %c0_i32, %c0_i32_0 : i32, i32
  }
  func.func @transform_19(%arg0: i32) -> (i32, i32) {
    %c0_i32 = arith.constant 0 : i32
    %c0_i32_0 = arith.constant 0 : i32
    %c0_i32_1 = arith.constant 0 : i32
    return %c0_i32, %c0_i32_0 : i32, i32
  }
  func.func @transform_20(%arg0: i32) -> (i32, i32) {
    %c0_i32 = arith.constant 0 : i32
    %c0_i32_0 = arith.constant 0 : i32
    %c0_i32_1 = arith.constant 0 : i32
    return %c0_i32, %c0_i32_0 : i32, i32
  }
  func.func @transform_21(%arg0: i32) -> (i32, i32) {
    %c0_i32 = arith.constant 0 : i32
    %c0_i32_0 = arith.constant 0 : i32
    %c0_i32_1 = arith.constant 0 : i32
    return %c0_i32, %c0_i32_0 : i32, i32
  }
  func.func @transform_22(%arg0: i32) -> (i32, i32) {
    %c0_i32 = arith.constant 0 : i32
    %c0_i32_0 = arith.constant 0 : i32
    %c0_i32_1 = arith.constant 0 : i32
    return %c0_i32, %c0_i32_0 : i32, i32
  }
  func.func @transform_23(%arg0: i32) -> (i32, i32) {
    %c0_i32 = arith.constant 0 : i32
    %c0_i32_0 = arith.constant 0 : i32
    %c0_i32_1 = arith.constant 0 : i32
    return %c0_i32, %c0_i32_0 : i32, i32
  }
  func.func @transform_24(%arg0: i32) -> (i32, i32, i32) {
    %c0_i32 = arith.constant 0 : i32
    %c0_i32_0 = arith.constant 0 : i32
    %c0_i32_1 = arith.constant 0 : i32
    return %arg0, %c0_i32, %c0_i32_0 : i32, i32, i32
  }
  func.func @transform_25(%arg0: i32) -> (i32, i32, i32, i32) {
    %c0_i32 = arith.constant 0 : i32
    %c0_i32_0 = arith.constant 0 : i32
    %c0_i32_1 = arith.constant 0 : i32
    %c0_i32_2 = arith.constant 0 : i32
    return %arg0, %c0_i32, %c0_i32_0, %c0_i32_1 : i32, i32, i32, i32
  }
  func.func @transform_26(%arg0: i32) -> (i32, i32, i32, i32) {
    %c0_i32 = arith.constant 0 : i32
    %c0_i32_0 = arith.constant 0 : i32
    %c0_i32_1 = arith.constant 0 : i32
    %c0_i32_2 = arith.constant 0 : i32
    return %arg0, %c0_i32, %c0_i32_0, %c0_i32_1 : i32, i32, i32, i32
  }
}

</mosaic_0001>

<llo_original>
// kernel: tpu_custom_call.1
$region0: #{tpu_custom_call.1}
  #allocation0 [shape = 'u32[]', space=smem, size = 0x4, offset = 0x4, fixed_abs, tag = 'smem constant byte address 0x4 - core index']
  #allocation1 [shape = 'u32[144,128]{1,0:T(1,128)}', space=vmem, size = 0x12000, scoped, tag = 'internal scratch']
  %s0 = inlined_call_operand.hbm [shape: bf16[2,8,32], index: 0, kind: input, shape index: {}]
  %s1 = inlined_call_operand.vmem [shape: bf16[2,16,32], index: 1, kind: input, shape index: {}]
  %s2 = inlined_call_operand.hbm [shape: bf16[8,8], index: 2, kind: input, shape index: {}]
  %s3 = inlined_call_operand.hbm [shape: bf16[8,16], index: 3, kind: input, shape index: {}]
  %s4 = inlined_call_operand.vmem [shape: bf16[32,96], index: 4, kind: input, shape index: {}]
  %s5 = inlined_call_operand.hbm [shape: f32[1,96], index: 5, kind: input, shape index: {}]
  %s6 = inlined_call_operand.vmem [shape: bf16[32,32], index: 6, kind: input, shape index: {}]
  %s7 = inlined_call_operand.hbm [shape: f32[1,32], index: 7, kind: input, shape index: {}]
  %s8 = inlined_call_operand.hbm [shape: bf16[32,32], index: 8, kind: input, shape index: {}]
  %s9 = inlined_call_operand.hbm [shape: f32[1,32], index: 9, kind: input, shape index: {}]
  %s10 = inlined_call_operand.vmem [shape: bf16[32,64], index: 10, kind: input, shape index: {}]
  %s11 = inlined_call_operand.hbm [shape: f32[1,64], index: 11, kind: input, shape index: {}]
  %s12 = inlined_call_operand.hbm [shape: bf16[32,32], index: 12, kind: input, shape index: {}]
  %s13 = inlined_call_operand.hbm [shape: f32[1,32], index: 13, kind: input, shape index: {}]
  %s14 = inlined_call_operand.hbm [shape: f32[1,32], index: 14, kind: input, shape index: {}]
  %s15 = inlined_call_operand.hbm [shape: f32[1,32], index: 15, kind: input, shape index: {}]
  %s16 = inlined_call_operand.hbm [shape: f32[1,32], index: 16, kind: input, shape index: {}]
  %s17 = inlined_call_operand.hbm [shape: f32[1,32], index: 17, kind: input, shape index: {}]
  %s18 = inlined_call_operand.hbm [shape: f32[1,32], index: 18, kind: input, shape index: {}]
  %s19 = inlined_call_operand.vmem [shape: f32[1,32], index: 19, kind: input, shape index: {}]
  %s20 = inlined_call_operand.vmem [shape: bf16[32,64], index: 20, kind: input, shape index: {}]
  %s21 = inlined_call_operand.vmem [shape: f32[1,64], index: 21, kind: input, shape index: {}]
  %s22 = inlined_call_operand.vmem [shape: bf16[64,32], index: 22, kind: input, shape index: {}]
  %s23 = inlined_call_operand.vmem [shape: f32[1,32], index: 23, kind: input, shape index: {}]
  %s24 = inlined_call_operand.hbm [shape: f32[2,8,32], index: 24, kind: output, shape index: {0}]
  %s25 = inlined_call_operand.hbm [shape: bf16[2,4,8,8], index: 25, kind: output, shape index: {1}]
  %s26 = inlined_call_operand.hbm [shape: bf16[2,4,8,16], index: 26, kind: output, shape index: {2}]
  %27 = xla_tuple %s24, %s25, %s26
  %s28 = sld [smem:[#allocation0]]
  $region205: #{tpu_custom_call.1} parent=0
    _
  %s30 = ssub.s32 1, %s28
  %s31 = scalar_select 0, %s30, %s28
  $region1: #{tpu_custom_call.1} parent=0
    #allocation2 [shape = 'u8[4096]{0}', space=vmem, size = 0x1000, scoped, tag = 'input window, operand 0']
    #allocation3 [shape = 's32[2]{0}', space=sflag, size = 0x8, scoped, tag = 'scoped memory for tpu_custom_call.1']
    #allocation4 [shape = 's32[2]{0}', space=sflag, size = 0x8, scoped, tag = 'scoped memory for tpu_custom_call.1']
    #allocation5 [shape = 'u8[2048]{0}', space=vmem, size = 0x800, scoped, tag = 'input window, operand 2, single buffered']
    #allocation6 [shape = 's32[1]{0}', space=sflag, size = 0x4, scoped, tag = 'scoped memory for tpu_custom_call.1']
    #allocation7 [shape = 'u8[2048]{0}', space=vmem, size = 0x800, scoped, tag = 'input window, operand 3, single buffered']
    #allocation8 [shape = 'u8[512]{0}', space=vmem, size = 0x400, scoped, tag = 'input window, operand 5, single buffered']
    #allocation9 [shape = 's32[1]{0}', space=sflag, size = 0x4, scoped, tag = 'scoped memory for tpu_custom_call.1']
    #allocation10 [shape = 'u8[512]{0}', space=vmem, size = 0x400, scoped, tag = 'input window, operand 7, single buffered']
    #allocation11 [shape = 'u8[8192]{0}', space=vmem, size = 0x2000, scoped, tag = 'input window, operand 8, single buffered']
    #allocation12 [shape = 's32[1]{0}', space=sflag, size = 0x4, scoped, tag = 'scoped memory for tpu_custom_call.1']
    #allocation13 [shape = 'u8[512]{0}', space=vmem, size = 0x400, scoped, tag = 'input window, operand 9, single buffered']
    #allocation14 [shape = 'u8[512]{0}', space=vmem, size = 0x400, scoped, tag = 'input window, operand 11, single buffered']
    #allocation15 [shape = 's32[1]{0}', space=sflag, size = 0x4, scoped, tag = 'scoped memory for tpu_custom_call.1']
    #allocation16 [shape = 'u8[8192]{0}', space=vmem, size = 0x2000, scoped, tag = 'input window, operand 12, single buffered']
    #allocation17 [shape = 'u8[512]{0}', space=vmem, size = 0x400, scoped, tag = 'input window, operand 13, single buffered']
    #allocation18 [shape = 's32[1]{0}', space=sflag, size = 0x4, scoped, tag = 'scoped memory for tpu_custom_call.1']
    #allocation19 [shape = 'u8[512]{0}', space=vmem, size = 0x400, scoped, tag = 'input window, operand 14, single buffered']
    #allocation20 [shape = 'u8[512]{0}', space=vmem, size = 0x400, scoped, tag = 'input window, operand 15, single buffered']
    #allocation21 [shape = 's32[1]{0}', space=sflag, size = 0x4, scoped, tag = 'scoped memory for tpu_custom_call.1']
    #allocation22 [shape = 'u8[512]{0}', space=vmem, size = 0x400, scoped, tag = 'input window, operand 16, single buffered']
    #allocation23 [shape = 'u8[512]{0}', space=vmem, size = 0x400, scoped, tag = 'input window, operand 17, single buffered']
    #allocation24 [shape = 's32[1]{0}', space=sflag, size = 0x4, scoped, tag = 'scoped memory for tpu_custom_call.1']
    #allocation25 [shape = 'u8[512]{0}', space=vmem, size = 0x400, scoped, tag = 'input window, operand 18, single buffered']
    #allocation26 [shape = 'u8[8192]{0}', space=vmem, size = 0x2000, scoped, tag = 'output window, operand 0']
    #allocation27 [shape = 'u8[16384]{0}', space=vmem, size = 0x4000, scoped, tag = 'output window, operand 1']
    #allocation28 [shape = 's32[2]{0}', space=sflag, size = 0x8, scoped, tag = 'scoped memory for tpu_custom_call.1']
    #allocation29 [shape = 'u8[16384]{0}', space=vmem, size = 0x4000, scoped, tag = 'output window, operand 2']
    %32 = vsyncpa [#allocation3], 0
    %s33 = scalar_lea.sflag [#allocation3], 1
    %34 = vsyncpa %s33, 0
    %35 = vsyncpa [#allocation6], 0
    %36 = vsyncpa [#allocation9], 0
    %37 = vsyncpa [#allocation12], 0
    %38 = vsyncpa [#allocation15], 0
    %39 = vsyncpa [#allocation18], 0
    %40 = vsyncpa [#allocation21], 0
    %41 = vsyncpa [#allocation24], 0
    %42 = vsyncpa [#allocation4], 0
    %s43 = scalar_lea.sflag [#allocation4], 1
    %44 = vsyncpa %s43, 0
    %45 = vsyncpa [#allocation28], 0
    %s46 = scalar_lea.sflag [#allocation28], 1
    %47 = vsyncpa %s46, 0
    loop: start=0, step=1, limit=4
    $region2: #{tpu_custom_call.1} parent=1 // loop_pre_header
      _
    $region3: #{tpu_custom_call.1} parent=1 // loop_header
      %s49 = sphi 0, %s53
      %p50 = scmp.ge.s32.totalorder %s49, 4
      %s59 = sphi 0, %s61
      %s62 = sphi 0, %s59
      %s63 = sphi 0, %s62
      %s79 = sphi 0, %s63
      %s85 = sphi 0, %s87
      %s88 = sphi 0, %s85
      %s89 = sphi 0, %s88
      %s105 = sphi 0, %s89
      %s109 = sphi 0, %s109
      %s111 = sphi 0, %s109
      %s112 = sphi 0, %s111
      %s126 = sphi 0, %s112
      %s130 = sphi 0, %s130
      %s132 = sphi 0, %s130
      %s133 = sphi 0, %s132
      %s147 = sphi 0, %s133
      %s151 = sphi 0, %s151
      %s153 = sphi 0, %s151
      %s154 = sphi 0, %s153
      %s168 = sphi 0, %s154
      %s172 = sphi 0, %s172
      %s174 = sphi 0, %s172
      %s175 = sphi 0, %s174
      %s189 = sphi 0, %s175
      %s193 = sphi 0, %s193
      %s195 = sphi 0, %s193
      %s196 = sphi 0, %s195
      %s210 = sphi 0, %s196
      %s214 = sphi 0, %s214
      %s216 = sphi 0, %s214
      %s217 = sphi 0, %s216
      %s231 = sphi 0, %s217
      %s235 = sphi 0, %s235
      %s237 = sphi 0, %s235
      %s238 = sphi 0, %s237
      %s252 = sphi 0, %s238
      %s256 = sphi 0, %s256
      %s258 = sphi 0, %s256
      %s259 = sphi 0, %s258
      %s273 = sphi 0, %s259
      %s277 = sphi 0, %s277
      %s279 = sphi 0, %s277
      %s280 = sphi 0, %s279
      %s294 = sphi 0, %s280
      %s298 = sphi 0, %s298
      %s300 = sphi 0, %s298
      %s301 = sphi 0, %s300
      %s315 = sphi 0, %s301
      %s319 = sphi 0, %s319
      %s321 = sphi 0, %s319
      %s322 = sphi 0, %s321
      %s336 = sphi 0, %s322
      %s340 = sphi 0, %s340
      %s342 = sphi 0, %s340
      %s343 = sphi 0, %s342
      %s357 = sphi 0, %s343
      %s361 = sphi 0, %s361
      %s363 = sphi 0, %s361
      %s364 = sphi 0, %s363
      %s378 = sphi 0, %s364
      %s382 = sphi 0, %s382
      %s384 = sphi 0, %s382
      %s385 = sphi 0, %s384
      %s399 = sphi 0, %s385
      %s403 = sphi 0, %s403
      %s405 = sphi 0, %s403
      %s406 = sphi 0, %s405
      %s420 = sphi 0, %s406
      %s424 = sphi 0, %s424
      %s426 = sphi 0, %s424
      %s427 = sphi 0, %s426
      %s441 = sphi 0, %s427
      %s445 = sphi 0, %s445
      %s447 = sphi 0, %s445
      %s448 = sphi 0, %s447
      %s462 = sphi 0, %s448
      %s466 = sphi 0, %s466
      %s468 = sphi 0, %s466
      %s469 = sphi 0, %s468
      %s483 = sphi 0, %s469
      %s487 = sphi 0, %s487
      %s489 = sphi 0, %s487
      %s490 = sphi 0, %s489
      %s504 = sphi 0, %s490
      %s508 = sphi 0, %s508
      %s510 = sphi 0, %s508
      %s511 = sphi 0, %s510
      %s525 = sphi 0, %s511
      %s529 = sphi 0, %s529
      %s531 = sphi 0, %s529
      %s532 = sphi 0, %s531
      %s546 = sphi 0, %s532
      %s550 = sphi 0, %s550
      %s552 = sphi 0, %s550
      %s553 = sphi 0, %s552
      %s567 = sphi 0, %s553
      %s573 = sphi 0, %s575
      %s576 = sphi 0, %s573
      %s577 = sphi 0, %s576
      %s593 = sphi 0, %s577
      %s599 = sphi 0, %s601
      %s602 = sphi 0, %s599
      %s603 = sphi 0, %s602
      %s619 = sphi 0, %s603
      %s625 = sphi 0, %s627
      %s628 = sphi 0, %s625
      %s629 = sphi 0, %s628
      %s645 = sphi 0, %s629
    $region4: #{tpu_custom_call.1} parent=1 // loop_header_branch
      %52 = sbr.rel (%p50) target = $region8
    $region5: #{tpu_custom_call.1} parent=1 // loop_body
      %s54 = ssub.s32 %s49, 1
      %s55 = ssub.s32 %s49, 2
      %s56 = sadd.s32 %s49, 1
      %s57 = ssub.s32 %s49, %s56
      %p58 = scmp.eq.s32.totalorder %s57, 0
      %s60 = sadd.s32 %s59, 1
      %s61 = scalar_select %p58, %s59, %s60
      %p64 = pneg %p58
      %p65 = scmp.eq.s32.totalorder %s49, 1
      %p66 = por %p64, %p65
      %p67 = scmp.ne.s32.totalorder %s59, %s62
      %p68 = scmp.eq.s32.totalorder %s49, 0
      %p69 = por %p67, %p68
      %p70 = scmp.ne.s32.totalorder %s59, %s62
      %p71 = scmp.eq.s32.totalorder %s54, 1
      %p72 = por %p70, %p71
      %p73 = scmp.ne.s32.totalorder %s62, %s63
      %p74 = scmp.eq.s32.totalorder %s54, 0
      %p75 = por %p73, %p74
      %p76 = scmp.ne.s32.totalorder %s62, %s63
      %p77 = scmp.eq.s32.totalorder %s55, 1
      %p78 = por %p76, %p77
      %p80 = scmp.ne.s32.totalorder %s63, %s79
      %p81 = scmp.eq.s32.totalorder %s55, 0
      %p82 = por %p80, %p81
      %s83 = ssub.s32 %s49, %s56
      %p84 = scmp.eq.s32.totalorder %s83, 0
      %s86 = sadd.s32 %s85, 1
      %s87 = scalar_select %p84, %s85, %s86
      %p90 = pneg %p84
      %p91 = scmp.eq.s32.totalorder %s49, 1
      %p92 = por %p90, %p91
      %p93 = scmp.ne.s32.totalorder %s85, %s88
      %p94 = scmp.eq.s32.totalorder %s49, 0
      %p95 = por %p93, %p94
      %p96 = scmp.ne.s32.totalorder %s85, %s88
      %p97 = scmp.eq.s32.totalorder %s54, 1
      %p98 = por %p96, %p97
      %p99 = scmp.ne.s32.totalorder %s88, %s89
      %p100 = scmp.eq.s32.totalorder %s54, 0
      %p101 = por %p99, %p100
      %p102 = scmp.ne.s32.totalorder %s88, %s89
      %p103 = scmp.eq.s32.totalorder %s55, 1
      %p104 = por %p102, %p103
      %p106 = scmp.ne.s32.totalorder %s89, %s105
      %p107 = scmp.eq.s32.totalorder %s55, 0
      %p108 = por %p106, %p107
      %s110 = sadd.s32 %s109, 1
      %p113 = scmp.eq.s32.totalorder %s49, 1
      %p114 = scmp.ne.s32.totalorder %s109, %s111
      %p115 = scmp.eq.s32.totalorder %s49, 0
      %p116 = por %p114, %p115
      %p117 = scmp.ne.s32.totalorder %s109, %s111
      %p118 = scmp.eq.s32.totalorder %s54, 1
      %p119 = por %p117, %p118
      %p120 = scmp.ne.s32.totalorder %s111, %s112
      %p121 = scmp.eq.s32.totalorder %s54, 0
      %p122 = por %p120, %p121
      %p123 = scmp.ne.s32.totalorder %s111, %s112
      %p124 = scmp.eq.s32.totalorder %s55, 1
      %p125 = por %p123, %p124
      %p127 = scmp.ne.s32.totalorder %s112, %s126
      %p128 = scmp.eq.s32.totalorder %s55, 0
      %p129 = por %p127, %p128
      %s131 = sadd.s32 %s130, 1
      %p134 = scmp.eq.s32.totalorder %s49, 1
      %p135 = scmp.ne.s32.totalorder %s130, %s132
      %p136 = scmp.eq.s32.totalorder %s49, 0
      %p137 = por %p135, %p136
      %p138 = scmp.ne.s32.totalorder %s130, %s132
      %p139 = scmp.eq.s32.totalorder %s54, 1
      %p140 = por %p138, %p139
      %p141 = scmp.ne.s32.totalorder %s132, %s133
      %p142 = scmp.eq.s32.totalorder %s54, 0
      %p143 = por %p141, %p142
      %p144 = scmp.ne.s32.totalorder %s132, %s133
      %p145 = scmp.eq.s32.totalorder %s55, 1
      %p146 = por %p144, %p145
      %p148 = scmp.ne.s32.totalorder %s133, %s147
      %p149 = scmp.eq.s32.totalorder %s55, 0
      %p150 = por %p148, %p149
      %s152 = sadd.s32 %s151, 1
      %p155 = scmp.eq.s32.totalorder %s49, 1
      %p156 = scmp.ne.s32.totalorder %s151, %s153
      %p157 = scmp.eq.s32.totalorder %s49, 0
      %p158 = por %p156, %p157
      %p159 = scmp.ne.s32.totalorder %s151, %s153
      %p160 = scmp.eq.s32.totalorder %s54, 1
      %p161 = por %p159, %p160
      %p162 = scmp.ne.s32.totalorder %s153, %s154
      %p163 = scmp.eq.s32.totalorder %s54, 0
      %p164 = por %p162, %p163
      %p165 = scmp.ne.s32.totalorder %s153, %s154
      %p166 = scmp.eq.s32.totalorder %s55, 1
      %p167 = por %p165, %p166
      %p169 = scmp.ne.s32.totalorder %s154, %s168
      %p170 = scmp.eq.s32.totalorder %s55, 0
      %p171 = por %p169, %p170
      %s173 = sadd.s32 %s172, 1
      %p176 = scmp.eq.s32.totalorder %s49, 1
      %p177 = scmp.ne.s32.totalorder %s172, %s174
      %p178 = scmp.eq.s32.totalorder %s49, 0
      %p179 = por %p177, %p178
      %p180 = scmp.ne.s32.totalorder %s172, %s174
      %p181 = scmp.eq.s32.totalorder %s54, 1
      %p182 = por %p180, %p181
      %p183 = scmp.ne.s32.totalorder %s174, %s175
      %p184 = scmp.eq.s32.totalorder %s54, 0
      %p185 = por %p183, %p184
      %p186 = scmp.ne.s32.totalorder %s174, %s175
      %p187 = scmp.eq.s32.totalorder %s55, 1
      %p188 = por %p186, %p187
      %p190 = scmp.ne.s32.totalorder %s175, %s189
      %p191 = scmp.eq.s32.totalorder %s55, 0
      %p192 = por %p190, %p191
      %s194 = sadd.s32 %s193, 1
      %p197 = scmp.eq.s32.totalorder %s49, 1
      %p198 = scmp.ne.s32.totalorder %s193, %s195
      %p199 = scmp.eq.s32.totalorder %s49, 0
      %p200 = por %p198, %p199
      %p201 = scmp.ne.s32.totalorder %s193, %s195
      %p202 = scmp.eq.s32.totalorder %s54, 1
      %p203 = por %p201, %p202
      %p204 = scmp.ne.s32.totalorder %s195, %s196
      %p205 = scmp.eq.s32.totalorder %s54, 0
      %p206 = por %p204, %p205
      %p207 = scmp.ne.s32.totalorder %s195, %s196
      %p208 = scmp.eq.s32.totalorder %s55, 1
      %p209 = por %p207, %p208
      %p211 = scmp.ne.s32.totalorder %s196, %s210
      %p212 = scmp.eq.s32.totalorder %s55, 0
      %p213 = por %p211, %p212
      %s215 = sadd.s32 %s214, 1
      %p218 = scmp.eq.s32.totalorder %s49, 1
      %p219 = scmp.ne.s32.totalorder %s214, %s216
      %p220 = scmp.eq.s32.totalorder %s49, 0
      %p221 = por %p219, %p220
      %p222 = scmp.ne.s32.totalorder %s214, %s216
      %p223 = scmp.eq.s32.totalorder %s54, 1
      %p224 = por %p222, %p223
      %p225 = scmp.ne.s32.totalorder %s216, %s217
      %p226 = scmp.eq.s32.totalorder %s54, 0
      %p227 = por %p225, %p226
      %p228 = scmp.ne.s32.totalorder %s216, %s217
      %p229 = scmp.eq.s32.totalorder %s55, 1
      %p230 = por %p228, %p229
      %p232 = scmp.ne.s32.totalorder %s217, %s231
      %p233 = scmp.eq.s32.totalorder %s55, 0
      %p234 = por %p232, %p233
      %s236 = sadd.s32 %s235, 1
      %p239 = scmp.eq.s32.totalorder %s49, 1
      %p240 = scmp.ne.s32.totalorder %s235, %s237
      %p241 = scmp.eq.s32.totalorder %s49, 0
      %p242 = por %p240, %p241
      %p243 = scmp.ne.s32.totalorder %s235, %s237
      %p244 = scmp.eq.s32.totalorder %s54, 1
      %p245 = por %p243, %p244
      %p246 = scmp.ne.s32.totalorder %s237, %s238
      %p247 = scmp.eq.s32.totalorder %s54, 0
      %p248 = por %p246, %p247
      %p249 = scmp.ne.s32.totalorder %s237, %s238
      %p250 = scmp.eq.s32.totalorder %s55, 1
      %p251 = por %p249, %p250
      %p253 = scmp.ne.s32.totalorder %s238, %s252
      %p254 = scmp.eq.s32.totalorder %s55, 0
      %p255 = por %p253, %p254
      %s257 = sadd.s32 %s256, 1
      %p260 = scmp.eq.s32.totalorder %s49, 1
      %p261 = scmp.ne.s32.totalorder %s256, %s258
      %p262 = scmp.eq.s32.totalorder %s49, 0
      %p263 = por %p261, %p262
      %p264 = scmp.ne.s32.totalorder %s256, %s258
      %p265 = scmp.eq.s32.totalorder %s54, 1
      %p266 = por %p264, %p265
      %p267 = scmp.ne.s32.totalorder %s258, %s259
      %p268 = scmp.eq.s32.totalorder %s54, 0
      %p269 = por %p267, %p268
      %p270 = scmp.ne.s32.totalorder %s258, %s259
      %p271 = scmp.eq.s32.totalorder %s55, 1
      %p272 = por %p270, %p271
      %p274 = scmp.ne.s32.totalorder %s259, %s273
      %p275 = scmp.eq.s32.totalorder %s55, 0
      %p276 = por %p274, %p275
      %s278 = sadd.s32 %s277, 1
      %p281 = scmp.eq.s32.totalorder %s49, 1
      %p282 = scmp.ne.s32.totalorder %s277, %s279
      %p283 = scmp.eq.s32.totalorder %s49, 0
      %p284 = por %p282, %p283
      %p285 = scmp.ne.s32.totalorder %s277, %s279
      %p286 = scmp.eq.s32.totalorder %s54, 1
      %p287 = por %p285, %p286
      %p288 = scmp.ne.s32.totalorder %s279, %s280
      %p289 = scmp.eq.s32.totalorder %s54, 0
      %p290 = por %p288, %p289
      %p291 = scmp.ne.s32.totalorder %s279, %s280
      %p292 = scmp.eq.s32.totalorder %s55, 1
      %p293 = por %p291, %p292
      %p295 = scmp.ne.s32.totalorder %s280, %s294
      %p296 = scmp.eq.s32.totalorder %s55, 0
      %p297 = por %p295, %p296
      %s299 = sadd.s32 %s298, 1
      %p302 = scmp.eq.s32.totalorder %s49, 1
      %p303 = scmp.ne.s32.totalorder %s298, %s300
      %p304 = scmp.eq.s32.totalorder %s49, 0
      %p305 = por %p303, %p304
      %p306 = scmp.ne.s32.totalorder %s298, %s300
      %p307 = scmp.eq.s32.totalorder %s54, 1
      %p308 = por %p306, %p307
      %p309 = scmp.ne.s32.totalorder %s300, %s301
      %p310 = scmp.eq.s32.totalorder %s54, 0
      %p311 = por %p309, %p310
      %p312 = scmp.ne.s32.totalorder %s300, %s301
      %p313 = scmp.eq.s32.totalorder %s55, 1
      %p314 = por %p312, %p313
      %p316 = scmp.ne.s32.totalorder %s301, %s315
      %p317 = scmp.eq.s32.totalorder %s55, 0
      %p318 = por %p316, %p317
      %s320 = sadd.s32 %s319, 1
      %p323 = scmp.eq.s32.totalorder %s49, 1
      %p324 = scmp.ne.s32.totalorder %s319, %s321
      %p325 = scmp.eq.s32.totalorder %s49, 0
      %p326 = por %p324, %p325
      %p327 = scmp.ne.s32.totalorder %s319, %s321
      %p328 = scmp.eq.s32.totalorder %s54, 1
      %p329 = por %p327, %p328
      %p330 = scmp.ne.s32.totalorder %s321, %s322
      %p331 = scmp.eq.s32.totalorder %s54, 0
      %p332 = por %p330, %p331
      %p333 = scmp.ne.s32.totalorder %s321, %s322
      %p334 = scmp.eq.s32.totalorder %s55, 1
      %p335 = por %p333, %p334
      %p337 = scmp.ne.s32.totalorder %s322, %s336
      %p338 = scmp.eq.s32.totalorder %s55, 0
      %p339 = por %p337, %p338
      %s341 = sadd.s32 %s340, 1
      %p344 = scmp.eq.s32.totalorder %s49, 1
      %p345 = scmp.ne.s32.totalorder %s340, %s342
      %p346 = scmp.eq.s32.totalorder %s49, 0
      %p347 = por %p345, %p346
      %p348 = scmp.ne.s32.totalorder %s340, %s342
      %p349 = scmp.eq.s32.totalorder %s54, 1
      %p350 = por %p348, %p349
      %p351 = scmp.ne.s32.totalorder %s342, %s343
      %p352 = scmp.eq.s32.totalorder %s54, 0
      %p353 = por %p351, %p352
      %p354 = scmp.ne.s32.totalorder %s342, %s343
      %p355 = scmp.eq.s32.totalorder %s55, 1
      %p356 = por %p354, %p355
      %p358 = scmp.ne.s32.totalorder %s343, %s357
      %p359 = scmp.eq.s32.totalorder %s55, 0
      %p360 = por %p358, %p359
      %s362 = sadd.s32 %s361, 1
      %p365 = scmp.eq.s32.totalorder %s49, 1
      %p366 = scmp.ne.s32.totalorder %s361, %s363
      %p367 = scmp.eq.s32.totalorder %s49, 0
      %p368 = por %p366, %p367
      %p369 = scmp.ne.s32.totalorder %s361, %s363
      %p370 = scmp.eq.s32.totalorder %s54, 1
      %p371 = por %p369, %p370
      %p372 = scmp.ne.s32.totalorder %s363, %s364
      %p373 = scmp.eq.s32.totalorder %s54, 0
      %p374 = por %p372, %p373
      %p375 = scmp.ne.s32.totalorder %s363, %s364
      %p376 = scmp.eq.s32.totalorder %s55, 1
      %p377 = por %p375, %p376
      %p379 = scmp.ne.s32.totalorder %s364, %s378
      %p380 = scmp.eq.s32.totalorder %s55, 0
      %p381 = por %p379, %p380
      %s383 = sadd.s32 %s382, 1
      %p386 = scmp.eq.s32.totalorder %s49, 1
      %p387 = scmp.ne.s32.totalorder %s382, %s384
      %p388 = scmp.eq.s32.totalorder %s49, 0
      %p389 = por %p387, %p388
      %p390 = scmp.ne.s32.totalorder %s382, %s384
      %p391 = scmp.eq.s32.totalorder %s54, 1
      %p392 = por %p390, %p391
      %p393 = scmp.ne.s32.totalorder %s384, %s385
      %p394 = scmp.eq.s32.totalorder %s54, 0
      %p395 = por %p393, %p394
      %p396 = scmp.ne.s32.totalorder %s384, %s385
      %p397 = scmp.eq.s32.totalorder %s55, 1
      %p398 = por %p396, %p397
      %p400 = scmp.ne.s32.totalorder %s385, %s399
      %p401 = scmp.eq.s32.totalorder %s55, 0
      %p402 = por %p400, %p401
      %s404 = sadd.s32 %s403, 1
      %p407 = scmp.eq.s32.totalorder %s49, 1
      %p408 = scmp.ne.s32.totalorder %s403, %s405
      %p409 = scmp.eq.s32.totalorder %s49, 0
      %p410 = por %p408, %p409
      %p411 = scmp.ne.s32.totalorder %s403, %s405
      %p412 = scmp.eq.s32.totalorder %s54, 1
      %p413 = por %p411, %p412
      %p414 = scmp.ne.s32.totalorder %s405, %s406
      %p415 = scmp.eq.s32.totalorder %s54, 0
      %p416 = por %p414, %p415
      %p417 = scmp.ne.s32.totalorder %s405, %s406
      %p418 = scmp.eq.s32.totalorder %s55, 1
      %p419 = por %p417, %p418
      %p421 = scmp.ne.s32.totalorder %s406, %s420
      %p422 = scmp.eq.s32.totalorder %s55, 0
      %p423 = por %p421, %p422
      %s425 = sadd.s32 %s424, 1
      %p428 = scmp.eq.s32.totalorder %s49, 1
      %p429 = scmp.ne.s32.totalorder %s424, %s426
      %p430 = scmp.eq.s32.totalorder %s49, 0
      %p431 = por %p429, %p430
      %p432 = scmp.ne.s32.totalorder %s424, %s426
      %p433 = scmp.eq.s32.totalorder %s54, 1
      %p434 = por %p432, %p433
      %p435 = scmp.ne.s32.totalorder %s426, %s427
      %p436 = scmp.eq.s32.totalorder %s54, 0
      %p437 = por %p435, %p436
      %p438 = scmp.ne.s32.totalorder %s426, %s427
      %p439 = scmp.eq.s32.totalorder %s55, 1
      %p440 = por %p438, %p439
      %p442 = scmp.ne.s32.totalorder %s427, %s441
      %p443 = scmp.eq.s32.totalorder %s55, 0
      %p444 = por %p442, %p443
      %s446 = sadd.s32 %s445, 1
      %p449 = scmp.eq.s32.totalorder %s49, 1
      %p450 = scmp.ne.s32.totalorder %s445, %s447
      %p451 = scmp.eq.s32.totalorder %s49, 0
      %p452 = por %p450, %p451
      %p453 = scmp.ne.s32.totalorder %s445, %s447
      %p454 = scmp.eq.s32.totalorder %s54, 1
      %p455 = por %p453, %p454
      %p456 = scmp.ne.s32.totalorder %s447, %s448
      %p457 = scmp.eq.s32.totalorder %s54, 0
      %p458 = por %p456, %p457
      %p459 = scmp.ne.s32.totalorder %s447, %s448
      %p460 = scmp.eq.s32.totalorder %s55, 1
      %p461 = por %p459, %p460
      %p463 = scmp.ne.s32.totalorder %s448, %s462
      %p464 = scmp.eq.s32.totalorder %s55, 0
      %p465 = por %p463, %p464
      %s467 = sadd.s32 %s466, 1
      %p470 = scmp.eq.s32.totalorder %s49, 1
      %p471 = scmp.ne.s32.totalorder %s466, %s468
      %p472 = scmp.eq.s32.totalorder %s49, 0
      %p473 = por %p471, %p472
      %p474 = scmp.ne.s32.totalorder %s466, %s468
      %p475 = scmp.eq.s32.totalorder %s54, 1
      %p476 = por %p474, %p475
      %p477 = scmp.ne.s32.totalorder %s468, %s469
      %p478 = scmp.eq.s32.totalorder %s54, 0
      %p479 = por %p477, %p478
      %p480 = scmp.ne.s32.totalorder %s468, %s469
      %p481 = scmp.eq.s32.totalorder %s55, 1
      %p482 = por %p480, %p481
      %p484 = scmp.ne.s32.totalorder %s469, %s483
      %p485 = scmp.eq.s32.totalorder %s55, 0
      %p486 = por %p484, %p485
      %s488 = sadd.s32 %s487, 1
      %p491 = scmp.eq.s32.totalorder %s49, 1
      %p492 = scmp.ne.s32.totalorder %s487, %s489
      %p493 = scmp.eq.s32.totalorder %s49, 0
      %p494 = por %p492, %p493
      %p495 = scmp.ne.s32.totalorder %s487, %s489
      %p496 = scmp.eq.s32.totalorder %s54, 1
      %p497 = por %p495, %p496
      %p498 = scmp.ne.s32.totalorder %s489, %s490
      %p499 = scmp.eq.s32.totalorder %s54, 0
      %p500 = por %p498, %p499
      %p501 = scmp.ne.s32.totalorder %s489, %s490
      %p502 = scmp.eq.s32.totalorder %s55, 1
      %p503 = por %p501, %p502
      %p505 = scmp.ne.s32.totalorder %s490, %s504
      %p506 = scmp.eq.s32.totalorder %s55, 0
      %p507 = por %p505, %p506
      %s509 = sadd.s32 %s508, 1
      %p512 = scmp.eq.s32.totalorder %s49, 1
      %p513 = scmp.ne.s32.totalorder %s508, %s510
      %p514 = scmp.eq.s32.totalorder %s49, 0
      %p515 = por %p513, %p514
      %p516 = scmp.ne.s32.totalorder %s508, %s510
      %p517 = scmp.eq.s32.totalorder %s54, 1
      %p518 = por %p516, %p517
      %p519 = scmp.ne.s32.totalorder %s510, %s511
      %p520 = scmp.eq.s32.totalorder %s54, 0
      %p521 = por %p519, %p520
      %p522 = scmp.ne.s32.totalorder %s510, %s511
      %p523 = scmp.eq.s32.totalorder %s55, 1
      %p524 = por %p522, %p523
      %p526 = scmp.ne.s32.totalorder %s511, %s525
      %p527 = scmp.eq.s32.totalorder %s55, 0
      %p528 = por %p526, %p527
      %s530 = sadd.s32 %s529, 1
      %p533 = scmp.eq.s32.totalorder %s49, 1
      %p534 = scmp.ne.s32.totalorder %s529, %s531
      %p535 = scmp.eq.s32.totalorder %s49, 0
      %p536 = por %p534, %p535
      %p537 = scmp.ne.s32.totalorder %s529, %s531
      %p538 = scmp.eq.s32.totalorder %s54, 1
      %p539 = por %p537, %p538
      %p540 = scmp.ne.s32.totalorder %s531, %s532
      %p541 = scmp.eq.s32.totalorder %s54, 0
      %p542 = por %p540, %p541
      %p543 = scmp.ne.s32.totalorder %s531, %s532
      %p544 = scmp.eq.s32.totalorder %s55, 1
      %p545 = por %p543, %p544
      %p547 = scmp.ne.s32.totalorder %s532, %s546
      %p548 = scmp.eq.s32.totalorder %s55, 0
      %p549 = por %p547, %p548
      %s551 = sadd.s32 %s550, 1
      %p554 = scmp.eq.s32.totalorder %s49, 1
      %p555 = scmp.ne.s32.totalorder %s550, %s552
      %p556 = scmp.eq.s32.totalorder %s49, 0
      %p557 = por %p555, %p556
      %p558 = scmp.ne.s32.totalorder %s550, %s552
      %p559 = scmp.eq.s32.totalorder %s54, 1
      %p560 = por %p558, %p559
      %p561 = scmp.ne.s32.totalorder %s552, %s553
      %p562 = scmp.eq.s32.totalorder %s54, 0
      %p563 = por %p561, %p562
      %p564 = scmp.ne.s32.totalorder %s552, %s553
      %p565 = scmp.eq.s32.totalorder %s55, 1
      %p566 = por %p564, %p565
      %p568 = scmp.ne.s32.totalorder %s553, %s567
      %p569 = scmp.eq.s32.totalorder %s55, 0
      %p570 = por %p568, %p569
      %s571 = ssub.s32 %s49, %s56
      %p572 = scmp.eq.s32.totalorder %s571, 0
      %s574 = sadd.s32 %s573, 1
      %s575 = scalar_select %p572, %s573, %s574
      %p578 = pneg %p572
      %p579 = scmp.eq.s32.totalorder %s49, 1
      %p580 = por %p578, %p579
      %p581 = scmp.ne.s32.totalorder %s573, %s576
      %p582 = scmp.eq.s32.totalorder %s49, 0
      %p583 = por %p581, %p582
      %p584 = scmp.ne.s32.totalorder %s573, %s576
      %p585 = scmp.eq.s32.totalorder %s54, 1
      %p586 = por %p584, %p585
      %p587 = scmp.ne.s32.totalorder %s576, %s577
      %p588 = scmp.eq.s32.totalorder %s54, 0
      %p589 = por %p587, %p588
      %p590 = scmp.ne.s32.totalorder %s576, %s577
      %p591 = scmp.eq.s32.totalorder %s55, 1
      %p592 = por %p590, %p591
      %p594 = scmp.ne.s32.totalorder %s577, %s593
      %p595 = scmp.eq.s32.totalorder %s55, 0
      %p596 = por %p594, %p595
      %s597 = ssub.s32 %s49, %s56
      %p598 = scmp.eq.s32.totalorder %s597, 0
      %s600 = sadd.s32 %s599, 1
      %s601 = scalar_select %p598, %s599, %s600
      %p604 = pneg %p598
      %p605 = scmp.eq.s32.totalorder %s49, 1
      %p606 = por %p604, %p605
      %p607 = scmp.ne.s32.totalorder %s599, %s602
      %p608 = scmp.eq.s32.totalorder %s49, 0
      %p609 = por %p607, %p608
      %p610 = scmp.ne.s32.totalorder %s599, %s602
      %p611 = scmp.eq.s32.totalorder %s54, 1
      %p612 = por %p610, %p611
      %p613 = scmp.ne.s32.totalorder %s602, %s603
      %p614 = scmp.eq.s32.totalorder %s54, 0
      %p615 = por %p613, %p614
      %p616 = scmp.ne.s32.totalorder %s602, %s603
      %p617 = scmp.eq.s32.totalorder %s55, 1
      %p618 = por %p616, %p617
      %p620 = scmp.ne.s32.totalorder %s603, %s619
      %p621 = scmp.eq.s32.totalorder %s55, 0
      %p622 = por %p620, %p621
      %s623 = ssub.s32 %s49, %s56
      %p624 = scmp.eq.s32.totalorder %s623, 0
      %s626 = sadd.s32 %s625, 1
      %s627 = scalar_select %p624, %s625, %s626
      %p630 = pneg %p624
      %p631 = scmp.eq.s32.totalorder %s49, 1
      %p632 = por %p630, %p631
      %p633 = scmp.ne.s32.totalorder %s625, %s628
      %p634 = scmp.eq.s32.totalorder %s49, 0
      %p635 = por %p633, %p634
      %p636 = scmp.ne.s32.totalorder %s625, %s628
      %p637 = scmp.eq.s32.totalorder %s54, 1
      %p638 = por %p636, %p637
      %p639 = scmp.ne.s32.totalorder %s628, %s629
      %p640 = scmp.eq.s32.totalorder %s54, 0
      %p641 = por %p639, %p640
      %p642 = scmp.ne.s32.totalorder %s628, %s629
      %p643 = scmp.eq.s32.totalorder %s55, 1
      %p644 = por %p642, %p643
      %p646 = scmp.ne.s32.totalorder %s629, %s645
      %p647 = scmp.eq.s32.totalorder %s55, 0
      %p648 = por %p646, %p647
      %p649 = scmp.le.s32.totalorder 1, %s49
      %p650 = scmp.lt.s32.totalorder %s49, 3
      %p651 = pnand %p649, %p650
      %p652 = pneg %p651
      // Predicated region
      $region9: #{tpu_custom_call.1} parent=5 // pred_check
        _
      $region10: #{tpu_custom_call.1} parent=5 // pred_check_branch
        %654 = sbr.rel (%p651) target = $region12
      $region11: #{tpu_custom_call.1} parent=5 // pred_region
        %s655 = ssub.s32 %s49, 1
        // Predicated region
        $region13: #{tpu_custom_call.1} parent=11 // pred_check
          %p656 = pneg %p122
        $region14: #{tpu_custom_call.1} parent=11 // pred_check_branch
          %658 = sbr.rel (%p656) target = $region16
        $region15: #{tpu_custom_call.1} parent=11 // pred_region
          %s660 = ssub.s32 64, 64
          %661 = vsyncadd [#allocation6], %s660
          %s663 = sshll.u32 [#allocation5], 4
          %s664 = int_to_ptr.vmem [resolvable:$true] %s663
          %666 = dma.hbm_to_vmem [thread:$0]  %s2, 64, %s664, [#allocation6]
        $region16: #{tpu_custom_call.1} parent=11 // pred_fallthru
          _
        // Predicated region
        $region17: #{tpu_custom_call.1} parent=11 // pred_check
          %p667 = pneg %p143
        $region18: #{tpu_custom_call.1} parent=11 // pred_check_branch
          %669 = sbr.rel (%p667) target = $region20
        $region19: #{tpu_custom_call.1} parent=11 // pred_region
          %s671 = ssub.s32 64, 64
          %672 = vsyncadd [#allocation6], %s671
          %s674 = sshll.u32 [#allocation7], 4
          %s675 = int_to_ptr.vmem [resolvable:$true] %s674
          %677 = dma.hbm_to_vmem [thread:$0]  %s3, 64, %s675, [#allocation6]
        $region20: #{tpu_custom_call.1} parent=11 // pred_fallthru
          _
        // Predicated region
        $region21: #{tpu_custom_call.1} parent=11 // pred_check
          %p678 = pneg %p164
        $region22: #{tpu_custom_call.1} parent=11 // pred_check_branch
          %680 = sbr.rel (%p678) target = $region24
        $region23: #{tpu_custom_call.1} parent=11 // pred_region
          _
        $region24: #{tpu_custom_call.1} parent=11 // pred_fallthru
          _
        // Predicated region
        $region25: #{tpu_custom_call.1} parent=11 // pred_check
          %p681 = pneg %p185
        $region26: #{tpu_custom_call.1} parent=11 // pred_check_branch
          %683 = sbr.rel (%p681) target = $region28
        $region27: #{tpu_custom_call.1} parent=11 // pred_region
          %s685 = ssub.s32 16, 16
          %686 = vsyncadd [#allocation9], %s685
          %s688 = sshll.u32 [#allocation8], 4
          %s689 = int_to_ptr.vmem [resolvable:$true] %s688
          %691 = dma.hbm_to_vmem [thread:$0]  %s5, 16, %s689, [#allocation9]
        $region28: #{tpu_custom_call.1} parent=11 // pred_fallthru
          _
        // Predicated region
        $region29: #{tpu_custom_call.1} parent=11 // pred_check
          %p692 = pneg %p206
        $region30: #{tpu_custom_call.1} parent=11 // pred_check_branch
          %694 = sbr.rel (%p692) target = $region32
        $region31: #{tpu_custom_call.1} parent=11 // pred_region
          _
        $region32: #{tpu_custom_call.1} parent=11 // pred_fallthru
          _
        // Predicated region
        $region33: #{tpu_custom_call.1} parent=11 // pred_check
          %p695 = pneg %p227
        $region34: #{tpu_custom_call.1} parent=11 // pred_check_branch
          %697 = sbr.rel (%p695) target = $region36
        $region35: #{tpu_custom_call.1} parent=11 // pred_region
          %s699 = ssub.s32 16, 16
          %700 = vsyncadd [#allocation9], %s699
          %s702 = sshll.u32 [#allocation10], 4
          %s703 = int_to_ptr.vmem [resolvable:$true] %s702
          %705 = dma.hbm_to_vmem [thread:$0]  %s7, 16, %s703, [#allocation9]
        $region36: #{tpu_custom_call.1} parent=11 // pred_fallthru
          _
        // Predicated region
        $region37: #{tpu_custom_call.1} parent=11 // pred_check
          %p706 = pneg %p248
        $region38: #{tpu_custom_call.1} parent=11 // pred_check_branch
          %708 = sbr.rel (%p706) target = $region40
        $region39: #{tpu_custom_call.1} parent=11 // pred_region
          %s710 = ssub.s32 256, 256
          %711 = vsyncadd [#allocation12], %s710
          %s712 = sshll.u32 [#allocation11], 4
          %s713 = int_to_ptr.vmem [resolvable:$true] %s712
          %718 = dma.hbm_to_vmem [thread:$0]  %s8, 256, %s713, [#allocation12], 64, 64, 4
        $region40: #{tpu_custom_call.1} parent=11 // pred_fallthru
          _
        // Predicated region
        $region41: #{tpu_custom_call.1} parent=11 // pred_check
          %p719 = pneg %p269
        $region42: #{tpu_custom_call.1} parent=11 // pred_check_branch
          %721 = sbr.rel (%p719) target = $region44
        $region43: #{tpu_custom_call.1} parent=11 // pred_region
          %s723 = ssub.s32 16, 16
          %724 = vsyncadd [#allocation12], %s723
          %s726 = sshll.u32 [#allocation13], 4
          %s727 = int_to_ptr.vmem [resolvable:$true] %s726
          %729 = dma.hbm_to_vmem [thread:$0]  %s9, 16, %s727, [#allocation12]
        $region44: #{tpu_custom_call.1} parent=11 // pred_fallthru
          _
        // Predicated region
        $region45: #{tpu_custom_call.1} parent=11 // pred_check
          %p730 = pneg %p290
        $region46: #{tpu_custom_call.1} parent=11 // pred_check_branch
          %732 = sbr.rel (%p730) target = $region48
        $region47: #{tpu_custom_call.1} parent=11 // pred_region
          _
        $region48: #{tpu_custom_call.1} parent=11 // pred_fallthru
          _
        // Predicated region
        $region49: #{tpu_custom_call.1} parent=11 // pred_check
          %p733 = pneg %p311
        $region50: #{tpu_custom_call.1} parent=11 // pred_check_branch
          %735 = sbr.rel (%p733) target = $region52
        $region51: #{tpu_custom_call.1} parent=11 // pred_region
          %s737 = ssub.s32 16, 16
          %738 = vsyncadd [#allocation15], %s737
          %s740 = sshll.u32 [#allocation14], 4
          %s741 = int_to_ptr.vmem [resolvable:$true] %s740
          %743 = dma.hbm_to_vmem [thread:$0]  %s11, 16, %s741, [#allocation15]
        $region52: #{tpu_custom_call.1} parent=11 // pred_fallthru
          _
        // Predicated region
        $region53: #{tpu_custom_call.1} parent=11 // pred_check
          %p744 = pneg %p332
        $region54: #{tpu_custom_call.1} parent=11 // pred_check_branch
          %746 = sbr.rel (%p744) target = $region56
        $region55: #{tpu_custom_call.1} parent=11 // pred_region
          %s748 = ssub.s32 256, 256
          %749 = vsyncadd [#allocation15], %s748
          %s750 = sshll.u32 [#allocation16], 4
          %s751 = int_to_ptr.vmem [resolvable:$true] %s750
          %756 = dma.hbm_to_vmem [thread:$0]  %s12, 256, %s751, [#allocation15], 64, 64, 4
        $region56: #{tpu_custom_call.1} parent=11 // pred_fallthru
          _
        // Predicated region
        $region57: #{tpu_custom_call.1} parent=11 // pred_check
          %p757 = pneg %p353
        $region58: #{tpu_custom_call.1} parent=11 // pred_check_branch
          %759 = sbr.rel (%p757) target = $region60
        $region59: #{tpu_custom_call.1} parent=11 // pred_region
          %s761 = ssub.s32 16, 16
          %762 = vsyncadd [#allocation18], %s761
          %s764 = sshll.u32 [#allocation17], 4
          %s765 = int_to_ptr.vmem [resolvable:$true] %s764
          %767 = dma.hbm_to_vmem [thread:$0]  %s13, 16, %s765, [#allocation18]
        $region60: #{tpu_custom_call.1} parent=11 // pred_fallthru
          _
        // Predicated region
        $region61: #{tpu_custom_call.1} parent=11 // pred_check
          %p768 = pneg %p374
        $region62: #{tpu_custom_call.1} parent=11 // pred_check_branch
          %770 = sbr.rel (%p768) target = $region64
        $region63: #{tpu_custom_call.1} parent=11 // pred_region
          %s772 = ssub.s32 16, 16
          %773 = vsyncadd [#allocation18], %s772
          %s775 = sshll.u32 [#allocation19], 4
          %s776 = int_to_ptr.vmem [resolvable:$true] %s775
          %778 = dma.hbm_to_vmem [thread:$0]  %s14, 16, %s776, [#allocation18]
        $region64: #{tpu_custom_call.1} parent=11 // pred_fallthru
          _
        // Predicated region
        $region65: #{tpu_custom_call.1} parent=11 // pred_check
          %p779 = pneg %p395
        $region66: #{tpu_custom_call.1} parent=11 // pred_check_branch
          %781 = sbr.rel (%p779) target = $region68
        $region67: #{tpu_custom_call.1} parent=11 // pred_region
          %s783 = ssub.s32 16, 16
          %784 = vsyncadd [#allocation21], %s783
          %s786 = sshll.u32 [#allocation20], 4
          %s787 = int_to_ptr.vmem [resolvable:$true] %s786
          %789 = dma.hbm_to_vmem [thread:$0]  %s15, 16, %s787, [#allocation21]
        $region68: #{tpu_custom_call.1} parent=11 // pred_fallthru
          _
        // Predicated region
        $region69: #{tpu_custom_call.1} parent=11 // pred_check
          %p790 = pneg %p416
        $region70: #{tpu_custom_call.1} parent=11 // pred_check_branch
          %792 = sbr.rel (%p790) target = $region72
        $region71: #{tpu_custom_call.1} parent=11 // pred_region
          %s794 = ssub.s32 16, 16
          %795 = vsyncadd [#allocation21], %s794
          %s797 = sshll.u32 [#allocation22], 4
          %s798 = int_to_ptr.vmem [resolvable:$true] %s797
          %800 = dma.hbm_to_vmem [thread:$0]  %s16, 16, %s798, [#allocation21]
        $region72: #{tpu_custom_call.1} parent=11 // pred_fallthru
          _
        // Predicated region
        $region73: #{tpu_custom_call.1} parent=11 // pred_check
          %p801 = pneg %p437
        $region74: #{tpu_custom_call.1} parent=11 // pred_check_branch
          %803 = sbr.rel (%p801) target = $region76
        $region75: #{tpu_custom_call.1} parent=11 // pred_region
          %s805 = ssub.s32 16, 16
          %806 = vsyncadd [#allocation24], %s805
          %s808 = sshll.u32 [#allocation23], 4
          %s809 = int_to_ptr.vmem [resolvable:$true] %s808
          %811 = dma.hbm_to_vmem [thread:$0]  %s17, 16, %s809, [#allocation24]
        $region76: #{tpu_custom_call.1} parent=11 // pred_fallthru
          _
        // Predicated region
        $region77: #{tpu_custom_call.1} parent=11 // pred_check
          %p812 = pneg %p458
        $region78: #{tpu_custom_call.1} parent=11 // pred_check_branch
          %814 = sbr.rel (%p812) target = $region80
        $region79: #{tpu_custom_call.1} parent=11 // pred_region
          %s816 = ssub.s32 16, 16
          %817 = vsyncadd [#allocation24], %s816
          %s819 = sshll.u32 [#allocation25], 4
          %s820 = int_to_ptr.vmem [resolvable:$true] %s819
          %822 = dma.hbm_to_vmem [thread:$0]  %s18, 16, %s820, [#allocation24]
        $region80: #{tpu_custom_call.1} parent=11 // pred_fallthru
          _
        // Predicated region
        $region81: #{tpu_custom_call.1} parent=11 // pred_check
          %p823 = pneg %p479
        $region82: #{tpu_custom_call.1} parent=11 // pred_check_branch
          %825 = sbr.rel (%p823) target = $region84
        $region83: #{tpu_custom_call.1} parent=11 // pred_region
          _
        $region84: #{tpu_custom_call.1} parent=11 // pred_fallthru
          _
        // Predicated region
        $region85: #{tpu_custom_call.1} parent=11 // pred_check
          %p826 = pneg %p500
        $region86: #{tpu_custom_call.1} parent=11 // pred_check_branch
          %828 = sbr.rel (%p826) target = $region88
        $region87: #{tpu_custom_call.1} parent=11 // pred_region
          _
        $region88: #{tpu_custom_call.1} parent=11 // pred_fallthru
          _
        // Predicated region
        $region89: #{tpu_custom_call.1} parent=11 // pred_check
          %p829 = pneg %p521
        $region90: #{tpu_custom_call.1} parent=11 // pred_check_branch
          %831 = sbr.rel (%p829) target = $region92
        $region91: #{tpu_custom_call.1} parent=11 // pred_region
          _
        $region92: #{tpu_custom_call.1} parent=11 // pred_fallthru
          _
        // Predicated region
        $region93: #{tpu_custom_call.1} parent=11 // pred_check
          %p832 = pneg %p542
        $region94: #{tpu_custom_call.1} parent=11 // pred_check_branch
          %834 = sbr.rel (%p832) target = $region96
        $region95: #{tpu_custom_call.1} parent=11 // pred_region
          _
        $region96: #{tpu_custom_call.1} parent=11 // pred_fallthru
          _
        // Predicated region
        $region97: #{tpu_custom_call.1} parent=11 // pred_check
          %p835 = pneg %p563
        $region98: #{tpu_custom_call.1} parent=11 // pred_check_branch
          %837 = sbr.rel (%p835) target = $region100
        $region99: #{tpu_custom_call.1} parent=11 // pred_region
          _
        $region100: #{tpu_custom_call.1} parent=11 // pred_fallthru
          _
      $region12: #{tpu_custom_call.1} parent=5 // pred_fallthru
        _
      %p838 = scmp.lt.s32.totalorder %s49, 2
      // Predicated region
      $region101: #{tpu_custom_call.1} parent=5 // pred_check
        %p839 = pneg %p838
      $region102: #{tpu_custom_call.1} parent=5 // pred_check_branch
        %841 = sbr.rel (%p839) target = $region104
      $region103: #{tpu_custom_call.1} parent=5 // pred_region
        // Predicated region
        $region105: #{tpu_custom_call.1} parent=103 // pred_check
          %p842 = pneg %p69
        $region106: #{tpu_custom_call.1} parent=103 // pred_check_branch
          %844 = sbr.rel (%p842) target = $region108
        $region107: #{tpu_custom_call.1} parent=103 // pred_region
          %s845 = sand.u32 %s59, 1
          %s846 = scalar_lea.sflag [#allocation3], %s845
          %s847 = sand.u32 %s59, 1
          %s848 = smul.addr %s847, 4
          %s849 = scalar_lea.vmem [#allocation2], %s848
          %s851 = ssub.s32 64, 64
          %852 = vsyncadd %s846, %s851
          %s853 = smul.addr %s49, 64
          %s854 = scalar_lea.hbm %s0, %s853
          %s856 = sshll.u32 %s849, 4
          %s857 = int_to_ptr.vmem [resolvable:$true] %s856
          %859 = dma.hbm_to_vmem [thread:$0]  %s854, 64, %s857, %s846
        $region108: #{tpu_custom_call.1} parent=103 // pred_fallthru
          _
        // Predicated region
        $region109: #{tpu_custom_call.1} parent=103 // pred_check
          %p860 = pneg %p95
        $region110: #{tpu_custom_call.1} parent=103 // pred_check_branch
          %862 = sbr.rel (%p860) target = $region112
        $region111: #{tpu_custom_call.1} parent=103 // pred_region
          %p863 = scmp.lt.s32.totalorder %s49, 1
          %s864 = scalar_select %p863, %s49, 1
          %s865 = smul.addr %s864, 2
          %s866 = smul.addr %s865, 4
          %s867 = scalar_lea.vmem %s1, %s866
        $region112: #{tpu_custom_call.1} parent=103 // pred_fallthru
          _
      $region104: #{tpu_custom_call.1} parent=5 // pred_fallthru
        _
      %p868 = scmp.le.s32.totalorder 1, %s49
      %p869 = scmp.lt.s32.totalorder %s49, 3
      %p870 = pnand %p868, %p869
      %p871 = pneg %p870
      // Predicated region
      $region113: #{tpu_custom_call.1} parent=5 // pred_check
        _
      $region114: #{tpu_custom_call.1} parent=5 // pred_check_branch
        %873 = sbr.rel (%p870) target = $region116
      $region115: #{tpu_custom_call.1} parent=5 // pred_region
        %s874 = ssub.s32 %s49, 1
        %s875 = sand.u32 %s62, 1
        %s876 = scalar_lea.sflag [#allocation3], %s875
        %s877 = sand.u32 %s62, 1
        %s878 = smul.addr %s877, 4
        %s879 = scalar_lea.vmem [#allocation2], %s878
        // Predicated region
        $region117: #{tpu_custom_call.1} parent=115 // pred_check
          %p880 = pneg %p75
        $region118: #{tpu_custom_call.1} parent=115 // pred_check_branch
          %882 = sbr.rel (%p880) target = $region120
        $region119: #{tpu_custom_call.1} parent=115 // pred_region
          %883 = dma.done %s876, 64
        $region120: #{tpu_custom_call.1} parent=115 // pred_fallthru
          _
        // Predicated region
        $region121: #{tpu_custom_call.1} parent=115 // pred_check
          %p884 = pneg %p122
        $region122: #{tpu_custom_call.1} parent=115 // pred_check_branch
          %886 = sbr.rel (%p884) target = $region124
        $region123: #{tpu_custom_call.1} parent=115 // pred_region
          %887 = dma.done [#allocation6], 64
        $region124: #{tpu_custom_call.1} parent=115 // pred_fallthru
          _
        // Predicated region
        $region125: #{tpu_custom_call.1} parent=115 // pred_check
          %p888 = pneg %p143
        $region126: #{tpu_custom_call.1} parent=115 // pred_check_branch
          %890 = sbr.rel (%p888) target = $region128
        $region127: #{tpu_custom_call.1} parent=115 // pred_region
          %891 = dma.done [#allocation6], 64
        $region128: #{tpu_custom_call.1} parent=115 // pred_fallthru
          _
        // Predicated region
        $region129: #{tpu_custom_call.1} parent=115 // pred_check
          %p892 = pneg %p185
        $region130: #{tpu_custom_call.1} parent=115 // pred_check_branch
          %894 = sbr.rel (%p892) target = $region132
        $region131: #{tpu_custom_call.1} parent=115 // pred_region
          %895 = dma.done [#allocation9], 16
        $region132: #{tpu_custom_call.1} parent=115 // pred_fallthru
          _
        // Predicated region
        $region133: #{tpu_custom_call.1} parent=115 // pred_check
          %p896 = pneg %p227
        $region134: #{tpu_custom_call.1} parent=115 // pred_check_branch
          %898 = sbr.rel (%p896) target = $region136
        $region135: #{tpu_custom_call.1} parent=115 // pred_region
          %899 = dma.done [#allocation9], 16
        $region136: #{tpu_custom_call.1} parent=115 // pred_fallthru
          _
        // Predicated region
        $region137: #{tpu_custom_call.1} parent=115 // pred_check
          %p900 = pneg %p248
        $region138: #{tpu_custom_call.1} parent=115 // pred_check_branch
          %902 = sbr.rel (%p900) target = $region140
        $region139: #{tpu_custom_call.1} parent=115 // pred_region
          %903 = dma.done [#allocation12], 256
        $region140: #{tpu_custom_call.1} parent=115 // pred_fallthru
          _
        // Predicated region
        $region141: #{tpu_custom_call.1} parent=115 // pred_check
          %p904 = pneg %p269
        $region142: #{tpu_custom_call.1} parent=115 // pred_check_branch
          %906 = sbr.rel (%p904) target = $region144
        $region143: #{tpu_custom_call.1} parent=115 // pred_region
          %907 = dma.done [#allocation12], 16
        $region144: #{tpu_custom_call.1} parent=115 // pred_fallthru
          _
        // Predicated region
        $region145: #{tpu_custom_call.1} parent=115 // pred_check
          %p908 = pneg %p311
        $region146: #{tpu_custom_call.1} parent=115 // pred_check_branch
          %910 = sbr.rel (%p908) target = $region148
        $region147: #{tpu_custom_call.1} parent=115 // pred_region
          %911 = dma.done [#allocation15], 16
        $region148: #{tpu_custom_call.1} parent=115 // pred_fallthru
          _
        // Predicated region
        $region149: #{tpu_custom_call.1} parent=115 // pred_check
          %p912 = pneg %p332
        $region150: #{tpu_custom_call.1} parent=115 // pred_check_branch
          %914 = sbr.rel (%p912) target = $region152
        $region151: #{tpu_custom_call.1} parent=115 // pred_region
          %915 = dma.done [#allocation15], 256
        $region152: #{tpu_custom_call.1} parent=115 // pred_fallthru
          _
        // Predicated region
        $region153: #{tpu_custom_call.1} parent=115 // pred_check
          %p916 = pneg %p353
        $region154: #{tpu_custom_call.1} parent=115 // pred_check_branch
          %918 = sbr.rel (%p916) target = $region156
        $region155: #{tpu_custom_call.1} parent=115 // pred_region
          %919 = dma.done [#allocation18], 16
        $region156: #{tpu_custom_call.1} parent=115 // pred_fallthru
          _
        // Predicated region
        $region157: #{tpu_custom_call.1} parent=115 // pred_check
          %p920 = pneg %p374
        $region158: #{tpu_custom_call.1} parent=115 // pred_check_branch
          %922 = sbr.rel (%p920) target = $region160
        $region159: #{tpu_custom_call.1} parent=115 // pred_region
          %923 = dma.done [#allocation18], 16
        $region160: #{tpu_custom_call.1} parent=115 // pred_fallthru
          _
        // Predicated region
        $region161: #{tpu_custom_call.1} parent=115 // pred_check
          %p924 = pneg %p395
        $region162: #{tpu_custom_call.1} parent=115 // pred_check_branch
          %926 = sbr.rel (%p924) target = $region164
        $region163: #{tpu_custom_call.1} parent=115 // pred_region
          %927 = dma.done [#allocation21], 16
        $region164: #{tpu_custom_call.1} parent=115 // pred_fallthru
          _
        // Predicated region
        $region165: #{tpu_custom_call.1} parent=115 // pred_check
          %p928 = pneg %p416
        $region166: #{tpu_custom_call.1} parent=115 // pred_check_branch
          %930 = sbr.rel (%p928) target = $region168
        $region167: #{tpu_custom_call.1} parent=115 // pred_region
          %931 = dma.done [#allocation21], 16
        $region168: #{tpu_custom_call.1} parent=115 // pred_fallthru
          _
        // Predicated region
        $region169: #{tpu_custom_call.1} parent=115 // pred_check
          %p932 = pneg %p437
        $region170: #{tpu_custom_call.1} parent=115 // pred_check_branch
          %934 = sbr.rel (%p932) target = $region172
        $region171: #{tpu_custom_call.1} parent=115 // pred_region
          %935 = dma.done [#allocation24], 16
        $region172: #{tpu_custom_call.1} parent=115 // pred_fallthru
          _
        // Predicated region
        $region173: #{tpu_custom_call.1} parent=115 // pred_check
          %p936 = pneg %p458
        $region174: #{tpu_custom_call.1} parent=115 // pred_check_branch
          %938 = sbr.rel (%p936) target = $region176
        $region175: #{tpu_custom_call.1} parent=115 // pred_region
          %939 = dma.done [#allocation24], 16
        $region176: #{tpu_custom_call.1} parent=115 // pred_fallthru
          _
        %s940 = sand.u32 %s62, 1
        %s941 = scalar_lea.sflag [#allocation3], %s940
        %s942 = sand.u32 %s62, 1
        %s943 = smul.addr %s942, 4
        %s944 = scalar_lea.vmem [#allocation2], %s943
        %p945 = pneg %p75
        %p946 = pneg %p72
        %p947 = scmp.lt.s32.totalorder %s54, 1
        %s948 = scalar_select %p947, %s54, 1
        %s949 = smul.addr %s948, 2
        %s950 = smul.addr %s949, 4
        %s951 = scalar_lea.vmem %s1, %s950
        %p952 = pneg %p101
        %p953 = pneg %p98
        %p954 = pneg %p122
        %p955 = pneg %p119
        %p956 = pneg %p143
        %p957 = pneg %p140
        %p958 = pneg %p164
        %p959 = pneg %p161
        %p960 = pneg %p185
        %p961 = pneg %p182
        %p962 = pneg %p206
        %p963 = pneg %p203
        %p964 = pneg %p227
        %p965 = pneg %p224
        %p966 = pneg %p248
        %p967 = pneg %p245
        %p968 = pneg %p269
        %p969 = pneg %p266
        %p970 = pneg %p290
        %p971 = pneg %p287
        %p972 = pneg %p311
        %p973 = pneg %p308
        %p974 = pneg %p332
        %p975 = pneg %p329
        %p976 = pneg %p353
        %p977 = pneg %p350
        %p978 = pneg %p374
        %p979 = pneg %p371
        %p980 = pneg %p395
        %p981 = pneg %p392
        %p982 = pneg %p416
        %p983 = pneg %p413
        %p984 = pneg %p437
        %p985 = pneg %p434
        %p986 = pneg %p458
        %p987 = pneg %p455
        %p988 = pneg %p479
        %p989 = pneg %p476
        %p990 = pneg %p500
        %p991 = pneg %p497
        %p992 = pneg %p521
        %p993 = pneg %p518
        %p994 = pneg %p542
        %p995 = pneg %p539
        %p996 = pneg %p563
        %p997 = pneg %p560
        %p998 = pneg %p589
        %p999 = pneg %p586
        %s1000 = sand.u32 %s576, 1
        %s1001 = scalar_lea.sflag [#allocation4], %s1000
        %s1002 = sand.u32 %s576, 1
        %s1003 = smul.addr %s1002, 8
        %s1004 = scalar_lea.vmem [#allocation26], %s1003
        %p1005 = pneg %p615
        %p1006 = pneg %p612
        %s1007 = sand.u32 %s54, 1
        %s1008 = scalar_lea.sflag [#allocation28], %s1007
        %s1009 = sand.u32 %s602, 1
        %s1010 = smul.addr %s1009, 16
        %s1011 = scalar_lea.vmem [#allocation27], %s1010
        %p1012 = pneg %p641
        %p1013 = pneg %p638
        %s1014 = sand.u32 %s54, 1
        %s1015 = scalar_lea.sflag [#allocation28], %s1014
        %s1016 = sand.u32 %s628, 1
        %s1017 = smul.addr %s1016, 16
        %s1018 = scalar_lea.vmem [#allocation29], %s1017
        %p1019 = scmp.lt.s32.totalorder %s54, 1
        %s1020 = scalar_select %p1019, %s54, 1
        %s1021 = smul.addr %s1020, 2
        %s1022 = smul.addr %s1021, 4
        %s1023 = scalar_lea.vmem %s1, %s1022
        %v1025 = vld [vmem:[%s879] sm:$0xf]
        %v1026 = vld [vmem:[%s1023] sm:$0xf]
        %v1027 = vld [vmem:[%s1023 + $0x4] sm:$0xf]
        %v1028 = vunpack.c.l.bf16 %v1025
        %v1029 = vld [vmem:[%s4] sm:$0xf]
        %v1030 = vld [vmem:[%s4 + $0x4] sm:$0xf]
        %v1031 = vld [vmem:[%s4 + $0x8] sm:$0xf]
        %v1032 = vld [vmem:[%s4 + $0xc] sm:$0xf]
        %v1033 = vld [vmem:[#allocation8] sm:$0x1]
        %v1035 = vlaneseq
        %v1036 = vshrl.u32 %v1035, 7
        %v1037 = vsub.s32 0, %v1036
        %v1038 = vrot.slane %v1033, %v1037
        %v1044 = vunpack.c.l.b16 %v1029
        %v1045 = vunpack.c.l.b16 %v1030
        %v1046 = vunpack.c.l.b16 %v1031
        %v1047 = vunpack.c.l.b16 %v1032
        %v1048 = vpack.c.b16 %v1045, %v1044
        %v1049 = vpack.c.b16 %v1047, %v1046
        %vm1052 = vcmask 261120
        %v1054 = vsel %vm1052, %v1025, 0
        %1056 = vmatprep.subr.bf16.mxu0 0
        %1057 = vmatpush1.bf16.msra.mxu0 0
        %1058 = vmatprep.subr.bf16.mxu0 0
        %1059 = vmatpush1.bf16.msra.mxu0 0
        %1060 = vmatprep.subr.bf16.mxu0 0
        %1061 = vmatpush1.bf16.msra.mxu0 0
        %1062 = vmatprep.subr.bf16.mxu0 0
        %1063 = vmatpush1.bf16.msra.mxu0 0
        %1064 = vmatprep.subr.bf16.mxu0 0
        %1065 = vmatpush1.bf16.msra.mxu0 0
        %1066 = vmatprep.subr.bf16.mxu0 0
        %1067 = vmatpush1.bf16.msra.mxu0 0
        %1068 = vmatprep.subr.bf16.mxu0 0
        %1069 = vmatpush1.bf16.msra.mxu0 %v1049
        %1070 = vmatprep.subr.bf16.mxu0 0
        %1071 = vmatpush1.bf16.msra.mxu0 %v1048
        %1072 = vmatprep.subr.bf16.mxu0 0
        %1073 = vmatpush2.bf16.msra.mxu0 0
        %1074 = vmatprep.subr.bf16.mxu0 0
        %1075 = vmatpush2.bf16.msra.mxu0 0
        %1076 = vmatprep.subr.bf16.mxu0 0
        %1077 = vmatpush2.bf16.msra.mxu0 0
        %1078 = vmatprep.subr.bf16.mxu0 0
        %1079 = vmatpush2.bf16.msra.mxu0 0
        %1080 = vmatprep.subr.bf16.mxu0 0
        %1081 = vmatpush2.bf16.msra.mxu0 0
        %1082 = vmatprep.subr.bf16.mxu0 0
        %1083 = vmatpush2.bf16.msra.mxu0 0
        %1084 = vmatprep.subr.bf16.mxu0 0
        %1085 = vmatpush2.bf16.msra.mxu0 0
        %1086 = vmatprep.subr.bf16.mxu0 0
        %1087 = vmatpush2.bf16.msra.mxu0 0
        %1088 = vmatprep.mubr.bf16.mxu0 0
        %1089 = vmatmul.mubr.bf16.gmra.mxu0 %v1054
        %v1090 = vpop.f32.mrf.mxu0
        %v1091 = vadd.f32 %v1038, %v1090
        %v1092 = vpop.f32.mrf.mxu0
        %v1093 = vpop.f32.mrf.mxu0
        %v1094 = vpop.f32.mrf.mxu0
        %1095 = vdwg.mxu0
        %v1096 = vld [vmem:[#allocation5] sm:$0xf]
        %v1097 = vunpack.c.l.bf16 %v1096
        %v1098 = vpack.c.bf16 %v1091, %v1091
        %1100 = vrot.lane.b32.xlu0 %v1098, 96
        %v1101 = vpop.permute.xlu0 %1100
        %vm1102 = vcmask 64512
        %v1104 = vsel %vm1102, %v1098, 0
        %v1107 = vsel %vm1102, %v1101, 0
        %1109 = vmatprep.subr.bf16.mxu0 0
        %1110 = vmatpush1.bf16.xpose.msra.mxu0 0
        %1111 = vmatprep.subr.bf16.mxu0 0
        %1112 = vmatpush1.bf16.xpose.msra.mxu0 0
        %1113 = vmatprep.subr.bf16.mxu0 0
        %1114 = vmatpush1.bf16.xpose.msra.mxu0 0
        %1115 = vmatprep.subr.bf16.mxu0 0
        %1116 = vmatpush1.bf16.xpose.msra.mxu0 0
        %1117 = vmatprep.subr.bf16.mxu0 0
        %1118 = vmatpush1.bf16.xpose.msra.mxu0 0
        %1119 = vmatprep.subr.bf16.mxu0 0
        %1120 = vmatpush1.bf16.xpose.msra.mxu0 0
        %1121 = vmatprep.subr.bf16.mxu0 0
        %1122 = vmatpush1.bf16.xpose.msra.mxu0 0
        %1123 = vmatprep.subr.bf16.mxu0 0
        %1124 = vmatpush1.bf16.xpose.msra.mxu0 %v1107
        %1125 = vmatprep.subr.bf16.mxu0 0
        %1126 = vmatpush2.bf16.xpose.msra.mxu0 0
        %1127 = vmatprep.subr.bf16.mxu0 0
        %1128 = vmatpush2.bf16.xpose.msra.mxu0 0
        %1129 = vmatprep.subr.bf16.mxu0 0
        %1130 = vmatpush2.bf16.xpose.msra.mxu0 0
        %1131 = vmatprep.subr.bf16.mxu0 0
        %1132 = vmatpush2.bf16.xpose.msra.mxu0 0
        %1133 = vmatprep.subr.bf16.mxu0 0
        %1134 = vmatpush2.bf16.xpose.msra.mxu0 0
        %1135 = vmatprep.subr.bf16.mxu0 0
        %1136 = vmatpush2.bf16.xpose.msra.mxu0 0
        %1137 = vmatprep.subr.bf16.mxu0 0
        %1138 = vmatpush2.bf16.xpose.msra.mxu0 0
        %1139 = vmatprep.subr.bf16.mxu0 0
        %1140 = vmatpush2.bf16.xpose.msra.mxu0 0
        %1141 = vmatprep.mubr.bf16.mxu0 0
        %1142 = vmatmul.mubr.bf16.gmra.mxu0 %v1104
        %v1143 = vpop.f32.mrf.mxu0
        %v1144 = vadd.f32 %v1097, %v1143
        %v1145 = vpop.f32.mrf.mxu0
        %v1146 = vpop.f32.mrf.mxu0
        %v1147 = vpop.f32.mrf.mxu0
        %1148 = vdwg.mxu0
        %v1149 = vsel %vm1102, %v1144, -inf
        %1150 = vmax.xlane.f32.xlu0 %v1149
        %v1151 = vpop.xlane.xlu0 %1150
        %v1152 = vsub.f32 %v1144, %v1151
        %v1153 = vmul.f32 %v1152, 1.442695
        %v1154 = vpow.pop %v1153
        %v1155 = vsel %vm1102, %v1154, 0.0
        %1156 = vadd.xlane.f32.xlu0 %v1155
        %v1157 = vpop.xlane.xlu0 %1156
        %v1158 = vrcp.pop %v1157
        %v1159 = vmul.f32 %v1154, %v1158
        %v1160 = vpack.c.bf16 %v1159, %v1159
        %vm1161 = vcmask 60416
        %1162 = vst.msk [vmem:[%s1011] sm:$0xf] %vm1161, %v1160
        %1163 = vrot.lane.b32.xlu0 %v1098, 64
        %v1164 = vpop.permute.xlu0 %1163
        %v1166 = vsel %vm1102, %v1160, 0
        %vm1168 = vcmask 1043456
        %v1170 = vsel %vm1168, %v1164, 0
        %1172 = vmatprep.subr.bf16.mxu0 0
        %1173 = vmatpush1.bf16.msra.mxu0 0
        %1174 = vmatprep.subr.bf16.mxu0 0
        %1175 = vmatpush1.bf16.msra.mxu0 0
        %1176 = vmatprep.subr.bf16.mxu0 0
        %1177 = vmatpush1.bf16.msra.mxu0 0
        %1178 = vmatprep.subr.bf16.mxu0 0
        %1179 = vmatpush1.bf16.msra.mxu0 0
        %1180 = vmatprep.subr.bf16.mxu0 0
        %1181 = vmatpush1.bf16.msra.mxu0 0
        %1182 = vmatprep.subr.bf16.mxu0 0
        %1183 = vmatpush1.bf16.msra.mxu0 0
        %1184 = vmatprep.subr.bf16.mxu0 0
        %1185 = vmatpush1.bf16.msra.mxu0 0
        %1186 = vmatprep.subr.bf16.mxu0 0
        %1187 = vmatpush1.bf16.msra.mxu0 %v1170
        %1188 = vmatprep.subr.bf16.mxu0 0
        %1189 = vmatpush2.bf16.msra.mxu0 0
        %1190 = vmatprep.subr.bf16.mxu0 0
        %1191 = vmatpush2.bf16.msra.mxu0 0
        %1192 = vmatprep.subr.bf16.mxu0 0
        %1193 = vmatpush2.bf16.msra.mxu0 0
        %1194 = vmatprep.subr.bf16.mxu0 0
        %1195 = vmatpush2.bf16.msra.mxu0 0
        %1196 = vmatprep.subr.bf16.mxu0 0
        %1197 = vmatpush2.bf16.msra.mxu0 0
        %1198 = vmatprep.subr.bf16.mxu0 0
        %1199 = vmatpush2.bf16.msra.mxu0 0
        %1200 = vmatprep.subr.bf16.mxu0 0
        %1201 = vmatpush2.bf16.msra.mxu0 0
        %1202 = vmatprep.subr.bf16.mxu0 0
        %1203 = vmatpush2.bf16.msra.mxu0 0
        %1204 = vmatprep.mubr.bf16.mxu0 0
        %1205 = vmatmul.mubr.bf16.gmra.mxu0 %v1166
        %v1206 = vpop.f32.mrf.mxu0
        %v1207 = vadd.f32 0.0, %v1206
        %v1208 = vpop.f32.mrf.mxu0
        %v1209 = vpop.f32.mrf.mxu0
        %v1210 = vpop.f32.mrf.mxu0
        %1211 = vdwg.mxu0
        %1212 = vrot.lane.b32.xlu0 %v1098, 120
        %v1213 = vpop.permute.xlu0 %1212
        %1214 = vrot.lane.b32.xlu0 %v1098, 88
        %v1215 = vpop.permute.xlu0 %1214
        %v1217 = vsel %vm1102, %v1213, 0
        %v1220 = vsel %vm1102, %v1215, 0
        %1222 = vmatprep.subr.bf16.mxu0 0
        %1223 = vmatpush1.bf16.xpose.msra.mxu0 0
        %1224 = vmatprep.subr.bf16.mxu0 0
        %1225 = vmatpush1.bf16.xpose.msra.mxu0 0
        %1226 = vmatprep.subr.bf16.mxu0 0
        %1227 = vmatpush1.bf16.xpose.msra.mxu0 0
        %1228 = vmatprep.subr.bf16.mxu0 0
        %1229 = vmatpush1.bf16.xpose.msra.mxu0 0
        %1230 = vmatprep.subr.bf16.mxu0 0
        %1231 = vmatpush1.bf16.xpose.msra.mxu0 0
        %1232 = vmatprep.subr.bf16.mxu0 0
        %1233 = vmatpush1.bf16.xpose.msra.mxu0 0
        %1234 = vmatprep.subr.bf16.mxu0 0
        %1235 = vmatpush1.bf16.xpose.msra.mxu0 0
        %1236 = vmatprep.subr.bf16.mxu0 0
        %1237 = vmatpush1.bf16.xpose.msra.mxu0 %v1220
        %1238 = vmatprep.subr.bf16.mxu0 0
        %1239 = vmatpush2.bf16.xpose.msra.mxu0 0
        %1240 = vmatprep.subr.bf16.mxu0 0
        %1241 = vmatpush2.bf16.xpose.msra.mxu0 0
        %1242 = vmatprep.subr.bf16.mxu0 0
        %1243 = vmatpush2.bf16.xpose.msra.mxu0 0
        %1244 = vmatprep.subr.bf16.mxu0 0
        %1245 = vmatpush2.bf16.xpose.msra.mxu0 0
        %1246 = vmatprep.subr.bf16.mxu0 0
        %1247 = vmatpush2.bf16.xpose.msra.mxu0 0
        %1248 = vmatprep.subr.bf16.mxu0 0
        %1249 = vmatpush2.bf16.xpose.msra.mxu0 0
        %1250 = vmatprep.subr.bf16.mxu0 0
        %1251 = vmatpush2.bf16.xpose.msra.mxu0 0
        %1252 = vmatprep.subr.bf16.mxu0 0
        %1253 = vmatpush2.bf16.xpose.msra.mxu0 0
        %1254 = vmatprep.mubr.bf16.mxu0 0
        %1255 = vmatmul.mubr.bf16.gmra.mxu0 %v1217
        %v1256 = vpop.f32.mrf.mxu0
        %v1257 = vadd.f32 %v1097, %v1256
        %v1258 = vpop.f32.mrf.mxu0
        %v1259 = vpop.f32.mrf.mxu0
        %v1260 = vpop.f32.mrf.mxu0
        %1261 = vdwg.mxu0
        %v1262 = vsel %vm1102, %v1257, -inf
        %1263 = vmax.xlane.f32.xlu0 %v1262
        %v1264 = vpop.xlane.xlu0 %1263
        %v1265 = vsub.f32 %v1257, %v1264
        %v1266 = vmul.f32 %v1265, 1.442695
        %v1267 = vpow.pop %v1266
        %v1268 = vsel %vm1102, %v1267, 0.0
        %1269 = vadd.xlane.f32.xlu0 %v1268
        %v1270 = vpop.xlane.xlu0 %1269
        %v1271 = vrcp.pop %v1270
        %v1272 = vmul.f32 %v1267, %v1271
        %v1273 = vpack.c.bf16 %v1272, %v1272
        %s1274 = scalar_lea.vmem %s1011, 4 [#allocation27]
        %1275 = vst.msk [vmem:[%s1274] sm:$0xf] %vm1161, %v1273
        %1276 = vrot.lane.b32.xlu0 %v1098, 56
        %v1277 = vpop.permute.xlu0 %1276
        %v1279 = vsel %vm1102, %v1273, 0
        %v1282 = vsel %vm1168, %v1277, 0
        %1284 = vmatprep.subr.bf16.mxu0 0
        %1285 = vmatpush1.bf16.msra.mxu0 0
        %1286 = vmatprep.subr.bf16.mxu0 0
        %1287 = vmatpush1.bf16.msra.mxu0 0
        %1288 = vmatprep.subr.bf16.mxu0 0
        %1289 = vmatpush1.bf16.msra.mxu0 0
        %1290 = vmatprep.subr.bf16.mxu0 0
        %1291 = vmatpush1.bf16.msra.mxu0 0
        %1292 = vmatprep.subr.bf16.mxu0 0
        %1293 = vmatpush1.bf16.msra.mxu0 0
        %1294 = vmatprep.subr.bf16.mxu0 0
        %1295 = vmatpush1.bf16.msra.mxu0 0
        %1296 = vmatprep.subr.bf16.mxu0 0
        %1297 = vmatpush1.bf16.msra.mxu0 0
        %1298 = vmatprep.subr.bf16.mxu0 0
        %1299 = vmatpush1.bf16.msra.mxu0 %v1282
        %1300 = vmatprep.subr.bf16.mxu0 0
        %1301 = vmatpush2.bf16.msra.mxu0 0
        %1302 = vmatprep.subr.bf16.mxu0 0
        %1303 = vmatpush2.bf16.msra.mxu0 0
        %1304 = vmatprep.subr.bf16.mxu0 0
        %1305 = vmatpush2.bf16.msra.mxu0 0
        %1306 = vmatprep.subr.bf16.mxu0 0
        %1307 = vmatpush2.bf16.msra.mxu0 0
        %1308 = vmatprep.subr.bf16.mxu0 0
        %1309 = vmatpush2.bf16.msra.mxu0 0
        %1310 = vmatprep.subr.bf16.mxu0 0
        %1311 = vmatpush2.bf16.msra.mxu0 0
        %1312 = vmatprep.subr.bf16.mxu0 0
        %1313 = vmatpush2.bf16.msra.mxu0 0
        %1314 = vmatprep.subr.bf16.mxu0 0
        %1315 = vmatpush2.bf16.msra.mxu0 0
        %1316 = vmatprep.mubr.bf16.mxu0 0
        %1317 = vmatmul.mubr.bf16.gmra.mxu0 %v1279
        %v1318 = vpop.f32.mrf.mxu0
        %v1319 = vadd.f32 0.0, %v1318
        %v1320 = vpop.f32.mrf.mxu0
        %v1321 = vpop.f32.mrf.mxu0
        %v1322 = vpop.f32.mrf.mxu0
        %1323 = vdwg.mxu0
        %1324 = vrot.lane.b32.xlu0 %v1098, 112
        %v1325 = vpop.permute.xlu0 %1324
        %1326 = vrot.lane.b32.xlu0 %v1098, 80
        %v1327 = vpop.permute.xlu0 %1326
        %v1329 = vsel %vm1102, %v1325, 0
        %v1332 = vsel %vm1102, %v1327, 0
        %1334 = vmatprep.subr.bf16.mxu0 0
        %1335 = vmatpush1.bf16.xpose.msra.mxu0 0
        %1336 = vmatprep.subr.bf16.mxu0 0
        %1337 = vmatpush1.bf16.xpose.msra.mxu0 0
        %1338 = vmatprep.subr.bf16.mxu0 0
        %1339 = vmatpush1.bf16.xpose.msra.mxu0 0
        %1340 = vmatprep.subr.bf16.mxu0 0
        %1341 = vmatpush1.bf16.xpose.msra.mxu0 0
        %1342 = vmatprep.subr.bf16.mxu0 0
        %1343 = vmatpush1.bf16.xpose.msra.mxu0 0
        %1344 = vmatprep.subr.bf16.mxu0 0
        %1345 = vmatpush1.bf16.xpose.msra.mxu0 0
        %1346 = vmatprep.subr.bf16.mxu0 0
        %1347 = vmatpush1.bf16.xpose.msra.mxu0 0
        %1348 = vmatprep.subr.bf16.mxu0 0
        %1349 = vmatpush1.bf16.xpose.msra.mxu0 %v1332
        %1350 = vmatprep.subr.bf16.mxu0 0
        %1351 = vmatpush2.bf16.xpose.msra.mxu0 0
        %1352 = vmatprep.subr.bf16.mxu0 0
        %1353 = vmatpush2.bf16.xpose.msra.mxu0 0
        %1354 = vmatprep.subr.bf16.mxu0 0
        %1355 = vmatpush2.bf16.xpose.msra.mxu0 0
        %1356 = vmatprep.subr.bf16.mxu0 0
        %1357 = vmatpush2.bf16.xpose.msra.mxu0 0
        %1358 = vmatprep.subr.bf16.mxu0 0
        %1359 = vmatpush2.bf16.xpose.msra.mxu0 0
        %1360 = vmatprep.subr.bf16.mxu0 0
        %1361 = vmatpush2.bf16.xpose.msra.mxu0 0
        %1362 = vmatprep.subr.bf16.mxu0 0
        %1363 = vmatpush2.bf16.xpose.msra.mxu0 0
        %1364 = vmatprep.subr.bf16.mxu0 0
        %1365 = vmatpush2.bf16.xpose.msra.mxu0 0
        %1366 = vmatprep.mubr.bf16.mxu0 0
        %1367 = vmatmul.mubr.bf16.gmra.mxu0 %v1329
        %v1368 = vpop.f32.mrf.mxu0
        %v1369 = vadd.f32 %v1097, %v1368
        %v1370 = vpop.f32.mrf.mxu0
        %v1371 = vpop.f32.mrf.mxu0
        %v1372 = vpop.f32.mrf.mxu0
        %1373 = vdwg.mxu0
        %v1374 = vsel %vm1102, %v1369, -inf
        %1375 = vmax.xlane.f32.xlu0 %v1374
        %v1376 = vpop.xlane.xlu0 %1375
        %v1377 = vsub.f32 %v1369, %v1376
        %v1378 = vmul.f32 %v1377, 1.442695
        %v1379 = vpow.pop %v1378
        %v1380 = vsel %vm1102, %v1379, 0.0
        %1381 = vadd.xlane.f32.xlu0 %v1380
        %v1382 = vpop.xlane.xlu0 %1381
        %v1383 = vrcp.pop %v1382
        %v1384 = vmul.f32 %v1379, %v1383
        %v1385 = vpack.c.bf16 %v1384, %v1384
        %s1386 = scalar_lea.vmem %s1011, 8 [#allocation27]
        %1387 = vst.msk [vmem:[%s1386] sm:$0xf] %vm1161, %v1385
        %1388 = vrot.lane.b32.xlu0 %v1098, 48
        %v1389 = vpop.permute.xlu0 %1388
        %v1391 = vsel %vm1102, %v1385, 0
        %v1394 = vsel %vm1168, %v1389, 0
        %1396 = vmatprep.subr.bf16.mxu0 0
        %1397 = vmatpush1.bf16.msra.mxu0 0
        %1398 = vmatprep.subr.bf16.mxu0 0
        %1399 = vmatpush1.bf16.msra.mxu0 0
        %1400 = vmatprep.subr.bf16.mxu0 0
        %1401 = vmatpush1.bf16.msra.mxu0 0
        %1402 = vmatprep.subr.bf16.mxu0 0
        %1403 = vmatpush1.bf16.msra.mxu0 0
        %1404 = vmatprep.subr.bf16.mxu0 0
        %1405 = vmatpush1.bf16.msra.mxu0 0
        %1406 = vmatprep.subr.bf16.mxu0 0
        %1407 = vmatpush1.bf16.msra.mxu0 0
        %1408 = vmatprep.subr.bf16.mxu0 0
        %1409 = vmatpush1.bf16.msra.mxu0 0
        %1410 = vmatprep.subr.bf16.mxu0 0
        %1411 = vmatpush1.bf16.msra.mxu0 %v1394
        %1412 = vmatprep.subr.bf16.mxu0 0
        %1413 = vmatpush2.bf16.msra.mxu0 0
        %1414 = vmatprep.subr.bf16.mxu0 0
        %1415 = vmatpush2.bf16.msra.mxu0 0
        %1416 = vmatprep.subr.bf16.mxu0 0
        %1417 = vmatpush2.bf16.msra.mxu0 0
        %1418 = vmatprep.subr.bf16.mxu0 0
        %1419 = vmatpush2.bf16.msra.mxu0 0
        %1420 = vmatprep.subr.bf16.mxu0 0
        %1421 = vmatpush2.bf16.msra.mxu0 0
        %1422 = vmatprep.subr.bf16.mxu0 0
        %1423 = vmatpush2.bf16.msra.mxu0 0
        %1424 = vmatprep.subr.bf16.mxu0 0
        %1425 = vmatpush2.bf16.msra.mxu0 0
        %1426 = vmatprep.subr.bf16.mxu0 0
        %1427 = vmatpush2.bf16.msra.mxu0 0
        %1428 = vmatprep.mubr.bf16.mxu0 0
        %1429 = vmatmul.mubr.bf16.gmra.mxu0 %v1391
        %v1430 = vpop.f32.mrf.mxu0
        %v1431 = vadd.f32 0.0, %v1430
        %v1432 = vpop.f32.mrf.mxu0
        %v1433 = vpop.f32.mrf.mxu0
        %v1434 = vpop.f32.mrf.mxu0
        %1435 = vdwg.mxu0
        %1436 = vrot.lane.b32.xlu0 %v1098, 104
        %v1437 = vpop.permute.xlu0 %1436
        %1438 = vrot.lane.b32.xlu0 %v1098, 72
        %v1439 = vpop.permute.xlu0 %1438
        %v1441 = vsel %vm1102, %v1437, 0
        %v1444 = vsel %vm1102, %v1439, 0
        %1446 = vmatprep.subr.bf16.mxu0 0
        %1447 = vmatpush1.bf16.xpose.msra.mxu0 0
        %1448 = vmatprep.subr.bf16.mxu0 0
        %1449 = vmatpush1.bf16.xpose.msra.mxu0 0
        %1450 = vmatprep.subr.bf16.mxu0 0
        %1451 = vmatpush1.bf16.xpose.msra.mxu0 0
        %1452 = vmatprep.subr.bf16.mxu0 0
        %1453 = vmatpush1.bf16.xpose.msra.mxu0 0
        %1454 = vmatprep.subr.bf16.mxu0 0
        %1455 = vmatpush1.bf16.xpose.msra.mxu0 0
        %1456 = vmatprep.subr.bf16.mxu0 0
        %1457 = vmatpush1.bf16.xpose.msra.mxu0 0
        %1458 = vmatprep.subr.bf16.mxu0 0
        %1459 = vmatpush1.bf16.xpose.msra.mxu0 0
        %1460 = vmatprep.subr.bf16.mxu0 0
        %1461 = vmatpush1.bf16.xpose.msra.mxu0 %v1444
        %1462 = vmatprep.subr.bf16.mxu0 0
        %1463 = vmatpush2.bf16.xpose.msra.mxu0 0
        %1464 = vmatprep.subr.bf16.mxu0 0
        %1465 = vmatpush2.bf16.xpose.msra.mxu0 0
        %1466 = vmatprep.subr.bf16.mxu0 0
        %1467 = vmatpush2.bf16.xpose.msra.mxu0 0
        %1468 = vmatprep.subr.bf16.mxu0 0
        %1469 = vmatpush2.bf16.xpose.msra.mxu0 0
        %1470 = vmatprep.subr.bf16.mxu0 0
        %1471 = vmatpush2.bf16.xpose.msra.mxu0 0
        %1472 = vmatprep.subr.bf16.mxu0 0
        %1473 = vmatpush2.bf16.xpose.msra.mxu0 0
        %1474 = vmatprep.subr.bf16.mxu0 0
        %1475 = vmatpush2.bf16.xpose.msra.mxu0 0
        %1476 = vmatprep.subr.bf16.mxu0 0
        %1477 = vmatpush2.bf16.xpose.msra.mxu0 0
        %1478 = vmatprep.mubr.bf16.mxu0 0
        %1479 = vmatmul.mubr.bf16.gmra.mxu0 %v1441
        %v1480 = vpop.f32.mrf.mxu0
        %v1481 = vadd.f32 %v1097, %v1480
        %v1482 = vpop.f32.mrf.mxu0
        %v1483 = vpop.f32.mrf.mxu0
        %v1484 = vpop.f32.mrf.mxu0
        %1485 = vdwg.mxu0
        %v1486 = vsel %vm1102, %v1481, -inf
        %1487 = vmax.xlane.f32.xlu0 %v1486
        %v1488 = vpop.xlane.xlu0 %1487
        %v1489 = vsub.f32 %v1481, %v1488
        %v1490 = vmul.f32 %v1489, 1.442695
        %v1491 = vpow.pop %v1490
        %v1492 = vsel %vm1102, %v1491, 0.0
        %1493 = vadd.xlane.f32.xlu0 %v1492
        %v1494 = vpop.xlane.xlu0 %1493
        %v1495 = vrcp.pop %v1494
        %v1496 = vmul.f32 %v1491, %v1495
        %v1497 = vpack.c.bf16 %v1496, %v1496
        %s1498 = scalar_lea.vmem %s1011, 12 [#allocation27]
        %1499 = vst.msk [vmem:[%s1498] sm:$0xf] %vm1161, %v1497
        %1500 = vrot.lane.b32.xlu0 %v1098, 40
        %v1501 = vpop.permute.xlu0 %1500
        %v1503 = vsel %vm1102, %v1497, 0
        %v1506 = vsel %vm1168, %v1501, 0
        %1508 = vmatprep.subr.bf16.mxu0 0
        %1509 = vmatpush1.bf16.msra.mxu0 0
        %1510 = vmatprep.subr.bf16.mxu0 0
        %1511 = vmatpush1.bf16.msra.mxu0 0
        %1512 = vmatprep.subr.bf16.mxu0 0
        %1513 = vmatpush1.bf16.msra.mxu0 0
        %1514 = vmatprep.subr.bf16.mxu0 0
        %1515 = vmatpush1.bf16.msra.mxu0 0
        %1516 = vmatprep.subr.bf16.mxu0 0
        %1517 = vmatpush1.bf16.msra.mxu0 0
        %1518 = vmatprep.subr.bf16.mxu0 0
        %1519 = vmatpush1.bf16.msra.mxu0 0
        %1520 = vmatprep.subr.bf16.mxu0 0
        %1521 = vmatpush1.bf16.msra.mxu0 0
        %1522 = vmatprep.subr.bf16.mxu0 0
        %1523 = vmatpush1.bf16.msra.mxu0 %v1506
        %1524 = vmatprep.subr.bf16.mxu0 0
        %1525 = vmatpush2.bf16.msra.mxu0 0
        %1526 = vmatprep.subr.bf16.mxu0 0
        %1527 = vmatpush2.bf16.msra.mxu0 0
        %1528 = vmatprep.subr.bf16.mxu0 0
        %1529 = vmatpush2.bf16.msra.mxu0 0
        %1530 = vmatprep.subr.bf16.mxu0 0
        %1531 = vmatpush2.bf16.msra.mxu0 0
        %1532 = vmatprep.subr.bf16.mxu0 0
        %1533 = vmatpush2.bf16.msra.mxu0 0
        %1534 = vmatprep.subr.bf16.mxu0 0
        %1535 = vmatpush2.bf16.msra.mxu0 0
        %1536 = vmatprep.subr.bf16.mxu0 0
        %1537 = vmatpush2.bf16.msra.mxu0 0
        %1538 = vmatprep.subr.bf16.mxu0 0
        %1539 = vmatpush2.bf16.msra.mxu0 0
        %1540 = vmatprep.mubr.bf16.mxu0 0
        %1541 = vmatmul.mubr.bf16.gmra.mxu0 %v1503
        %v1542 = vpop.f32.mrf.mxu0
        %v1543 = vadd.f32 0.0, %v1542
        %v1544 = vpop.f32.mrf.mxu0
        %v1545 = vpop.f32.mrf.mxu0
        %v1546 = vpop.f32.mrf.mxu0
        %1547 = vdwg.mxu0
        %1549 = vrot.lane.b32.xlu0 %v1319, 8
        %v1550 = vpop.permute.xlu0 %1549
        %1553 = vrot.lane.b32.xlu0 %v1431, 16
        %v1554 = vpop.permute.xlu0 %1553
        %1557 = vrot.lane.b32.xlu0 %v1543, 24
        %v1558 = vpop.permute.xlu0 %1557
        %v1560 = vsel %vm1102, %v1207, %v1550
        %vm1561 = vcmask 130048
        %v1562 = vsel %vm1561, %v1560, %v1554
        %vm1563 = vcmask 195584
        %v1564 = vsel %vm1563, %v1562, %v1558
        %v1565 = vpack.c.bf16 %v1564, %v1564
        %v1566 = vld [vmem:[%s6] sm:$0xf]
        %v1567 = vld [vmem:[%s6 + $0x4] sm:$0xf]
        %v1568 = vld [vmem:[%s6 + $0x8] sm:$0xf]
        %v1569 = vld [vmem:[%s6 + $0xc] sm:$0xf]
        %v1570 = vld [vmem:[#allocation10] sm:$0x1]
        %v1572 = vlaneseq
        %v1573 = vshrl.u32 %v1572, 7
        %v1574 = vsub.s32 0, %v1573
        %v1575 = vrot.slane %v1570, %v1574
        %v1581 = vunpack.c.l.b16 %v1566
        %v1582 = vunpack.c.l.b16 %v1567
        %v1583 = vunpack.c.l.b16 %v1568
        %v1584 = vunpack.c.l.b16 %v1569
        %v1585 = vpack.c.b16 %v1582, %v1581
        %v1586 = vpack.c.b16 %v1584, %v1583
        %v1590 = vsel %vm1052, %v1565, 0
        %1592 = vmatprep.subr.bf16.mxu0 0
        %1593 = vmatpush1.bf16.msra.mxu0 0
        %1594 = vmatprep.subr.bf16.mxu0 0
        %1595 = vmatpush1.bf16.msra.mxu0 0
        %1596 = vmatprep.subr.bf16.mxu0 0
        %1597 = vmatpush1.bf16.msra.mxu0 0
        %1598 = vmatprep.subr.bf16.mxu0 0
        %1599 = vmatpush1.bf16.msra.mxu0 0
        %1600 = vmatprep.subr.bf16.mxu0 0
        %1601 = vmatpush1.bf16.msra.mxu0 0
        %1602 = vmatprep.subr.bf16.mxu0 0
        %1603 = vmatpush1.bf16.msra.mxu0 0
        %1604 = vmatprep.subr.bf16.mxu0 0
        %1605 = vmatpush1.bf16.msra.mxu0 %v1586
        %1606 = vmatprep.subr.bf16.mxu0 0
        %1607 = vmatpush1.bf16.msra.mxu0 %v1585
        %1608 = vmatprep.subr.bf16.mxu0 0
        %1609 = vmatpush2.bf16.msra.mxu0 0
        %1610 = vmatprep.subr.bf16.mxu0 0
        %1611 = vmatpush2.bf16.msra.mxu0 0
        %1612 = vmatprep.subr.bf16.mxu0 0
        %1613 = vmatpush2.bf16.msra.mxu0 0
        %1614 = vmatprep.subr.bf16.mxu0 0
        %1615 = vmatpush2.bf16.msra.mxu0 0
        %1616 = vmatprep.subr.bf16.mxu0 0
        %1617 = vmatpush2.bf16.msra.mxu0 0
        %1618 = vmatprep.subr.bf16.mxu0 0
        %1619 = vmatpush2.bf16.msra.mxu0 0
        %1620 = vmatprep.subr.bf16.mxu0 0
        %1621 = vmatpush2.bf16.msra.mxu0 0
        %1622 = vmatprep.subr.bf16.mxu0 0
        %1623 = vmatpush2.bf16.msra.mxu0 0
        %1624 = vmatprep.mubr.bf16.mxu0 0
        %1625 = vmatmul.mubr.bf16.gmra.mxu0 %v1590
        %v1626 = vpop.f32.mrf.mxu0
        %v1627 = vadd.f32 %v1575, %v1626
        %v1628 = vpop.f32.mrf.mxu0
        %v1629 = vpop.f32.mrf.mxu0
        %v1630 = vpop.f32.mrf.mxu0
        %1631 = vdwg.mxu0
        %v1632 = vadd.f32 %v1028, %v1627
        %v1633 = vld [vmem:[#allocation19] sm:$0x1]
        %v1634 = vld [vmem:[#allocation20] sm:$0x1]
        %v1635 = vsel %vm1052, %v1632, 0.0
        %1636 = vadd.xlane.f32.xlu0 %v1635
        %v1637 = vpop.xlane.xlu0 %1636
        %v1638 = vrcp.pop 32.0
        %v1639 = vmul.f32 %v1637, %v1638
        %v1640 = vsub.f32 %v1632, %v1639
        %v1641 = vmul.f32 %v1640, %v1640
        %v1642 = vsel %vm1052, %v1641, 0.0
        %1643 = vadd.xlane.f32.xlu0 %v1642
        %v1644 = vpop.xlane.xlu0 %1643
        %v1645 = vmul.f32 %v1644, %v1638
        %v1646 = vadd.f32 %v1645, 1e-05
        %v1647 = vrsqrt.pop %v1646
        %v1648 = vmul.f32 %v1640, %v1647
        %v1650 = vlaneseq
        %v1651 = vshrl.u32 %v1650, 7
        %v1652 = vsub.s32 0, %v1651
        %v1653 = vrot.slane %v1633, %v1652
        %v1655 = vmul.f32 %v1648, %v1653
        %v1657 = vlaneseq
        %v1658 = vshrl.u32 %v1657, 7
        %v1659 = vsub.s32 0, %v1658
        %v1660 = vrot.slane %v1634, %v1659
        %v1662 = vadd.f32 %v1655, %v1660
        %v1663 = vpack.c.bf16 %v1662, %v1662
        %v1664 = vld [vmem:[#allocation11] sm:$0xf]
        %v1665 = vld [vmem:[#allocation11 + $0x4] sm:$0xf]
        %v1666 = vld [vmem:[#allocation11 + $0x8] sm:$0xf]
        %v1667 = vld [vmem:[#allocation11 + $0xc] sm:$0xf]
        %v1668 = vld [vmem:[#allocation13] sm:$0x1]
        %v1670 = vlaneseq
        %v1671 = vshrl.u32 %v1670, 7
        %v1672 = vsub.s32 0, %v1671
        %v1673 = vrot.slane %v1668, %v1672
        %v1679 = vunpack.c.l.b16 %v1664
        %v1680 = vunpack.c.l.b16 %v1665
        %v1681 = vunpack.c.l.b16 %v1666
        %v1682 = vunpack.c.l.b16 %v1667
        %v1683 = vpack.c.b16 %v1680, %v1679
        %v1684 = vpack.c.b16 %v1682, %v1681
        %v1688 = vsel %vm1052, %v1663, 0
        %1690 = vmatprep.subr.bf16.mxu0 0
        %1691 = vmatpush1.bf16.msra.mxu0 0
        %1692 = vmatprep.subr.bf16.mxu0 0
        %1693 = vmatpush1.bf16.msra.mxu0 0
        %1694 = vmatprep.subr.bf16.mxu0 0
        %1695 = vmatpush1.bf16.msra.mxu0 0
        %1696 = vmatprep.subr.bf16.mxu0 0
        %1697 = vmatpush1.bf16.msra.mxu0 0
        %1698 = vmatprep.subr.bf16.mxu0 0
        %1699 = vmatpush1.bf16.msra.mxu0 0
        %1700 = vmatprep.subr.bf16.mxu0 0
        %1701 = vmatpush1.bf16.msra.mxu0 0
        %1702 = vmatprep.subr.bf16.mxu0 0
        %1703 = vmatpush1.bf16.msra.mxu0 %v1684
        %1704 = vmatprep.subr.bf16.mxu0 0
        %1705 = vmatpush1.bf16.msra.mxu0 %v1683
        %1706 = vmatprep.subr.bf16.mxu0 0
        %1707 = vmatpush2.bf16.msra.mxu0 0
        %1708 = vmatprep.subr.bf16.mxu0 0
        %1709 = vmatpush2.bf16.msra.mxu0 0
        %1710 = vmatprep.subr.bf16.mxu0 0
        %1711 = vmatpush2.bf16.msra.mxu0 0
        %1712 = vmatprep.subr.bf16.mxu0 0
        %1713 = vmatpush2.bf16.msra.mxu0 0
        %1714 = vmatprep.subr.bf16.mxu0 0
        %1715 = vmatpush2.bf16.msra.mxu0 0
        %1716 = vmatprep.subr.bf16.mxu0 0
        %1717 = vmatpush2.bf16.msra.mxu0 0
        %1718 = vmatprep.subr.bf16.mxu0 0
        %1719 = vmatpush2.bf16.msra.mxu0 0
        %1720 = vmatprep.subr.bf16.mxu0 0
        %1721 = vmatpush2.bf16.msra.mxu0 0
        %1722 = vmatprep.mubr.bf16.mxu0 0
        %1723 = vmatmul.mubr.bf16.gmra.mxu0 %v1688
        %v1724 = vpop.f32.mrf.mxu0
        %v1725 = vadd.f32 %v1673, %v1724
        %v1726 = vpop.f32.mrf.mxu0
        %v1727 = vpop.f32.mrf.mxu0
        %v1728 = vpop.f32.mrf.mxu0
        %1729 = vdwg.mxu0
        %v1730 = vld [vmem:[%s10] sm:$0xf]
        %v1731 = vld [vmem:[%s10 + $0x4] sm:$0xf]
        %v1732 = vld [vmem:[%s10 + $0x8] sm:$0xf]
        %v1733 = vld [vmem:[%s10 + $0xc] sm:$0xf]
        %v1734 = vld [vmem:[#allocation14] sm:$0x1]
        %v1736 = vlaneseq
        %v1737 = vshrl.u32 %v1736, 7
        %v1738 = vsub.s32 0, %v1737
        %v1739 = vrot.slane %v1734, %v1738
        %v1743 = vunpack.c.l.b16 %v1026
        %v1744 = vunpack.c.l.b16 %v1027
        %v1745 = vpack.c.b16 %v1744, %v1743
        %v1750 = vunpack.c.l.b16 %v1730
        %v1751 = vunpack.c.l.b16 %v1731
        %v1752 = vunpack.c.l.b16 %v1732
        %v1753 = vunpack.c.l.b16 %v1733
        %v1754 = vpack.c.b16 %v1751, %v1750
        %v1755 = vpack.c.b16 %v1753, %v1752
        %v1759 = vsel %vm1052, %v1745, 0
        %1761 = vmatprep.subr.bf16.mxu0 0
        %1762 = vmatpush1.bf16.msra.mxu0 0
        %1763 = vmatprep.subr.bf16.mxu0 0
        %1764 = vmatpush1.bf16.msra.mxu0 0
        %1765 = vmatprep.subr.bf16.mxu0 0
        %1766 = vmatpush1.bf16.msra.mxu0 0
        %1767 = vmatprep.subr.bf16.mxu0 0
        %1768 = vmatpush1.bf16.msra.mxu0 0
        %1769 = vmatprep.subr.bf16.mxu0 0
        %1770 = vmatpush1.bf16.msra.mxu0 0
        %1771 = vmatprep.subr.bf16.mxu0 0
        %1772 = vmatpush1.bf16.msra.mxu0 0
        %1773 = vmatprep.subr.bf16.mxu0 0
        %1774 = vmatpush1.bf16.msra.mxu0 %v1755
        %1775 = vmatprep.subr.bf16.mxu0 0
        %1776 = vmatpush1.bf16.msra.mxu0 %v1754
        %1777 = vmatprep.subr.bf16.mxu0 0
        %1778 = vmatpush2.bf16.msra.mxu0 0
        %1779 = vmatprep.subr.bf16.mxu0 0
        %1780 = vmatpush2.bf16.msra.mxu0 0
        %1781 = vmatprep.subr.bf16.mxu0 0
        %1782 = vmatpush2.bf16.msra.mxu0 0
        %1783 = vmatprep.subr.bf16.mxu0 0
        %1784 = vmatpush2.bf16.msra.mxu0 0
        %1785 = vmatprep.subr.bf16.mxu0 0
        %1786 = vmatpush2.bf16.msra.mxu0 0
        %1787 = vmatprep.subr.bf16.mxu0 0
        %1788 = vmatpush2.bf16.msra.mxu0 0
        %1789 = vmatprep.subr.bf16.mxu0 0
        %1790 = vmatpush2.bf16.msra.mxu0 0
        %1791 = vmatprep.subr.bf16.mxu0 0
        %1792 = vmatpush2.bf16.msra.mxu0 0
        %1793 = vmatprep.mubr.bf16.mxu0 0
        %1794 = vmatmul.mubr.bf16.gmra.mxu0 %v1759
        %v1795 = vpop.f32.mrf.mxu0
        %v1796 = vadd.f32 %v1739, %v1795
        %v1797 = vpop.f32.mrf.mxu0
        %v1798 = vpop.f32.mrf.mxu0
        %v1799 = vadd.f32 %v1739, %v1798
        %v1800 = vpop.f32.mrf.mxu0
        %1801 = vdwg.mxu0
        %v1802 = vld [vmem:[#allocation7] sm:$0xf]
        %v1803 = vunpack.c.l.bf16 %v1802
        %v1804 = vpack.c.bf16 %v1725, %v1725
        %v1805 = vpack.c.bf16 %v1799, %v1796
        %v1807 = vsel %vm1102, %v1804, 0
        %v1810 = vsel %vm1102, %v1805, 0
        %1812 = vmatprep.subr.bf16.mxu0 0
        %1813 = vmatpush1.bf16.xpose.msra.mxu0 0
        %1814 = vmatprep.subr.bf16.mxu0 0
        %1815 = vmatpush1.bf16.xpose.msra.mxu0 0
        %1816 = vmatprep.subr.bf16.mxu0 0
        %1817 = vmatpush1.bf16.xpose.msra.mxu0 0
        %1818 = vmatprep.subr.bf16.mxu0 0
        %1819 = vmatpush1.bf16.xpose.msra.mxu0 0
        %1820 = vmatprep.subr.bf16.mxu0 0
        %1821 = vmatpush1.bf16.xpose.msra.mxu0 0
        %1822 = vmatprep.subr.bf16.mxu0 0
        %1823 = vmatpush1.bf16.xpose.msra.mxu0 0
        %1824 = vmatprep.subr.bf16.mxu0 0
        %1825 = vmatpush1.bf16.xpose.msra.mxu0 0
        %1826 = vmatprep.subr.bf16.mxu0 0
        %1827 = vmatpush1.bf16.xpose.msra.mxu0 %v1810
        %1828 = vmatprep.subr.bf16.mxu0 0
        %1829 = vmatpush2.bf16.xpose.msra.mxu0 0
        %1830 = vmatprep.subr.bf16.mxu0 0
        %1831 = vmatpush2.bf16.xpose.msra.mxu0 0
        %1832 = vmatprep.subr.bf16.mxu0 0
        %1833 = vmatpush2.bf16.xpose.msra.mxu0 0
        %1834 = vmatprep.subr.bf16.mxu0 0
        %1835 = vmatpush2.bf16.xpose.msra.mxu0 0
        %1836 = vmatprep.subr.bf16.mxu0 0
        %1837 = vmatpush2.bf16.xpose.msra.mxu0 0
        %1838 = vmatprep.subr.bf16.mxu0 0
        %1839 = vmatpush2.bf16.xpose.msra.mxu0 0
        %1840 = vmatprep.subr.bf16.mxu0 0
        %1841 = vmatpush2.bf16.xpose.msra.mxu0 0
        %1842 = vmatprep.subr.bf16.mxu0 0
        %1843 = vmatpush2.bf16.xpose.msra.mxu0 0
        %1844 = vmatprep.mubr.bf16.mxu0 0
        %1845 = vmatmul.mubr.bf16.gmra.mxu0 %v1807
        %v1846 = vpop.f32.mrf.mxu0
        %v1847 = vadd.f32 %v1803, %v1846
        %v1848 = vpop.f32.mrf.mxu0
        %v1849 = vpop.f32.mrf.mxu0
        %v1850 = vpop.f32.mrf.mxu0
        %1851 = vdwg.mxu0
        %v1852 = vsel %vm1561, %v1847, -inf
        %1853 = vmax.xlane.f32.xlu0 %v1852
        %v1854 = vpop.xlane.xlu0 %1853
        %v1855 = vsub.f32 %v1847, %v1854
        %v1856 = vmul.f32 %v1855, 1.442695
        %v1857 = vpow.pop %v1856
        %v1858 = vsel %vm1561, %v1857, 0.0
        %1859 = vadd.xlane.f32.xlu0 %v1858
        %v1860 = vpop.xlane.xlu0 %1859
        %v1861 = vrcp.pop %v1860
        %v1862 = vmul.f32 %v1857, %v1861
        %v1863 = vpack.c.bf16 %v1862, %v1862
        %vm1864 = vcmask 125952
        %1865 = vst.msk [vmem:[%s1018] sm:$0xf] %vm1864, %v1863
        %1867 = vrot.lane.b32.xlu0 %v1805, 96
        %v1868 = vpop.permute.xlu0 %1867
        %v1871 = vsel %vm1561, %v1863, 0
        %1873 = vmatprep.subr.bf16.mxu0 0
        %1874 = vmatpush1.bf16.msra.mxu0 0
        %1875 = vmatprep.subr.bf16.mxu0 0
        %1876 = vmatpush1.bf16.msra.mxu0 0
        %1877 = vmatprep.subr.bf16.mxu0 0
        %1878 = vmatpush1.bf16.msra.mxu0 0
        %1879 = vmatprep.subr.bf16.mxu0 0
        %1880 = vmatpush1.bf16.msra.mxu0 0
        %1881 = vmatprep.subr.bf16.mxu0 0
        %1882 = vmatpush1.bf16.msra.mxu0 0
        %1883 = vmatprep.subr.bf16.mxu0 0
        %1884 = vmatpush1.bf16.msra.mxu0 0
        %1885 = vmatprep.subr.bf16.mxu0 0
        %1886 = vmatpush1.bf16.msra.mxu0 0
        %1887 = vmatprep.subr.bf16.mxu0 0
        %1888 = vmatpush1.bf16.msra.mxu0 %v1868
        %1889 = vmatprep.subr.bf16.mxu0 0
        %1890 = vmatpush2.bf16.msra.mxu0 0
        %1891 = vmatprep.subr.bf16.mxu0 0
        %1892 = vmatpush2.bf16.msra.mxu0 0
        %1893 = vmatprep.subr.bf16.mxu0 0
        %1894 = vmatpush2.bf16.msra.mxu0 0
        %1895 = vmatprep.subr.bf16.mxu0 0
        %1896 = vmatpush2.bf16.msra.mxu0 0
        %1897 = vmatprep.subr.bf16.mxu0 0
        %1898 = vmatpush2.bf16.msra.mxu0 0
        %1899 = vmatprep.subr.bf16.mxu0 0
        %1900 = vmatpush2.bf16.msra.mxu0 0
        %1901 = vmatprep.subr.bf16.mxu0 0
        %1902 = vmatpush2.bf16.msra.mxu0 0
        %1903 = vmatprep.subr.bf16.mxu0 0
        %1904 = vmatpush2.bf16.msra.mxu0 0
        %1905 = vmatprep.mubr.bf16.mxu0 0
        %1906 = vmatmul.mubr.bf16.gmra.mxu0 %v1871
        %v1907 = vpop.f32.mrf.mxu0
        %v1908 = vadd.f32 0.0, %v1907
        %v1909 = vpop.f32.mrf.mxu0
        %v1910 = vpop.f32.mrf.mxu0
        %v1911 = vpop.f32.mrf.mxu0
        %1912 = vdwg.mxu0
        %1914 = vrot.lane.b32.xlu0 %v1804, 120
        %v1915 = vpop.permute.xlu0 %1914
        %1916 = vrot.lane.b32.xlu0 %v1805, 120
        %v1917 = vpop.permute.xlu0 %1916
        %v1919 = vsel %vm1102, %v1915, 0
        %v1922 = vsel %vm1102, %v1917, 0
        %1924 = vmatprep.subr.bf16.mxu0 0
        %1925 = vmatpush1.bf16.xpose.msra.mxu0 0
        %1926 = vmatprep.subr.bf16.mxu0 0
        %1927 = vmatpush1.bf16.xpose.msra.mxu0 0
        %1928 = vmatprep.subr.bf16.mxu0 0
        %1929 = vmatpush1.bf16.xpose.msra.mxu0 0
        %1930 = vmatprep.subr.bf16.mxu0 0
        %1931 = vmatpush1.bf16.xpose.msra.mxu0 0
        %1932 = vmatprep.subr.bf16.mxu0 0
        %1933 = vmatpush1.bf16.xpose.msra.mxu0 0
        %1934 = vmatprep.subr.bf16.mxu0 0
        %1935 = vmatpush1.bf16.xpose.msra.mxu0 0
        %1936 = vmatprep.subr.bf16.mxu0 0
        %1937 = vmatpush1.bf16.xpose.msra.mxu0 0
        %1938 = vmatprep.subr.bf16.mxu0 0
        %1939 = vmatpush1.bf16.xpose.msra.mxu0 %v1922
        %1940 = vmatprep.subr.bf16.mxu0 0
        %1941 = vmatpush2.bf16.xpose.msra.mxu0 0
        %1942 = vmatprep.subr.bf16.mxu0 0
        %1943 = vmatpush2.bf16.xpose.msra.mxu0 0
        %1944 = vmatprep.subr.bf16.mxu0 0
        %1945 = vmatpush2.bf16.xpose.msra.mxu0 0
        %1946 = vmatprep.subr.bf16.mxu0 0
        %1947 = vmatpush2.bf16.xpose.msra.mxu0 0
        %1948 = vmatprep.subr.bf16.mxu0 0
        %1949 = vmatpush2.bf16.xpose.msra.mxu0 0
        %1950 = vmatprep.subr.bf16.mxu0 0
        %1951 = vmatpush2.bf16.xpose.msra.mxu0 0
        %1952 = vmatprep.subr.bf16.mxu0 0
        %1953 = vmatpush2.bf16.xpose.msra.mxu0 0
        %1954 = vmatprep.subr.bf16.mxu0 0
        %1955 = vmatpush2.bf16.xpose.msra.mxu0 0
        %1956 = vmatprep.mubr.bf16.mxu0 0
        %1957 = vmatmul.mubr.bf16.gmra.mxu0 %v1919
        %v1958 = vpop.f32.mrf.mxu0
        %v1959 = vadd.f32 %v1803, %v1958
        %v1960 = vpop.f32.mrf.mxu0
        %v1961 = vpop.f32.mrf.mxu0
        %v1962 = vpop.f32.mrf.mxu0
        %1963 = vdwg.mxu0
        %v1964 = vsel %vm1561, %v1959, -inf
        %1965 = vmax.xlane.f32.xlu0 %v1964
        %v1966 = vpop.xlane.xlu0 %1965
        %v1967 = vsub.f32 %v1959, %v1966
        %v1968 = vmul.f32 %v1967, 1.442695
        %v1969 = vpow.pop %v1968
        %v1970 = vsel %vm1561, %v1969, 0.0
        %1971 = vadd.xlane.f32.xlu0 %v1970
        %v1972 = vpop.xlane.xlu0 %1971
        %v1973 = vrcp.pop %v1972
        %v1974 = vmul.f32 %v1969, %v1973
        %v1975 = vpack.c.bf16 %v1974, %v1974
        %s1976 = scalar_lea.vmem %s1018, 4 [#allocation29]
        %1977 = vst.msk [vmem:[%s1976] sm:$0xf] %vm1864, %v1975
        %1978 = vrot.lane.b32.xlu0 %v1805, 88
        %v1979 = vpop.permute.xlu0 %1978
        %v1982 = vsel %vm1561, %v1975, 0
        %1984 = vmatprep.subr.bf16.mxu0 0
        %1985 = vmatpush1.bf16.msra.mxu0 0
        %1986 = vmatprep.subr.bf16.mxu0 0
        %1987 = vmatpush1.bf16.msra.mxu0 0
        %1988 = vmatprep.subr.bf16.mxu0 0
        %1989 = vmatpush1.bf16.msra.mxu0 0
        %1990 = vmatprep.subr.bf16.mxu0 0
        %1991 = vmatpush1.bf16.msra.mxu0 0
        %1992 = vmatprep.subr.bf16.mxu0 0
        %1993 = vmatpush1.bf16.msra.mxu0 0
        %1994 = vmatprep.subr.bf16.mxu0 0
        %1995 = vmatpush1.bf16.msra.mxu0 0
        %1996 = vmatprep.subr.bf16.mxu0 0
        %1997 = vmatpush1.bf16.msra.mxu0 0
        %1998 = vmatprep.subr.bf16.mxu0 0
        %1999 = vmatpush1.bf16.msra.mxu0 %v1979
        %2000 = vmatprep.subr.bf16.mxu0 0
        %2001 = vmatpush2.bf16.msra.mxu0 0
        %2002 = vmatprep.subr.bf16.mxu0 0
        %2003 = vmatpush2.bf16.msra.mxu0 0
        %2004 = vmatprep.subr.bf16.mxu0 0
        %2005 = vmatpush2.bf16.msra.mxu0 0
        %2006 = vmatprep.subr.bf16.mxu0 0
        %2007 = vmatpush2.bf16.msra.mxu0 0
        %2008 = vmatprep.subr.bf16.mxu0 0
        %2009 = vmatpush2.bf16.msra.mxu0 0
        %2010 = vmatprep.subr.bf16.mxu0 0
        %2011 = vmatpush2.bf16.msra.mxu0 0
        %2012 = vmatprep.subr.bf16.mxu0 0
        %2013 = vmatpush2.bf16.msra.mxu0 0
        %2014 = vmatprep.subr.bf16.mxu0 0
        %2015 = vmatpush2.bf16.msra.mxu0 0
        %2016 = vmatprep.mubr.bf16.mxu0 0
        %2017 = vmatmul.mubr.bf16.gmra.mxu0 %v1982
        %v2018 = vpop.f32.mrf.mxu0
        %v2019 = vadd.f32 0.0, %v2018
        %v2020 = vpop.f32.mrf.mxu0
        %v2021 = vpop.f32.mrf.mxu0
        %v2022 = vpop.f32.mrf.mxu0
        %2023 = vdwg.mxu0
        %2024 = vrot.lane.b32.xlu0 %v1804, 112
        %v2025 = vpop.permute.xlu0 %2024
        %2026 = vrot.lane.b32.xlu0 %v1805, 112
        %v2027 = vpop.permute.xlu0 %2026
        %v2029 = vsel %vm1102, %v2025, 0
        %v2032 = vsel %vm1102, %v2027, 0
        %2034 = vmatprep.subr.bf16.mxu0 0
        %2035 = vmatpush1.bf16.xpose.msra.mxu0 0
        %2036 = vmatprep.subr.bf16.mxu0 0
        %2037 = vmatpush1.bf16.xpose.msra.mxu0 0
        %2038 = vmatprep.subr.bf16.mxu0 0
        %2039 = vmatpush1.bf16.xpose.msra.mxu0 0
        %2040 = vmatprep.subr.bf16.mxu0 0
        %2041 = vmatpush1.bf16.xpose.msra.mxu0 0
        %2042 = vmatprep.subr.bf16.mxu0 0
        %2043 = vmatpush1.bf16.xpose.msra.mxu0 0
        %2044 = vmatprep.subr.bf16.mxu0 0
        %2045 = vmatpush1.bf16.xpose.msra.mxu0 0
        %2046 = vmatprep.subr.bf16.mxu0 0
        %2047 = vmatpush1.bf16.xpose.msra.mxu0 0
        %2048 = vmatprep.subr.bf16.mxu0 0
        %2049 = vmatpush1.bf16.xpose.msra.mxu0 %v2032
        %2050 = vmatprep.subr.bf16.mxu0 0
        %2051 = vmatpush2.bf16.xpose.msra.mxu0 0
        %2052 = vmatprep.subr.bf16.mxu0 0
        %2053 = vmatpush2.bf16.xpose.msra.mxu0 0
        %2054 = vmatprep.subr.bf16.mxu0 0
        %2055 = vmatpush2.bf16.xpose.msra.mxu0 0
        %2056 = vmatprep.subr.bf16.mxu0 0
        %2057 = vmatpush2.bf16.xpose.msra.mxu0 0
        %2058 = vmatprep.subr.bf16.mxu0 0
        %2059 = vmatpush2.bf16.xpose.msra.mxu0 0
        %2060 = vmatprep.subr.bf16.mxu0 0
        %2061 = vmatpush2.bf16.xpose.msra.mxu0 0
        %2062 = vmatprep.subr.bf16.mxu0 0
        %2063 = vmatpush2.bf16.xpose.msra.mxu0 0
        %2064 = vmatprep.subr.bf16.mxu0 0
        %2065 = vmatpush2.bf16.xpose.msra.mxu0 0
        %2066 = vmatprep.mubr.bf16.mxu0 0
        %2067 = vmatmul.mubr.bf16.gmra.mxu0 %v2029
        %v2068 = vpop.f32.mrf.mxu0
        %v2069 = vadd.f32 %v1803, %v2068
        %v2070 = vpop.f32.mrf.mxu0
        %v2071 = vpop.f32.mrf.mxu0
        %v2072 = vpop.f32.mrf.mxu0
        %2073 = vdwg.mxu0
        %v2074 = vsel %vm1561, %v2069, -inf
        %2075 = vmax.xlane.f32.xlu0 %v2074
        %v2076 = vpop.xlane.xlu0 %2075
        %v2077 = vsub.f32 %v2069, %v2076
        %v2078 = vmul.f32 %v2077, 1.442695
        %v2079 = vpow.pop %v2078
        %v2080 = vsel %vm1561, %v2079, 0.0
        %2081 = vadd.xlane.f32.xlu0 %v2080
        %v2082 = vpop.xlane.xlu0 %2081
        %v2083 = vrcp.pop %v2082
        %v2084 = vmul.f32 %v2079, %v2083
        %v2085 = vpack.c.bf16 %v2084, %v2084
        %s2086 = scalar_lea.vmem %s1018, 8 [#allocation29]
        %2087 = vst.msk [vmem:[%s2086] sm:$0xf] %vm1864, %v2085
        %2088 = vrot.lane.b32.xlu0 %v1805, 80
        %v2089 = vpop.permute.xlu0 %2088
        %v2092 = vsel %vm1561, %v2085, 0
        %2094 = vmatprep.subr.bf16.mxu0 0
        %2095 = vmatpush1.bf16.msra.mxu0 0
        %2096 = vmatprep.subr.bf16.mxu0 0
        %2097 = vmatpush1.bf16.msra.mxu0 0
        %2098 = vmatprep.subr.bf16.mxu0 0
        %2099 = vmatpush1.bf16.msra.mxu0 0
        %2100 = vmatprep.subr.bf16.mxu0 0
        %2101 = vmatpush1.bf16.msra.mxu0 0
        %2102 = vmatprep.subr.bf16.mxu0 0
        %2103 = vmatpush1.bf16.msra.mxu0 0
        %2104 = vmatprep.subr.bf16.mxu0 0
        %2105 = vmatpush1.bf16.msra.mxu0 0
        %2106 = vmatprep.subr.bf16.mxu0 0
        %2107 = vmatpush1.bf16.msra.mxu0 0
        %2108 = vmatprep.subr.bf16.mxu0 0
        %2109 = vmatpush1.bf16.msra.mxu0 %v2089
        %2110 = vmatprep.subr.bf16.mxu0 0
        %2111 = vmatpush2.bf16.msra.mxu0 0
        %2112 = vmatprep.subr.bf16.mxu0 0
        %2113 = vmatpush2.bf16.msra.mxu0 0
        %2114 = vmatprep.subr.bf16.mxu0 0
        %2115 = vmatpush2.bf16.msra.mxu0 0
        %2116 = vmatprep.subr.bf16.mxu0 0
        %2117 = vmatpush2.bf16.msra.mxu0 0
        %2118 = vmatprep.subr.bf16.mxu0 0
        %2119 = vmatpush2.bf16.msra.mxu0 0
        %2120 = vmatprep.subr.bf16.mxu0 0
        %2121 = vmatpush2.bf16.msra.mxu0 0
        %2122 = vmatprep.subr.bf16.mxu0 0
        %2123 = vmatpush2.bf16.msra.mxu0 0
        %2124 = vmatprep.subr.bf16.mxu0 0
        %2125 = vmatpush2.bf16.msra.mxu0 0
        %2126 = vmatprep.mubr.bf16.mxu0 0
        %2127 = vmatmul.mubr.bf16.gmra.mxu0 %v2092
        %v2128 = vpop.f32.mrf.mxu0
        %v2129 = vadd.f32 0.0, %v2128
        %v2130 = vpop.f32.mrf.mxu0
        %v2131 = vpop.f32.mrf.mxu0
        %v2132 = vpop.f32.mrf.mxu0
        %2133 = vdwg.mxu0
        %2134 = vrot.lane.b32.xlu0 %v1804, 104
        %v2135 = vpop.permute.xlu0 %2134
        %2136 = vrot.lane.b32.xlu0 %v1805, 104
        %v2137 = vpop.permute.xlu0 %2136
        %v2139 = vsel %vm1102, %v2135, 0
        %v2142 = vsel %vm1102, %v2137, 0
        %2144 = vmatprep.subr.bf16.mxu0 0
        %2145 = vmatpush1.bf16.xpose.msra.mxu0 0
        %2146 = vmatprep.subr.bf16.mxu0 0
        %2147 = vmatpush1.bf16.xpose.msra.mxu0 0
        %2148 = vmatprep.subr.bf16.mxu0 0
        %2149 = vmatpush1.bf16.xpose.msra.mxu0 0
        %2150 = vmatprep.subr.bf16.mxu0 0
        %2151 = vmatpush1.bf16.xpose.msra.mxu0 0
        %2152 = vmatprep.subr.bf16.mxu0 0
        %2153 = vmatpush1.bf16.xpose.msra.mxu0 0
        %2154 = vmatprep.subr.bf16.mxu0 0
        %2155 = vmatpush1.bf16.xpose.msra.mxu0 0
        %2156 = vmatprep.subr.bf16.mxu0 0
        %2157 = vmatpush1.bf16.xpose.msra.mxu0 0
        %2158 = vmatprep.subr.bf16.mxu0 0
        %2159 = vmatpush1.bf16.xpose.msra.mxu0 %v2142
        %2160 = vmatprep.subr.bf16.mxu0 0
        %2161 = vmatpush2.bf16.xpose.msra.mxu0 0
        %2162 = vmatprep.subr.bf16.mxu0 0
        %2163 = vmatpush2.bf16.xpose.msra.mxu0 0
        %2164 = vmatprep.subr.bf16.mxu0 0
        %2165 = vmatpush2.bf16.xpose.msra.mxu0 0
        %2166 = vmatprep.subr.bf16.mxu0 0
        %2167 = vmatpush2.bf16.xpose.msra.mxu0 0
        %2168 = vmatprep.subr.bf16.mxu0 0
        %2169 = vmatpush2.bf16.xpose.msra.mxu0 0
        %2170 = vmatprep.subr.bf16.mxu0 0
        %2171 = vmatpush2.bf16.xpose.msra.mxu0 0
        %2172 = vmatprep.subr.bf16.mxu0 0
        %2173 = vmatpush2.bf16.xpose.msra.mxu0 0
        %2174 = vmatprep.subr.bf16.mxu0 0
        %2175 = vmatpush2.bf16.xpose.msra.mxu0 0
        %2176 = vmatprep.mubr.bf16.mxu0 0
        %2177 = vmatmul.mubr.bf16.gmra.mxu0 %v2139
        %v2178 = vpop.f32.mrf.mxu0
        %v2179 = vadd.f32 %v1803, %v2178
        %v2180 = vpop.f32.mrf.mxu0
        %v2181 = vpop.f32.mrf.mxu0
        %v2182 = vpop.f32.mrf.mxu0
        %2183 = vdwg.mxu0
        %v2184 = vsel %vm1561, %v2179, -inf
        %2185 = vmax.xlane.f32.xlu0 %v2184
        %v2186 = vpop.xlane.xlu0 %2185
        %v2187 = vsub.f32 %v2179, %v2186
        %v2188 = vmul.f32 %v2187, 1.442695
        %v2189 = vpow.pop %v2188
        %v2190 = vsel %vm1561, %v2189, 0.0
        %2191 = vadd.xlane.f32.xlu0 %v2190
        %v2192 = vpop.xlane.xlu0 %2191
        %v2193 = vrcp.pop %v2192
        %v2194 = vmul.f32 %v2189, %v2193
        %v2195 = vpack.c.bf16 %v2194, %v2194
        %s2196 = scalar_lea.vmem %s1018, 12 [#allocation29]
        %2197 = vst.msk [vmem:[%s2196] sm:$0xf] %vm1864, %v2195
        %2198 = vrot.lane.b32.xlu0 %v1805, 72
        %v2199 = vpop.permute.xlu0 %2198
        %v2202 = vsel %vm1561, %v2195, 0
        %2204 = vmatprep.subr.bf16.mxu0 0
        %2205 = vmatpush1.bf16.msra.mxu0 0
        %2206 = vmatprep.subr.bf16.mxu0 0
        %2207 = vmatpush1.bf16.msra.mxu0 0
        %2208 = vmatprep.subr.bf16.mxu0 0
        %2209 = vmatpush1.bf16.msra.mxu0 0
        %2210 = vmatprep.subr.bf16.mxu0 0
        %2211 = vmatpush1.bf16.msra.mxu0 0
        %2212 = vmatprep.subr.bf16.mxu0 0
        %2213 = vmatpush1.bf16.msra.mxu0 0
        %2214 = vmatprep.subr.bf16.mxu0 0
        %2215 = vmatpush1.bf16.msra.mxu0 0
        %2216 = vmatprep.subr.bf16.mxu0 0
        %2217 = vmatpush1.bf16.msra.mxu0 0
        %2218 = vmatprep.subr.bf16.mxu0 0
        %2219 = vmatpush1.bf16.msra.mxu0 %v2199
        %2220 = vmatprep.subr.bf16.mxu0 0
        %2221 = vmatpush2.bf16.msra.mxu0 0
        %2222 = vmatprep.subr.bf16.mxu0 0
        %2223 = vmatpush2.bf16.msra.mxu0 0
        %2224 = vmatprep.subr.bf16.mxu0 0
        %2225 = vmatpush2.bf16.msra.mxu0 0
        %2226 = vmatprep.subr.bf16.mxu0 0
        %2227 = vmatpush2.bf16.msra.mxu0 0
        %2228 = vmatprep.subr.bf16.mxu0 0
        %2229 = vmatpush2.bf16.msra.mxu0 0
        %2230 = vmatprep.subr.bf16.mxu0 0
        %2231 = vmatpush2.bf16.msra.mxu0 0
        %2232 = vmatprep.subr.bf16.mxu0 0
        %2233 = vmatpush2.bf16.msra.mxu0 0
        %2234 = vmatprep.subr.bf16.mxu0 0
        %2235 = vmatpush2.bf16.msra.mxu0 0
        %2236 = vmatprep.mubr.bf16.mxu0 0
        %2237 = vmatmul.mubr.bf16.gmra.mxu0 %v2202
        %v2238 = vpop.f32.mrf.mxu0
        %v2239 = vadd.f32 0.0, %v2238
        %v2240 = vpop.f32.mrf.mxu0
        %v2241 = vpop.f32.mrf.mxu0
        %v2242 = vpop.f32.mrf.mxu0
        %2243 = vdwg.mxu0
        %2245 = vrot.lane.b32.xlu0 %v2019, 8
        %v2246 = vpop.permute.xlu0 %2245
        %2249 = vrot.lane.b32.xlu0 %v2129, 16
        %v2250 = vpop.permute.xlu0 %2249
        %2253 = vrot.lane.b32.xlu0 %v2239, 24
        %v2254 = vpop.permute.xlu0 %2253
        %v2256 = vsel %vm1102, %v1908, %v2246
        %v2257 = vsel %vm1561, %v2256, %v2250
        %v2258 = vsel %vm1563, %v2257, %v2254
        %v2259 = vpack.c.bf16 %v2258, %v2258
        %v2260 = vld [vmem:[#allocation16] sm:$0xf]
        %v2261 = vld [vmem:[#allocation16 + $0x4] sm:$0xf]
        %v2262 = vld [vmem:[#allocation16 + $0x8] sm:$0xf]
        %v2263 = vld [vmem:[#allocation16 + $0xc] sm:$0xf]
        %v2264 = vld [vmem:[#allocation17] sm:$0x1]
        %v2266 = vlaneseq
        %v2267 = vshrl.u32 %v2266, 7
        %v2268 = vsub.s32 0, %v2267
        %v2269 = vrot.slane %v2264, %v2268
        %v2275 = vunpack.c.l.b16 %v2260
        %v2276 = vunpack.c.l.b16 %v2261
        %v2277 = vunpack.c.l.b16 %v2262
        %v2278 = vunpack.c.l.b16 %v2263
        %v2279 = vpack.c.b16 %v2276, %v2275
        %v2280 = vpack.c.b16 %v2278, %v2277
        %v2284 = vsel %vm1052, %v2259, 0
        %2286 = vmatprep.subr.bf16.mxu0 0
        %2287 = vmatpush1.bf16.msra.mxu0 0
        %2288 = vmatprep.subr.bf16.mxu0 0
        %2289 = vmatpush1.bf16.msra.mxu0 0
        %2290 = vmatprep.subr.bf16.mxu0 0
        %2291 = vmatpush1.bf16.msra.mxu0 0
        %2292 = vmatprep.subr.bf16.mxu0 0
        %2293 = vmatpush1.bf16.msra.mxu0 0
        %2294 = vmatprep.subr.bf16.mxu0 0
        %2295 = vmatpush1.bf16.msra.mxu0 0
        %2296 = vmatprep.subr.bf16.mxu0 0
        %2297 = vmatpush1.bf16.msra.mxu0 0
        %2298 = vmatprep.subr.bf16.mxu0 0
        %2299 = vmatpush1.bf16.msra.mxu0 %v2280
        %2300 = vmatprep.subr.bf16.mxu0 0
        %2301 = vmatpush1.bf16.msra.mxu0 %v2279
        %2302 = vmatprep.subr.bf16.mxu0 0
        %2303 = vmatpush2.bf16.msra.mxu0 0
        %2304 = vmatprep.subr.bf16.mxu0 0
        %2305 = vmatpush2.bf16.msra.mxu0 0
        %2306 = vmatprep.subr.bf16.mxu0 0
        %2307 = vmatpush2.bf16.msra.mxu0 0
        %2308 = vmatprep.subr.bf16.mxu0 0
        %2309 = vmatpush2.bf16.msra.mxu0 0
        %2310 = vmatprep.subr.bf16.mxu0 0
        %2311 = vmatpush2.bf16.msra.mxu0 0
        %2312 = vmatprep.subr.bf16.mxu0 0
        %2313 = vmatpush2.bf16.msra.mxu0 0
        %2314 = vmatprep.subr.bf16.mxu0 0
        %2315 = vmatpush2.bf16.msra.mxu0 0
        %2316 = vmatprep.subr.bf16.mxu0 0
        %2317 = vmatpush2.bf16.msra.mxu0 0
        %2318 = vmatprep.mubr.bf16.mxu0 0
        %2319 = vmatmul.mubr.bf16.gmra.mxu0 %v2284
        %v2320 = vpop.f32.mrf.mxu0
        %v2321 = vadd.f32 %v2269, %v2320
        %v2322 = vpop.f32.mrf.mxu0
        %v2323 = vpop.f32.mrf.mxu0
        %v2324 = vpop.f32.mrf.mxu0
        %2325 = vdwg.mxu0
        %v2326 = vadd.f32 %v1662, %v2321
        %v2327 = vld [vmem:[#allocation22] sm:$0x1]
        %v2328 = vld [vmem:[#allocation23] sm:$0x1]
        %v2329 = vsel %vm1052, %v2326, 0.0
        %2330 = vadd.xlane.f32.xlu0 %v2329
        %v2331 = vpop.xlane.xlu0 %2330
        %v2332 = vmul.f32 %v2331, %v1638
        %v2333 = vsub.f32 %v2326, %v2332
        %v2334 = vmul.f32 %v2333, %v2333
        %v2335 = vsel %vm1052, %v2334, 0.0
        %2336 = vadd.xlane.f32.xlu0 %v2335
        %v2337 = vpop.xlane.xlu0 %2336
        %v2338 = vmul.f32 %v2337, %v1638
        %v2339 = vadd.f32 %v2338, 1e-05
        %v2340 = vrsqrt.pop %v2339
        %v2341 = vmul.f32 %v2333, %v2340
        %v2343 = vlaneseq
        %v2344 = vshrl.u32 %v2343, 7
        %v2345 = vsub.s32 0, %v2344
        %v2346 = vrot.slane %v2327, %v2345
        %v2348 = vmul.f32 %v2341, %v2346
        %v2350 = vlaneseq
        %v2351 = vshrl.u32 %v2350, 7
        %v2352 = vsub.s32 0, %v2351
        %v2353 = vrot.slane %v2328, %v2352
        %v2355 = vadd.f32 %v2348, %v2353
        %v2356 = vpack.c.bf16 %v2355, %v2355
        %v2357 = vld [vmem:[%s20] sm:$0xf]
        %v2358 = vld [vmem:[%s20 + $0x4] sm:$0xf]
        %v2359 = vld [vmem:[%s20 + $0x8] sm:$0xf]
        %v2360 = vld [vmem:[%s20 + $0xc] sm:$0xf]
        %v2361 = vld [vmem:[%s21] sm:$0x1]
        %v2363 = vlaneseq
        %v2364 = vshrl.u32 %v2363, 7
        %v2365 = vsub.s32 0, %v2364
        %v2366 = vrot.slane %v2361, %v2365
        %v2372 = vunpack.c.l.b16 %v2357
        %v2373 = vunpack.c.l.b16 %v2358
        %v2374 = vunpack.c.l.b16 %v2359
        %v2375 = vunpack.c.l.b16 %v2360
        %v2376 = vpack.c.b16 %v2373, %v2372
        %v2377 = vpack.c.b16 %v2375, %v2374
        %v2381 = vsel %vm1052, %v2356, 0
        %2383 = vmatprep.subr.bf16.mxu0 0
        %2384 = vmatpush1.bf16.msra.mxu0 0
        %2385 = vmatprep.subr.bf16.mxu0 0
        %2386 = vmatpush1.bf16.msra.mxu0 0
        %2387 = vmatprep.subr.bf16.mxu0 0
        %2388 = vmatpush1.bf16.msra.mxu0 0
        %2389 = vmatprep.subr.bf16.mxu0 0
        %2390 = vmatpush1.bf16.msra.mxu0 0
        %2391 = vmatprep.subr.bf16.mxu0 0
        %2392 = vmatpush1.bf16.msra.mxu0 0
        %2393 = vmatprep.subr.bf16.mxu0 0
        %2394 = vmatpush1.bf16.msra.mxu0 0
        %2395 = vmatprep.subr.bf16.mxu0 0
        %2396 = vmatpush1.bf16.msra.mxu0 %v2377
        %2397 = vmatprep.subr.bf16.mxu0 0
        %2398 = vmatpush1.bf16.msra.mxu0 %v2376
        %2399 = vmatprep.subr.bf16.mxu0 0
        %2400 = vmatpush2.bf16.msra.mxu0 0
        %2401 = vmatprep.subr.bf16.mxu0 0
        %2402 = vmatpush2.bf16.msra.mxu0 0
        %2403 = vmatprep.subr.bf16.mxu0 0
        %2404 = vmatpush2.bf16.msra.mxu0 0
        %2405 = vmatprep.subr.bf16.mxu0 0
        %2406 = vmatpush2.bf16.msra.mxu0 0
        %2407 = vmatprep.subr.bf16.mxu0 0
        %2408 = vmatpush2.bf16.msra.mxu0 0
        %2409 = vmatprep.subr.bf16.mxu0 0
        %2410 = vmatpush2.bf16.msra.mxu0 0
        %2411 = vmatprep.subr.bf16.mxu0 0
        %2412 = vmatpush2.bf16.msra.mxu0 0
        %2413 = vmatprep.subr.bf16.mxu0 0
        %2414 = vmatpush2.bf16.msra.mxu0 0
        %2415 = vmatprep.mubr.bf16.mxu0 0
        %2416 = vmatmul.mubr.bf16.gmra.mxu0 %v2381
        %v2417 = vpop.f32.mrf.mxu0
        %v2418 = vadd.f32 %v2366, %v2417
        %v2419 = vpop.f32.mrf.mxu0
        %v2420 = vpop.f32.mrf.mxu0
        %v2421 = vpop.f32.mrf.mxu0
        %2422 = vdwg.mxu0
        %v2423 = vmul.f32 %v2418, 0.5
        %v2424 = vmul.f32 %v2418, 0.044715
        %v2425 = vmul.f32 %v2424, %v2418
        %v2426 = vmul.f32 %v2425, %v2418
        %v2427 = vadd.f32 %v2418, %v2426
        %v2428 = vmul.f32 %v2427, 0.7978846
        %v2429 = vtanh.pop %v2428
        %v2430 = vadd.f32 %v2429, 1.0
        %v2431 = vmul.f32 %v2423, %v2430
        %v2432 = vpack.c.bf16 %v2431, %v2431
        %v2433 = vld [vmem:[%s22] sm:$0xf]
        %v2434 = vld [vmem:[%s22 + $0x4] sm:$0xf]
        %v2435 = vld [vmem:[%s22 + $0x8] sm:$0xf]
        %v2436 = vld [vmem:[%s22 + $0xc] sm:$0xf]
        %v2437 = vld [vmem:[%s22 + $0x10] sm:$0xf]
        %v2438 = vld [vmem:[%s22 + $0x14] sm:$0xf]
        %v2439 = vld [vmem:[%s22 + $0x18] sm:$0xf]
        %v2440 = vld [vmem:[%s22 + $0x1c] sm:$0xf]
        %v2441 = vld [vmem:[%s23] sm:$0x1]
        %v2443 = vlaneseq
        %v2444 = vshrl.u32 %v2443, 7
        %v2445 = vsub.s32 0, %v2444
        %v2446 = vrot.slane %v2441, %v2445
        %v2456 = vunpack.c.l.b16 %v2433
        %v2457 = vunpack.c.l.b16 %v2434
        %v2458 = vunpack.c.l.b16 %v2435
        %v2459 = vunpack.c.l.b16 %v2436
        %v2460 = vunpack.c.l.b16 %v2437
        %v2461 = vunpack.c.l.b16 %v2438
        %v2462 = vunpack.c.l.b16 %v2439
        %v2463 = vunpack.c.l.b16 %v2440
        %v2464 = vpack.c.b16 %v2457, %v2456
        %v2465 = vpack.c.b16 %v2459, %v2458
        %v2466 = vpack.c.b16 %v2461, %v2460
        %v2467 = vpack.c.b16 %v2463, %v2462
        %vm2472 = vcmask 523264
        %v2474 = vsel %vm2472, %v2432, 0
        %2476 = vmatprep.subr.bf16.mxu0 0
        %2477 = vmatpush1.bf16.msra.mxu0 0
        %2478 = vmatprep.subr.bf16.mxu0 0
        %2479 = vmatpush1.bf16.msra.mxu0 0
        %2480 = vmatprep.subr.bf16.mxu0 0
        %2481 = vmatpush1.bf16.msra.mxu0 0
        %2482 = vmatprep.subr.bf16.mxu0 0
        %2483 = vmatpush1.bf16.msra.mxu0 0
        %2484 = vmatprep.subr.bf16.mxu0 0
        %2485 = vmatpush1.bf16.msra.mxu0 %v2467
        %2486 = vmatprep.subr.bf16.mxu0 0
        %2487 = vmatpush1.bf16.msra.mxu0 %v2466
        %2488 = vmatprep.subr.bf16.mxu0 0
        %2489 = vmatpush1.bf16.msra.mxu0 %v2465
        %2490 = vmatprep.subr.bf16.mxu0 0
        %2491 = vmatpush1.bf16.msra.mxu0 %v2464
        %2492 = vmatprep.subr.bf16.mxu0 0
        %2493 = vmatpush2.bf16.msra.mxu0 0
        %2494 = vmatprep.subr.bf16.mxu0 0
        %2495 = vmatpush2.bf16.msra.mxu0 0
        %2496 = vmatprep.subr.bf16.mxu0 0
        %2497 = vmatpush2.bf16.msra.mxu0 0
        %2498 = vmatprep.subr.bf16.mxu0 0
        %2499 = vmatpush2.bf16.msra.mxu0 0
        %2500 = vmatprep.subr.bf16.mxu0 0
        %2501 = vmatpush2.bf16.msra.mxu0 0
        %2502 = vmatprep.subr.bf16.mxu0 0
        %2503 = vmatpush2.bf16.msra.mxu0 0
        %2504 = vmatprep.subr.bf16.mxu0 0
        %2505 = vmatpush2.bf16.msra.mxu0 0
        %2506 = vmatprep.subr.bf16.mxu0 0
        %2507 = vmatpush2.bf16.msra.mxu0 0
        %2508 = vmatprep.mubr.bf16.mxu0 0
        %2509 = vmatmul.mubr.bf16.gmra.mxu0 %v2474
        %v2510 = vpop.f32.mrf.mxu0
        %v2511 = vadd.f32 %v2446, %v2510
        %v2512 = vpop.f32.mrf.mxu0
        %v2513 = vpop.f32.mrf.mxu0
        %v2514 = vpop.f32.mrf.mxu0
        %2515 = vdwg.mxu0
        %v2516 = vadd.f32 %v2355, %v2511
        %v2517 = vld [vmem:[#allocation25] sm:$0x1]
        %v2518 = vld [vmem:[%s19] sm:$0x1]
        %v2519 = vsel %vm1052, %v2516, 0.0
        %2520 = vadd.xlane.f32.xlu0 %v2519
        %v2521 = vpop.xlane.xlu0 %2520
        %v2522 = vmul.f32 %v2521, %v1638
        %v2523 = vsub.f32 %v2516, %v2522
        %v2524 = vmul.f32 %v2523, %v2523
        %v2525 = vsel %vm1052, %v2524, 0.0
        %2526 = vadd.xlane.f32.xlu0 %v2525
        %v2527 = vpop.xlane.xlu0 %2526
        %v2528 = vmul.f32 %v2527, %v1638
        %v2529 = vadd.f32 %v2528, 1e-05
        %v2530 = vrsqrt.pop %v2529
        %v2531 = vmul.f32 %v2523, %v2530
        %v2533 = vlaneseq
        %v2534 = vshrl.u32 %v2533, 7
        %v2535 = vsub.s32 0, %v2534
        %v2536 = vrot.slane %v2517, %v2535
        %v2538 = vmul.f32 %v2531, %v2536
        %v2540 = vlaneseq
        %v2541 = vshrl.u32 %v2540, 7
        %v2542 = vsub.s32 0, %v2541
        %v2543 = vrot.slane %v2518, %v2542
        %v2545 = vadd.f32 %v2538, %v2543
        %2546 = vst.msk [vmem:[%s1004] sm:$0xff] %vm1052, %v2545
        %s2547 = sand.u32 %s576, 1
        %s2548 = scalar_lea.sflag [#allocation4], %s2547
        %s2549 = sand.u32 %s576, 1
        %s2550 = smul.addr %s2549, 8
        %s2551 = scalar_lea.vmem [#allocation26], %s2550
        %s2552 = sand.u32 %s54, 1
        %s2553 = scalar_lea.sflag [#allocation28], %s2552
        %s2554 = sand.u32 %s602, 1
        %s2555 = smul.addr %s2554, 16
        %s2556 = scalar_lea.vmem [#allocation27], %s2555
        %s2557 = sand.u32 %s54, 1
        %s2558 = scalar_lea.sflag [#allocation28], %s2557
        %s2559 = sand.u32 %s628, 1
        %s2560 = smul.addr %s2559, 16
        %s2561 = scalar_lea.vmem [#allocation29], %s2560
        // Predicated region
        $region177: #{tpu_custom_call.1} parent=115 // pred_check
          %p2562 = pneg %p586
        $region178: #{tpu_custom_call.1} parent=115 // pred_check_branch
          %2564 = sbr.rel (%p2562) target = $region180
        $region179: #{tpu_custom_call.1} parent=115 // pred_region
          %s2566 = ssub.s32 128, 128
          %2567 = vsyncadd %s2548, %s2566
          %s2568 = smul.addr %s54, 128
          %s2569 = scalar_lea.hbm %s24, %s2568
          %s2571 = sshll.u32 %s2551, 4
          %s2572 = int_to_ptr.vmem [resolvable:$true] %s2571
          %2574 = dma.vmem_to_hbm [thread:$0]  %s2572, 128, %s2569, %s2548
        $region180: #{tpu_custom_call.1} parent=115 // pred_fallthru
          _
        // Predicated region
        $region181: #{tpu_custom_call.1} parent=115 // pred_check
          %p2575 = pneg %p612
        $region182: #{tpu_custom_call.1} parent=115 // pred_check_branch
          %2577 = sbr.rel (%p2575) target = $region184
        $region183: #{tpu_custom_call.1} parent=115 // pred_region
          %s2579 = ssub.s32 256, 256
          %2580 = vsyncadd %s2553, %s2579
          %s2581 = smul.addr %s54, 4
          %s2582 = smul.addr %s2581, 64
          %s2583 = scalar_lea.hbm %s25, %s2582
          %s2584 = sshll.u32 %s2556, 4
          %s2585 = int_to_ptr.vmem [resolvable:$true] %s2584
          %2590 = dma.vmem_to_hbm [thread:$0]  %s2585, 256, %s2583, %s2553, 64, 64, 4
        $region184: #{tpu_custom_call.1} parent=115 // pred_fallthru
          _
        // Predicated region
        $region185: #{tpu_custom_call.1} parent=115 // pred_check
          %p2591 = pneg %p638
        $region186: #{tpu_custom_call.1} parent=115 // pred_check_branch
          %2593 = sbr.rel (%p2591) target = $region188
        $region187: #{tpu_custom_call.1} parent=115 // pred_region
          %s2595 = ssub.s32 256, 256
          %2596 = vsyncadd %s2558, %s2595
          %s2597 = smul.addr %s54, 4
          %s2598 = smul.addr %s2597, 64
          %s2599 = scalar_lea.hbm %s26, %s2598
          %s2600 = sshll.u32 %s2561, 4
          %s2601 = int_to_ptr.vmem [resolvable:$true] %s2600
          %2606 = dma.vmem_to_hbm [thread:$0]  %s2601, 256, %s2599, %s2558, 64, 64, 4
        $region188: #{tpu_custom_call.1} parent=115 // pred_fallthru
          _
      $region116: #{tpu_custom_call.1} parent=5 // pred_fallthru
        _
      %p2607 = scmp.le.s32.totalorder 2, %s49
      // Predicated region
      $region189: #{tpu_custom_call.1} parent=5 // pred_check
        %p2608 = pneg %p2607
      $region190: #{tpu_custom_call.1} parent=5 // pred_check_branch
        %2610 = sbr.rel (%p2608) target = $region192
      $region191: #{tpu_custom_call.1} parent=5 // pred_region
        %s2611 = ssub.s32 %s49, 2
        // Predicated region
        $region193: #{tpu_custom_call.1} parent=191 // pred_check
          %p2612 = pneg %p592
        $region194: #{tpu_custom_call.1} parent=191 // pred_check_branch
          %2614 = sbr.rel (%p2612) target = $region196
        $region195: #{tpu_custom_call.1} parent=191 // pred_region
          %s2615 = sand.u32 %s577, 1
          %s2616 = scalar_lea.sflag [#allocation4], %s2615
          %s2617 = sand.u32 %s577, 1
          %s2618 = smul.addr %s2617, 8
          %s2619 = scalar_lea.vmem [#allocation26], %s2618
          %2620 = dma.done %s2616, 128
        $region196: #{tpu_custom_call.1} parent=191 // pred_fallthru
          _
        // Predicated region
        $region197: #{tpu_custom_call.1} parent=191 // pred_check
          %p2621 = pneg %p618
        $region198: #{tpu_custom_call.1} parent=191 // pred_check_branch
          %2623 = sbr.rel (%p2621) target = $region200
        $region199: #{tpu_custom_call.1} parent=191 // pred_region
          %s2624 = sand.u32 %s55, 1
          %s2625 = scalar_lea.sflag [#allocation28], %s2624
          %s2626 = sand.u32 %s603, 1
          %s2627 = smul.addr %s2626, 16
          %s2628 = scalar_lea.vmem [#allocation27], %s2627
          %2629 = dma.done %s2625, 256
        $region200: #{tpu_custom_call.1} parent=191 // pred_fallthru
          _
        // Predicated region
        $region201: #{tpu_custom_call.1} parent=191 // pred_check
          %p2630 = pneg %p644
        $region202: #{tpu_custom_call.1} parent=191 // pred_check_branch
          %2632 = sbr.rel (%p2630) target = $region204
        $region203: #{tpu_custom_call.1} parent=191 // pred_region
          %s2633 = sand.u32 %s55, 1
          %s2634 = scalar_lea.sflag [#allocation28], %s2633
          %s2635 = sand.u32 %s629, 1
          %s2636 = smul.addr %s2635, 16
          %s2637 = scalar_lea.vmem [#allocation29], %s2636
          %2638 = dma.done %s2634, 256
        $region204: #{tpu_custom_call.1} parent=191 // pred_fallthru
          _
      $region192: #{tpu_custom_call.1} parent=5 // pred_fallthru
        _
    $region6: #{tpu_custom_call.1} parent=1 // loop_footer
      %s53 = sadd.s32 1, %s49
    $region7: #{tpu_custom_call.1} parent=1 // loop_footer_branch
      %48 = sbr.rel target = $region3
    $region8: #{tpu_custom_call.1} parent=1 // loop_exit
      _
    %2639 = vsyncpa [#allocation3], 1
    %s2640 = scalar_lea.sflag [#allocation3], 1
    %2641 = vsyncpa %s2640, 1
    %2642 = vsyncpa [#allocation6], 1
    %2643 = vsyncpa [#allocation9], 1
    %2644 = vsyncpa [#allocation12], 1
    %2645 = vsyncpa [#allocation15], 1
    %2646 = vsyncpa [#allocation18], 1
    %2647 = vsyncpa [#allocation21], 1
    %2648 = vsyncpa [#allocation24], 1
    %2649 = vsyncpa [#allocation4], 1
    %s2650 = scalar_lea.sflag [#allocation4], 1
    %2651 = vsyncpa %s2650, 1
    %2652 = vsyncpa [#allocation28], 1
    %s2653 = scalar_lea.sflag [#allocation28], 1
    %2654 = vsyncpa %s2653, 1

// kernel: tpu_custom_call.1
$region0: #{tpu_custom_call.1}
  #allocation0 [shape = 'u32[]', space=smem, size = 0x4, offset = 0x4, fixed_abs, tag = 'smem constant byte address 0x4 - core index']
  #allocation1 [shape = 'u32[144,128]{1,0:T(1,128)}', space=vmem, size = 0x12000, scoped, tag = 'internal scratch']
  %s0 = inlined_call_operand.hbm [shape: bf16[2,8,32], index: 0, kind: input, shape index: {}]
  %s1 = inlined_call_operand.vmem [shape: bf16[2,16,32], index: 1, kind: input, shape index: {}]
  %s2 = inlined_call_operand.hbm [shape: bf16[8,8], index: 2, kind: input, shape index: {}]
  %s3 = inlined_call_operand.hbm [shape: bf16[8,16], index: 3, kind: input, shape index: {}]
  %s4 = inlined_call_operand.vmem [shape: bf16[32,96], index: 4, kind: input, shape index: {}]
  %s5 = inlined_call_operand.hbm [shape: f32[1,96], index: 5, kind: input, shape index: {}]
  %s6 = inlined_call_operand.vmem [shape: bf16[32,32], index: 6, kind: input, shape index: {}]
  %s7 = inlined_call_operand.hbm [shape: f32[1,32], index: 7, kind: input, shape index: {}]
  %s8 = inlined_call_operand.hbm [shape: bf16[32,32], index: 8, kind: input, shape index: {}]
  %s9 = inlined_call_operand.hbm [shape: f32[1,32], index: 9, kind: input, shape index: {}]
  %s10 = inlined_call_operand.vmem [shape: bf16[32,64], index: 10, kind: input, shape index: {}]
  %s11 = inlined_call_operand.hbm [shape: f32[1,64], index: 11, kind: input, shape index: {}]
  %s12 = inlined_call_operand.hbm [shape: bf16[32,32], index: 12, kind: input, shape index: {}]
  %s13 = inlined_call_operand.hbm [shape: f32[1,32], index: 13, kind: input, shape index: {}]
  %s14 = inlined_call_operand.hbm [shape: f32[1,32], index: 14, kind: input, shape index: {}]
  %s15 = inlined_call_operand.hbm [shape: f32[1,32], index: 15, kind: input, shape index: {}]
  %s16 = inlined_call_operand.hbm [shape: f32[1,32], index: 16, kind: input, shape index: {}]
  %s17 = inlined_call_operand.hbm [shape: f32[1,32], index: 17, kind: input, shape index: {}]
  %s18 = inlined_call_operand.hbm [shape: f32[1,32], index: 18, kind: input, shape index: {}]
  %s19 = inlined_call_operand.vmem [shape: f32[1,32], index: 19, kind: input, shape index: {}]
  %s20 = inlined_call_operand.vmem [shape: bf16[32,64], index: 20, kind: input, shape index: {}]
  %s21 = inlined_call_operand.vmem [shape: f32[1,64], index: 21, kind: input, shape index: {}]
  %s22 = inlined_call_operand.vmem [shape: bf16[64,32], index: 22, kind: input, shape index: {}]
  %s23 = inlined_call_operand.vmem [shape: f32[1,32], index: 23, kind: input, shape index: {}]
  %s24 = inlined_call_operand.hbm [shape: f32[2,8,32], index: 24, kind: output, shape index: {0}]
  %s25 = inlined_call_operand.hbm [shape: bf16[2,4,8,8], index: 25, kind: output, shape index: {1}]
  %s26 = inlined_call_operand.hbm [shape: bf16[2,4,8,16], index: 26, kind: output, shape index: {2}]
  %27 = xla_tuple %s24, %s25, %s26
  %s28 = sld [smem:[#allocation0]]
  $region205: #{tpu_custom_call.1} parent=0
    _
  %s30 = ssub.s32 1, %s28
  %s31 = scalar_select 0, %s30, %s28
  $region1: #{tpu_custom_call.1} parent=0
    #allocation2 [shape = 'u8[4096]{0}', space=vmem, size = 0x1000, scoped, tag = 'input window, operand 0']
    #allocation3 [shape = 's32[2]{0}', space=sflag, size = 0x8, scoped, tag = 'scoped memory for tpu_custom_call.1']
    #allocation4 [shape = 's32[2]{0}', space=sflag, size = 0x8, scoped, tag = 'scoped memory for tpu_custom_call.1']
    #allocation5 [shape = 'u8[2048]{0}', space=vmem, size = 0x800, scoped, tag = 'input window, operand 2, single buffered']
    #allocation6 [shape = 's32[1]{0}', space=sflag, size = 0x4, scoped, tag = 'scoped memory for tpu_custom_call.1']
    #allocation7 [shape = 'u8[2048]{0}', space=vmem, size = 0x800, scoped, tag = 'input window, operand 3, single buffered']
    #allocation8 [shape = 'u8[512]{0}', space=vmem, size = 0x400, scoped, tag = 'input window, operand 5, single buffered']
    #allocation9 [shape = 's32[1]{0}', space=sflag, size = 0x4, scoped, tag = 'scoped memory for tpu_custom_call.1']
    #allocation10 [shape = 'u8[512]{0}', space=vmem, size = 0x400, scoped, tag = 'input window, operand 7, single buffered']
    #allocation11 [shape = 'u8[8192]{0}', space=vmem, size = 0x2000, scoped, tag = 'input window, operand 8, single buffered']
    #allocation12 [shape = 's32[1]{0}', space=sflag, size = 0x4, scoped, tag = 'scoped memory for tpu_custom_call.1']
    #allocation13 [shape = 'u8[512]{0}', space=vmem, size = 0x400, scoped, tag = 'input window, operand 9, single buffered']
    #allocation14 [shape = 'u8[512]{0}', space=vmem, size = 0x400, scoped, tag = 'input window, operand 11, single buffered']
    #allocation15 [shape = 's32[1]{0}', space=sflag, size = 0x4, scoped, tag = 'scoped memory for tpu_custom_call.1']
    #allocation16 [shape = 'u8[8192]{0}', space=vmem, size = 0x2000, scoped, tag = 'input window, operand 12, single buffered']
    #allocation17 [shape = 'u8[512]{0}', space=vmem, size = 0x400, scoped, tag = 'input window, operand 13, single buffered']
    #allocation18 [shape = 's32[1]{0}', space=sflag, size = 0x4, scoped, tag = 'scoped memory for tpu_custom_call.1']
    #allocation19 [shape = 'u8[512]{0}', space=vmem, size = 0x400, scoped, tag = 'input window, operand 14, single buffered']
    #allocation20 [shape = 'u8[512]{0}', space=vmem, size = 0x400, scoped, tag = 'input window, operand 15, single buffered']
    #allocation21 [shape = 's32[1]{0}', space=sflag, size = 0x4, scoped, tag = 'scoped memory for tpu_custom_call.1']
    #allocation22 [shape = 'u8[512]{0}', space=vmem, size = 0x400, scoped, tag = 'input window, operand 16, single buffered']
    #allocation23 [shape = 'u8[512]{0}', space=vmem, size = 0x400, scoped, tag = 'input window, operand 17, single buffered']
    #allocation24 [shape = 's32[1]{0}', space=sflag, size = 0x4, scoped, tag = 'scoped memory for tpu_custom_call.1']
    #allocation25 [shape = 'u8[512]{0}', space=vmem, size = 0x400, scoped, tag = 'input window, operand 18, single buffered']
    #allocation26 [shape = 'u8[8192]{0}', space=vmem, size = 0x2000, scoped, tag = 'output window, operand 0']
    #allocation27 [shape = 'u8[16384]{0}', space=vmem, size = 0x4000, scoped, tag = 'output window, operand 1']
    #allocation28 [shape = 's32[2]{0}', space=sflag, size = 0x8, scoped, tag = 'scoped memory for tpu_custom_call.1']
    #allocation29 [shape = 'u8[16384]{0}', space=vmem, size = 0x4000, scoped, tag = 'output window, operand 2']
    %32 = vsyncpa [#allocation3], 0
    %s33 = scalar_lea.sflag [#allocation3], 1
    %34 = vsyncpa %s33, 0
    %35 = vsyncpa [#allocation6], 0
    %36 = vsyncpa [#allocation9], 0
    %37 = vsyncpa [#allocation12], 0
    %38 = vsyncpa [#allocation15], 0
    %39 = vsyncpa [#allocation18], 0
    %40 = vsyncpa [#allocation21], 0
    %41 = vsyncpa [#allocation24], 0
    %42 = vsyncpa [#allocation4], 0
    %s43 = scalar_lea.sflag [#allocation4], 1
    %44 = vsyncpa %s43, 0
    %45 = vsyncpa [#allocation28], 0
    %s46 = scalar_lea.sflag [#allocation28], 1
    %47 = vsyncpa %s46, 0
    loop: start=0, step=1, limit=4
    $region2: #{tpu_custom_call.1} parent=1 // loop_pre_header
      _
    $region3: #{tpu_custom_call.1} parent=1 // loop_header
      %s49 = sphi 0, %s53
      %p50 = scmp.ge.s32.totalorder %s49, 4
      %s59 = sphi 0, %s61
      %s62 = sphi 0, %s59
      %s63 = sphi 0, %s62
      %s79 = sphi 0, %s63
      %s85 = sphi 0, %s87
      %s88 = sphi 0, %s85
      %s89 = sphi 0, %s88
      %s105 = sphi 0, %s89
      %s109 = sphi 0, %s109
      %s111 = sphi 0, %s109
      %s112 = sphi 0, %s111
      %s126 = sphi 0, %s112
      %s130 = sphi 0, %s130
      %s132 = sphi 0, %s130
      %s133 = sphi 0, %s132
      %s147 = sphi 0, %s133
      %s151 = sphi 0, %s151
      %s153 = sphi 0, %s151
      %s154 = sphi 0, %s153
      %s168 = sphi 0, %s154
      %s172 = sphi 0, %s172
      %s174 = sphi 0, %s172
      %s175 = sphi 0, %s174
      %s189 = sphi 0, %s175
      %s193 = sphi 0, %s193
      %s195 = sphi 0, %s193
      %s196 = sphi 0, %s195
      %s210 = sphi 0, %s196
      %s214 = sphi 0, %s214
      %s216 = sphi 0, %s214
      %s217 = sphi 0, %s216
      %s231 = sphi 0, %s217
      %s235 = sphi 0, %s235
      %s237 = sphi 0, %s235
      %s238 = sphi 0, %s237
      %s252 = sphi 0, %s238
      %s256 = sphi 0, %s256
      %s258 = sphi 0, %s256
      %s259 = sphi 0, %s258
      %s273 = sphi 0, %s259
      %s277 = sphi 0, %s277
      %s279 = sphi 0, %s277
      %s280 = sphi 0, %s279
      %s294 = sphi 0, %s280
      %s298 = sphi 0, %s298
      %s300 = sphi 0, %s298
      %s301 = sphi 0, %s300
      %s315 = sphi 0, %s301
      %s319 = sphi 0, %s319
      %s321 = sphi 0, %s319
      %s322 = sphi 0, %s321
      %s336 = sphi 0, %s322
      %s340 = sphi 0, %s340
      %s342 = sphi 0, %s340
      %s343 = sphi 0, %s342
      %s357 = sphi 0, %s343
      %s361 = sphi 0, %s361
      %s363 = sphi 0, %s361
      %s364 = sphi 0, %s363
      %s378 = sphi 0, %s364
      %s382 = sphi 0, %s382
      %s384 = sphi 0, %s382
      %s385 = sphi 0, %s384
      %s399 = sphi 0, %s385
      %s403 = sphi 0, %s403
      %s405 = sphi 0, %s403
      %s406 = sphi 0, %s405
      %s420 = sphi 0, %s406
      %s424 = sphi 0, %s424
      %s426 = sphi 0, %s424
      %s427 = sphi 0, %s426
      %s441 = sphi 0, %s427
      %s445 = sphi 0, %s445
      %s447 = sphi 0, %s445
      %s448 = sphi 0, %s447
      %s462 = sphi 0, %s448
      %s466 = sphi 0, %s466
      %s468 = sphi 0, %s466
      %s469 = sphi 0, %s468
      %s483 = sphi 0, %s469
      %s487 = sphi 0, %s487
      %s489 = sphi 0, %s487
      %s490 = sphi 0, %s489
      %s504 = sphi 0, %s490
      %s508 = sphi 0, %s508
      %s510 = sphi 0, %s508
      %s511 = sphi 0, %s510
      %s525 = sphi 0, %s511
      %s529 = sphi 0, %s529
      %s531 = sphi 0, %s529
      %s532 = sphi 0, %s531
      %s546 = sphi 0, %s532
      %s550 = sphi 0, %s550
      %s552 = sphi 0, %s550
      %s553 = sphi 0, %s552
      %s567 = sphi 0, %s553
      %s573 = sphi 0, %s575
      %s576 = sphi 0, %s573
      %s577 = sphi 0, %s576
      %s593 = sphi 0, %s577
      %s599 = sphi 0, %s601
      %s602 = sphi 0, %s599
      %s603 = sphi 0, %s602
      %s619 = sphi 0, %s603
      %s625 = sphi 0, %s627
      %s628 = sphi 0, %s625
      %s629 = sphi 0, %s628
      %s645 = sphi 0, %s629
    $region4: #{tpu_custom_call.1} parent=1 // loop_header_branch
      %52 = sbr.rel (%p50) target = $region8
    $region5: #{tpu_custom_call.1} parent=1 // loop_body
      %s54 = ssub.s32 %s49, 1
      %s55 = ssub.s32 %s49, 2
      %s56 = sadd.s32 %s49, 1
      %s57 = ssub.s32 %s49, %s56
      %p58 = scmp.eq.s32.totalorder %s57, 0
      %s60 = sadd.s32 %s59, 1
      %s61 = scalar_select %p58, %s59, %s60
      %p64 = pneg %p58
      %p65 = scmp.eq.s32.totalorder %s49, 1
      %p66 = por %p64, %p65
      %p67 = scmp.ne.s32.totalorder %s59, %s62
      %p68 = scmp.eq.s32.totalorder %s49, 0
      %p69 = por %p67, %p68
      %p70 = scmp.ne.s32.totalorder %s59, %s62
      %p71 = scmp.eq.s32.totalorder %s54, 1
      %p72 = por %p70, %p71
      %p73 = scmp.ne.s32.totalorder %s62, %s63
      %p74 = scmp.eq.s32.totalorder %s54, 0
      %p75 = por %p73, %p74
      %p76 = scmp.ne.s32.totalorder %s62, %s63
      %p77 = scmp.eq.s32.totalorder %s55, 1
      %p78 = por %p76, %p77
      %p80 = scmp.ne.s32.totalorder %s63, %s79
      %p81 = scmp.eq.s32.totalorder %s55, 0
      %p82 = por %p80, %p81
      %s83 = ssub.s32 %s49, %s56
      %p84 = scmp.eq.s32.totalorder %s83, 0
      %s86 = sadd.s32 %s85, 1
      %s87 = scalar_select %p84, %s85, %s86
      %p90 = pneg %p84
      %p91 = scmp.eq.s32.totalorder %s49, 1
      %p92 = por %p90, %p91
      %p93 = scmp.ne.s32.totalorder %s85, %s88
      %p94 = scmp.eq.s32.totalorder %s49, 0
      %p95 = por %p93, %p94
      %p96 = scmp.ne.s32.totalorder %s85, %s88
      %p97 = scmp.eq.s32.totalorder %s54, 1
      %p98 = por %p96, %p97
      %p99 = scmp.ne.s32.totalorder %s88, %s89
      %p100 = scmp.eq.s32.totalorder %s54, 0
      %p101 = por %p99, %p100
      %p102 = scmp.ne.s32.totalorder %s88, %s89
      %p103 = scmp.eq.s32.totalorder %s55, 1
      %p104 = por %p102, %p103
      %p106 = scmp.ne.s32.totalorder %s89, %s105
      %p107 = scmp.eq.s32.totalorder %s55, 0
      %p108 = por %p106, %p107
      %s110 = sadd.s32 %s109, 1
      %p113 = scmp.eq.s32.totalorder %s49, 1
      %p114 = scmp.ne.s32.totalorder %s109, %s111
      %p115 = scmp.eq.s32.totalorder %s49, 0
      %p116 = por %p114, %p115
      %p117 = scmp.ne.s32.totalorder %s109, %s111
      %p118 = scmp.eq.s32.totalorder %s54, 1
      %p119 = por %p117, %p118
      %p120 = scmp.ne.s32.totalorder %s111, %s112
      %p121 = scmp.eq.s32.totalorder %s54, 0
      %p122 = por %p120, %p121
      %p123 = scmp.ne.s32.totalorder %s111, %s112
      %p124 = scmp.eq.s32.totalorder %s55, 1
      %p125 = por %p123, %p124
      %p127 = scmp.ne.s32.totalorder %s112, %s126
      %p128 = scmp.eq.s32.totalorder %s55, 0
      %p129 = por %p127, %p128
      %s131 = sadd.s32 %s130, 1
      %p134 = scmp.eq.s32.totalorder %s49, 1
      %p135 = scmp.ne.s32.totalorder %s130, %s132
      %p136 = scmp.eq.s32.totalorder %s49, 0
      %p137 = por %p135, %p136
      %p138 = scmp.ne.s32.totalorder %s130, %s132
      %p139 = scmp.eq.s32.totalorder %s54, 1
      %p140 = por %p138, %p139
      %p141 = scmp.ne.s32.totalorder %s132, %s133
      %p142 = scmp.eq.s32.totalorder %s54, 0
      %p143 = por %p141, %p142
      %p144 = scmp.ne.s32.totalorder %s132, %s133
      %p145 = scmp.eq.s32.totalorder %s55, 1
      %p146 = por %p144, %p145
      %p148 = scmp.ne.s32.totalorder %s133, %s147
      %p149 = scmp.eq.s32.totalorder %s55, 0
      %p150 = por %p148, %p149
      %s152 = sadd.s32 %s151, 1
      %p155 = scmp.eq.s32.totalorder %s49, 1
      %p156 = scmp.ne.s32.totalorder %s151, %s153
      %p157 = scmp.eq.s32.totalorder %s49, 0
      %p158 = por %p156, %p157
      %p159 = scmp.ne.s32.totalorder %s151, %s153
      %p160 = scmp.eq.s32.totalorder %s54, 1
      %p161 = por %p159, %p160
      %p162 = scmp.ne.s32.totalorder %s153, %s154
      %p163 = scmp.eq.s32.totalorder %s54, 0
      %p164 = por %p162, %p163
      %p165 = scmp.ne.s32.totalorder %s153, %s154
      %p166 = scmp.eq.s32.totalorder %s55, 1
      %p167 = por %p165, %p166
      %p169 = scmp.ne.s32.totalorder %s154, %s168
      %p170 = scmp.eq.s32.totalorder %s55, 0
      %p171 = por %p169, %p170
      %s173 = sadd.s32 %s172, 1
      %p176 = scmp.eq.s32.totalorder %s49, 1
      %p177 = scmp.ne.s32.totalorder %s172, %s174
      %p178 = scmp.eq.s32.totalorder %s49, 0
      %p179 = por %p177, %p178
      %p180 = scmp.ne.s32.totalorder %s172, %s174
      %p181 = scmp.eq.s32.totalorder %s54, 1
      %p182 = por %p180, %p181
      %p183 = scmp.ne.s32.totalorder %s174, %s175
      %p184 = scmp.eq.s32.totalorder %s54, 0
      %p185 = por %p183, %p184
      %p186 = scmp.ne.s32.totalorder %s174, %s175
      %p187 = scmp.eq.s32.totalorder %s55, 1
      %p188 = por %p186, %p187
      %p190 = scmp.ne.s32.totalorder %s175, %s189
      %p191 = scmp.eq.s32.totalorder %s55, 0
      %p192 = por %p190, %p191
      %s194 = sadd.s32 %s193, 1
      %p197 = scmp.eq.s32.totalorder %s49, 1
      %p198 = scmp.ne.s32.totalorder %s193, %s195
      %p199 = scmp.eq.s32.totalorder %s49, 0
      %p200 = por %p198, %p199
      %p201 = scmp.ne.s32.totalorder %s193, %s195
      %p202 = scmp.eq.s32.totalorder %s54, 1
      %p203 = por %p201, %p202
      %p204 = scmp.ne.s32.totalorder %s195, %s196
      %p205 = scmp.eq.s32.totalorder %s54, 0
      %p206 = por %p204, %p205
      %p207 = scmp.ne.s32.totalorder %s195, %s196
      %p208 = scmp.eq.s32.totalorder %s55, 1
      %p209 = por %p207, %p208
      %p211 = scmp.ne.s32.totalorder %s196, %s210
      %p212 = scmp.eq.s32.totalorder %s55, 0
      %p213 = por %p211, %p212
      %s215 = sadd.s32 %s214, 1
      %p218 = scmp.eq.s32.totalorder %s49, 1
      %p219 = scmp.ne.s32.totalorder %s214, %s216
      %p220 = scmp.eq.s32.totalorder %s49, 0
      %p221 = por %p219, %p220
      %p222 = scmp.ne.s32.totalorder %s214, %s216
      %p223 = scmp.eq.s32.totalorder %s54, 1
      %p224 = por %p222, %p223
      %p225 = scmp.ne.s32.totalorder %s216, %s217
      %p226 = scmp.eq.s32.totalorder %s54, 0
      %p227 = por %p225, %p226
      %p228 = scmp.ne.s32.totalorder %s216, %s217
      %p229 = scmp.eq.s32.totalorder %s55, 1
      %p230 = por %p228, %p229
      %p232 = scmp.ne.s32.totalorder %s217, %s231
      %p233 = scmp.eq.s32.totalorder %s55, 0
      %p234 = por %p232, %p233
      %s236 = sadd.s32 %s235, 1
      %p239 = scmp.eq.s32.totalorder %s49, 1
      %p240 = scmp.ne.s32.totalorder %s235, %s237
      %p241 = scmp.eq.s32.totalorder %s49, 0
      %p242 = por %p240, %p241
      %p243 = scmp.ne.s32.totalorder %s235, %s237
      %p244 = scmp.eq.s32.totalorder %s54, 1
      %p245 = por %p243, %p244
      %p246 = scmp.ne.s32.totalorder %s237, %s238
      %p247 = scmp.eq.s32.totalorder %s54, 0
      %p248 = por %p246, %p247
      %p249 = scmp.ne.s32.totalorder %s237, %s238
      %p250 = scmp.eq.s32.totalorder %s55, 1
      %p251 = por %p249, %p250
      %p253 = scmp.ne.s32.totalorder %s238, %s252
      %p254 = scmp.eq.s32.totalorder %s55, 0
      %p255 = por %p253, %p254
      %s257 = sadd.s32 %s256, 1
      %p260 = scmp.eq.s32.totalorder %s49, 1
      %p261 = scmp.ne.s32.totalorder %s256, %s258
      %p262 = scmp.eq.s32.totalorder %s49, 0
      %p263 = por %p261, %p262
      %p264 = scmp.ne.s32.totalorder %s256, %s258
      %p265 = scmp.eq.s32.totalorder %s54, 1
      %p266 = por %p264, %p265
      %p267 = scmp.ne.s32.totalorder %s258, %s259
      %p268 = scmp.eq.s32.totalorder %s54, 0
      %p269 = por %p267, %p268
      %p270 = scmp.ne.s32.totalorder %s258, %s259
      %p271 = scmp.eq.s32.totalorder %s55, 1
      %p272 = por %p270, %p271
      %p274 = scmp.ne.s32.totalorder %s259, %s273
      %p275 = scmp.eq.s32.totalorder %s55, 0
      %p276 = por %p274, %p275
      %s278 = sadd.s32 %s277, 1
      %p281 = scmp.eq.s32.totalorder %s49, 1
      %p282 = scmp.ne.s32.totalorder %s277, %s279
      %p283 = scmp.eq.s32.totalorder %s49, 0
      %p284 = por %p282, %p283
      %p285 = scmp.ne.s32.totalorder %s277, %s279
      %p286 = scmp.eq.s32.totalorder %s54, 1
      %p287 = por %p285, %p286
      %p288 = scmp.ne.s32.totalorder %s279, %s280
      %p289 = scmp.eq.s32.totalorder %s54, 0
      %p290 = por %p288, %p289
      %p291 = scmp.ne.s32.totalorder %s279, %s280
      %p292 = scmp.eq.s32.totalorder %s55, 1
      %p293 = por %p291, %p292
      %p295 = scmp.ne.s32.totalorder %s280, %s294
      %p296 = scmp.eq.s32.totalorder %s55, 0
      %p297 = por %p295, %p296
      %s299 = sadd.s32 %s298, 1
      %p302 = scmp.eq.s32.totalorder %s49, 1
      %p303 = scmp.ne.s32.totalorder %s298, %s300
      %p304 = scmp.eq.s32.totalorder %s49, 0
      %p305 = por %p303, %p304
      %p306 = scmp.ne.s32.totalorder %s298, %s300
      %p307 = scmp.eq.s32.totalorder %s54, 1
      %p308 = por %p306, %p307
      %p309 = scmp.ne.s32.totalorder %s300, %s301
      %p310 = scmp.eq.s32.totalorder %s54, 0
      %p311 = por %p309, %p310
      %p312 = scmp.ne.s32.totalorder %s300, %s301
      %p313 = scmp.eq.s32.totalorder %s55, 1
      %p314 = por %p312, %p313
      %p316 = scmp.ne.s32.totalorder %s301, %s315
      %p317 = scmp.eq.s32.totalorder %s55, 0
      %p318 = por %p316, %p317
      %s320 = sadd.s32 %s319, 1
      %p323 = scmp.eq.s32.totalorder %s49, 1
      %p324 = scmp.ne.s32.totalorder %s319, %s321
      %p325 = scmp.eq.s32.totalorder %s49, 0
      %p326 = por %p324, %p325
      %p327 = scmp.ne.s32.totalorder %s319, %s321
      %p328 = scmp.eq.s32.totalorder %s54, 1
      %p329 = por %p327, %p328
      %p330 = scmp.ne.s32.totalorder %s321, %s322
      %p331 = scmp.eq.s32.totalorder %s54, 0
      %p332 = por %p330, %p331
      %p333 = scmp.ne.s32.totalorder %s321, %s322
      %p334 = scmp.eq.s32.totalorder %s55, 1
      %p335 = por %p333, %p334
      %p337 = scmp.ne.s32.totalorder %s322, %s336
      %p338 = scmp.eq.s32.totalorder %s55, 0
      %p339 = por %p337, %p338
      %s341 = sadd.s32 %s340, 1
      %p344 = scmp.eq.s32.totalorder %s49, 1
      %p345 = scmp.ne.s32.totalorder %s340, %s342
      %p346 = scmp.eq.s32.totalorder %s49, 0
      %p347 = por %p345, %p346
      %p348 = scmp.ne.s32.totalorder %s340, %s342
      %p349 = scmp.eq.s32.totalorder %s54, 1
      %p350 = por %p348, %p349
      %p351 = scmp.ne.s32.totalorder %s342, %s343
      %p352 = scmp.eq.s32.totalorder %s54, 0
      %p353 = por %p351, %p352
      %p354 = scmp.ne.s32.totalorder %s342, %s343
      %p355 = scmp.eq.s32.totalorder %s55, 1
      %p356 = por %p354, %p355
      %p358 = scmp.ne.s32.totalorder %s343, %s357
      %p359 = scmp.eq.s32.totalorder %s55, 0
      %p360 = por %p358, %p359
      %s362 = sadd.s32 %s361, 1
      %p365 = scmp.eq.s32.totalorder %s49, 1
      %p366 = scmp.ne.s32.totalorder %s361, %s363
      %p367 = scmp.eq.s32.totalorder %s49, 0
      %p368 = por %p366, %p367
      %p369 = scmp.ne.s32.totalorder %s361, %s363
      %p370 = scmp.eq.s32.totalorder %s54, 1
      %p371 = por %p369, %p370
      %p372 = scmp.ne.s32.totalorder %s363, %s364
      %p373 = scmp.eq.s32.totalorder %s54, 0
      %p374 = por %p372, %p373
      %p375 = scmp.ne.s32.totalorder %s363, %s364
      %p376 = scmp.eq.s32.totalorder %s55, 1
      %p377 = por %p375, %p376
      %p379 = scmp.ne.s32.totalorder %s364, %s378
      %p380 = scmp.eq.s32.totalorder %s55, 0
      %p381 = por %p379, %p380
      %s383 = sadd.s32 %s382, 1
      %p386 = scmp.eq.s32.totalorder %s49, 1
      %p387 = scmp.ne.s32.totalorder %s382, %s384
      %p388 = scmp.eq.s32.totalorder %s49, 0
      %p389 = por %p387, %p388
      %p390 = scmp.ne.s32.totalorder %s382, %s384
      %p391 = scmp.eq.s32.totalorder %s54, 1
      %p392 = por %p390, %p391
      %p393 = scmp.ne.s32.totalorder %s384, %s385
      %p394 = scmp.eq.s32.totalorder %s54, 0
      %p395 = por %p393, %p394
      %p396 = scmp.ne.s32.totalorder %s384, %s385
      %p397 = scmp.eq.s32.totalorder %s55, 1
      %p398 = por %p396, %p397
      %p400 = scmp.ne.s32.totalorder %s385, %s399
      %p401 = scmp.eq.s32.totalorder %s55, 0
      %p402 = por %p400, %p401
      %s404 = sadd.s32 %s403, 1
      %p407 = scmp.eq.s32.totalorder %s49, 1
      %p408 = scmp.ne.s32.totalorder %s403, %s405
      %p409 = scmp.eq.s32.totalorder %s49, 0
      %p410 = por %p408, %p409
      %p411 = scmp.ne.s32.totalorder %s403, %s405
      %p412 = scmp.eq.s32.totalorder %s54, 1
      %p413 = por %p411, %p412
      %p414 = scmp.ne.s32.totalorder %s405, %s406
      %p415 = scmp.eq.s32.totalorder %s54, 0
      %p416 = por %p414, %p415
      %p417 = scmp.ne.s32.totalorder %s405, %s406
      %p418 = scmp.eq.s32.totalorder %s55, 1
      %p419 = por %p417, %p418
      %p421 = scmp.ne.s32.totalorder %s406, %s420
      %p422 = scmp.eq.s32.totalorder %s55, 0
      %p423 = por %p421, %p422
      %s425 = sadd.s32 %s424, 1
      %p428 = scmp.eq.s32.totalorder %s49, 1
      %p429 = scmp.ne.s32.totalorder %s424, %s426
      %p430 = scmp.eq.s32.totalorder %s49, 0
      %p431 = por %p429, %p430
      %p432 = scmp.ne.s32.totalorder %s424, %s426
      %p433 = scmp.eq.s32.totalorder %s54, 1
      %p434 = por %p432, %p433
      %p435 = scmp.ne.s32.totalorder %s426, %s427
      %p436 = scmp.eq.s32.totalorder %s54, 0
      %p437 = por %p435, %p436
      %p438 = scmp.ne.s32.totalorder %s426, %s427
      %p439 = scmp.eq.s32.totalorder %s55, 1
      %p440 = por %p438, %p439
      %p442 = scmp.ne.s32.totalorder %s427, %s441
      %p443 = scmp.eq.s32.totalorder %s55, 0
      %p444 = por %p442, %p443
      %s446 = sadd.s32 %s445, 1
      %p449 = scmp.eq.s32.totalorder %s49, 1
      %p450 = scmp.ne.s32.totalorder %s445, %s447
      %p451 = scmp.eq.s32.totalorder %s49, 0
      %p452 = por %p450, %p451
      %p453 = scmp.ne.s32.totalorder %s445, %s447
      %p454 = scmp.eq.s32.totalorder %s54, 1
      %p455 = por %p453, %p454
      %p456 = scmp.ne.s32.totalorder %s447, %s448
      %p457 = scmp.eq.s32.totalorder %s54, 0
      %p458 = por %p456, %p457
      %p459 = scmp.ne.s32.totalorder %s447, %s448
      %p460 = scmp.eq.s32.totalorder %s55, 1
      %p461 = por %p459, %p460
      %p463 = scmp.ne.s32.totalorder %s448, %s462
      %p464 = scmp.eq.s32.totalorder %s55, 0
      %p465 = por %p463, %p464
      %s467 = sadd.s32 %s466, 1
      %p470 = scmp.eq.s32.totalorder %s49, 1
      %p471 = scmp.ne.s32.totalorder %s466, %s468
      %p472 = scmp.eq.s32.totalorder %s49, 0
      %p473 = por %p471, %p472
      %p474 = scmp.ne.s32.totalorder %s466, %s468
      %p475 = scmp.eq.s32.totalorder %s54, 1
      %p476 = por %p474, %p475
      %p477 = scmp.ne.s32.totalorder %s468, %s469
      %p478 = scmp.eq.s32.totalorder %s54, 0
      %p479 = por %p477, %p478
      %p480 = scmp.ne.s32.totalorder %s468, %s469
      %p481 = scmp.eq.s32.totalorder %s55, 1
      %p482 = por %p480, %p481
      %p484 = scmp.ne.s32.totalorder %s469, %s483
      %p485 = scmp.eq.s32.totalorder %s55, 0
      %p486 = por %p484, %p485
      %s488 = sadd.s32 %s487, 1
      %p491 = scmp.eq.s32.totalorder %s49, 1
      %p492 = scmp.ne.s32.totalorder %s487, %s489
      %p493 = scmp.eq.s32.totalorder %s49, 0
      %p494 = por %p492, %p493
      %p495 = scmp.ne.s32.totalorder %s487, %s489
      %p496 = scmp.eq.s32.totalorder %s54, 1
      %p497 = por %p495, %p496
      %p498 = scmp.ne.s32.totalorder %s489, %s490
      %p499 = scmp.eq.s32.totalorder %s54, 0
      %p500 = por %p498, %p499
      %p501 = scmp.ne.s32.totalorder %s489, %s490
      %p502 = scmp.eq.s32.totalorder %s55, 1
      %p503 = por %p501, %p502
      %p505 = scmp.ne.s32.totalorder %s490, %s504
      %p506 = scmp.eq.s32.totalorder %s55, 0
      %p507 = por %p505, %p506
      %s509 = sadd.s32 %s508, 1
      %p512 = scmp.eq.s32.totalorder %s49, 1
      %p513 = scmp.ne.s32.totalorder %s508, %s510
      %p514 = scmp.eq.s32.totalorder %s49, 0
      %p515 = por %p513, %p514
      %p516 = scmp.ne.s32.totalorder %s508, %s510
      %p517 = scmp.eq.s32.totalorder %s54, 1
      %p518 = por %p516, %p517
      %p519 = scmp.ne.s32.totalorder %s510, %s511
      %p520 = scmp.eq.s32.totalorder %s54, 0
      %p521 = por %p519, %p520
      %p522 = scmp.ne.s32.totalorder %s510, %s511
      %p523 = scmp.eq.s32.totalorder %s55, 1
      %p524 = por %p522, %p523
      %p526 = scmp.ne.s32.totalorder %s511, %s525
      %p527 = scmp.eq.s32.totalorder %s55, 0
      %p528 = por %p526, %p527
      %s530 = sadd.s32 %s529, 1
      %p533 = scmp.eq.s32.totalorder %s49, 1
      %p534 = scmp.ne.s32.totalorder %s529, %s531
      %p535 = scmp.eq.s32.totalorder %s49, 0
      %p536 = por %p534, %p535
      %p537 = scmp.ne.s32.totalorder %s529, %s531
      %p538 = scmp.eq.s32.totalorder %s54, 1
      %p539 = por %p537, %p538
      %p540 = scmp.ne.s32.totalorder %s531, %s532
      %p541 = scmp.eq.s32.totalorder %s54, 0
      %p542 = por %p540, %p541
      %p543 = scmp.ne.s32.totalorder %s531, %s532
      %p544 = scmp.eq.s32.totalorder %s55, 1
      %p545 = por %p543, %p544
      %p547 = scmp.ne.s32.totalorder %s532, %s546
      %p548 = scmp.eq.s32.totalorder %s55, 0
      %p549 = por %p547, %p548
      %s551 = sadd.s32 %s550, 1
      %p554 = scmp.eq.s32.totalorder %s49, 1
      %p555 = scmp.ne.s32.totalorder %s550, %s552
      %p556 = scmp.eq.s32.totalorder %s49, 0
      %p557 = por %p555, %p556
      %p558 = scmp.ne.s32.totalorder %s550, %s552
      %p559 = scmp.eq.s32.totalorder %s54, 1
      %p560 = por %p558, %p559
      %p561 = scmp.ne.s32.totalorder %s552, %s553
      %p562 = scmp.eq.s32.totalorder %s54, 0
      %p563 = por %p561, %p562
      %p564 = scmp.ne.s32.totalorder %s552, %s553
      %p565 = scmp.eq.s32.totalorder %s55, 1
      %p566 = por %p564, %p565
      %p568 = scmp.ne.s32.totalorder %s553, %s567
      %p569 = scmp.eq.s32.totalorder %s55, 0
      %p570 = por %p568, %p569
      %s571 = ssub.s32 %s49, %s56
      %p572 = scmp.eq.s32.totalorder %s571, 0
      %s574 = sadd.s32 %s573, 1
      %s575 = scalar_select %p572, %s573, %s574
      %p578 = pneg %p572
      %p579 = scmp.eq.s32.totalorder %s49, 1
      %p580 = por %p578, %p579
      %p581 = scmp.ne.s32.totalorder %s573, %s576
      %p582 = scmp.eq.s32.totalorder %s49, 0
      %p583 = por %p581, %p582
      %p584 = scmp.ne.s32.totalorder %s573, %s576
      %p585 = scmp.eq.s32.totalorder %s54, 1
      %p586 = por %p584, %p585
      %p587 = scmp.ne.s32.totalorder %s576, %s577
      %p588 = scmp.eq.s32.totalorder %s54, 0
      %p589 = por %p587, %p588
      %p590 = scmp.ne.s32.totalorder %s576, %s577
      %p591 = scmp.eq.s32.totalorder %s55, 1
      %p592 = por %p590, %p591
      %p594 = scmp.ne.s32.totalorder %s577, %s593
      %p595 = scmp.eq.s32.totalorder %s55, 0
      %p596 = por %p594, %p595
      %s597 = ssub.s32 %s49, %s56
      %p598 = scmp.eq.s32.totalorder %s597, 0
      %s600 = sadd.s32 %s599, 1
      %s601 = scalar_select %p598, %s599, %s600
      %p604 = pneg %p598
      %p605 = scmp.eq.s32.totalorder %s49, 1
      %p606 = por %p604, %p605
      %p607 = scmp.ne.s32.totalorder %s599, %s602
      %p608 = scmp.eq.s32.totalorder %s49, 0
      %p609 = por %p607, %p608
      %p610 = scmp.ne.s32.totalorder %s599, %s602
      %p611 = scmp.eq.s32.totalorder %s54, 1
      %p612 = por %p610, %p611
      %p613 = scmp.ne.s32.totalorder %s602, %s603
      %p614 = scmp.eq.s32.totalorder %s54, 0
      %p615 = por %p613, %p614
      %p616 = scmp.ne.s32.totalorder %s602, %s603
      %p617 = scmp.eq.s32.totalorder %s55, 1
      %p618 = por %p616, %p617
      %p620 = scmp.ne.s32.totalorder %s603, %s619
      %p621 = scmp.eq.s32.totalorder %s55, 0
      %p622 = por %p620, %p621
      %s623 = ssub.s32 %s49, %s56
      %p624 = scmp.eq.s32.totalorder %s623, 0
      %s626 = sadd.s32 %s625, 1
      %s627 = scalar_select %p624, %s625, %s626
      %p630 = pneg %p624
      %p631 = scmp.eq.s32.totalorder %s49, 1
      %p632 = por %p630, %p631
      %p633 = scmp.ne.s32.totalorder %s625, %s628
      %p634 = scmp.eq.s32.totalorder %s49, 0
      %p635 = por %p633, %p634
      %p636 = scmp.ne.s32.totalorder %s625, %s628
      %p637 = scmp.eq.s32.totalorder %s54, 1
      %p638 = por %p636, %p637
      %p639 = scmp.ne.s32.totalorder %s628, %s629
      %p640 = scmp.eq.s32.totalorder %s54, 0
      %p641 = por %p639, %p640
      %p642 = scmp.ne.s32.totalorder %s628, %s629
      %p643 = scmp.eq.s32.totalorder %s55, 1
      %p644 = por %p642, %p643
      %p646 = scmp.ne.s32.totalorder %s629, %s645
      %p647 = scmp.eq.s32.totalorder %s55, 0
      %p648 = por %p646, %p647
      %p649 = scmp.le.s32.totalorder 1, %s49
      %p650 = scmp.lt.s32.totalorder %s49, 3
      %p651 = pnand %p649, %p650
      %p652 = pneg %p651
      // Predicated region
      $region9: #{tpu_custom_call.1} parent=5 // pred_check
        _
      $region10: #{tpu_custom_call.1} parent=5 // pred_check_branch
        %654 = sbr.rel (%p651) target = $region12
      $region11: #{tpu_custom_call.1} parent=5 // pred_region
        %s655 = ssub.s32 %s49, 1
        // Predicated region
        $region13: #{tpu_custom_call.1} parent=11 // pred_check
          %p656 = pneg %p122
        $region14: #{tpu_custom_call.1} parent=11 // pred_check_branch
          %658 = sbr.rel (%p656) target = $region16
        $region15: #{tpu_custom_call.1} parent=11 // pred_region
          %s660 = ssub.s32 64, 64
          %661 = vsyncadd [#allocation6], %s660
          %s663 = sshll.u32 [#allocation5], 4
          %s664 = int_to_ptr.vmem [resolvable:$true] %s663
          %666 = dma.hbm_to_vmem [thread:$0]  %s2, 64, %s664, [#allocation6]
        $region16: #{tpu_custom_call.1} parent=11 // pred_fallthru
          _
        // Predicated region
        $region17: #{tpu_custom_call.1} parent=11 // pred_check
          %p667 = pneg %p143
        $region18: #{tpu_custom_call.1} parent=11 // pred_check_branch
          %669 = sbr.rel (%p667) target = $region20
        $region19: #{tpu_custom_call.1} parent=11 // pred_region
          %s671 = ssub.s32 64, 64
          %672 = vsyncadd [#allocation6], %s671
          %s674 = sshll.u32 [#allocation7], 4
          %s675 = int_to_ptr.vmem [resolvable:$true] %s674
          %677 = dma.hbm_to_vmem [thread:$0]  %s3, 64, %s675, [#allocation6]
        $region20: #{tpu_custom_call.1} parent=11 // pred_fallthru
          _
        // Predicated region
        $region21: #{tpu_custom_call.1} parent=11 // pred_check
          %p678 = pneg %p164
        $region22: #{tpu_custom_call.1} parent=11 // pred_check_branch
          %680 = sbr.rel (%p678) target = $region24
        $region23: #{tpu_custom_call.1} parent=11 // pred_region
          _
        $region24: #{tpu_custom_call.1} parent=11 // pred_fallthru
          _
        // Predicated region
        $region25: #{tpu_custom_call.1} parent=11 // pred_check
          %p681 = pneg %p185
        $region26: #{tpu_custom_call.1} parent=11 // pred_check_branch
          %683 = sbr.rel (%p681) target = $region28
        $region27: #{tpu_custom_call.1} parent=11 // pred_region
          %s685 = ssub.s32 16, 16
          %686 = vsyncadd [#allocation9], %s685
          %s688 = sshll.u32 [#allocation8], 4
          %s689 = int_to_ptr.vmem [resolvable:$true] %s688
          %691 = dma.hbm_to_vmem [thread:$0]  %s5, 16, %s689, [#allocation9]
        $region28: #{tpu_custom_call.1} parent=11 // pred_fallthru
          _
        // Predicated region
        $region29: #{tpu_custom_call.1} parent=11 // pred_check
          %p692 = pneg %p206
        $region30: #{tpu_custom_call.1} parent=11 // pred_check_branch
          %694 = sbr.rel (%p692) target = $region32
        $region31: #{tpu_custom_call.1} parent=11 // pred_region
          _
        $region32: #{tpu_custom_call.1} parent=11 // pred_fallthru
          _
        // Predicated region
        $region33: #{tpu_custom_call.1} parent=11 // pred_check
          %p695 = pneg %p227
        $region34: #{tpu_custom_call.1} parent=11 // pred_check_branch
          %697 = sbr.rel (%p695) target = $region36
        $region35: #{tpu_custom_call.1} parent=11 // pred_region
          %s699 = ssub.s32 16, 16
          %700 = vsyncadd [#allocation9], %s699
          %s702 = sshll.u32 [#allocation10], 4
          %s703 = int_to_ptr.vmem [resolvable:$true] %s702
          %705 = dma.hbm_to_vmem [thread:$0]  %s7, 16, %s703, [#allocation9]
        $region36: #{tpu_custom_call.1} parent=11 // pred_fallthru
          _
        // Predicated region
        $region37: #{tpu_custom_call.1} parent=11 // pred_check
          %p706 = pneg %p248
        $region38: #{tpu_custom_call.1} parent=11 // pred_check_branch
          %708 = sbr.rel (%p706) target = $region40
        $region39: #{tpu_custom_call.1} parent=11 // pred_region
          %s710 = ssub.s32 256, 256
          %711 = vsyncadd [#allocation12], %s710
          %s712 = sshll.u32 [#allocation11], 4
          %s713 = int_to_ptr.vmem [resolvable:$true] %s712
          %718 = dma.hbm_to_vmem [thread:$0]  %s8, 256, %s713, [#allocation12], 64, 64, 4
        $region40: #{tpu_custom_call.1} parent=11 // pred_fallthru
          _
        // Predicated region
        $region41: #{tpu_custom_call.1} parent=11 // pred_check
          %p719 = pneg %p269
        $region42: #{tpu_custom_call.1} parent=11 // pred_check_branch
          %721 = sbr.rel (%p719) target = $region44
        $region43: #{tpu_custom_call.1} parent=11 // pred_region
          %s723 = ssub.s32 16, 16
          %724 = vsyncadd [#allocation12], %s723
          %s726 = sshll.u32 [#allocation13], 4
          %s727 = int_to_ptr.vmem [resolvable:$true] %s726
          %729 = dma.hbm_to_vmem [thread:$0]  %s9, 16, %s727, [#allocation12]
        $region44: #{tpu_custom_call.1} parent=11 // pred_fallthru
          _
        // Predicated region
        $region45: #{tpu_custom_call.1} parent=11 // pred_check
          %p730 = pneg %p290
        $region46: #{tpu_custom_call.1} parent=11 // pred_check_branch
          %732 = sbr.rel (%p730) target = $region48
        $region47: #{tpu_custom_call.1} parent=11 // pred_region
          _
        $region48: #{tpu_custom_call.1} parent=11 // pred_fallthru
          _
        // Predicated region
        $region49: #{tpu_custom_call.1} parent=11 // pred_check
          %p733 = pneg %p311
        $region50: #{tpu_custom_call.1} parent=11 // pred_check_branch
          %735 = sbr.rel (%p733) target = $region52
        $region51: #{tpu_custom_call.1} parent=11 // pred_region
          %s737 = ssub.s32 16, 16
          %738 = vsyncadd [#allocation15], %s737
          %s740 = sshll.u32 [#allocation14], 4
          %s741 = int_to_ptr.vmem [resolvable:$true] %s740
          %743 = dma.hbm_to_vmem [thread:$0]  %s11, 16, %s741, [#allocation15]
        $region52: #{tpu_custom_call.1} parent=11 // pred_fallthru
          _
        // Predicated region
        $region53: #{tpu_custom_call.1} parent=11 // pred_check
          %p744 = pneg %p332
        $region54: #{tpu_custom_call.1} parent=11 // pred_check_branch
          %746 = sbr.rel (%p744) target = $region56
        $region55: #{tpu_custom_call.1} parent=11 // pred_region
          %s748 = ssub.s32 256, 256
          %749 = vsyncadd [#allocation15], %s748
          %s750 = sshll.u32 [#allocation16], 4
          %s751 = int_to_ptr.vmem [resolvable:$true] %s750
          %756 = dma.hbm_to_vmem [thread:$0]  %s12, 256, %s751, [#allocation15], 64, 64, 4
        $region56: #{tpu_custom_call.1} parent=11 // pred_fallthru
          _
        // Predicated region
        $region57: #{tpu_custom_call.1} parent=11 // pred_check
          %p757 = pneg %p353
        $region58: #{tpu_custom_call.1} parent=11 // pred_check_branch
          %759 = sbr.rel (%p757) target = $region60
        $region59: #{tpu_custom_call.1} parent=11 // pred_region
          %s761 = ssub.s32 16, 16
          %762 = vsyncadd [#allocation18], %s761
          %s764 = sshll.u32 [#allocation17], 4
          %s765 = int_to_ptr.vmem [resolvable:$true] %s764
          %767 = dma.hbm_to_vmem [thread:$0]  %s13, 16, %s765, [#allocation18]
        $region60: #{tpu_custom_call.1} parent=11 // pred_fallthru
          _
        // Predicated region
        $region61: #{tpu_custom_call.1} parent=11 // pred_check
          %p768 = pneg %p374
        $region62: #{tpu_custom_call.1} parent=11 // pred_check_branch
          %770 = sbr.rel (%p768) target = $region64
        $region63: #{tpu_custom_call.1} parent=11 // pred_region
          %s772 = ssub.s32 16, 16
          %773 = vsyncadd [#allocation18], %s772
          %s775 = sshll.u32 [#allocation19], 4
          %s776 = int_to_ptr.vmem [resolvable:$true] %s775
          %778 = dma.hbm_to_vmem [thread:$0]  %s14, 16, %s776, [#allocation18]
        $region64: #{tpu_custom_call.1} parent=11 // pred_fallthru
          _
        // Predicated region
        $region65: #{tpu_custom_call.1} parent=11 // pred_check
          %p779 = pneg %p395
        $region66: #{tpu_custom_call.1} parent=11 // pred_check_branch
          %781 = sbr.rel (%p779) target = $region68
        $region67: #{tpu_custom_call.1} parent=11 // pred_region
          %s783 = ssub.s32 16, 16
          %784 = vsyncadd [#allocation21], %s783
          %s786 = sshll.u32 [#allocation20], 4
          %s787 = int_to_ptr.vmem [resolvable:$true] %s786
          %789 = dma.hbm_to_vmem [thread:$0]  %s15, 16, %s787, [#allocation21]
        $region68: #{tpu_custom_call.1} parent=11 // pred_fallthru
          _
        // Predicated region
        $region69: #{tpu_custom_call.1} parent=11 // pred_check
          %p790 = pneg %p416
        $region70: #{tpu_custom_call.1} parent=11 // pred_check_branch
          %792 = sbr.rel (%p790) target = $region72
        $region71: #{tpu_custom_call.1} parent=11 // pred_region
          %s794 = ssub.s32 16, 16
          %795 = vsyncadd [#allocation21], %s794
          %s797 = sshll.u32 [#allocation22], 4
          %s798 = int_to_ptr.vmem [resolvable:$true] %s797
          %800 = dma.hbm_to_vmem [thread:$0]  %s16, 16, %s798, [#allocation21]
        $region72: #{tpu_custom_call.1} parent=11 // pred_fallthru
          _
        // Predicated region
        $region73: #{tpu_custom_call.1} parent=11 // pred_check
          %p801 = pneg %p437
        $region74: #{tpu_custom_call.1} parent=11 // pred_check_branch
          %803 = sbr.rel (%p801) target = $region76
        $region75: #{tpu_custom_call.1} parent=11 // pred_region
          %s805 = ssub.s32 16, 16
          %806 = vsyncadd [#allocation24], %s805
          %s808 = sshll.u32 [#allocation23], 4
          %s809 = int_to_ptr.vmem [resolvable:$true] %s808
          %811 = dma.hbm_to_vmem [thread:$0]  %s17, 16, %s809, [#allocation24]
        $region76: #{tpu_custom_call.1} parent=11 // pred_fallthru
          _
        // Predicated region
        $region77: #{tpu_custom_call.1} parent=11 // pred_check
          %p812 = pneg %p458
        $region78: #{tpu_custom_call.1} parent=11 // pred_check_branch
          %814 = sbr.rel (%p812) target = $region80
        $region79: #{tpu_custom_call.1} parent=11 // pred_region
          %s816 = ssub.s32 16, 16
          %817 = vsyncadd [#allocation24], %s816
          %s819 = sshll.u32 [#allocation25], 4
          %s820 = int_to_ptr.vmem [resolvable:$true] %s819
          %822 = dma.hbm_to_vmem [thread:$0]  %s18, 16, %s820, [#allocation24]
        $region80: #{tpu_custom_call.1} parent=11 // pred_fallthru
          _
        // Predicated region
        $region81: #{tpu_custom_call.1} parent=11 // pred_check
          %p823 = pneg %p479
        $region82: #{tpu_custom_call.1} parent=11 // pred_check_branch
          %825 = sbr.rel (%p823) target = $region84
        $region83: #{tpu_custom_call.1} parent=11 // pred_region
          _
        $region84: #{tpu_custom_call.1} parent=11 // pred_fallthru
          _
        // Predicated region
        $region85: #{tpu_custom_call.1} parent=11 // pred_check
          %p826 = pneg %p500
        $region86: #{tpu_custom_call.1} parent=11 // pred_check_branch
          %828 = sbr.rel (%p826) target = $region88
        $region87: #{tpu_custom_call.1} parent=11 // pred_region
          _
        $region88: #{tpu_custom_call.1} parent=11 // pred_fallthru
          _
        // Predicated region
        $region89: #{tpu_custom_call.1} parent=11 // pred_check
          %p829 = pneg %p521
        $region90: #{tpu_custom_call.1} parent=11 // pred_check_branch
          %831 = sbr.rel (%p829) target = $region92
        $region91: #{tpu_custom_call.1} parent=11 // pred_region
          _
        $region92: #{tpu_custom_call.1} parent=11 // pred_fallthru
          _
        // Predicated region
        $region93: #{tpu_custom_call.1} parent=11 // pred_check
          %p832 = pneg %p542
        $region94: #{tpu_custom_call.1} parent=11 // pred_check_branch
          %834 = sbr.rel (%p832) target = $region96
        $region95: #{tpu_custom_call.1} parent=11 // pred_region
          _
        $region96: #{tpu_custom_call.1} parent=11 // pred_fallthru
          _
        // Predicated region
        $region97: #{tpu_custom_call.1} parent=11 // pred_check
          %p835 = pneg %p563
        $region98: #{tpu_custom_call.1} parent=11 // pred_check_branch
          %837 = sbr.rel (%p835) target = $region100
        $region99: #{tpu_custom_call.1} parent=11 // pred_region
          _
        $region100: #{tpu_custom_call.1} parent=11 // pred_fallthru
          _
      $region12: #{tpu_custom_call.1} parent=5 // pred_fallthru
        _
      %p838 = scmp.lt.s32.totalorder %s49, 2
      // Predicated region
      $region101: #{tpu_custom_call.1} parent=5 // pred_check
        %p839 = pneg %p838
      $region102: #{tpu_custom_call.1} parent=5 // pred_check_branch
        %841 = sbr.rel (%p839) target = $region104
      $region103: #{tpu_custom_call.1} parent=5 // pred_region
        // Predicated region
        $region105: #{tpu_custom_call.1} parent=103 // pred_check
          %p842 = pneg %p69
        $region106: #{tpu_custom_call.1} parent=103 // pred_check_branch
          %844 = sbr.rel (%p842) target = $region108
        $region107: #{tpu_custom_call.1} parent=103 // pred_region
          %s845 = sand.u32 %s59, 1
          %s846 = scalar_lea.sflag [#allocation3], %s845
          %s847 = sand.u32 %s59, 1
          %s848 = smul.addr %s847, 4
          %s849 = scalar_lea.vmem [#allocation2], %s848
          %s851 = ssub.s32 64, 64
          %852 = vsyncadd %s846, %s851
          %s853 = smul.addr %s49, 64
          %s854 = scalar_lea.hbm %s0, %s853
          %s856 = sshll.u32 %s849, 4
          %s857 = int_to_ptr.vmem [resolvable:$true] %s856
          %859 = dma.hbm_to_vmem [thread:$0]  %s854, 64, %s857, %s846
        $region108: #{tpu_custom_call.1} parent=103 // pred_fallthru
          _
        // Predicated region
        $region109: #{tpu_custom_call.1} parent=103 // pred_check
          %p860 = pneg %p95
        $region110: #{tpu_custom_call.1} parent=103 // pred_check_branch
          %862 = sbr.rel (%p860) target = $region112
        $region111: #{tpu_custom_call.1} parent=103 // pred_region
          %p863 = scmp.lt.s32.totalorder %s49, 1
          %s864 = scalar_select %p863, %s49, 1
          %s865 = smul.addr %s864, 2
          %s866 = smul.addr %s865, 4
          %s867 = scalar_lea.vmem %s1, %s866
        $region112: #{tpu_custom_call.1} parent=103 // pred_fallthru
          _
      $region104: #{tpu_custom_call.1} parent=5 // pred_fallthru
        _
      %p868 = scmp.le.s32.totalorder 1, %s49
      %p869 = scmp.lt.s32.totalorder %s49, 3
      %p870 = pnand %p868, %p869
      %p871 = pneg %p870
      // Predicated region
      $region113: #{tpu_custom_call.1} parent=5 // pred_check
        _
      $region114: #{tpu_custom_call.1} parent=5 // pred_check_branch
        %873 = sbr.rel (%p870) target = $region116
      $region115: #{tpu_custom_call.1} parent=5 // pred_region
        %s874 = ssub.s32 %s49, 1
        %s875 = sand.u32 %s62, 1
        %s876 = scalar_lea.sflag [#allocation3], %s875
        %s877 = sand.u32 %s62, 1
        %s878 = smul.addr %s877, 4
        %s879 = scalar_lea.vmem [#allocation2], %s878
        // Predicated region
        $region117: #{tpu_custom_call.1} parent=115 // pred_check
          %p880 = pneg %p75
        $region118: #{tpu_custom_call.1} parent=115 // pred_check_branch
          %882 = sbr.rel (%p880) target = $region120
        $region119: #{tpu_custom_call.1} parent=115 // pred_region
          %883 = dma.done %s876, 64
        $region120: #{tpu_custom_call.1} parent=115 // pred_fallthru
          _
        // Predicated region
        $region121: #{tpu_custom_call.1} parent=115 // pred_check
          %p884 = pneg %p122
        $region122: #{tpu_custom_call.1} parent=115 // pred_check_branch
          %886 = sbr.rel (%p884) target = $region124
        $region123: #{tpu_custom_call.1} parent=115 // pred_region
          %887 = dma.done [#allocation6], 64
        $region124: #{tpu_custom_call.1} parent=115 // pred_fallthru
          _
        // Predicated region
        $region125: #{tpu_custom_call.1} parent=115 // pred_check
          %p888 = pneg %p143
        $region126: #{tpu_custom_call.1} parent=115 // pred_check_branch
          %890 = sbr.rel (%p888) target = $region128
        $region127: #{tpu_custom_call.1} parent=115 // pred_region
          %891 = dma.done [#allocation6], 64
        $region128: #{tpu_custom_call.1} parent=115 // pred_fallthru
          _
        // Predicated region
        $region129: #{tpu_custom_call.1} parent=115 // pred_check
          %p892 = pneg %p185
        $region130: #{tpu_custom_call.1} parent=115 // pred_check_branch
          %894 = sbr.rel (%p892) target = $region132
        $region131: #{tpu_custom_call.1} parent=115 // pred_region
          %895 = dma.done [#allocation9], 16
        $region132: #{tpu_custom_call.1} parent=115 // pred_fallthru
          _
        // Predicated region
        $region133: #{tpu_custom_call.1} parent=115 // pred_check
          %p896 = pneg %p227
        $region134: #{tpu_custom_call.1} parent=115 // pred_check_branch
          %898 = sbr.rel (%p896) target = $region136
        $region135: #{tpu_custom_call.1} parent=115 // pred_region
          %899 = dma.done [#allocation9], 16
        $region136: #{tpu_custom_call.1} parent=115 // pred_fallthru
          _
        // Predicated region
        $region137: #{tpu_custom_call.1} parent=115 // pred_check
          %p900 = pneg %p248
        $region138: #{tpu_custom_call.1} parent=115 // pred_check_branch
          %902 = sbr.rel (%p900) target = $region140
        $region139: #{tpu_custom_call.1} parent=115 // pred_region
          %903 = dma.done [#allocation12], 256
        $region140: #{tpu_custom_call.1} parent=115 // pred_fallthru
          _
        // Predicated region
        $region141: #{tpu_custom_call.1} parent=115 // pred_check
          %p904 = pneg %p269
        $region142: #{tpu_custom_call.1} parent=115 // pred_check_branch
          %906 = sbr.rel (%p904) target = $region144
        $region143: #{tpu_custom_call.1} parent=115 // pred_region
          %907 = dma.done [#allocation12], 16
        $region144: #{tpu_custom_call.1} parent=115 // pred_fallthru
          _
        // Predicated region
        $region145: #{tpu_custom_call.1} parent=115 // pred_check
          %p908 = pneg %p311
        $region146: #{tpu_custom_call.1} parent=115 // pred_check_branch
          %910 = sbr.rel (%p908) target = $region148
        $region147: #{tpu_custom_call.1} parent=115 // pred_region
          %911 = dma.done [#allocation15], 16
        $region148: #{tpu_custom_call.1} parent=115 // pred_fallthru
          _
        // Predicated region
        $region149: #{tpu_custom_call.1} parent=115 // pred_check
          %p912 = pneg %p332
        $region150: #{tpu_custom_call.1} parent=115 // pred_check_branch
          %914 = sbr.rel (%p912) target = $region152
        $region151: #{tpu_custom_call.1} parent=115 // pred_region
          %915 = dma.done [#allocation15], 256
        $region152: #{tpu_custom_call.1} parent=115 // pred_fallthru
          _
        // Predicated region
        $region153: #{tpu_custom_call.1} parent=115 // pred_check
          %p916 = pneg %p353
        $region154: #{tpu_custom_call.1} parent=115 // pred_check_branch
          %918 = sbr.rel (%p916) target = $region156
        $region155: #{tpu_custom_call.1} parent=115 // pred_region
          %919 = dma.done [#allocation18], 16
        $region156: #{tpu_custom_call.1} parent=115 // pred_fallthru
          _
        // Predicated region
        $region157: #{tpu_custom_call.1} parent=115 // pred_check
          %p920 = pneg %p374
        $region158: #{tpu_custom_call.1} parent=115 // pred_check_branch
          %922 = sbr.rel (%p920) target = $region160
        $region159: #{tpu_custom_call.1} parent=115 // pred_region
          %923 = dma.done [#allocation18], 16
        $region160: #{tpu_custom_call.1} parent=115 // pred_fallthru
          _
        // Predicated region
        $region161: #{tpu_custom_call.1} parent=115 // pred_check
          %p924 = pneg %p395
        $region162: #{tpu_custom_call.1} parent=115 // pred_check_branch
          %926 = sbr.rel (%p924) target = $region164
        $region163: #{tpu_custom_call.1} parent=115 // pred_region
          %927 = dma.done [#allocation21], 16
        $region164: #{tpu_custom_call.1} parent=115 // pred_fallthru
          _
        // Predicated region
        $region165: #{tpu_custom_call.1} parent=115 // pred_check
          %p928 = pneg %p416
        $region166: #{tpu_custom_call.1} parent=115 // pred_check_branch
          %930 = sbr.rel (%p928) target = $region168
        $region167: #{tpu_custom_call.1} parent=115 // pred_region
          %931 = dma.done [#allocation21], 16
        $region168: #{tpu_custom_call.1} parent=115 // pred_fallthru
          _
        // Predicated region
        $region169: #{tpu_custom_call.1} parent=115 // pred_check
          %p932 = pneg %p437
        $region170: #{tpu_custom_call.1} parent=115 // pred_check_branch
          %934 = sbr.rel (%p932) target = $region172
        $region171: #{tpu_custom_call.1} parent=115 // pred_region
          %935 = dma.done [#allocation24], 16
        $region172: #{tpu_custom_call.1} parent=115 // pred_fallthru
          _
        // Predicated region
        $region173: #{tpu_custom_call.1} parent=115 // pred_check
          %p936 = pneg %p458
        $region174: #{tpu_custom_call.1} parent=115 // pred_check_branch
          %938 = sbr.rel (%p936) target = $region176
        $region175: #{tpu_custom_call.1} parent=115 // pred_region
          %939 = dma.done [#allocation24], 16
        $region176: #{tpu_custom_call.1} parent=115 // pred_fallthru
          _
        %s940 = sand.u32 %s62, 1
        %s941 = scalar_lea.sflag [#allocation3], %s940
        %s942 = sand.u32 %s62, 1
        %s943 = smul.addr %s942, 4
        %s944 = scalar_lea.vmem [#allocation2], %s943
        %p945 = pneg %p75
        %p946 = pneg %p72
        %p947 = scmp.lt.s32.totalorder %s54, 1
        %s948 = scalar_select %p947, %s54, 1
        %s949 = smul.addr %s948, 2
        %s950 = smul.addr %s949, 4
        %s951 = scalar_lea.vmem %s1, %s950
        %p952 = pneg %p101
        %p953 = pneg %p98
        %p954 = pneg %p122
        %p955 = pneg %p119
        %p956 = pneg %p143
        %p957 = pneg %p140
        %p958 = pneg %p164
        %p959 = pneg %p161
        %p960 = pneg %p185
        %p961 = pneg %p182
        %p962 = pneg %p206
        %p963 = pneg %p203
        %p964 = pneg %p227
        %p965 = pneg %p224
        %p966 = pneg %p248
        %p967 = pneg %p245
        %p968 = pneg %p269
        %p969 = pneg %p266
        %p970 = pneg %p290
        %p971 = pneg %p287
        %p972 = pneg %p311
        %p973 = pneg %p308
        %p974 = pneg %p332
        %p975 = pneg %p329
        %p976 = pneg %p353
        %p977 = pneg %p350
        %p978 = pneg %p374
        %p979 = pneg %p371
        %p980 = pneg %p395
        %p981 = pneg %p392
        %p982 = pneg %p416
        %p983 = pneg %p413
        %p984 = pneg %p437
        %p985 = pneg %p434
        %p986 = pneg %p458
        %p987 = pneg %p455
        %p988 = pneg %p479
        %p989 = pneg %p476
        %p990 = pneg %p500
        %p991 = pneg %p497
        %p992 = pneg %p521
        %p993 = pneg %p518
        %p994 = pneg %p542
        %p995 = pneg %p539
        %p996 = pneg %p563
        %p997 = pneg %p560
        %p998 = pneg %p589
        %p999 = pneg %p586
        %s1000 = sand.u32 %s576, 1
        %s1001 = scalar_lea.sflag [#allocation4], %s1000
        %s1002 = sand.u32 %s576, 1
        %s1003 = smul.addr %s1002, 8
        %s1004 = scalar_lea.vmem [#allocation26], %s1003
        %p1005 = pneg %p615
        %p1006 = pneg %p612
        %s1007 = sand.u32 %s54, 1
        %s1008 = scalar_lea.sflag [#allocation28], %s1007
        %s1009 = sand.u32 %s602, 1
        %s1010 = smul.addr %s1009, 16
        %s1011 = scalar_lea.vmem [#allocation27], %s1010
        %p1012 = pneg %p641
        %p1013 = pneg %p638
        %s1014 = sand.u32 %s54, 1
        %s1015 = scalar_lea.sflag [#allocation28], %s1014
        %s1016 = sand.u32 %s628, 1
        %s1017 = smul.addr %s1016, 16
        %s1018 = scalar_lea.vmem [#allocation29], %s1017
        %p1019 = scmp.lt.s32.totalorder %s54, 1
        %s1020 = scalar_select %p1019, %s54, 1
        %s1021 = smul.addr %s1020, 2
        %s1022 = smul.addr %s1021, 4
        %s1023 = scalar_lea.vmem %s1, %s1022
        %v1025 = vld [vmem:[%s879] sm:$0xf]
        %v1026 = vld [vmem:[%s1023] sm:$0xf]
        %v1027 = vld [vmem:[%s1023 + $0x4] sm:$0xf]
        %v1028 = vunpack.c.l.bf16 %v1025
        %v1029 = vld [vmem:[%s4] sm:$0xf]
        %v1030 = vld [vmem:[%s4 + $0x4] sm:$0xf]
        %v1031 = vld [vmem:[%s4 + $0x8] sm:$0xf]
        %v1032 = vld [vmem:[%s4 + $0xc] sm:$0xf]
        %v1033 = vld [vmem:[#allocation8] sm:$0x1]
        %v1035 = vlaneseq
        %v1036 = vshrl.u32 %v1035, 7
        %v1037 = vsub.s32 0, %v1036
        %v1038 = vrot.slane %v1033, %v1037
        %v1044 = vunpack.c.l.b16 %v1029
        %v1045 = vunpack.c.l.b16 %v1030
        %v1046 = vunpack.c.l.b16 %v1031
        %v1047 = vunpack.c.l.b16 %v1032
        %v1048 = vpack.c.b16 %v1045, %v1044
        %v1049 = vpack.c.b16 %v1047, %v1046
        %vm1052 = vcmask 261120
        %v1054 = vsel %vm1052, %v1025, 0
        %1056 = vmatprep.subr.bf16.mxu0 0
        %1057 = vmatpush1.bf16.msra.mxu0 0
        %1058 = vmatprep.subr.bf16.mxu0 0
        %1059 = vmatpush1.bf16.msra.mxu0 0
        %1060 = vmatprep.subr.bf16.mxu0 0
        %1061 = vmatpush1.bf16.msra.mxu0 0
        %1062 = vmatprep.subr.bf16.mxu0 0
        %1063 = vmatpush1.bf16.msra.mxu0 0
        %1064 = vmatprep.subr.bf16.mxu0 0
        %1065 = vmatpush1.bf16.msra.mxu0 0
        %1066 = vmatprep.subr.bf16.mxu0 0
        %1067 = vmatpush1.bf16.msra.mxu0 0
        %1068 = vmatprep.subr.bf16.mxu0 0
        %1069 = vmatpush1.bf16.msra.mxu0 %v1049
        %1070 = vmatprep.subr.bf16.mxu0 0
        %1071 = vmatpush1.bf16.msra.mxu0 %v1048
        %1072 = vmatprep.subr.bf16.mxu0 0
        %1073 = vmatpush2.bf16.msra.mxu0 0
        %1074 = vmatprep.subr.bf16.mxu0 0
        %1075 = vmatpush2.bf16.msra.mxu0 0
        %1076 = vmatprep.subr.bf16.mxu0 0
        %1077 = vmatpush2.bf16.msra.mxu0 0
        %1078 = vmatprep.subr.bf16.mxu0 0
        %1079 = vmatpush2.bf16.msra.mxu0 0
        %1080 = vmatprep.subr.bf16.mxu0 0
        %1081 = vmatpush2.bf16.msra.mxu0 0
        %1082 = vmatprep.subr.bf16.mxu0 0
        %1083 = vmatpush2.bf16.msra.mxu0 0
        %1084 = vmatprep.subr.bf16.mxu0 0
        %1085 = vmatpush2.bf16.msra.mxu0 0
        %1086 = vmatprep.subr.bf16.mxu0 0
        %1087 = vmatpush2.bf16.msra.mxu0 0
        %1088 = vmatprep.mubr.bf16.mxu0 0
        %1089 = vmatmul.mubr.bf16.gmra.mxu0 %v1054
        %v1090 = vpop.f32.mrf.mxu0
        %v1091 = vadd.f32 %v1038, %v1090
        %v1092 = vpop.f32.mrf.mxu0
        %v1093 = vpop.f32.mrf.mxu0
        %v1094 = vpop.f32.mrf.mxu0
        %1095 = vdwg.mxu0
        %v1096 = vld [vmem:[#allocation5] sm:$0xf]
        %v1097 = vunpack.c.l.bf16 %v1096
        %v1098 = vpack.c.bf16 %v1091, %v1091
        %1100 = vrot.lane.b32.xlu0 %v1098, 96
        %v1101 = vpop.permute.xlu0 %1100
        %vm1102 = vcmask 64512
        %v1104 = vsel %vm1102, %v1098, 0
        %v1107 = vsel %vm1102, %v1101, 0
        %1109 = vmatprep.subr.bf16.mxu0 0
        %1110 = vmatpush1.bf16.xpose.msra.mxu0 0
        %1111 = vmatprep.subr.bf16.mxu0 0
        %1112 = vmatpush1.bf16.xpose.msra.mxu0 0
        %1113 = vmatprep.subr.bf16.mxu0 0
        %1114 = vmatpush1.bf16.xpose.msra.mxu0 0
        %1115 = vmatprep.subr.bf16.mxu0 0
        %1116 = vmatpush1.bf16.xpose.msra.mxu0 0
        %1117 = vmatprep.subr.bf16.mxu0 0
        %1118 = vmatpush1.bf16.xpose.msra.mxu0 0
        %1119 = vmatprep.subr.bf16.mxu0 0
        %1120 = vmatpush1.bf16.xpose.msra.mxu0 0
        %1121 = vmatprep.subr.bf16.mxu0 0
        %1122 = vmatpush1.bf16.xpose.msra.mxu0 0
        %1123 = vmatprep.subr.bf16.mxu0 0
        %1124 = vmatpush1.bf16.xpose.msra.mxu0 %v1107
        %1125 = vmatprep.subr.bf16.mxu0 0
        %1126 = vmatpush2.bf16.xpose.msra.mxu0 0
        %1127 = vmatprep.subr.bf16.mxu0 0
        %1128 = vmatpush2.bf16.xpose.msra.mxu0 0
        %1129 = vmatprep.subr.bf16.mxu0 0
        %1130 = vmatpush2.bf16.xpose.msra.mxu0 0
        %1131 = vmatprep.subr.bf16.mxu0 0
        %1132 = vmatpush2.bf16.xpose.msra.mxu0 0
        %1133 = vmatprep.subr.bf16.mxu0 0
        %1134 = vmatpush2.bf16.xpose.msra.mxu0 0
        %1135 = vmatprep.subr.bf16.mxu0 0
        %1136 = vmatpush2.bf16.xpose.msra.mxu0 0
        %1137 = vmatprep.subr.bf16.mxu0 0
        %1138 = vmatpush2.bf16.xpose.msra.mxu0 0
        %1139 = vmatprep.subr.bf16.mxu0 0
        %1140 = vmatpush2.bf16.xpose.msra.mxu0 0
        %1141 = vmatprep.mubr.bf16.mxu0 0
        %1142 = vmatmul.mubr.bf16.gmra.mxu0 %v1104
        %v1143 = vpop.f32.mrf.mxu0
        %v1144 = vadd.f32 %v1097, %v1143
        %v1145 = vpop.f32.mrf.mxu0
        %v1146 = vpop.f32.mrf.mxu0
        %v1147 = vpop.f32.mrf.mxu0
        %1148 = vdwg.mxu0
        %v1149 = vsel %vm1102, %v1144, -inf
        %1150 = vmax.xlane.f32.xlu0 %v1149
        %v1151 = vpop.xlane.xlu0 %1150
        %v1152 = vsub.f32 %v1144, %v1151
        %v1153 = vmul.f32 %v1152, 1.442695
        %v1154 = vpow.pop %v1153
        %v1155 = vsel %vm1102, %v1154, 0.0
        %1156 = vadd.xlane.f32.xlu0 %v1155
        %v1157 = vpop.xlane.xlu0 %1156
        %v1158 = vrcp.pop %v1157
        %v1159 = vmul.f32 %v1154, %v1158
        %v1160 = vpack.c.bf16 %v1159, %v1159
        %vm1161 = vcmask 60416
        %1162 = vst.msk [vmem:[%s1011] sm:$0xf] %vm1161, %v1160
        %1163 = vrot.lane.b32.xlu0 %v1098, 64
        %v1164 = vpop.permute.xlu0 %1163
        %v1166 = vsel %vm1102, %v1160, 0
        %vm1168 = vcmask 1043456
        %v1170 = vsel %vm1168, %v1164, 0
        %1172 = vmatprep.subr.bf16.mxu0 0
        %1173 = vmatpush1.bf16.msra.mxu0 0
        %1174 = vmatprep.subr.bf16.mxu0 0
        %1175 = vmatpush1.bf16.msra.mxu0 0
        %1176 = vmatprep.subr.bf16.mxu0 0
        %1177 = vmatpush1.bf16.msra.mxu0 0
        %1178 = vmatprep.subr.bf16.mxu0 0
        %1179 = vmatpush1.bf16.msra.mxu0 0
        %1180 = vmatprep.subr.bf16.mxu0 0
        %1181 = vmatpush1.bf16.msra.mxu0 0
        %1182 = vmatprep.subr.bf16.mxu0 0
        %1183 = vmatpush1.bf16.msra.mxu0 0
        %1184 = vmatprep.subr.bf16.mxu0 0
        %1185 = vmatpush1.bf16.msra.mxu0 0
        %1186 = vmatprep.subr.bf16.mxu0 0
        %1187 = vmatpush1.bf16.msra.mxu0 %v1170
        %1188 = vmatprep.subr.bf16.mxu0 0
        %1189 = vmatpush2.bf16.msra.mxu0 0
        %1190 = vmatprep.subr.bf16.mxu0 0
        %1191 = vmatpush2.bf16.msra.mxu0 0
        %1192 = vmatprep.subr.bf16.mxu0 0
        %1193 = vmatpush2.bf16.msra.mxu0 0
        %1194 = vmatprep.subr.bf16.mxu0 0
        %1195 = vmatpush2.bf16.msra.mxu0 0
        %1196 = vmatprep.subr.bf16.mxu0 0
        %1197 = vmatpush2.bf16.msra.mxu0 0
        %1198 = vmatprep.subr.bf16.mxu0 0
        %1199 = vmatpush2.bf16.msra.mxu0 0
        %1200 = vmatprep.subr.bf16.mxu0 0
        %1201 = vmatpush2.bf16.msra.mxu0 0
        %1202 = vmatprep.subr.bf16.mxu0 0
        %1203 = vmatpush2.bf16.msra.mxu0 0
        %1204 = vmatprep.mubr.bf16.mxu0 0
        %1205 = vmatmul.mubr.bf16.gmra.mxu0 %v1166
        %v1206 = vpop.f32.mrf.mxu0
        %v1207 = vadd.f32 0.0, %v1206
        %v1208 = vpop.f32.mrf.mxu0
        %v1209 = vpop.f32.mrf.mxu0
        %v1210 = vpop.f32.mrf.mxu0
        %1211 = vdwg.mxu0
        %1212 = vrot.lane.b32.xlu0 %v1098, 120
        %v1213 = vpop.permute.xlu0 %1212
        %1214 = vrot.lane.b32.xlu0 %v1098, 88
        %v1215 = vpop.permute.xlu0 %1214
        %v1217 = vsel %vm1102, %v1213, 0
        %v1220 = vsel %vm1102, %v1215, 0
        %1222 = vmatprep.subr.bf16.mxu0 0
        %1223 = vmatpush1.bf16.xpose.msra.mxu0 0
        %1224 = vmatprep.subr.bf16.mxu0 0
        %1225 = vmatpush1.bf16.xpose.msra.mxu0 0
        %1226 = vmatprep.subr.bf16.mxu0 0
        %1227 = vmatpush1.bf16.xpose.msra.mxu0 0
        %1228 = vmatprep.subr.bf16.mxu0 0
        %1229 = vmatpush1.bf16.xpose.msra.mxu0 0
        %1230 = vmatprep.subr.bf16.mxu0 0
        %1231 = vmatpush1.bf16.xpose.msra.mxu0 0
        %1232 = vmatprep.subr.bf16.mxu0 0
        %1233 = vmatpush1.bf16.xpose.msra.mxu0 0
        %1234 = vmatprep.subr.bf16.mxu0 0
        %1235 = vmatpush1.bf16.xpose.msra.mxu0 0
        %1236 = vmatprep.subr.bf16.mxu0 0
        %1237 = vmatpush1.bf16.xpose.msra.mxu0 %v1220
        %1238 = vmatprep.subr.bf16.mxu0 0
        %1239 = vmatpush2.bf16.xpose.msra.mxu0 0
        %1240 = vmatprep.subr.bf16.mxu0 0
        %1241 = vmatpush2.bf16.xpose.msra.mxu0 0
        %1242 = vmatprep.subr.bf16.mxu0 0
        %1243 = vmatpush2.bf16.xpose.msra.mxu0 0
        %1244 = vmatprep.subr.bf16.mxu0 0
        %1245 = vmatpush2.bf16.xpose.msra.mxu0 0
        %1246 = vmatprep.subr.bf16.mxu0 0
        %1247 = vmatpush2.bf16.xpose.msra.mxu0 0
        %1248 = vmatprep.subr.bf16.mxu0 0
        %1249 = vmatpush2.bf16.xpose.msra.mxu0 0
        %1250 = vmatprep.subr.bf16.mxu0 0
        %1251 = vmatpush2.bf16.xpose.msra.mxu0 0
        %1252 = vmatprep.subr.bf16.mxu0 0
        %1253 = vmatpush2.bf16.xpose.msra.mxu0 0
        %1254 = vmatprep.mubr.bf16.mxu0 0
        %1255 = vmatmul.mubr.bf16.gmra.mxu0 %v1217
        %v1256 = vpop.f32.mrf.mxu0
        %v1257 = vadd.f32 %v1097, %v1256
        %v1258 = vpop.f32.mrf.mxu0
        %v1259 = vpop.f32.mrf.mxu0
        %v1260 = vpop.f32.mrf.mxu0
        %1261 = vdwg.mxu0
        %v1262 = vsel %vm1102, %v1257, -inf
        %1263 = vmax.xlane.f32.xlu0 %v1262
        %v1264 = vpop.xlane.xlu0 %1263
        %v1265 = vsub.f32 %v1257, %v1264
        %v1266 = vmul.f32 %v1265, 1.442695
        %v1267 = vpow.pop %v1266
        %v1268 = vsel %vm1102, %v1267, 0.0
        %1269 = vadd.xlane.f32.xlu0 %v1268
        %v1270 = vpop.xlane.xlu0 %1269
        %v1271 = vrcp.pop %v1270
        %v1272 = vmul.f32 %v1267, %v1271
        %v1273 = vpack.c.bf16 %v1272, %v1272
        %s1274 = scalar_lea.vmem %s1011, 4 [#allocation27]
        %1275 = vst.msk [vmem:[%s1274] sm:$0xf] %vm1161, %v1273
        %1276 = vrot.lane.b32.xlu0 %v1098, 56
        %v1277 = vpop.permute.xlu0 %1276
        %v1279 = vsel %vm1102, %v1273, 0
        %v1282 = vsel %vm1168, %v1277, 0
        %1284 = vmatprep.subr.bf16.mxu0 0
        %1285 = vmatpush1.bf16.msra.mxu0 0
        %1286 = vmatprep.subr.bf16.mxu0 0
        %1287 = vmatpush1.bf16.msra.mxu0 0
        %1288 = vmatprep.subr.bf16.mxu0 0
        %1289 = vmatpush1.bf16.msra.mxu0 0
        %1290 = vmatprep.subr.bf16.mxu0 0
        %1291 = vmatpush1.bf16.msra.mxu0 0
        %1292 = vmatprep.subr.bf16.mxu0 0
        %1293 = vmatpush1.bf16.msra.mxu0 0
        %1294 = vmatprep.subr.bf16.mxu0 0
        %1295 = vmatpush1.bf16.msra.mxu0 0
        %1296 = vmatprep.subr.bf16.mxu0 0
        %1297 = vmatpush1.bf16.msra.mxu0 0
        %1298 = vmatprep.subr.bf16.mxu0 0
        %1299 = vmatpush1.bf16.msra.mxu0 %v1282
        %1300 = vmatprep.subr.bf16.mxu0 0
        %1301 = vmatpush2.bf16.msra.mxu0 0
        %1302 = vmatprep.subr.bf16.mxu0 0
        %1303 = vmatpush2.bf16.msra.mxu0 0
        %1304 = vmatprep.subr.bf16.mxu0 0
        %1305 = vmatpush2.bf16.msra.mxu0 0
        %1306 = vmatprep.subr.bf16.mxu0 0
        %1307 = vmatpush2.bf16.msra.mxu0 0
        %1308 = vmatprep.subr.bf16.mxu0 0
        %1309 = vmatpush2.bf16.msra.mxu0 0
        %1310 = vmatprep.subr.bf16.mxu0 0
        %1311 = vmatpush2.bf16.msra.mxu0 0
        %1312 = vmatprep.subr.bf16.mxu0 0
        %1313 = vmatpush2.bf16.msra.mxu0 0
        %1314 = vmatprep.subr.bf16.mxu0 0
        %1315 = vmatpush2.bf16.msra.mxu0 0
        %1316 = vmatprep.mubr.bf16.mxu0 0
        %1317 = vmatmul.mubr.bf16.gmra.mxu0 %v1279
        %v1318 = vpop.f32.mrf.mxu0
        %v1319 = vadd.f32 0.0, %v1318
        %v1320 = vpop.f32.mrf.mxu0
        %v1321 = vpop.f32.mrf.mxu0
        %v1322 = vpop.f32.mrf.mxu0
        %1323 = vdwg.mxu0
        %1324 = vrot.lane.b32.xlu0 %v1098, 112
        %v1325 = vpop.permute.xlu0 %1324
        %1326 = vrot.lane.b32.xlu0 %v1098, 80
        %v1327 = vpop.permute.xlu0 %1326
        %v1329 = vsel %vm1102, %v1325, 0
        %v1332 = vsel %vm1102, %v1327, 0
        %1334 = vmatprep.subr.bf16.mxu0 0
        %1335 = vmatpush1.bf16.xpose.msra.mxu0 0
        %1336 = vmatprep.subr.bf16.mxu0 0
        %1337 = vmatpush1.bf16.xpose.msra.mxu0 0
        %1338 = vmatprep.subr.bf16.mxu0 0
        %1339 = vmatpush1.bf16.xpose.msra.mxu0 0
        %1340 = vmatprep.subr.bf16.mxu0 0
        %1341 = vmatpush1.bf16.xpose.msra.mxu0 0
        %1342 = vmatprep.subr.bf16.mxu0 0
        %1343 = vmatpush1.bf16.xpose.msra.mxu0 0
        %1344 = vmatprep.subr.bf16.mxu0 0
        %1345 = vmatpush1.bf16.xpose.msra.mxu0 0
        %1346 = vmatprep.subr.bf16.mxu0 0
        %1347 = vmatpush1.bf16.xpose.msra.mxu0 0
        %1348 = vmatprep.subr.bf16.mxu0 0
        %1349 = vmatpush1.bf16.xpose.msra.mxu0 %v1332
        %1350 = vmatprep.subr.bf16.mxu0 0
        %1351 = vmatpush2.bf16.xpose.msra.mxu0 0
        %1352 = vmatprep.subr.bf16.mxu0 0
        %1353 = vmatpush2.bf16.xpose.msra.mxu0 0
        %1354 = vmatprep.subr.bf16.mxu0 0
        %1355 = vmatpush2.bf16.xpose.msra.mxu0 0
        %1356 = vmatprep.subr.bf16.mxu0 0
        %1357 = vmatpush2.bf16.xpose.msra.mxu0 0
        %1358 = vmatprep.subr.bf16.mxu0 0
        %1359 = vmatpush2.bf16.xpose.msra.mxu0 0
        %1360 = vmatprep.subr.bf16.mxu0 0
        %1361 = vmatpush2.bf16.xpose.msra.mxu0 0
        %1362 = vmatprep.subr.bf16.mxu0 0
        %1363 = vmatpush2.bf16.xpose.msra.mxu0 0
        %1364 = vmatprep.subr.bf16.mxu0 0
        %1365 = vmatpush2.bf16.xpose.msra.mxu0 0
        %1366 = vmatprep.mubr.bf16.mxu0 0
        %1367 = vmatmul.mubr.bf16.gmra.mxu0 %v1329
        %v1368 = vpop.f32.mrf.mxu0
        %v1369 = vadd.f32 %v1097, %v1368
        %v1370 = vpop.f32.mrf.mxu0
        %v1371 = vpop.f32.mrf.mxu0
        %v1372 = vpop.f32.mrf.mxu0
        %1373 = vdwg.mxu0
        %v1374 = vsel %vm1102, %v1369, -inf
        %1375 = vmax.xlane.f32.xlu0 %v1374
        %v1376 = vpop.xlane.xlu0 %1375
        %v1377 = vsub.f32 %v1369, %v1376
        %v1378 = vmul.f32 %v1377, 1.442695
        %v1379 = vpow.pop %v1378
        %v1380 = vsel %vm1102, %v1379, 0.0
        %1381 = vadd.xlane.f32.xlu0 %v1380
        %v1382 = vpop.xlane.xlu0 %1381
        %v1383 = vrcp.pop %v1382
        %v1384 = vmul.f32 %v1379, %v1383
        %v1385 = vpack.c.bf16 %v1384, %v1384
        %s1386 = scalar_lea.vmem %s1011, 8 [#allocation27]
        %1387 = vst.msk [vmem:[%s1386] sm:$0xf] %vm1161, %v1385
        %1388 = vrot.lane.b32.xlu0 %v1098, 48
        %v1389 = vpop.permute.xlu0 %1388
        %v1391 = vsel %vm1102, %v1385, 0
        %v1394 = vsel %vm1168, %v1389, 0
        %1396 = vmatprep.subr.bf16.mxu0 0
        %1397 = vmatpush1.bf16.msra.mxu0 0
        %1398 = vmatprep.subr.bf16.mxu0 0
        %1399 = vmatpush1.bf16.msra.mxu0 0
        %1400 = vmatprep.subr.bf16.mxu0 0
        %1401 = vmatpush1.bf16.msra.mxu0 0
        %1402 = vmatprep.subr.bf16.mxu0 0
        %1403 = vmatpush1.bf16.msra.mxu0 0
        %1404 = vmatprep.subr.bf16.mxu0 0
        %1405 = vmatpush1.bf16.msra.mxu0 0
        %1406 = vmatprep.subr.bf16.mxu0 0
        %1407 = vmatpush1.bf16.msra.mxu0 0
        %1408 = vmatprep.subr.bf16.mxu0 0
        %1409 = vmatpush1.bf16.msra.mxu0 0
        %1410 = vmatprep.subr.bf16.mxu0 0
        %1411 = vmatpush1.bf16.msra.mxu0 %v1394
        %1412 = vmatprep.subr.bf16.mxu0 0
        %1413 = vmatpush2.bf16.msra.mxu0 0
        %1414 = vmatprep.subr.bf16.mxu0 0
        %1415 = vmatpush2.bf16.msra.mxu0 0
        %1416 = vmatprep.subr.bf16.mxu0 0
        %1417 = vmatpush2.bf16.msra.mxu0 0
        %1418 = vmatprep.subr.bf16.mxu0 0
        %1419 = vmatpush2.bf16.msra.mxu0 0
        %1420 = vmatprep.subr.bf16.mxu0 0
        %1421 = vmatpush2.bf16.msra.mxu0 0
        %1422 = vmatprep.subr.bf16.mxu0 0
        %1423 = vmatpush2.bf16.msra.mxu0 0
        %1424 = vmatprep.subr.bf16.mxu0 0
        %1425 = vmatpush2.bf16.msra.mxu0 0
        %1426 = vmatprep.subr.bf16.mxu0 0
        %1427 = vmatpush2.bf16.msra.mxu0 0
        %1428 = vmatprep.mubr.bf16.mxu0 0
        %1429 = vmatmul.mubr.bf16.gmra.mxu0 %v1391
        %v1430 = vpop.f32.mrf.mxu0
        %v1431 = vadd.f32 0.0, %v1430
        %v1432 = vpop.f32.mrf.mxu0
        %v1433 = vpop.f32.mrf.mxu0
        %v1434 = vpop.f32.mrf.mxu0
        %1435 = vdwg.mxu0
        %1436 = vrot.lane.b32.xlu0 %v1098, 104
        %v1437 = vpop.permute.xlu0 %1436
        %1438 = vrot.lane.b32.xlu0 %v1098, 72
        %v1439 = vpop.permute.xlu0 %1438
        %v1441 = vsel %vm1102, %v1437, 0
        %v1444 = vsel %vm1102, %v1439, 0
        %1446 = vmatprep.subr.bf16.mxu0 0
        %1447 = vmatpush1.bf16.xpose.msra.mxu0 0
        %1448 = vmatprep.subr.bf16.mxu0 0
        %1449 = vmatpush1.bf16.xpose.msra.mxu0 0
        %1450 = vmatprep.subr.bf16.mxu0 0
        %1451 = vmatpush1.bf16.xpose.msra.mxu0 0
        %1452 = vmatprep.subr.bf16.mxu0 0
        %1453 = vmatpush1.bf16.xpose.msra.mxu0 0
        %1454 = vmatprep.subr.bf16.mxu0 0
        %1455 = vmatpush1.bf16.xpose.msra.mxu0 0
        %1456 = vmatprep.subr.bf16.mxu0 0
        %1457 = vmatpush1.bf16.xpose.msra.mxu0 0
        %1458 = vmatprep.subr.bf16.mxu0 0
        %1459 = vmatpush1.bf16.xpose.msra.mxu0 0
        %1460 = vmatprep.subr.bf16.mxu0 0
        %1461 = vmatpush1.bf16.xpose.msra.mxu0 %v1444
        %1462 = vmatprep.subr.bf16.mxu0 0
        %1463 = vmatpush2.bf16.xpose.msra.mxu0 0
        %1464 = vmatprep.subr.bf16.mxu0 0
        %1465 = vmatpush2.bf16.xpose.msra.mxu0 0
        %1466 = vmatprep.subr.bf16.mxu0 0
        %1467 = vmatpush2.bf16.xpose.msra.mxu0 0
        %1468 = vmatprep.subr.bf16.mxu0 0
        %1469 = vmatpush2.bf16.xpose.msra.mxu0 0
        %1470 = vmatprep.subr.bf16.mxu0 0
        %1471 = vmatpush2.bf16.xpose.msra.mxu0 0
        %1472 = vmatprep.subr.bf16.mxu0 0
        %1473 = vmatpush2.bf16.xpose.msra.mxu0 0
        %1474 = vmatprep.subr.bf16.mxu0 0
        %1475 = vmatpush2.bf16.xpose.msra.mxu0 0
        %1476 = vmatprep.subr.bf16.mxu0 0
        %1477 = vmatpush2.bf16.xpose.msra.mxu0 0
        %1478 = vmatprep.mubr.bf16.mxu0 0
        %1479 = vmatmul.mubr.bf16.gmra.mxu0 %v1441
        %v1480 = vpop.f32.mrf.mxu0
        %v1481 = vadd.f32 %v1097, %v1480
        %v1482 = vpop.f32.mrf.mxu0
        %v1483 = vpop.f32.mrf.mxu0
        %v1484 = vpop.f32.mrf.mxu0
        %1485 = vdwg.mxu0
        %v1486 = vsel %vm1102, %v1481, -inf
        %1487 = vmax.xlane.f32.xlu0 %v1486
        %v1488 = vpop.xlane.xlu0 %1487
        %v1489 = vsub.f32 %v1481, %v1488
        %v1490 = vmul.f32 %v1489, 1.442695
        %v1491 = vpow.pop %v1490
        %v1492 = vsel %vm1102, %v1491, 0.0
        %1493 = vadd.xlane.f32.xlu0 %v1492
        %v1494 = vpop.xlane.xlu0 %1493
        %v1495 = vrcp.pop %v1494
        %v1496 = vmul.f32 %v1491, %v1495
        %v1497 = vpack.c.bf16 %v1496, %v1496
        %s1498 = scalar_lea.vmem %s1011, 12 [#allocation27]
        %1499 = vst.msk [vmem:[%s1498] sm:$0xf] %vm1161, %v1497
        %1500 = vrot.lane.b32.xlu0 %v1098, 40
        %v1501 = vpop.permute.xlu0 %1500
        %v1503 = vsel %vm1102, %v1497, 0
        %v1506 = vsel %vm1168, %v1501, 0
        %1508 = vmatprep.subr.bf16.mxu0 0
        %1509 = vmatpush1.bf16.msra.mxu0 0
        %1510 = vmatprep.subr.bf16.mxu0 0
        %1511 = vmatpush1.bf16.msra.mxu0 0
        %1512 = vmatprep.subr.bf16.mxu0 0
        %1513 = vmatpush1.bf16.msra.mxu0 0
        %1514 = vmatprep.subr.bf16.mxu0 0
        %1515 = vmatpush1.bf16.msra.mxu0 0
        %1516 = vmatprep.subr.bf16.mxu0 0
        %1517 = vmatpush1.bf16.msra.mxu0 0
        %1518 = vmatprep.subr.bf16.mxu0 0
        %1519 = vmatpush1.bf16.msra.mxu0 0
        %1520 = vmatprep.subr.bf16.mxu0 0
        %1521 = vmatpush1.bf16.msra.mxu0 0
        %1522 = vmatprep.subr.bf16.mxu0 0
        %1523 = vmatpush1.bf16.msra.mxu0 %v1506
        %1524 = vmatprep.subr.bf16.mxu0 0
        %1525 = vmatpush2.bf16.msra.mxu0 0
        %1526 = vmatprep.subr.bf16.mxu0 0
        %1527 = vmatpush2.bf16.msra.mxu0 0
        %1528 = vmatprep.subr.bf16.mxu0 0
        %1529 = vmatpush2.bf16.msra.mxu0 0
        %1530 = vmatprep.subr.bf16.mxu0 0
        %1531 = vmatpush2.bf16.msra.mxu0 0
        %1532 = vmatprep.subr.bf16.mxu0 0
        %1533 = vmatpush2.bf16.msra.mxu0 0
        %1534 = vmatprep.subr.bf16.mxu0 0
        %1535 = vmatpush2.bf16.msra.mxu0 0
        %1536 = vmatprep.subr.bf16.mxu0 0
        %1537 = vmatpush2.bf16.msra.mxu0 0
        %1538 = vmatprep.subr.bf16.mxu0 0
        %1539 = vmatpush2.bf16.msra.mxu0 0
        %1540 = vmatprep.mubr.bf16.mxu0 0
        %1541 = vmatmul.mubr.bf16.gmra.mxu0 %v1503
        %v1542 = vpop.f32.mrf.mxu0
        %v1543 = vadd.f32 0.0, %v1542
        %v1544 = vpop.f32.mrf.mxu0
        %v1545 = vpop.f32.mrf.mxu0
        %v1546 = vpop.f32.mrf.mxu0
        %1547 = vdwg.mxu0
        %1549 = vrot.lane.b32.xlu0 %v1319, 8
        %v1550 = vpop.permute.xlu0 %1549
        %1553 = vrot.lane.b32.xlu0 %v1431, 16
        %v1554 = vpop.permute.xlu0 %1553
        %1557 = vrot.lane.b32.xlu0 %v1543, 24
        %v1558 = vpop.permute.xlu0 %1557
        %v1560 = vsel %vm1102, %v1207, %v1550
        %vm1561 = vcmask 130048
        %v1562 = vsel %vm1561, %v1560, %v1554
        %vm1563 = vcmask 195584
        %v1564 = vsel %vm1563, %v1562, %v1558
        %v1565 = vpack.c.bf16 %v1564, %v1564
        %v1566 = vld [vmem:[%s6] sm:$0xf]
        %v1567 = vld [vmem:[%s6 + $0x4] sm:$0xf]
        %v1568 = vld [vmem:[%s6 + $0x8] sm:$0xf]
        %v1569 = vld [vmem:[%s6 + $0xc] sm:$0xf]
        %v1570 = vld [vmem:[#allocation10] sm:$0x1]
        %v1572 = vlaneseq
        %v1573 = vshrl.u32 %v1572, 7
        %v1574 = vsub.s32 0, %v1573
        %v1575 = vrot.slane %v1570, %v1574
        %v1581 = vunpack.c.l.b16 %v1566
        %v1582 = vunpack.c.l.b16 %v1567
        %v1583 = vunpack.c.l.b16 %v1568
        %v1584 = vunpack.c.l.b16 %v1569
        %v1585 = vpack.c.b16 %v1582, %v1581
        %v1586 = vpack.c.b16 %v1584, %v1583
        %v1590 = vsel %vm1052, %v1565, 0
        %1592 = vmatprep.subr.bf16.mxu0 0
        %1593 = vmatpush1.bf16.msra.mxu0 0
        %1594 = vmatprep.subr.bf16.mxu0 0
        %1595 = vmatpush1.bf16.msra.mxu0 0
        %1596 = vmatprep.subr.bf16.mxu0 0
        %1597 = vmatpush1.bf16.msra.mxu0 0
        %1598 = vmatprep.subr.bf16.mxu0 0
        %1599 = vmatpush1.bf16.msra.mxu0 0
        %1600 = vmatprep.subr.bf16.mxu0 0
        %1601 = vmatpush1.bf16.msra.mxu0 0
        %1602 = vmatprep.subr.bf16.mxu0 0
        %1603 = vmatpush1.bf16.msra.mxu0 0
        %1604 = vmatprep.subr.bf16.mxu0 0
        %1605 = vmatpush1.bf16.msra.mxu0 %v1586
        %1606 = vmatprep.subr.bf16.mxu0 0
        %1607 = vmatpush1.bf16.msra.mxu0 %v1585
        %1608 = vmatprep.subr.bf16.mxu0 0
        %1609 = vmatpush2.bf16.msra.mxu0 0
        %1610 = vmatprep.subr.bf16.mxu0 0
        %1611 = vmatpush2.bf16.msra.mxu0 0
        %1612 = vmatprep.subr.bf16.mxu0 0
        %1613 = vmatpush2.bf16.msra.mxu0 0
        %1614 = vmatprep.subr.bf16.mxu0 0
        %1615 = vmatpush2.bf16.msra.mxu0 0
        %1616 = vmatprep.subr.bf16.mxu0 0
        %1617 = vmatpush2.bf16.msra.mxu0 0
        %1618 = vmatprep.subr.bf16.mxu0 0
        %1619 = vmatpush2.bf16.msra.mxu0 0
        %1620 = vmatprep.subr.bf16.mxu0 0
        %1621 = vmatpush2.bf16.msra.mxu0 0
        %1622 = vmatprep.subr.bf16.mxu0 0
        %1623 = vmatpush2.bf16.msra.mxu0 0
        %1624 = vmatprep.mubr.bf16.mxu0 0
        %1625 = vmatmul.mubr.bf16.gmra.mxu0 %v1590
        %v1626 = vpop.f32.mrf.mxu0
        %v1627 = vadd.f32 %v1575, %v1626
        %v1628 = vpop.f32.mrf.mxu0
        %v1629 = vpop.f32.mrf.mxu0
        %v1630 = vpop.f32.mrf.mxu0
        %1631 = vdwg.mxu0
        %v1632 = vadd.f32 %v1028, %v1627
        %v1633 = vld [vmem:[#allocation19] sm:$0x1]
        %v1634 = vld [vmem:[#allocation20] sm:$0x1]
        %v1635 = vsel %vm1052, %v1632, 0.0
        %1636 = vadd.xlane.f32.xlu0 %v1635
        %v1637 = vpop.xlane.xlu0 %1636
        %v1638 = vrcp.pop 32.0
        %v1639 = vmul.f32 %v1637, %v1638
        %v1640 = vsub.f32 %v1632, %v1639
        %v1641 = vmul.f32 %v1640, %v1640
        %v1642 = vsel %vm1052, %v1641, 0.0
        %1643 = vadd.xlane.f32.xlu0 %v1642
        %v1644 = vpop.xlane.xlu0 %1643
        %v1645 = vmul.f32 %v1644, %v1638
        %v1646 = vadd.f32 %v1645, 1e-05
        %v1647 = vrsqrt.pop %v1646
        %v1648 = vmul.f32 %v1640, %v1647
        %v1650 = vlaneseq
        %v1651 = vshrl.u32 %v1650, 7
        %v1652 = vsub.s32 0, %v1651
        %v1653 = vrot.slane %v1633, %v1652
        %v1655 = vmul.f32 %v1648, %v1653
        %v1657 = vlaneseq
        %v1658 = vshrl.u32 %v1657, 7
        %v1659 = vsub.s32 0, %v1658
        %v1660 = vrot.slane %v1634, %v1659
        %v1662 = vadd.f32 %v1655, %v1660
        %v1663 = vpack.c.bf16 %v1662, %v1662
        %v1664 = vld [vmem:[#allocation11] sm:$0xf]
        %v1665 = vld [vmem:[#allocation11 + $0x4] sm:$0xf]
        %v1666 = vld [vmem:[#allocation11 + $0x8] sm:$0xf]
        %v1667 = vld [vmem:[#allocation11 + $0xc] sm:$0xf]
        %v1668 = vld [vmem:[#allocation13] sm:$0x1]
        %v1670 = vlaneseq
        %v1671 = vshrl.u32 %v1670, 7
        %v1672 = vsub.s32 0, %v1671
        %v1673 = vrot.slane %v1668, %v1672
        %v1679 = vunpack.c.l.b16 %v1664
        %v1680 = vunpack.c.l.b16 %v1665
        %v1681 = vunpack.c.l.b16 %v1666
        %v1682 = vunpack.c.l.b16 %v1667
        %v1683 = vpack.c.b16 %v1680, %v1679
        %v1684 = vpack.c.b16 %v1682, %v1681
        %v1688 = vsel %vm1052, %v1663, 0
        %1690 = vmatprep.subr.bf16.mxu0 0
        %1691 = vmatpush1.bf16.msra.mxu0 0
        %1692 = vmatprep.subr.bf16.mxu0 0
        %1693 = vmatpush1.bf16.msra.mxu0 0
        %1694 = vmatprep.subr.bf16.mxu0 0
        %1695 = vmatpush1.bf16.msra.mxu0 0
        %1696 = vmatprep.subr.bf16.mxu0 0
        %1697 = vmatpush1.bf16.msra.mxu0 0
        %1698 = vmatprep.subr.bf16.mxu0 0
        %1699 = vmatpush1.bf16.msra.mxu0 0
        %1700 = vmatprep.subr.bf16.mxu0 0
        %1701 = vmatpush1.bf16.msra.mxu0 0
        %1702 = vmatprep.subr.bf16.mxu0 0
        %1703 = vmatpush1.bf16.msra.mxu0 %v1684
        %1704 = vmatprep.subr.bf16.mxu0 0
        %1705 = vmatpush1.bf16.msra.mxu0 %v1683
        %1706 = vmatprep.subr.bf16.mxu0 0
        %1707 = vmatpush2.bf16.msra.mxu0 0
        %1708 = vmatprep.subr.bf16.mxu0 0
        %1709 = vmatpush2.bf16.msra.mxu0 0
        %1710 = vmatprep.subr.bf16.mxu0 0
        %1711 = vmatpush2.bf16.msra.mxu0 0
        %1712 = vmatprep.subr.bf16.mxu0 0
        %1713 = vmatpush2.bf16.msra.mxu0 0
        %1714 = vmatprep.subr.bf16.mxu0 0
        %1715 = vmatpush2.bf16.msra.mxu0 0
        %1716 = vmatprep.subr.bf16.mxu0 0
        %1717 = vmatpush2.bf16.msra.mxu0 0
        %1718 = vmatprep.subr.bf16.mxu0 0
        %1719 = vmatpush2.bf16.msra.mxu0 0
        %1720 = vmatprep.subr.bf16.mxu0 0
        %1721 = vmatpush2.bf16.msra.mxu0 0
        %1722 = vmatprep.mubr.bf16.mxu0 0
        %1723 = vmatmul.mubr.bf16.gmra.mxu0 %v1688
        %v1724 = vpop.f32.mrf.mxu0
        %v1725 = vadd.f32 %v1673, %v1724
        %v1726 = vpop.f32.mrf.mxu0
        %v1727 = vpop.f32.mrf.mxu0
        %v1728 = vpop.f32.mrf.mxu0
        %1729 = vdwg.mxu0
        %v1730 = vld [vmem:[%s10] sm:$0xf]
        %v1731 = vld [vmem:[%s10 + $0x4] sm:$0xf]
        %v1732 = vld [vmem:[%s10 + $0x8] sm:$0xf]
        %v1733 = vld [vmem:[%s10 + $0xc] sm:$0xf]
        %v1734 = vld [vmem:[#allocation14] sm:$0x1]
        %v1736 = vlaneseq
        %v1737 = vshrl.u32 %v1736, 7
        %v1738 = vsub.s32 0, %v1737
        %v1739 = vrot.slane %v1734, %v1738
        %v1743 = vunpack.c.l.b16 %v1026
        %v1744 = vunpack.c.l.b16 %v1027
        %v1745 = vpack.c.b16 %v1744, %v1743
        %v1750 = vunpack.c.l.b16 %v1730
        %v1751 = vunpack.c.l.b16 %v1731
        %v1752 = vunpack.c.l.b16 %v1732
        %v1753 = vunpack.c.l.b16 %v1733
        %v1754 = vpack.c.b16 %v1751, %v1750
        %v1755 = vpack.c.b16 %v1753, %v1752
        %v1759 = vsel %vm1052, %v1745, 0
        %1761 = vmatprep.subr.bf16.mxu0 0
        %1762 = vmatpush1.bf16.msra.mxu0 0
        %1763 = vmatprep.subr.bf16.mxu0 0
        %1764 = vmatpush1.bf16.msra.mxu0 0
        %1765 = vmatprep.subr.bf16.mxu0 0
        %1766 = vmatpush1.bf16.msra.mxu0 0
        %1767 = vmatprep.subr.bf16.mxu0 0
        %1768 = vmatpush1.bf16.msra.mxu0 0
        %1769 = vmatprep.subr.bf16.mxu0 0
        %1770 = vmatpush1.bf16.msra.mxu0 0
        %1771 = vmatprep.subr.bf16.mxu0 0
        %1772 = vmatpush1.bf16.msra.mxu0 0
        %1773 = vmatprep.subr.bf16.mxu0 0
        %1774 = vmatpush1.bf16.msra.mxu0 %v1755
        %1775 = vmatprep.subr.bf16.mxu0 0
        %1776 = vmatpush1.bf16.msra.mxu0 %v1754
        %1777 = vmatprep.subr.bf16.mxu0 0
        %1778 = vmatpush2.bf16.msra.mxu0 0
        %1779 = vmatprep.subr.bf16.mxu0 0
        %1780 = vmatpush2.bf16.msra.mxu0 0
        %1781 = vmatprep.subr.bf16.mxu0 0
        %1782 = vmatpush2.bf16.msra.mxu0 0
        %1783 = vmatprep.subr.bf16.mxu0 0
        %1784 = vmatpush2.bf16.msra.mxu0 0
        %1785 = vmatprep.subr.bf16.mxu0 0
        %1786 = vmatpush2.bf16.msra.mxu0 0
        %1787 = vmatprep.subr.bf16.mxu0 0
        %1788 = vmatpush2.bf16.msra.mxu0 0
        %1789 = vmatprep.subr.bf16.mxu0 0
        %1790 = vmatpush2.bf16.msra.mxu0 0
        %1791 = vmatprep.subr.bf16.mxu0 0
        %1792 = vmatpush2.bf16.msra.mxu0 0
        %1793 = vmatprep.mubr.bf16.mxu0 0
        %1794 = vmatmul.mubr.bf16.gmra.mxu0 %v1759
        %v1795 = vpop.f32.mrf.mxu0
        %v1796 = vadd.f32 %v1739, %v1795
        %v1797 = vpop.f32.mrf.mxu0
        %v1798 = vpop.f32.mrf.mxu0
        %v1799 = vadd.f32 %v1739, %v1798
        %v1800 = vpop.f32.mrf.mxu0
        %1801 = vdwg.mxu0
        %v1802 = vld [vmem:[#allocation7] sm:$0xf]
        %v1803 = vunpack.c.l.bf16 %v1802
        %v1804 = vpack.c.bf16 %v1725, %v1725
        %v1805 = vpack.c.bf16 %v1799, %v1796
        %v1807 = vsel %vm1102, %v1804, 0
        %v1810 = vsel %vm1102, %v1805, 0
        %1812 = vmatprep.subr.bf16.mxu0 0
        %1813 = vmatpush1.bf16.xpose.msra.mxu0 0
        %1814 = vmatprep.subr.bf16.mxu0 0
        %1815 = vmatpush1.bf16.xpose.msra.mxu0 0
        %1816 = vmatprep.subr.bf16.mxu0 0
        %1817 = vmatpush1.bf16.xpose.msra.mxu0 0
        %1818 = vmatprep.subr.bf16.mxu0 0
        %1819 = vmatpush1.bf16.xpose.msra.mxu0 0
        %1820 = vmatprep.subr.bf16.mxu0 0
        %1821 = vmatpush1.bf16.xpose.msra.mxu0 0
        %1822 = vmatprep.subr.bf16.mxu0 0
        %1823 = vmatpush1.bf16.xpose.msra.mxu0 0
        %1824 = vmatprep.subr.bf16.mxu0 0
        %1825 = vmatpush1.bf16.xpose.msra.mxu0 0
        %1826 = vmatprep.subr.bf16.mxu0 0
        %1827 = vmatpush1.bf16.xpose.msra.mxu0 %v1810
        %1828 = vmatprep.subr.bf16.mxu0 0
        %1829 = vmatpush2.bf16.xpose.msra.mxu0 0
        %1830 = vmatprep.subr.bf16.mxu0 0
        %1831 = vmatpush2.bf16.xpose.msra.mxu0 0
        %1832 = vmatprep.subr.bf16.mxu0 0
        %1833 = vmatpush2.bf16.xpose.msra.mxu0 0
        %1834 = vmatprep.subr.bf16.mxu0 0
        %1835 = vmatpush2.bf16.xpose.msra.mxu0 0
        %1836 = vmatprep.subr.bf16.mxu0 0
        %1837 = vmatpush2.bf16.xpose.msra.mxu0 0
        %1838 = vmatprep.subr.bf16.mxu0 0
        %1839 = vmatpush2.bf16.xpose.msra.mxu0 0
        %1840 = vmatprep.subr.bf16.mxu0 0
        %1841 = vmatpush2.bf16.xpose.msra.mxu0 0
        %1842 = vmatprep.subr.bf16.mxu0 0
        %1843 = vmatpush2.bf16.xpose.msra.mxu0 0
        %1844 = vmatprep.mubr.bf16.mxu0 0
        %1845 = vmatmul.mubr.bf16.gmra.mxu0 %v1807
        %v1846 = vpop.f32.mrf.mxu0
        %v1847 = vadd.f32 %v1803, %v1846
        %v1848 = vpop.f32.mrf.mxu0
        %v1849 = vpop.f32.mrf.mxu0
        %v1850 = vpop.f32.mrf.mxu0
        %1851 = vdwg.mxu0
        %v1852 = vsel %vm1561, %v1847, -inf
        %1853 = vmax.xlane.f32.xlu0 %v1852
        %v1854 = vpop.xlane.xlu0 %1853
        %v1855 = vsub.f32 %v1847, %v1854
        %v1856 = vmul.f32 %v1855, 1.442695
        %v1857 = vpow.pop %v1856
        %v1858 = vsel %vm1561, %v1857, 0.0
        %1859 = vadd.xlane.f32.xlu0 %v1858
        %v1860 = vpop.xlane.xlu0 %1859
        %v1861 = vrcp.pop %v1860
        %v1862 = vmul.f32 %v1857, %v1861
        %v1863 = vpack.c.bf16 %v1862, %v1862
        %vm1864 = vcmask 125952
        %1865 = vst.msk [vmem:[%s1018] sm:$0xf] %vm1864, %v1863
        %1867 = vrot.lane.b32.xlu0 %v1805, 96
        %v1868 = vpop.permute.xlu0 %1867
        %v1871 = vsel %vm1561, %v1863, 0
        %1873 = vmatprep.subr.bf16.mxu0 0
        %1874 = vmatpush1.bf16.msra.mxu0 0
        %1875 = vmatprep.subr.bf16.mxu0 0
        %1876 = vmatpush1.bf16.msra.mxu0 0
        %1877 = vmatprep.subr.bf16.mxu0 0
        %1878 = vmatpush1.bf16.msra.mxu0 0
        %1879 = vmatprep.subr.bf16.mxu0 0
        %1880 = vmatpush1.bf16.msra.mxu0 0
        %1881 = vmatprep.subr.bf16.mxu0 0
        %1882 = vmatpush1.bf16.msra.mxu0 0
        %1883 = vmatprep.subr.bf16.mxu0 0
        %1884 = vmatpush1.bf16.msra.mxu0 0
        %1885 = vmatprep.subr.bf16.mxu0 0
        %1886 = vmatpush1.bf16.msra.mxu0 0
        %1887 = vmatprep.subr.bf16.mxu0 0
        %1888 = vmatpush1.bf16.msra.mxu0 %v1868
        %1889 = vmatprep.subr.bf16.mxu0 0
        %1890 = vmatpush2.bf16.msra.mxu0 0
        %1891 = vmatprep.subr.bf16.mxu0 0
        %1892 = vmatpush2.bf16.msra.mxu0 0
        %1893 = vmatprep.subr.bf16.mxu0 0
        %1894 = vmatpush2.bf16.msra.mxu0 0
        %1895 = vmatprep.subr.bf16.mxu0 0
        %1896 = vmatpush2.bf16.msra.mxu0 0
        %1897 = vmatprep.subr.bf16.mxu0 0
        %1898 = vmatpush2.bf16.msra.mxu0 0
        %1899 = vmatprep.subr.bf16.mxu0 0
        %1900 = vmatpush2.bf16.msra.mxu0 0
        %1901 = vmatprep.subr.bf16.mxu0 0
        %1902 = vmatpush2.bf16.msra.mxu0 0
        %1903 = vmatprep.subr.bf16.mxu0 0
        %1904 = vmatpush2.bf16.msra.mxu0 0
        %1905 = vmatprep.mubr.bf16.mxu0 0
        %1906 = vmatmul.mubr.bf16.gmra.mxu0 %v1871
        %v1907 = vpop.f32.mrf.mxu0
        %v1908 = vadd.f32 0.0, %v1907
        %v1909 = vpop.f32.mrf.mxu0
        %v1910 = vpop.f32.mrf.mxu0
        %v1911 = vpop.f32.mrf.mxu0
        %1912 = vdwg.mxu0
        %1914 = vrot.lane.b32.xlu0 %v1804, 120
        %v1915 = vpop.permute.xlu0 %1914
        %1916 = vrot.lane.b32.xlu0 %v1805, 120
        %v1917 = vpop.permute.xlu0 %1916
        %v1919 = vsel %vm1102, %v1915, 0
        %v1922 = vsel %vm1102, %v1917, 0
        %1924 = vmatprep.subr.bf16.mxu0 0
        %1925 = vmatpush1.bf16.xpose.msra.mxu0 0
        %1926 = vmatprep.subr.bf16.mxu0 0
        %1927 = vmatpush1.bf16.xpose.msra.mxu0 0
        %1928 = vmatprep.subr.bf16.mxu0 0
        %1929 = vmatpush1.bf16.xpose.msra.mxu0 0
        %1930 = vmatprep.subr.bf16.mxu0 0
        %1931 = vmatpush1.bf16.xpose.msra.mxu0 0
        %1932 = vmatprep.subr.bf16.mxu0 0
        %1933 = vmatpush1.bf16.xpose.msra.mxu0 0
        %1934 = vmatprep.subr.bf16.mxu0 0
        %1935 = vmatpush1.bf16.xpose.msra.mxu0 0
        %1936 = vmatprep.subr.bf16.mxu0 0
        %1937 = vmatpush1.bf16.xpose.msra.mxu0 0
        %1938 = vmatprep.subr.bf16.mxu0 0
        %1939 = vmatpush1.bf16.xpose.msra.mxu0 %v1922
        %1940 = vmatprep.subr.bf16.mxu0 0
        %1941 = vmatpush2.bf16.xpose.msra.mxu0 0
        %1942 = vmatprep.subr.bf16.mxu0 0
        %1943 = vmatpush2.bf16.xpose.msra.mxu0 0
        %1944 = vmatprep.subr.bf16.mxu0 0
        %1945 = vmatpush2.bf16.xpose.msra.mxu0 0
        %1946 = vmatprep.subr.bf16.mxu0 0
        %1947 = vmatpush2.bf16.xpose.msra.mxu0 0
        %1948 = vmatprep.subr.bf16.mxu0 0
        %1949 = vmatpush2.bf16.xpose.msra.mxu0 0
        %1950 = vmatprep.subr.bf16.mxu0 0
        %1951 = vmatpush2.bf16.xpose.msra.mxu0 0
        %1952 = vmatprep.subr.bf16.mxu0 0
        %1953 = vmatpush2.bf16.xpose.msra.mxu0 0
        %1954 = vmatprep.subr.bf16.mxu0 0
        %1955 = vmatpush2.bf16.xpose.msra.mxu0 0
        %1956 = vmatprep.mubr.bf16.mxu0 0
        %1957 = vmatmul.mubr.bf16.gmra.mxu0 %v1919
        %v1958 = vpop.f32.mrf.mxu0
        %v1959 = vadd.f32 %v1803, %v1958
        %v1960 = vpop.f32.mrf.mxu0
        %v1961 = vpop.f32.mrf.mxu0
        %v1962 = vpop.f32.mrf.mxu0
        %1963 = vdwg.mxu0
        %v1964 = vsel %vm1561, %v1959, -inf
        %1965 = vmax.xlane.f32.xlu0 %v1964
        %v1966 = vpop.xlane.xlu0 %1965
        %v1967 = vsub.f32 %v1959, %v1966
        %v1968 = vmul.f32 %v1967, 1.442695
        %v1969 = vpow.pop %v1968
        %v1970 = vsel %vm1561, %v1969, 0.0
        %1971 = vadd.xlane.f32.xlu0 %v1970
        %v1972 = vpop.xlane.xlu0 %1971
        %v1973 = vrcp.pop %v1972
        %v1974 = vmul.f32 %v1969, %v1973
        %v1975 = vpack.c.bf16 %v1974, %v1974
        %s1976 = scalar_lea.vmem %s1018, 4 [#allocation29]
        %1977 = vst.msk [vmem:[%s1976] sm:$0xf] %vm1864, %v1975
        %1978 = vrot.lane.b32.xlu0 %v1805, 88
        %v1979 = vpop.permute.xlu0 %1978
        %v1982 = vsel %vm1561, %v1975, 0
        %1984 = vmatprep.subr.bf16.mxu0 0
        %1985 = vmatpush1.bf16.msra.mxu0 0
        %1986 = vmatprep.subr.bf16.mxu0 0
        %1987 = vmatpush1.bf16.msra.mxu0 0
        %1988 = vmatprep.subr.bf16.mxu0 0
        %1989 = vmatpush1.bf16.msra.mxu0 0
        %1990 = vmatprep.subr.bf16.mxu0 0
        %1991 = vmatpush1.bf16.msra.mxu0 0
        %1992 = vmatprep.subr.bf16.mxu0 0
        %1993 = vmatpush1.bf16.msra.mxu0 0
        %1994 = vmatprep.subr.bf16.mxu0 0
        %1995 = vmatpush1.bf16.msra.mxu0 0
        %1996 = vmatprep.subr.bf16.mxu0 0
        %1997 = vmatpush1.bf16.msra.mxu0 0
        %1998 = vmatprep.subr.bf16.mxu0 0
        %1999 = vmatpush1.bf16.msra.mxu0 %v1979
        %2000 = vmatprep.subr.bf16.mxu0 0
        %2001 = vmatpush2.bf16.msra.mxu0 0
        %2002 = vmatprep.subr.bf16.mxu0 0
        %2003 = vmatpush2.bf16.msra.mxu0 0
        %2004 = vmatprep.subr.bf16.mxu0 0
        %2005 = vmatpush2.bf16.msra.mxu0 0
        %2006 = vmatprep.subr.bf16.mxu0 0
        %2007 = vmatpush2.bf16.msra.mxu0 0
        %2008 = vmatprep.subr.bf16.mxu0 0
        %2009 = vmatpush2.bf16.msra.mxu0 0
        %2010 = vmatprep.subr.bf16.mxu0 0
        %2011 = vmatpush2.bf16.msra.mxu0 0
        %2012 = vmatprep.subr.bf16.mxu0 0
        %2013 = vmatpush2.bf16.msra.mxu0 0
        %2014 = vmatprep.subr.bf16.mxu0 0
        %2015 = vmatpush2.bf16.msra.mxu0 0
        %2016 = vmatprep.mubr.bf16.mxu0 0
        %2017 = vmatmul.mubr.bf16.gmra.mxu0 %v1982
        %v2018 = vpop.f32.mrf.mxu0
        %v2019 = vadd.f32 0.0, %v2018
        %v2020 = vpop.f32.mrf.mxu0
        %v2021 = vpop.f32.mrf.mxu0
        %v2022 = vpop.f32.mrf.mxu0
        %2023 = vdwg.mxu0
        %2024 = vrot.lane.b32.xlu0 %v1804, 112
        %v2025 = vpop.permute.xlu0 %2024
        %2026 = vrot.lane.b32.xlu0 %v1805, 112
        %v2027 = vpop.permute.xlu0 %2026
        %v2029 = vsel %vm1102, %v2025, 0
        %v2032 = vsel %vm1102, %v2027, 0
        %2034 = vmatprep.subr.bf16.mxu0 0
        %2035 = vmatpush1.bf16.xpose.msra.mxu0 0
        %2036 = vmatprep.subr.bf16.mxu0 0
        %2037 = vmatpush1.bf16.xpose.msra.mxu0 0
        %2038 = vmatprep.subr.bf16.mxu0 0
        %2039 = vmatpush1.bf16.xpose.msra.mxu0 0
        %2040 = vmatprep.subr.bf16.mxu0 0
        %2041 = vmatpush1.bf16.xpose.msra.mxu0 0
        %2042 = vmatprep.subr.bf16.mxu0 0
        %2043 = vmatpush1.bf16.xpose.msra.mxu0 0
        %2044 = vmatprep.subr.bf16.mxu0 0
        %2045 = vmatpush1.bf16.xpose.msra.mxu0 0
        %2046 = vmatprep.subr.bf16.mxu0 0
        %2047 = vmatpush1.bf16.xpose.msra.mxu0 0
        %2048 = vmatprep.subr.bf16.mxu0 0
        %2049 = vmatpush1.bf16.xpose.msra.mxu0 %v2032
        %2050 = vmatprep.subr.bf16.mxu0 0
        %2051 = vmatpush2.bf16.xpose.msra.mxu0 0
        %2052 = vmatprep.subr.bf16.mxu0 0
        %2053 = vmatpush2.bf16.xpose.msra.mxu0 0
        %2054 = vmatprep.subr.bf16.mxu0 0
        %2055 = vmatpush2.bf16.xpose.msra.mxu0 0
        %2056 = vmatprep.subr.bf16.mxu0 0
        %2057 = vmatpush2.bf16.xpose.msra.mxu0 0
        %2058 = vmatprep.subr.bf16.mxu0 0
        %2059 = vmatpush2.bf16.xpose.msra.mxu0 0
        %2060 = vmatprep.subr.bf16.mxu0 0
        %2061 = vmatpush2.bf16.xpose.msra.mxu0 0
        %2062 = vmatprep.subr.bf16.mxu0 0
        %2063 = vmatpush2.bf16.xpose.msra.mxu0 0
        %2064 = vmatprep.subr.bf16.mxu0 0
        %2065 = vmatpush2.bf16.xpose.msra.mxu0 0
        %2066 = vmatprep.mubr.bf16.mxu0 0
        %2067 = vmatmul.mubr.bf16.gmra.mxu0 %v2029
        %v2068 = vpop.f32.mrf.mxu0
        %v2069 = vadd.f32 %v1803, %v2068
        %v2070 = vpop.f32.mrf.mxu0
        %v2071 = vpop.f32.mrf.mxu0
        %v2072 = vpop.f32.mrf.mxu0
        %2073 = vdwg.mxu0
        %v2074 = vsel %vm1561, %v2069, -inf
        %2075 = vmax.xlane.f32.xlu0 %v2074
        %v2076 = vpop.xlane.xlu0 %2075
        %v2077 = vsub.f32 %v2069, %v2076
        %v2078 = vmul.f32 %v2077, 1.442695
        %v2079 = vpow.pop %v2078
        %v2080 = vsel %vm1561, %v2079, 0.0
        %2081 = vadd.xlane.f32.xlu0 %v2080
        %v2082 = vpop.xlane.xlu0 %2081
        %v2083 = vrcp.pop %v2082
        %v2084 = vmul.f32 %v2079, %v2083
        %v2085 = vpack.c.bf16 %v2084, %v2084
        %s2086 = scalar_lea.vmem %s1018, 8 [#allocation29]
        %2087 = vst.msk [vmem:[%s2086] sm:$0xf] %vm1864, %v2085
        %2088 = vrot.lane.b32.xlu0 %v1805, 80
        %v2089 = vpop.permute.xlu0 %2088
        %v2092 = vsel %vm1561, %v2085, 0
        %2094 = vmatprep.subr.bf16.mxu0 0
        %2095 = vmatpush1.bf16.msra.mxu0 0
        %2096 = vmatprep.subr.bf16.mxu0 0
        %2097 = vmatpush1.bf16.msra.mxu0 0
        %2098 = vmatprep.subr.bf16.mxu0 0
        %2099 = vmatpush1.bf16.msra.mxu0 0
        %2100 = vmatprep.subr.bf16.mxu0 0
        %2101 = vmatpush1.bf16.msra.mxu0 0
        %2102 = vmatprep.subr.bf16.mxu0 0
        %2103 = vmatpush1.bf16.msra.mxu0 0
        %2104 = vmatprep.subr.bf16.mxu0 0
        %2105 = vmatpush1.bf16.msra.mxu0 0
        %2106 = vmatprep.subr.bf16.mxu0 0
        %2107 = vmatpush1.bf16.msra.mxu0 0
        %2108 = vmatprep.subr.bf16.mxu0 0
        %2109 = vmatpush1.bf16.msra.mxu0 %v2089
        %2110 = vmatprep.subr.bf16.mxu0 0
        %2111 = vmatpush2.bf16.msra.mxu0 0
        %2112 = vmatprep.subr.bf16.mxu0 0
        %2113 = vmatpush2.bf16.msra.mxu0 0
        %2114 = vmatprep.subr.bf16.mxu0 0
        %2115 = vmatpush2.bf16.msra.mxu0 0
        %2116 = vmatprep.subr.bf16.mxu0 0
        %2117 = vmatpush2.bf16.msra.mxu0 0
        %2118 = vmatprep.subr.bf16.mxu0 0
        %2119 = vmatpush2.bf16.msra.mxu0 0
        %2120 = vmatprep.subr.bf16.mxu0 0
        %2121 = vmatpush2.bf16.msra.mxu0 0
        %2122 = vmatprep.subr.bf16.mxu0 0
        %2123 = vmatpush2.bf16.msra.mxu0 0
        %2124 = vmatprep.subr.bf16.mxu0 0
        %2125 = vmatpush2.bf16.msra.mxu0 0
        %2126 = vmatprep.mubr.bf16.mxu0 0
        %2127 = vmatmul.mubr.bf16.gmra.mxu0 %v2092
        %v2128 = vpop.f32.mrf.mxu0
        %v2129 = vadd.f32 0.0, %v2128
        %v2130 = vpop.f32.mrf.mxu0
        %v2131 = vpop.f32.mrf.mxu0
        %v2132 = vpop.f32.mrf.mxu0
        %2133 = vdwg.mxu0
        %2134 = vrot.lane.b32.xlu0 %v1804, 104
        %v2135 = vpop.permute.xlu0 %2134
        %2136 = vrot.lane.b32.xlu0 %v1805, 104
        %v2137 = vpop.permute.xlu0 %2136
        %v2139 = vsel %vm1102, %v2135, 0
        %v2142 = vsel %vm1102, %v2137, 0
        %2144 = vmatprep.subr.bf16.mxu0 0
        %2145 = vmatpush1.bf16.xpose.msra.mxu0 0
        %2146 = vmatprep.subr.bf16.mxu0 0
        %2147 = vmatpush1.bf16.xpose.msra.mxu0 0
        %2148 = vmatprep.subr.bf16.mxu0 0
        %2149 = vmatpush1.bf16.xpose.msra.mxu0 0
        %2150 = vmatprep.subr.bf16.mxu0 0
        %2151 = vmatpush1.bf16.xpose.msra.mxu0 0
        %2152 = vmatprep.subr.bf16.mxu0 0
        %2153 = vmatpush1.bf16.xpose.msra.mxu0 0
        %2154 = vmatprep.subr.bf16.mxu0 0
        %2155 = vmatpush1.bf16.xpose.msra.mxu0 0
        %2156 = vmatprep.subr.bf16.mxu0 0
        %2157 = vmatpush1.bf16.xpose.msra.mxu0 0
        %2158 = vmatprep.subr.bf16.mxu0 0
        %2159 = vmatpush1.bf16.xpose.msra.mxu0 %v2142
        %2160 = vmatprep.subr.bf16.mxu0 0
        %2161 = vmatpush2.bf16.xpose.msra.mxu0 0
        %2162 = vmatprep.subr.bf16.mxu0 0
        %2163 = vmatpush2.bf16.xpose.msra.mxu0 0
        %2164 = vmatprep.subr.bf16.mxu0 0
        %2165 = vmatpush2.bf16.xpose.msra.mxu0 0
        %2166 = vmatprep.subr.bf16.mxu0 0
        %2167 = vmatpush2.bf16.xpose.msra.mxu0 0
        %2168 = vmatprep.subr.bf16.mxu0 0
        %2169 = vmatpush2.bf16.xpose.msra.mxu0 0
        %2170 = vmatprep.subr.bf16.mxu0 0
        %2171 = vmatpush2.bf16.xpose.msra.mxu0 0
        %2172 = vmatprep.subr.bf16.mxu0 0
        %2173 = vmatpush2.bf16.xpose.msra.mxu0 0
        %2174 = vmatprep.subr.bf16.mxu0 0
        %2175 = vmatpush2.bf16.xpose.msra.mxu0 0
        %2176 = vmatprep.mubr.bf16.mxu0 0
        %2177 = vmatmul.mubr.bf16.gmra.mxu0 %v2139
        %v2178 = vpop.f32.mrf.mxu0
        %v2179 = vadd.f32 %v1803, %v2178
        %v2180 = vpop.f32.mrf.mxu0
        %v2181 = vpop.f32.mrf.mxu0
        %v2182 = vpop.f32.mrf.mxu0
        %2183 = vdwg.mxu0
        %v2184 = vsel %vm1561, %v2179, -inf
        %2185 = vmax.xlane.f32.xlu0 %v2184
        %v2186 = vpop.xlane.xlu0 %2185
        %v2187 = vsub.f32 %v2179, %v2186
        %v2188 = vmul.f32 %v2187, 1.442695
        %v2189 = vpow.pop %v2188
        %v2190 = vsel %vm1561, %v2189, 0.0
        %2191 = vadd.xlane.f32.xlu0 %v2190
        %v2192 = vpop.xlane.xlu0 %2191
        %v2193 = vrcp.pop %v2192
        %v2194 = vmul.f32 %v2189, %v2193
        %v2195 = vpack.c.bf16 %v2194, %v2194
        %s2196 = scalar_lea.vmem %s1018, 12 [#allocation29]
        %2197 = vst.msk [vmem:[%s2196] sm:$0xf] %vm1864, %v2195
        %2198 = vrot.lane.b32.xlu0 %v1805, 72
        %v2199 = vpop.permute.xlu0 %2198
        %v2202 = vsel %vm1561, %v2195, 0
        %2204 = vmatprep.subr.bf16.mxu0 0
        %2205 = vmatpush1.bf16.msra.mxu0 0
        %2206 = vmatprep.subr.bf16.mxu0 0
        %2207 = vmatpush1.bf16.msra.mxu0 0
        %2208 = vmatprep.subr.bf16.mxu0 0
        %2209 = vmatpush1.bf16.msra.mxu0 0
        %2210 = vmatprep.subr.bf16.mxu0 0
        %2211 = vmatpush1.bf16.msra.mxu0 0
        %2212 = vmatprep.subr.bf16.mxu0 0
        %2213 = vmatpush1.bf16.msra.mxu0 0
        %2214 = vmatprep.subr.bf16.mxu0 0
        %2215 = vmatpush1.bf16.msra.mxu0 0
        %2216 = vmatprep.subr.bf16.mxu0 0
        %2217 = vmatpush1.bf16.msra.mxu0 0
        %2218 = vmatprep.subr.bf16.mxu0 0
        %2219 = vmatpush1.bf16.msra.mxu0 %v2199
        %2220 = vmatprep.subr.bf16.mxu0 0
        %2221 = vmatpush2.bf16.msra.mxu0 0
        %2222 = vmatprep.subr.bf16.mxu0 0
        %2223 = vmatpush2.bf16.msra.mxu0 0
        %2224 = vmatprep.subr.bf16.mxu0 0
        %2225 = vmatpush2.bf16.msra.mxu0 0
        %2226 = vmatprep.subr.bf16.mxu0 0
        %2227 = vmatpush2.bf16.msra.mxu0 0
        %2228 = vmatprep.subr.bf16.mxu0 0
        %2229 = vmatpush2.bf16.msra.mxu0 0
        %2230 = vmatprep.subr.bf16.mxu0 0
        %2231 = vmatpush2.bf16.msra.mxu0 0
        %2232 = vmatprep.subr.bf16.mxu0 0
        %2233 = vmatpush2.bf16.msra.mxu0 0
        %2234 = vmatprep.subr.bf16.mxu0 0
        %2235 = vmatpush2.bf16.msra.mxu0 0
        %2236 = vmatprep.mubr.bf16.mxu0 0
        %2237 = vmatmul.mubr.bf16.gmra.mxu0 %v2202
        %v2238 = vpop.f32.mrf.mxu0
        %v2239 = vadd.f32 0.0, %v2238
        %v2240 = vpop.f32.mrf.mxu0
        %v2241 = vpop.f32.mrf.mxu0
        %v2242 = vpop.f32.mrf.mxu0
        %2243 = vdwg.mxu0
        %2245 = vrot.lane.b32.xlu0 %v2019, 8
        %v2246 = vpop.permute.xlu0 %2245
        %2249 = vrot.lane.b32.xlu0 %v2129, 16
        %v2250 = vpop.permute.xlu0 %2249
        %2253 = vrot.lane.b32.xlu0 %v2239, 24
        %v2254 = vpop.permute.xlu0 %2253
        %v2256 = vsel %vm1102, %v1908, %v2246
        %v2257 = vsel %vm1561, %v2256, %v2250
        %v2258 = vsel %vm1563, %v2257, %v2254
        %v2259 = vpack.c.bf16 %v2258, %v2258
        %v2260 = vld [vmem:[#allocation16] sm:$0xf]
        %v2261 = vld [vmem:[#allocation16 + $0x4] sm:$0xf]
        %v2262 = vld [vmem:[#allocation16 + $0x8] sm:$0xf]
        %v2263 = vld [vmem:[#allocation16 + $0xc] sm:$0xf]
        %v2264 = vld [vmem:[#allocation17] sm:$0x1]
        %v2266 = vlaneseq
        %v2267 = vshrl.u32 %v2266, 7
        %v2268 = vsub.s32 0, %v2267
        %v2269 = vrot.slane %v2264, %v2268
        %v2275 = vunpack.c.l.b16 %v2260
        %v2276 = vunpack.c.l.b16 %v2261
        %v2277 = vunpack.c.l.b16 %v2262
        %v2278 = vunpack.c.l.b16 %v2263
        %v2279 = vpack.c.b16 %v2276, %v2275
        %v2280 = vpack.c.b16 %v2278, %v2277
        %v2284 = vsel %vm1052, %v2259, 0
        %2286 = vmatprep.subr.bf16.mxu0 0
        %2287 = vmatpush1.bf16.msra.mxu0 0
        %2288 = vmatprep.subr.bf16.mxu0 0
        %2289 = vmatpush1.bf16.msra.mxu0 0
        %2290 = vmatprep.subr.bf16.mxu0 0
        %2291 = vmatpush1.bf16.msra.mxu0 0
        %2292 = vmatprep.subr.bf16.mxu0 0
        %2293 = vmatpush1.bf16.msra.mxu0 0
        %2294 = vmatprep.subr.bf16.mxu0 0
        %2295 = vmatpush1.bf16.msra.mxu0 0
        %2296 = vmatprep.subr.bf16.mxu0 0
        %2297 = vmatpush1.bf16.msra.mxu0 0
        %2298 = vmatprep.subr.bf16.mxu0 0
        %2299 = vmatpush1.bf16.msra.mxu0 %v2280
        %2300 = vmatprep.subr.bf16.mxu0 0
        %2301 = vmatpush1.bf16.msra.mxu0 %v2279
        %2302 = vmatprep.subr.bf16.mxu0 0
        %2303 = vmatpush2.bf16.msra.mxu0 0
        %2304 = vmatprep.subr.bf16.mxu0 0
        %2305 = vmatpush2.bf16.msra.mxu0 0
        %2306 = vmatprep.subr.bf16.mxu0 0
        %2307 = vmatpush2.bf16.msra.mxu0 0
        %2308 = vmatprep.subr.bf16.mxu0 0
        %2309 = vmatpush2.bf16.msra.mxu0 0
        %2310 = vmatprep.subr.bf16.mxu0 0
        %2311 = vmatpush2.bf16.msra.mxu0 0
        %2312 = vmatprep.subr.bf16.mxu0 0
        %2313 = vmatpush2.bf16.msra.mxu0 0
        %2314 = vmatprep.subr.bf16.mxu0 0
        %2315 = vmatpush2.bf16.msra.mxu0 0
        %2316 = vmatprep.subr.bf16.mxu0 0
        %2317 = vmatpush2.bf16.msra.mxu0 0
        %2318 = vmatprep.mubr.bf16.mxu0 0
        %2319 = vmatmul.mubr.bf16.gmra.mxu0 %v2284
        %v2320 = vpop.f32.mrf.mxu0
        %v2321 = vadd.f32 %v2269, %v2320
        %v2322 = vpop.f32.mrf.mxu0
        %v2323 = vpop.f32.mrf.mxu0
        %v2324 = vpop.f32.mrf.mxu0
        %2325 = vdwg.mxu0
        %v2326 = vadd.f32 %v1662, %v2321
        %v2327 = vld [vmem:[#allocation22] sm:$0x1]
        %v2328 = vld [vmem:[#allocation23] sm:$0x1]
        %v2329 = vsel %vm1052, %v2326, 0.0
        %2330 = vadd.xlane.f32.xlu0 %v2329
        %v2331 = vpop.xlane.xlu0 %2330
        %v2332 = vmul.f32 %v2331, %v1638
        %v2333 = vsub.f32 %v2326, %v2332
        %v2334 = vmul.f32 %v2333, %v2333
        %v2335 = vsel %vm1052, %v2334, 0.0
        %2336 = vadd.xlane.f32.xlu0 %v2335
        %v2337 = vpop.xlane.xlu0 %2336
        %v2338 = vmul.f32 %v2337, %v1638
        %v2339 = vadd.f32 %v2338, 1e-05
        %v2340 = vrsqrt.pop %v2339
        %v2341 = vmul.f32 %v2333, %v2340
        %v2343 = vlaneseq
        %v2344 = vshrl.u32 %v2343, 7
        %v2345 = vsub.s32 0, %v2344
        %v2346 = vrot.slane %v2327, %v2345
        %v2348 = vmul.f32 %v2341, %v2346
        %v2350 = vlaneseq
        %v2351 = vshrl.u32 %v2350, 7
        %v2352 = vsub.s32 0, %v2351
        %v2353 = vrot.slane %v2328, %v2352
        %v2355 = vadd.f32 %v2348, %v2353
        %v2356 = vpack.c.bf16 %v2355, %v2355
        %v2357 = vld [vmem:[%s20] sm:$0xf]
        %v2358 = vld [vmem:[%s20 + $0x4] sm:$0xf]
        %v2359 = vld [vmem:[%s20 + $0x8] sm:$0xf]
        %v2360 = vld [vmem:[%s20 + $0xc] sm:$0xf]
        %v2361 = vld [vmem:[%s21] sm:$0x1]
        %v2363 = vlaneseq
        %v2364 = vshrl.u32 %v2363, 7
        %v2365 = vsub.s32 0, %v2364
        %v2366 = vrot.slane %v2361, %v2365
        %v2372 = vunpack.c.l.b16 %v2357
        %v2373 = vunpack.c.l.b16 %v2358
        %v2374 = vunpack.c.l.b16 %v2359
        %v2375 = vunpack.c.l.b16 %v2360
        %v2376 = vpack.c.b16 %v2373, %v2372
        %v2377 = vpack.c.b16 %v2375, %v2374
        %v2381 = vsel %vm1052, %v2356, 0
        %2383 = vmatprep.subr.bf16.mxu0 0
        %2384 = vmatpush1.bf16.msra.mxu0 0
        %2385 = vmatprep.subr.bf16.mxu0 0
        %2386 = vmatpush1.bf16.msra.mxu0 0
        %2387 = vmatprep.subr.bf16.mxu0 0
        %2388 = vmatpush1.bf16.msra.mxu0 0
        %2389 = vmatprep.subr.bf16.mxu0 0
        %2390 = vmatpush1.bf16.msra.mxu0 0
        %2391 = vmatprep.subr.bf16.mxu0 0
        %2392 = vmatpush1.bf16.msra.mxu0 0
        %2393 = vmatprep.subr.bf16.mxu0 0
        %2394 = vmatpush1.bf16.msra.mxu0 0
        %2395 = vmatprep.subr.bf16.mxu0 0
        %2396 = vmatpush1.bf16.msra.mxu0 %v2377
        %2397 = vmatprep.subr.bf16.mxu0 0
        %2398 = vmatpush1.bf16.msra.mxu0 %v2376
        %2399 = vmatprep.subr.bf16.mxu0 0
        %2400 = vmatpush2.bf16.msra.mxu0 0
        %2401 = vmatprep.subr.bf16.mxu0 0
        %2402 = vmatpush2.bf16.msra.mxu0 0
        %2403 = vmatprep.subr.bf16.mxu0 0
        %2404 = vmatpush2.bf16.msra.mxu0 0
        %2405 = vmatprep.subr.bf16.mxu0 0
        %2406 = vmatpush2.bf16.msra.mxu0 0
        %2407 = vmatprep.subr.bf16.mxu0 0
        %2408 = vmatpush2.bf16.msra.mxu0 0
        %2409 = vmatprep.subr.bf16.mxu0 0
        %2410 = vmatpush2.bf16.msra.mxu0 0
        %2411 = vmatprep.subr.bf16.mxu0 0
        %2412 = vmatpush2.bf16.msra.mxu0 0
        %2413 = vmatprep.subr.bf16.mxu0 0
        %2414 = vmatpush2.bf16.msra.mxu0 0
        %2415 = vmatprep.mubr.bf16.mxu0 0
        %2416 = vmatmul.mubr.bf16.gmra.mxu0 %v2381
        %v2417 = vpop.f32.mrf.mxu0
        %v2418 = vadd.f32 %v2366, %v2417
        %v2419 = vpop.f32.mrf.mxu0
        %v2420 = vpop.f32.mrf.mxu0
        %v2421 = vpop.f32.mrf.mxu0
        %2422 = vdwg.mxu0
        %v2423 = vmul.f32 %v2418, 0.5
        %v2424 = vmul.f32 %v2418, 0.044715
        %v2425 = vmul.f32 %v2424, %v2418
        %v2426 = vmul.f32 %v2425, %v2418
        %v2427 = vadd.f32 %v2418, %v2426
        %v2428 = vmul.f32 %v2427, 0.7978846
        %v2429 = vtanh.pop %v2428
        %v2430 = vadd.f32 %v2429, 1.0
        %v2431 = vmul.f32 %v2423, %v2430
        %v2432 = vpack.c.bf16 %v2431, %v2431
        %v2433 = vld [vmem:[%s22] sm:$0xf]
        %v2434 = vld [vmem:[%s22 + $0x4] sm:$0xf]
        %v2435 = vld [vmem:[%s22 + $0x8] sm:$0xf]
        %v2436 = vld [vmem:[%s22 + $0xc] sm:$0xf]
        %v2437 = vld [vmem:[%s22 + $0x10] sm:$0xf]
        %v2438 = vld [vmem:[%s22 + $0x14] sm:$0xf]
        %v2439 = vld [vmem:[%s22 + $0x18] sm:$0xf]
        %v2440 = vld [vmem:[%s22 + $0x1c] sm:$0xf]
        %v2441 = vld [vmem:[%s23] sm:$0x1]
        %v2443 = vlaneseq
        %v2444 = vshrl.u32 %v2443, 7
        %v2445 = vsub.s32 0, %v2444
        %v2446 = vrot.slane %v2441, %v2445
        %v2456 = vunpack.c.l.b16 %v2433
        %v2457 = vunpack.c.l.b16 %v2434
        %v2458 = vunpack.c.l.b16 %v2435
        %v2459 = vunpack.c.l.b16 %v2436
        %v2460 = vunpack.c.l.b16 %v2437
        %v2461 = vunpack.c.l.b16 %v2438
        %v2462 = vunpack.c.l.b16 %v2439
        %v2463 = vunpack.c.l.b16 %v2440
        %v2464 = vpack.c.b16 %v2457, %v2456
        %v2465 = vpack.c.b16 %v2459, %v2458
        %v2466 = vpack.c.b16 %v2461, %v2460
        %v2467 = vpack.c.b16 %v2463, %v2462
        %vm2472 = vcmask 523264
        %v2474 = vsel %vm2472, %v2432, 0
        %2476 = vmatprep.subr.bf16.mxu0 0
        %2477 = vmatpush1.bf16.msra.mxu0 0
        %2478 = vmatprep.subr.bf16.mxu0 0
        %2479 = vmatpush1.bf16.msra.mxu0 0
        %2480 = vmatprep.subr.bf16.mxu0 0
        %2481 = vmatpush1.bf16.msra.mxu0 0
        %2482 = vmatprep.subr.bf16.mxu0 0
        %2483 = vmatpush1.bf16.msra.mxu0 0
        %2484 = vmatprep.subr.bf16.mxu0 0
        %2485 = vmatpush1.bf16.msra.mxu0 %v2467
        %2486 = vmatprep.subr.bf16.mxu0 0
        %2487 = vmatpush1.bf16.msra.mxu0 %v2466
        %2488 = vmatprep.subr.bf16.mxu0 0
        %2489 = vmatpush1.bf16.msra.mxu0 %v2465
        %2490 = vmatprep.subr.bf16.mxu0 0
        %2491 = vmatpush1.bf16.msra.mxu0 %v2464
        %2492 = vmatprep.subr.bf16.mxu0 0
        %2493 = vmatpush2.bf16.msra.mxu0 0
        %2494 = vmatprep.subr.bf16.mxu0 0
        %2495 = vmatpush2.bf16.msra.mxu0 0
        %2496 = vmatprep.subr.bf16.mxu0 0
        %2497 = vmatpush2.bf16.msra.mxu0 0
        %2498 = vmatprep.subr.bf16.mxu0 0
        %2499 = vmatpush2.bf16.msra.mxu0 0
        %2500 = vmatprep.subr.bf16.mxu0 0
        %2501 = vmatpush2.bf16.msra.mxu0 0
        %2502 = vmatprep.subr.bf16.mxu0 0
        %2503 = vmatpush2.bf16.msra.mxu0 0
        %2504 = vmatprep.subr.bf16.mxu0 0
        %2505 = vmatpush2.bf16.msra.mxu0 0
        %2506 = vmatprep.subr.bf16.mxu0 0
        %2507 = vmatpush2.bf16.msra.mxu0 0
        %2508 = vmatprep.mubr.bf16.mxu0 0
        %2509 = vmatmul.mubr.bf16.gmra.mxu0 %v2474
        %v2510 = vpop.f32.mrf.mxu0
        %v2511 = vadd.f32 %v2446, %v2510
        %v2512 = vpop.f32.mrf.mxu0
        %v2513 = vpop.f32.mrf.mxu0
        %v2514 = vpop.f32.mrf.mxu0
        %2515 = vdwg.mxu0
        %v2516 = vadd.f32 %v2355, %v2511
        %v2517 = vld [vmem:[#allocation25] sm:$0x1]
        %v2518 = vld [vmem:[%s19] sm:$0x1]
        %v2519 = vsel %vm1052, %v2516, 0.0
        %2520 = vadd.xlane.f32.xlu0 %v2519
        %v2521 = vpop.xlane.xlu0 %2520
        %v2522 = vmul.f32 %v2521, %v1638
        %v2523 = vsub.f32 %v2516, %v2522
        %v2524 = vmul.f32 %v2523, %v2523
        %v2525 = vsel %vm1052, %v2524, 0.0
        %2526 = vadd.xlane.f32.xlu0 %v2525
        %v2527 = vpop.xlane.xlu0 %2526
        %v2528 = vmul.f32 %v2527, %v1638
        %v2529 = vadd.f32 %v2528, 1e-05
        %v2530 = vrsqrt.pop %v2529
        %v2531 = vmul.f32 %v2523, %v2530
        %v2533 = vlaneseq
        %v2534 = vshrl.u32 %v2533, 7
        %v2535 = vsub.s32 0, %v2534
        %v2536 = vrot.slane %v2517, %v2535
        %v2538 = vmul.f32 %v2531, %v2536
        %v2540 = vlaneseq
        %v2541 = vshrl.u32 %v2540, 7
        %v2542 = vsub.s32 0, %v2541
        %v2543 = vrot.slane %v2518, %v2542
        %v2545 = vadd.f32 %v2538, %v2543
        %2546 = vst.msk [vmem:[%s1004] sm:$0xff] %vm1052, %v2545
        %s2547 = sand.u32 %s576, 1
        %s2548 = scalar_lea.sflag [#allocation4], %s2547
        %s2549 = sand.u32 %s576, 1
        %s2550 = smul.addr %s2549, 8
        %s2551 = scalar_lea.vmem [#allocation26], %s2550
        %s2552 = sand.u32 %s54, 1
        %s2553 = scalar_lea.sflag [#allocation28], %s2552
        %s2554 = sand.u32 %s602, 1
        %s2555 = smul.addr %s2554, 16
        %s2556 = scalar_lea.vmem [#allocation27], %s2555
        %s2557 = sand.u32 %s54, 1
        %s2558 = scalar_lea.sflag [#allocation28], %s2557
        %s2559 = sand.u32 %s628, 1
        %s2560 = smul.addr %s2559, 16
        %s2561 = scalar_lea.vmem [#allocation29], %s2560
        // Predicated region
        $region177: #{tpu_custom_call.1} parent=115 // pred_check
          %p2562 = pneg %p586
        $region178: #{tpu_custom_call.1} parent=115 // pred_check_branch
          %2564 = sbr.rel (%p2562) target = $region180
        $region179: #{tpu_custom_call.1} parent=115 // pred_region
          %s2566 = ssub.s32 128, 128
          %2567 = vsyncadd %s2548, %s2566
          %s2568 = smul.addr %s54, 128
          %s2569 = scalar_lea.hbm %s24, %s2568
          %s2571 = sshll.u32 %s2551, 4
          %s2572 = int_to_ptr.vmem [resolvable:$true] %s2571
          %2574 = dma.vmem_to_hbm [thread:$0]  %s2572, 128, %s2569, %s2548
        $region180: #{tpu_custom_call.1} parent=115 // pred_fallthru
          _
        // Predicated region
        $region181: #{tpu_custom_call.1} parent=115 // pred_check
          %p2575 = pneg %p612
        $region182: #{tpu_custom_call.1} parent=115 // pred_check_branch
          %2577 = sbr.rel (%p2575) target = $region184
        $region183: #{tpu_custom_call.1} parent=115 // pred_region
          %s2579 = ssub.s32 256, 256
          %2580 = vsyncadd %s2553, %s2579
          %s2581 = smul.addr %s54, 4
          %s2582 = smul.addr %s2581, 64
          %s2583 = scalar_lea.hbm %s25, %s2582
          %s2584 = sshll.u32 %s2556, 4
          %s2585 = int_to_ptr.vmem [resolvable:$true] %s2584
          %2590 = dma.vmem_to_hbm [thread:$0]  %s2585, 256, %s2583, %s2553, 64, 64, 4
        $region184: #{tpu_custom_call.1} parent=115 // pred_fallthru
          _
        // Predicated region
        $region185: #{tpu_custom_call.1} parent=115 // pred_check
          %p2591 = pneg %p638
        $region186: #{tpu_custom_call.1} parent=115 // pred_check_branch
          %2593 = sbr.rel (%p2591) target = $region188
        $region187: #{tpu_custom_call.1} parent=115 // pred_region
          %s2595 = ssub.s32 256, 256
          %2596 = vsyncadd %s2558, %s2595
          %s2597 = smul.addr %s54, 4
          %s2598 = smul.addr %s2597, 64
          %s2599 = scalar_lea.hbm %s26, %s2598
          %s2600 = sshll.u32 %s2561, 4
          %s2601 = int_to_ptr.vmem [resolvable:$true] %s2600
          %2606 = dma.vmem_to_hbm [thread:$0]  %s2601, 256, %s2599, %s2558, 64, 64, 4
        $region188: #{tpu_custom_call.1} parent=115 // pred_fallthru
          _
      $region116: #{tpu_custom_call.1} parent=5 // pred_fallthru
        _
      %p2607 = scmp.le.s32.totalorder 2, %s49
      // Predicated region
      $region189: #{tpu_custom_call.1} parent=5 // pred_check
        %p2608 = pneg %p2607
      $region190: #{tpu_custom_call.1} parent=5 // pred_check_branch
        %2610 = sbr.rel (%p2608) target = $region192
      $region191: #{tpu_custom_call.1} parent=5 // pred_region
        %s2611 = ssub.s32 %s49, 2
        // Predicated region
        $region193: #{tpu_custom_call.1} parent=191 // pred_check
          %p2612 = pneg %p592
        $region194: #{tpu_custom_call.1} parent=191 // pred_check_branch
          %2614 = sbr.rel (%p2612) target = $region196
        $region195: #{tpu_custom_call.1} parent=191 // pred_region
          %s2615 = sand.u32 %s577, 1
          %s2616 = scalar_lea.sflag [#allocation4], %s2615
          %s2617 = sand.u32 %s577, 1
          %s2618 = smul.addr %s2617, 8
          %s2619 = scalar_lea.vmem [#allocation26], %s2618
          %2620 = dma.done %s2616, 128
        $region196: #{tpu_custom_call.1} parent=191 // pred_fallthru
          _
        // Predicated region
        $region197: #{tpu_custom_call.1} parent=191 // pred_check
          %p2621 = pneg %p618
        $region198: #{tpu_custom_call.1} parent=191 // pred_check_branch
          %2623 = sbr.rel (%p2621) target = $region200
        $region199: #{tpu_custom_call.1} parent=191 // pred_region
          %s2624 = sand.u32 %s55, 1
          %s2625 = scalar_lea.sflag [#allocation28], %s2624
          %s2626 = sand.u32 %s603, 1
          %s2627 = smul.addr %s2626, 16
          %s2628 = scalar_lea.vmem [#allocation27], %s2627
          %2629 = dma.done %s2625, 256
        $region200: #{tpu_custom_call.1} parent=191 // pred_fallthru
          _
        // Predicated region
        $region201: #{tpu_custom_call.1} parent=191 // pred_check
          %p2630 = pneg %p644
        $region202: #{tpu_custom_call.1} parent=191 // pred_check_branch
          %2632 = sbr.rel (%p2630) target = $region204
        $region203: #{tpu_custom_call.1} parent=191 // pred_region
          %s2633 = sand.u32 %s55, 1
          %s2634 = scalar_lea.sflag [#allocation28], %s2633
          %s2635 = sand.u32 %s629, 1
          %s2636 = smul.addr %s2635, 16
          %s2637 = scalar_lea.vmem [#allocation29], %s2636
          %2638 = dma.done %s2634, 256
        $region204: #{tpu_custom_call.1} parent=191 // pred_fallthru
          _
      $region192: #{tpu_custom_call.1} parent=5 // pred_fallthru
        _
    $region6: #{tpu_custom_call.1} parent=1 // loop_footer
      %s53 = sadd.s32 1, %s49
    $region7: #{tpu_custom_call.1} parent=1 // loop_footer_branch
      %48 = sbr.rel target = $region3
    $region8: #{tpu_custom_call.1} parent=1 // loop_exit
      _
    %2639 = vsyncpa [#allocation3], 1
    %s2640 = scalar_lea.sflag [#allocation3], 1
    %2641 = vsyncpa %s2640, 1
    %2642 = vsyncpa [#allocation6], 1
    %2643 = vsyncpa [#allocation9], 1
    %2644 = vsyncpa [#allocation12], 1
    %2645 = vsyncpa [#allocation15], 1
    %2646 = vsyncpa [#allocation18], 1
    %2647 = vsyncpa [#allocation21], 1
    %2648 = vsyncpa [#allocation24], 1
    %2649 = vsyncpa [#allocation4], 1
    %s2650 = scalar_lea.sflag [#allocation4], 1
    %2651 = vsyncpa %s2650, 1
    %2652 = vsyncpa [#allocation28], 1
    %s2653 = scalar_lea.sflag [#allocation28], 1
    %2654 = vsyncpa %s2653, 1

</llo_original>
